<compile_context>
chip_gen: v5e
topology: v5e:2x2
jax: 0.10.0
libtpu: 0.0.40
codegen_flags: <defaults>
</compile_context>

<pallas_src>
import numpy as np

import jax
import jax.numpy as jnp
from jax.experimental import pallas as pl
from jax.experimental.pallas import tpu as pltpu

# ---------------------------------------------------------------------------
# Small-config DCCRN (all sizes are constructor arguments of the torch module)
# ---------------------------------------------------------------------------
BATCH      = 2
WIN_LEN    = 64
WIN_INC    = 16
FFT_LEN    = 64
KS         = 5                      # kernel_size
KERNEL_NUM = [2, 8, 16, 32]         # [2] + kernel_num  (3 encoder / 3 decoder layers)
RNN_UNITS  = 32
N_SAMPLES  = 160                    # input waveform length


# ---------------------------------------------------------------------------
# Pallas kernels
# ---------------------------------------------------------------------------
def _conv_bn_prelu_kernel(w_ref, p_ref, b_ref, g_ref, be_ref, a_ref, o_ref):
    """Fused complex conv (single MXU dot) + bias + BatchNorm(batch stats) + PReLU.

    w_ref : [2N(or block), 2K]  combined complex weight  [[wr, -wi], [wi, wr]]
    p_ref : [2K, M]             im2col patches (M = B*Fo*To on lanes)
    out   : [2N(or block), M]
    """
    acc = jnp.dot(w_ref[...], p_ref[...], preferred_element_type=jnp.float32) + b_ref[...]
    # one-pass batch statistics: var = E[x^2] - mean^2 (per output channel)
    mean = jnp.mean(acc, axis=1, keepdims=True)
    var = jnp.mean(acc * acc, axis=1, keepdims=True) - mean * mean
    y = (acc - mean) * jax.lax.rsqrt(var + 1e-5) * g_ref[...] + be_ref[...]
    o_ref[...] = jnp.where(y >= 0.0, y, a_ref[...] * y)


def _conv_bias_kernel(w_ref, p_ref, b_ref, o_ref):
    """Fused complex conv (single dot) + bias (last decoder layer: no BN/PReLU)."""
    o_ref[...] = jnp.dot(w_ref[...], p_ref[...], preferred_element_type=jnp.float32) + b_ref[...]


def pallas_complex_conv_layer(patches_t, layer):
    wc = layer['wc']
    n2, k2 = wc.shape
    m = patches_t.shape[1]
    has_bn = layer['gamma'] is not None
    if has_bn:
        kernel = _conv_bn_prelu_kernel
        operands = (wc, patches_t, layer['bc'], layer['gamma'], layer['beta'], layer['alpha'])
    else:
        kernel = _conv_bias_kernel
        operands = (wc, patches_t, layer['bc'])

    # 2-block split over the output-channel axis (sublane-tileable only when
    # each half is a multiple of 8).  BN stats are per-channel, so exact.
    # 'parallel' lets v7x's two TensorCores take one block each; on v5e/v6e it
    # is just two cheap sequential steps.
    if n2 % 16 == 0:
        nb = n2 // 2
        w_spec = pl.BlockSpec((nb, k2), lambda i: (i, 0))
        p_spec = pl.BlockSpec((k2, m), lambda i: (0, 0))
        ch_spec = pl.BlockSpec((nb, 1), lambda i: (i, 0))
        a_spec = pl.BlockSpec((1, 1), lambda i: (0, 0))
        in_specs = [w_spec, p_spec, ch_spec] + ([ch_spec, ch_spec, a_spec] if has_bn else [])
        return pl.pallas_call(
            kernel,
            out_shape=jax.ShapeDtypeStruct((n2, m), jnp.float32),
            grid=(2,),
            in_specs=in_specs,
            out_specs=pl.BlockSpec((nb, m), lambda i: (i, 0)),
            compiler_params=pltpu.CompilerParams(dimension_semantics=("parallel",)),
        )(*operands)

    return pl.pallas_call(
        kernel, out_shape=jax.ShapeDtypeStruct((n2, m), jnp.float32))(*operands)


def pallas_lstm_enhance(x_tbi, lp):
    """2-layer LSTM (batch_first=False) + `tranform` Linear, all in ONE kernel.

    Layer-1 input projection and the output Linear are single wide MXU dots;
    only the small recurrent dots run inside the (static, unrolled) time loop.
    """
    T, B, I = x_tbi.shape
    H = RNN_UNITS
    D = lp['wt_t'].shape[1]

    def kernel(x_ref, wih1_ref, b1_ref, whh1_ref, w2_ref, b2_ref, wt_ref, bt_ref,
               o_ref, g1buf, h2seq):
        # hoisted layer-1 input projection for all timesteps (one wide dot)
        g1buf[...] = (jnp.dot(x_ref[...], wih1_ref[...], preferred_element_type=jnp.float32)
                      + b1_ref[...])

        def gates_update(g, c_prev):
            # one full-width sigmoid + tanh (whole-vreg EUP), then gate slices
            s = 1.0 / (1.0 + jnp.exp(-g))
            th = jnp.tanh(g)
            i = s[:, 0 * H:1 * H]
            f = s[:, 1 * H:2 * H]
            gg = th[:, 2 * H:3 * H]
            o = s[:, 3 * H:4 * H]
            c_new = f * c_prev + i * gg
            return o * jnp.tanh(c_new), c_new

        z = jnp.zeros((B, H), jnp.float32)
        h1, c1, h2, c2 = z, z, z, z
        for t in range(T):                       # static unroll: all slices static
            g1 = (g1buf[t * B:(t + 1) * B, :]
                  + jnp.dot(h1, whh1_ref[...], preferred_element_type=jnp.float32))
            h1, c1 = gates_update(g1, c1)
            # stacked layer-2 weight: one dot instead of two on the critical path
            hcat = jnp.concatenate([h1, h2], axis=1)
            g2 = (jnp.dot(hcat, w2_ref[...], preferred_element_type=jnp.float32)
                  + b2_ref[...])
            h2, c2 = gates_update(g2, c2)
            h2seq[t * B:(t + 1) * B, :] = h2
        # hoisted output projection (tranform Linear), lane-dense output
        o_ref[...] = (jnp.dot(h2seq[...], wt_ref[...], preferred_element_type=jnp.float32)
                      + bt_ref[...])

    out = pl.pallas_call(
        kernel,
        out_shape=jax.ShapeDtypeStruct((T * B, D), jnp.float32),
        scratch_shapes=[pltpu.VMEM((T * B, 4 * H), jnp.float32),
                        pltpu.VMEM((T * B, H), jnp.float32)],
    )(x_tbi.reshape(T * B, I), lp['wih1_t'], lp['b1'], lp['whh1_t'],
      lp['w2_t'], lp['b2'], lp['wt_t'], lp['bt'])
    return out.reshape(T, B, D)


# ---------------------------------------------------------------------------
# STFT / iSTFT  (framing and overlap-add folded into precomputed matrices)
# ---------------------------------------------------------------------------
def _stft_kernel(x_ref, kbig_ref, o_ref):
    o_ref[...] = jnp.dot(x_ref[...], kbig_ref[...], preferred_element_type=jnp.float32)


def _istft_kernel(sp_ref, kinv_ref, o_ref):
    wav = jnp.dot(sp_ref[...], kinv_ref[...], preferred_element_type=jnp.float32)
    o_ref[...] = jnp.clip(wav, -1.0, 1.0)


def conv_stft(x, kbig):
    """specs = x @ Kbig : framing + window + DFT as one MXU dot."""
    B = x.shape[0]
    tfc = kbig.shape[1]
    C = FFT_LEN + 2
    specs = pl.pallas_call(
        _stft_kernel, out_shape=jax.ShapeDtypeStruct((B, tfc), jnp.float32))(x, kbig)
    return specs.reshape(B, tfc // C, C).transpose(0, 2, 1)        # [B, fft+2, Tf]


def conv_istft(spec, kbig_inv):
    """wav = clip(spec_flat @ KbigInv): iDFT + overlap-add + norm + trim fused."""
    B, C, T = spec.shape
    sp = spec.transpose(0, 2, 1).reshape(B, T * C)                 # time-major per row
    return pl.pallas_call(
        _istft_kernel,
        out_shape=jax.ShapeDtypeStruct((B, kbig_inv.shape[1]), jnp.float32))(sp, kbig_inv)


# ---------------------------------------------------------------------------
# Glue (XLA): im2col (single cheap fusion per layer) and transposed-conv
# dilation.  Activations live in channel-first [C, B, F, T].
# ---------------------------------------------------------------------------
def im2col_T(xp, kh, kw, sh, sw):
    C, B, Hp, Wp = xp.shape
    Ho = (Hp - kh) // sh + 1
    Wo = (Wp - kw) // sw + 1
    cols = []
    for dy in range(kh):
        for dx in range(kw):
            cols.append(xp[:, :, dy:dy + sh * (Ho - 1) + 1:sh, dx:dx + sw * (Wo - 1) + 1:sw])
    p = jnp.stack(cols, axis=1)                                  # [C, kh*kw, B, Ho, Wo]
    return p.reshape(C * kh * kw, B * Ho * Wo), Ho, Wo


def complex_conv2d(x, layer):
    """ComplexConv2d: kernel (5,2), stride (2,1), sym freq pad 2, causal time pad 1."""
    B = x.shape[1]
    xp = jnp.pad(x, ((0, 0), (0, 0), (2, 2), (1, 0)))
    p, Fo, To = im2col_T(xp, KS, 2, 2, 1)
    out = pallas_complex_conv_layer(p, layer)                    # [2N, B*Fo*To]
    return out.reshape(-1, B, Fo, To)


def complex_conv_transpose2d(x, layer):
    """ComplexConvTranspose2d: kernel (5,2), stride (2,1), padding (2,0),
    output_padding (1,0) == dilate freq + pad + stride-1 conv with flipped weights."""
    C2, B, F, T = x.shape
    xd = jnp.zeros((C2, B, 2 * F - 1, T), x.dtype).at[:, :, ::2, :].set(x)
    xp = jnp.pad(xd, ((0, 0), (0, 0), (2, 2 + 1), (1, 1)))
    p, Fo, To = im2col_T(xp, KS, 2, 1, 1)
    out = pallas_complex_conv_layer(p, layer)
    return out.reshape(-1, B, Fo, To)


# ---------------------------------------------------------------------------
# Parameter init (deterministic; ALL weight preprocessing hoisted here)
# ---------------------------------------------------------------------------
def make_stft_matrices():
    n = np.arange(WIN_LEN)
    window = (0.5 - 0.5 * np.cos(2.0 * np.pi * n / WIN_LEN)) ** 0.5     # sqrt periodic hann
    fourier_basis = np.fft.rfft(np.eye(FFT_LEN))[:WIN_LEN]
    kernel = np.concatenate([np.real(fourier_basis), np.imag(fourier_basis)], axis=1).T
    inv_kernel = np.linalg.pinv(kernel).T
    K = kernel * window                                                 # [fft+2, win_len]
    Ki = inv_kernel * window                                            # [fft+2, win_len]

    C = FFT_LEN + 2
    pad = WIN_LEN - WIN_INC
    Tf = (N_SAMPLES + 2 * pad - WIN_LEN) // WIN_INC + 1

    # STFT: Kbig[s, t*C+c] = K[c, w] where w = s + pad - t*hop (zero-pad implicit)
    kbig = np.zeros((N_SAMPLES, Tf, C), np.float32)
    for t in range(Tf):
        for w in range(WIN_LEN):
            s = t * WIN_INC - pad + w
            if 0 <= s < N_SAMPLES:
                kbig[s, t, :] = K[:, w]
    kbig = kbig.reshape(N_SAMPLES, Tf * C)

    # iSTFT: overlap-add + 1/sum(window^2) normalization + trim folded in
    L_ola = (Tf - 1) * WIN_INC + WIN_LEN
    coff = np.zeros(L_ola)
    for t in range(Tf):
        coff[t * WIN_INC:t * WIN_INC + WIN_LEN] += window ** 2
    coff_inv = 1.0 / (coff + 1e-8)
    kbig_inv = np.zeros((Tf, C, N_SAMPLES), np.float32)
    for t in range(Tf):
        for j in range(N_SAMPLES):
            w = j + pad - t * WIN_INC
            if 0 <= w < WIN_LEN:
                kbig_inv[t, :, j] = Ki[:, w] * coff_inv[j + pad]
    kbig_inv = kbig_inv.reshape(Tf * C, N_SAMPLES)
    return kbig.astype(np.float32), kbig_inv.astype(np.float32)


def combine_complex_weight(wr, wi):
    """[Cout_h, Cin_h, kh, kw] real/imag conv weights -> fused [2N, 2*Cin_h*kh*kw]."""
    top = jnp.concatenate([wr, -wi], axis=1)
    bot = jnp.concatenate([wi, wr], axis=1)
    w = jnp.concatenate([top, bot], axis=0)                             # [2N, 2C, kh, kw]
    return w.reshape(w.shape[0], -1)


def init_params(key):
    keys = jax.random.split(key, 32)
    ki = iter(keys)
    params = {}

    kbig, kbig_inv = make_stft_matrices()
    params['stft_kbig'] = jnp.asarray(kbig)                             # [L, Tf*(fft+2)]
    params['istft_kbig'] = jnp.asarray(kbig_inv)                        # [Tf*(fft+2), L]

    kn = KERNEL_NUM
    enc = []
    for l in range(len(kn) - 1):
        cin_h, cout_h = kn[l] // 2, kn[l + 1] // 2
        wr = 0.05 * jax.random.normal(next(ki), (cout_h, cin_h, KS, 2), jnp.float32)
        wi = 0.05 * jax.random.normal(next(ki), (cout_h, cin_h, KS, 2), jnp.float32)
        enc.append(dict(
            wc=combine_complex_weight(wr, wi),
            bc=jnp.zeros((2 * cout_h, 1), jnp.float32),
            gamma=jnp.ones((2 * cout_h, 1), jnp.float32),
            beta=jnp.zeros((2 * cout_h, 1), jnp.float32),
            alpha=jnp.full((1, 1), 0.25, jnp.float32),
        ))
    params['encoder'] = enc

    dec = []
    for l in range(len(kn) - 1, 0, -1):
        cin_h, cout_h = kn[l], kn[l - 1] // 2
        wr = 0.05 * jax.random.normal(next(ki), (cin_h, cout_h, KS, 2), jnp.float32)
        wi = 0.05 * jax.random.normal(next(ki), (cin_h, cout_h, KS, 2), jnp.float32)
        # transposed conv -> equivalent conv: flip spatially, swap in/out channels
        wr_c = jnp.transpose(wr[:, :, ::-1, ::-1], (1, 0, 2, 3))
        wi_c = jnp.transpose(wi[:, :, ::-1, ::-1], (1, 0, 2, 3))
        wc = combine_complex_weight(wr_c, wi_c)
        # Fold the complex_cat channel interleave [out_r, skip_r, out_i, skip_i]
        # into a column permutation so the forward uses plain concat([out, skip]).
        h = cin_h // 2
        perm = np.concatenate([np.arange(0, h), np.arange(2 * h, 3 * h),
                               np.arange(h, 2 * h), np.arange(3 * h, 4 * h)])
        wc = wc.reshape(wc.shape[0], 2 * cin_h, KS * 2)[:, perm, :].reshape(wc.shape[0], -1)
        d = dict(wc=wc, bc=jnp.zeros((2 * cout_h, 1), jnp.float32))
        if l != 1:
            d.update(gamma=jnp.ones((2 * cout_h, 1), jnp.float32),
                     beta=jnp.zeros((2 * cout_h, 1), jnp.float32),
                     alpha=jnp.full((1, 1), 0.25, jnp.float32))
        else:
            d.update(gamma=None, beta=None, alpha=None)
        dec.append(d)
    params['decoder'] = dec

    H = RNN_UNITS
    hidden_dim = FFT_LEN // (2 ** len(kn))
    I = hidden_dim * kn[-1]
    bound = 1.0 / np.sqrt(H)

    def u(k_, shape):
        return jax.random.uniform(k_, shape, jnp.float32, -bound, bound)

    wih1 = u(next(ki), (4 * H, I)); whh1 = u(next(ki), (4 * H, H))
    bih1 = u(next(ki), (4 * H,));   bhh1 = u(next(ki), (4 * H,))
    wih2 = u(next(ki), (4 * H, H)); whh2 = u(next(ki), (4 * H, H))
    bih2 = u(next(ki), (4 * H,));   bhh2 = u(next(ki), (4 * H,))
    wt = u(next(ki), (I, H));       bt = u(next(ki), (I,))
    params['lstm'] = dict(
        wih1_t=wih1.T, b1=(bih1 + bhh1)[None, :],
        whh1_t=whh1.T,
        w2_t=jnp.concatenate([wih2.T, whh2.T], axis=0),      # [2H, 4H] stacked layer-2
        b2=(bih2 + bhh2)[None, :],
        wt_t=wt.T, bt=bt[None, :],
    )
    return params


# ---------------------------------------------------------------------------
# Full forward pass (DCCRN.forward, masking_mode='E', use_clstm=False)
# ---------------------------------------------------------------------------
def dccrn_forward(params, inputs):
    specs = conv_stft(inputs, params['stft_kbig'])               # [B, fft+2, T]
    half = FFT_LEN // 2 + 1
    real = specs[:, :half]
    imag = specs[:, half:]
    spec_mags = jnp.sqrt(real ** 2 + imag ** 2 + 1e-8)
    spec_phase = jnp.arctan2(imag, real)
    out = jnp.stack([real[:, 1:], imag[:, 1:]], axis=0)          # [2, B, fft/2, T]

    encoder_out = []
    for p in params['encoder']:
        out = complex_conv2d(out, p)                             # conv+bias+BN+PReLU fused
        encoder_out.append(out)

    C, B, F, T = out.shape
    x_rnn = out.transpose(3, 1, 0, 2).reshape(T, B, C * F)       # time-major
    x_rnn = pallas_lstm_enhance(x_rnn, params['lstm'])           # inproj + LSTM x2 + Linear
    out = x_rnn.reshape(T, B, C, F).transpose(2, 1, 3, 0)        # back to [C, B, F, T]

    for i, p in enumerate(params['decoder']):
        # complex_cat interleave is pre-folded into the decoder weights
        out = jnp.concatenate([out, encoder_out[-1 - i]], axis=0)
        out = complex_conv_transpose2d(out, p)                   # (BN+PReLU fused if present)
        out = out[..., 1:]                                       # causal time crop

    mask_real = out[0]                                           # [B, fft/2, T]
    mask_imag = out[1]
    mask_real = jnp.pad(mask_real, ((0, 0), (1, 0), (0, 0)))
    mask_imag = jnp.pad(mask_imag, ((0, 0), (1, 0), (0, 0)))

    # masking_mode == 'E'
    # TODO(synk): arctan2 / sin / cos have no reliable Mosaic lowering -> this tiny
    #             elementwise tail stays in plain JAX for exact torch semantics.
    mask_real = jnp.where(mask_real == 0.0, 1e-6, mask_real)
    mask_imag = jnp.where(mask_imag == 0.0, 1e-6, mask_imag)
    mask_mags = jnp.sqrt(mask_real ** 2 + mask_imag ** 2)
    real_phase = mask_real / (mask_mags + 1e-8)
    imag_phase = mask_imag / (mask_mags + 1e-8)
    mask_phase = jnp.arctan2(imag_phase, real_phase)
    mask_mags = jnp.tanh(mask_mags)
    est_mags = mask_mags * spec_mags
    est_phase = spec_phase + mask_phase
    real_o = est_mags * jnp.cos(est_phase)
    imag_o = est_mags * jnp.sin(est_phase)

    out_spec = jnp.concatenate([real_o, imag_o], axis=1)         # [B, fft+2, T]
    # iSTFT matmul (iDFT + overlap-add + normalization + trim) + clamp, one kernel
    return conv_istft(out_spec, params['istft_kbig'])


# ---------------------------------------------------------------------------
if __name__ == "__main__":
    key = jax.random.PRNGKey(0)
    pkey, xkey = jax.random.split(key)
    params = init_params(pkey)
    x = jax.random.uniform(xkey, (BATCH, N_SAMPLES), jnp.float32, -0.5, 0.5)

    y = jax.jit(dccrn_forward)(params, x)
    y = jax.block_until_ready(y)
    assert y.shape == (BATCH, N_SAMPLES), y.shape
    assert bool(jnp.all(jnp.isfinite(y)))
    print("KERNEL_OK")
</pallas_src>

<mosaic_0001>
module attributes {stable_mosaic.version = 11 : i64} {
  func.func @_stft_kernel(%arg0: memref<2x160xf32, #tpu.memory_space<vmem>>, %arg1: memref<160x858xf32, #tpu.memory_space<vmem>>, %arg2: memref<2x858xf32, #tpu.memory_space<vmem>>) attributes {dimension_semantics = [], scalar_prefetch = 0 : i64, scratch_operands = 0 : i64, tpu.core_type = #tpu.core_type<tc>} {
    %c0 = arith.constant 0 : index
    %c0_0 = arith.constant 0 : index
    %0 = vector.load %arg0[%c0, %c0_0] : memref<2x160xf32, #tpu.memory_space<vmem>>, vector<2x160xf32>
    %c0_1 = arith.constant 0 : index
    %c0_2 = arith.constant 0 : index
    %1 = vector.load %arg1[%c0_1, %c0_2] : memref<160x858xf32, #tpu.memory_space<vmem>>, vector<160x858xf32>
    %cst = arith.constant dense<0.000000e+00> : vector<2x858xf32>
    %2 = tpu.matmul %0, %1, %cst {dimension_numbers = #tpu.dot_dimension_numbers<[1], [0], [0], [1], [0, 0, 1, 1], [], []>} : vector<2x160xf32>, vector<160x858xf32>, vector<2x858xf32> -> vector<2x858xf32>
    %c0_3 = arith.constant 0 : index
    %c0_4 = arith.constant 0 : index
    %3 = vector.load %arg2[%c0_3, %c0_4] : memref<2x858xf32, #tpu.memory_space<vmem>>, vector<2x858xf32>
    tpu.vector_store %arg2[%c0_3, %c0_4], %2 {strides = array<i32>} : memref<2x858xf32, #tpu.memory_space<vmem>>, vector<2x858xf32>,
    return
  }
}

module attributes {stable_mosaic.version = 11 : i64} {
  func.func @_conv_bn_prelu_kernel(%arg0: memref<8x20xf32, #tpu.memory_space<vmem>>, %arg1: memref<20x416xf32, #tpu.memory_space<vmem>>, %arg2: memref<8x1xf32, #tpu.memory_space<vmem>>, %arg3: memref<8x1xf32, #tpu.memory_space<vmem>>, %arg4: memref<8x1xf32, #tpu.memory_space<vmem>>, %arg5: memref<1x1xf32, #tpu.memory_space<vmem>>, %arg6: memref<8x416xf32, #tpu.memory_space<vmem>>) attributes {dimension_semantics = [], scalar_prefetch = 0 : i64, scratch_operands = 0 : i64, tpu.core_type = #tpu.core_type<tc>} {
    %c0 = arith.constant 0 : index
    %c0_0 = arith.constant 0 : index
    %0 = vector.load %arg0[%c0, %c0_0] : memref<8x20xf32, #tpu.memory_space<vmem>>, vector<8x20xf32>
    %c0_1 = arith.constant 0 : index
    %c0_2 = arith.constant 0 : index
    %1 = vector.load %arg1[%c0_1, %c0_2] : memref<20x416xf32, #tpu.memory_space<vmem>>, vector<20x416xf32>
    %cst = arith.constant dense<0.000000e+00> : vector<8x416xf32>
    %2 = tpu.matmul %0, %1, %cst {dimension_numbers = #tpu.dot_dimension_numbers<[1], [0], [0], [1], [0, 0, 1, 1], [], []>} : vector<8x20xf32>, vector<20x416xf32>, vector<8x416xf32> -> vector<8x416xf32>
    %c0_3 = arith.constant 0 : index
    %c0_4 = arith.constant 0 : index
    %3 = vector.load %arg2[%c0_3, %c0_4] : memref<8x1xf32, #tpu.memory_space<vmem>>, vector<8x1xf32>
    %4 = vector.broadcast %3 : vector<8x1xf32> to vector<8x416xf32>
    %5 = arith.addf %2, %4 : vector<8x416xf32>
    %cst_5 = arith.constant dense<0.000000e+00> : vector<8xf32>
    %6 = vector.multi_reduction <add>, %5, %cst_5 [1] : vector<8x416xf32> to vector<8xf32>
    %7 = vector.shape_cast %6 : vector<8xf32> to vector<8x1xf32>
    %cst_6 = arith.constant 4.160000e+02 : f32
    %8 = vector.broadcast %cst_6 : f32 to vector<8x1xf32>
    %9 = arith.divf %7, %8 : vector<8x1xf32>
    %10 = arith.mulf %5, %5 : vector<8x416xf32>
    %cst_7 = arith.constant dense<0.000000e+00> : vector<8xf32>
    %11 = vector.multi_reduction <add>, %10, %cst_7 [1] : vector<8x416xf32> to vector<8xf32>
    %12 = vector.shape_cast %11 : vector<8xf32> to vector<8x1xf32>
    %cst_8 = arith.constant 4.160000e+02 : f32
    %13 = vector.broadcast %cst_8 : f32 to vector<8x1xf32>
    %14 = arith.divf %12, %13 : vector<8x1xf32>
    %15 = arith.mulf %9, %9 : vector<8x1xf32>
    %16 = arith.subf %14, %15 : vector<8x1xf32>
    %17 = vector.broadcast %9 : vector<8x1xf32> to vector<8x416xf32>
    %18 = arith.subf %5, %17 : vector<8x416xf32>
    %cst_9 = arith.constant 9.99999974E-6 : f32
    %19 = vector.broadcast %cst_9 : f32 to vector<8x1xf32>
    %20 = arith.addf %16, %19 : vector<8x1xf32>
    %21 = math.rsqrt %20 : vector<8x1xf32>
    %22 = vector.broadcast %21 : vector<8x1xf32> to vector<8x416xf32>
    %23 = arith.mulf %18, %22 : vector<8x416xf32>
    %c0_10 = arith.constant 0 : index
    %c0_11 = arith.constant 0 : index
    %24 = vector.load %arg3[%c0_10, %c0_11] : memref<8x1xf32, #tpu.memory_space<vmem>>, vector<8x1xf32>
    %25 = vector.broadcast %24 : vector<8x1xf32> to vector<8x416xf32>
    %26 = arith.mulf %23, %25 : vector<8x416xf32>
    %c0_12 = arith.constant 0 : index
    %c0_13 = arith.constant 0 : index
    %27 = vector.load %arg4[%c0_12, %c0_13] : memref<8x1xf32, #tpu.memory_space<vmem>>, vector<8x1xf32>
    %28 = vector.broadcast %27 : vector<8x1xf32> to vector<8x416xf32>
    %29 = arith.addf %26, %28 : vector<8x416xf32>
    %cst_14 = arith.constant 0.000000e+00 : f32
    %30 = vector.broadcast %cst_14 : f32 to vector<8x416xf32>
    %31 = arith.cmpf oge, %29, %30 : vector<8x416xf32>
    %c0_15 = arith.constant 0 : index
    %c0_16 = arith.constant 0 : index
    %32 = vector.load %arg5[%c0_15, %c0_16] : memref<1x1xf32, #tpu.memory_space<vmem>>, vector<1x1xf32>
    %33 = vector.broadcast %32 : vector<1x1xf32> to vector<8x416xf32>
    %34 = arith.mulf %33, %29 : vector<8x416xf32>
    %35 = arith.select %31, %29, %34 : vector<8x416xi1>, vector<8x416xf32>
    %c0_17 = arith.constant 0 : index
    %c0_18 = arith.constant 0 : index
    %36 = vector.load %arg6[%c0_17, %c0_18] : memref<8x416xf32, #tpu.memory_space<vmem>>, vector<8x416xf32>
    tpu.vector_store %arg6[%c0_17, %c0_18], %35 {strides = array<i32>} : memref<8x416xf32, #tpu.memory_space<vmem>>, vector<8x416xf32>,
    return
  }
}

module attributes {stable_mosaic.version = 11 : i64} {
  func.func @_conv_bn_prelu_kernel(%arg0: i32, %arg1: memref<8x80xf32, #tpu.memory_space<vmem>>, %arg2: memref<80x208xf32, #tpu.memory_space<vmem>>, %arg3: memref<8x1xf32, #tpu.memory_space<vmem>>, %arg4: memref<8x1xf32, #tpu.memory_space<vmem>>, %arg5: memref<8x1xf32, #tpu.memory_space<vmem>>, %arg6: memref<1x1xf32, #tpu.memory_space<vmem>>, %arg7: memref<8x208xf32, #tpu.memory_space<vmem>>) attributes {dimension_semantics = [#tpu.dimension_semantics<parallel>], iteration_bounds = array<i64: 2>, scalar_prefetch = 0 : i64, scratch_operands = 0 : i64, tpu.core_type = #tpu.core_type<tc>, window_params = [{transform_indices = @transform_0, window_bounds = array<i64: 8, 80>}, {pipeline_mode = #tpu.pipeline_mode<synchronous>, transform_indices = @transform_1, window_bounds = array<i64: 80, 208>}, {transform_indices = @transform_2, window_bounds = array<i64: 8, 1>}, {transform_indices = @transform_3, window_bounds = array<i64: 8, 1>}, {transform_indices = @transform_4, window_bounds = array<i64: 8, 1>}, {pipeline_mode = #tpu.pipeline_mode<synchronous>, transform_indices = @transform_5, window_bounds = array<i64: 1, 1>}, {transform_indices = @transform_6, window_bounds = array<i64: 8, 208>}]} {
    %c0 = arith.constant 0 : index
    %c0_0 = arith.constant 0 : index
    %0 = vector.load %arg1[%c0, %c0_0] : memref<8x80xf32, #tpu.memory_space<vmem>>, vector<8x80xf32>
    %c0_1 = arith.constant 0 : index
    %c0_2 = arith.constant 0 : index
    %1 = vector.load %arg2[%c0_1, %c0_2] : memref<80x208xf32, #tpu.memory_space<vmem>>, vector<80x208xf32>
    %cst = arith.constant dense<0.000000e+00> : vector<8x208xf32>
    %2 = tpu.matmul %0, %1, %cst {dimension_numbers = #tpu.dot_dimension_numbers<[1], [0], [0], [1], [0, 0, 1, 1], [], []>} : vector<8x80xf32>, vector<80x208xf32>, vector<8x208xf32> -> vector<8x208xf32>
    %c0_3 = arith.constant 0 : index
    %c0_4 = arith.constant 0 : index
    %3 = vector.load %arg3[%c0_3, %c0_4] : memref<8x1xf32, #tpu.memory_space<vmem>>, vector<8x1xf32>
    %4 = vector.broadcast %3 : vector<8x1xf32> to vector<8x208xf32>
    %5 = arith.addf %2, %4 : vector<8x208xf32>
    %cst_5 = arith.constant dense<0.000000e+00> : vector<8xf32>
    %6 = vector.multi_reduction <add>, %5, %cst_5 [1] : vector<8x208xf32> to vector<8xf32>
    %7 = vector.shape_cast %6 : vector<8xf32> to vector<8x1xf32>
    %cst_6 = arith.constant 2.080000e+02 : f32
    %8 = vector.broadcast %cst_6 : f32 to vector<8x1xf32>
    %9 = arith.divf %7, %8 : vector<8x1xf32>
    %10 = arith.mulf %5, %5 : vector<8x208xf32>
    %cst_7 = arith.constant dense<0.000000e+00> : vector<8xf32>
    %11 = vector.multi_reduction <add>, %10, %cst_7 [1] : vector<8x208xf32> to vector<8xf32>
    %12 = vector.shape_cast %11 : vector<8xf32> to vector<8x1xf32>
    %cst_8 = arith.constant 2.080000e+02 : f32
    %13 = vector.broadcast %cst_8 : f32 to vector<8x1xf32>
    %14 = arith.divf %12, %13 : vector<8x1xf32>
    %15 = arith.mulf %9, %9 : vector<8x1xf32>
    %16 = arith.subf %14, %15 : vector<8x1xf32>
    %17 = vector.broadcast %9 : vector<8x1xf32> to vector<8x208xf32>
    %18 = arith.subf %5, %17 : vector<8x208xf32>
    %cst_9 = arith.constant 9.99999974E-6 : f32
    %19 = vector.broadcast %cst_9 : f32 to vector<8x1xf32>
    %20 = arith.addf %16, %19 : vector<8x1xf32>
    %21 = math.rsqrt %20 : vector<8x1xf32>
    %22 = vector.broadcast %21 : vector<8x1xf32> to vector<8x208xf32>
    %23 = arith.mulf %18, %22 : vector<8x208xf32>
    %c0_10 = arith.constant 0 : index
    %c0_11 = arith.constant 0 : index
    %24 = vector.load %arg4[%c0_10, %c0_11] : memref<8x1xf32, #tpu.memory_space<vmem>>, vector<8x1xf32>
    %25 = vector.broadcast %24 : vector<8x1xf32> to vector<8x208xf32>
    %26 = arith.mulf %23, %25 : vector<8x208xf32>
    %c0_12 = arith.constant 0 : index
    %c0_13 = arith.constant 0 : index
    %27 = vector.load %arg5[%c0_12, %c0_13] : memref<8x1xf32, #tpu.memory_space<vmem>>, vector<8x1xf32>
    %28 = vector.broadcast %27 : vector<8x1xf32> to vector<8x208xf32>
    %29 = arith.addf %26, %28 : vector<8x208xf32>
    %cst_14 = arith.constant 0.000000e+00 : f32
    %30 = vector.broadcast %cst_14 : f32 to vector<8x208xf32>
    %31 = arith.cmpf oge, %29, %30 : vector<8x208xf32>
    %c0_15 = arith.constant 0 : index
    %c0_16 = arith.constant 0 : index
    %32 = vector.load %arg6[%c0_15, %c0_16] : memref<1x1xf32, #tpu.memory_space<vmem>>, vector<1x1xf32>
    %33 = vector.broadcast %32 : vector<1x1xf32> to vector<8x208xf32>
    %34 = arith.mulf %33, %29 : vector<8x208xf32>
    %35 = arith.select %31, %29, %34 : vector<8x208xi1>, vector<8x208xf32>
    %c0_17 = arith.constant 0 : index
    %c0_18 = arith.constant 0 : index
    %36 = vector.load %arg7[%c0_17, %c0_18] : memref<8x208xf32, #tpu.memory_space<vmem>>, vector<8x208xf32>
    tpu.vector_store %arg7[%c0_17, %c0_18], %35 {strides = array<i32>} : memref<8x208xf32, #tpu.memory_space<vmem>>, vector<8x208xf32>,
    return
  }
  func.func @transform_0(%arg0: i32) -> (i32, i32) {
    %c0_i32 = arith.constant 0 : i32
    %c0_i32_0 = arith.constant 0 : i32
    return %arg0, %c0_i32 : i32, i32
  }
  func.func @transform_1(%arg0: i32) -> (i32, i32) {
    %c0_i32 = arith.constant 0 : i32
    %c0_i32_0 = arith.constant 0 : i32
    %c0_i32_1 = arith.constant 0 : i32
    return %c0_i32, %c0_i32_0 : i32, i32
  }
  func.func @transform_2(%arg0: i32) -> (i32, i32) {
    %c0_i32 = arith.constant 0 : i32
    %c0_i32_0 = arith.constant 0 : i32
    return %arg0, %c0_i32 : i32, i32
  }
  func.func @transform_3(%arg0: i32) -> (i32, i32) {
    %c0_i32 = arith.constant 0 : i32
    %c0_i32_0 = arith.constant 0 : i32
    return %arg0, %c0_i32 : i32, i32
  }
  func.func @transform_4(%arg0: i32) -> (i32, i32) {
    %c0_i32 = arith.constant 0 : i32
    %c0_i32_0 = arith.constant 0 : i32
    return %arg0, %c0_i32 : i32, i32
  }
  func.func @transform_5(%arg0: i32) -> (i32, i32) {
    %c0_i32 = arith.constant 0 : i32
    %c0_i32_0 = arith.constant 0 : i32
    %c0_i32_1 = arith.constant 0 : i32
    return %c0_i32, %c0_i32_0 : i32, i32
  }
  func.func @transform_6(%arg0: i32) -> (i32, i32) {
    %c0_i32 = arith.constant 0 : i32
    %c0_i32_0 = arith.constant 0 : i32
    return %arg0, %c0_i32 : i32, i32
  }
}

module attributes {stable_mosaic.version = 11 : i64} {
  func.func @_conv_bn_prelu_kernel(%arg0: i32, %arg1: memref<16x160xf32, #tpu.memory_space<vmem>>, %arg2: memref<160x104xf32, #tpu.memory_space<vmem>>, %arg3: memref<16x1xf32, #tpu.memory_space<vmem>>, %arg4: memref<16x1xf32, #tpu.memory_space<vmem>>, %arg5: memref<16x1xf32, #tpu.memory_space<vmem>>, %arg6: memref<1x1xf32, #tpu.memory_space<vmem>>, %arg7: memref<16x104xf32, #tpu.memory_space<vmem>>) attributes {dimension_semantics = [#tpu.dimension_semantics<parallel>], iteration_bounds = array<i64: 2>, scalar_prefetch = 0 : i64, scratch_operands = 0 : i64, tpu.core_type = #tpu.core_type<tc>, window_params = [{transform_indices = @transform_0, window_bounds = array<i64: 16, 160>}, {pipeline_mode = #tpu.pipeline_mode<synchronous>, transform_indices = @transform_1, window_bounds = array<i64: 160, 104>}, {transform_indices = @transform_2, window_bounds = array<i64: 16, 1>}, {transform_indices = @transform_3, window_bounds = array<i64: 16, 1>}, {transform_indices = @transform_4, window_bounds = array<i64: 16, 1>}, {pipeline_mode = #tpu.pipeline_mode<synchronous>, transform_indices = @transform_5, window_bounds = array<i64: 1, 1>}, {transform_indices = @transform_6, window_bounds = array<i64: 16, 104>}]} {
    %c0 = arith.constant 0 : index
    %c0_0 = arith.constant 0 : index
    %0 = vector.load %arg1[%c0, %c0_0] : memref<16x160xf32, #tpu.memory_space<vmem>>, vector<16x160xf32>
    %c0_1 = arith.constant 0 : index
    %c0_2 = arith.constant 0 : index
    %1 = vector.load %arg2[%c0_1, %c0_2] : memref<160x104xf32, #tpu.memory_space<vmem>>, vector<160x104xf32>
    %cst = arith.constant dense<0.000000e+00> : vector<16x104xf32>
    %2 = tpu.matmul %0, %1, %cst {dimension_numbers = #tpu.dot_dimension_numbers<[1], [0], [0], [1], [0, 0, 1, 1], [], []>} : vector<16x160xf32>, vector<160x104xf32>, vector<16x104xf32> -> vector<16x104xf32>
    %c0_3 = arith.constant 0 : index
    %c0_4 = arith.constant 0 : index
    %3 = vector.load %arg3[%c0_3, %c0_4] : memref<16x1xf32, #tpu.memory_space<vmem>>, vector<16x1xf32>
    %4 = vector.broadcast %3 : vector<16x1xf32> to vector<16x104xf32>
    %5 = arith.addf %2, %4 : vector<16x104xf32>
    %cst_5 = arith.constant dense<0.000000e+00> : vector<16xf32>
    %6 = vector.multi_reduction <add>, %5, %cst_5 [1] : vector<16x104xf32> to vector<16xf32>
    %7 = vector.shape_cast %6 : vector<16xf32> to vector<16x1xf32>
    %cst_6 = arith.constant 1.040000e+02 : f32
    %8 = vector.broadcast %cst_6 : f32 to vector<16x1xf32>
    %9 = arith.divf %7, %8 : vector<16x1xf32>
    %10 = arith.mulf %5, %5 : vector<16x104xf32>
    %cst_7 = arith.constant dense<0.000000e+00> : vector<16xf32>
    %11 = vector.multi_reduction <add>, %10, %cst_7 [1] : vector<16x104xf32> to vector<16xf32>
    %12 = vector.shape_cast %11 : vector<16xf32> to vector<16x1xf32>
    %cst_8 = arith.constant 1.040000e+02 : f32
    %13 = vector.broadcast %cst_8 : f32 to vector<16x1xf32>
    %14 = arith.divf %12, %13 : vector<16x1xf32>
    %15 = arith.mulf %9, %9 : vector<16x1xf32>
    %16 = arith.subf %14, %15 : vector<16x1xf32>
    %17 = vector.broadcast %9 : vector<16x1xf32> to vector<16x104xf32>
    %18 = arith.subf %5, %17 : vector<16x104xf32>
    %cst_9 = arith.constant 9.99999974E-6 : f32
    %19 = vector.broadcast %cst_9 : f32 to vector<16x1xf32>
    %20 = arith.addf %16, %19 : vector<16x1xf32>
    %21 = math.rsqrt %20 : vector<16x1xf32>
    %22 = vector.broadcast %21 : vector<16x1xf32> to vector<16x104xf32>
    %23 = arith.mulf %18, %22 : vector<16x104xf32>
    %c0_10 = arith.constant 0 : index
    %c0_11 = arith.constant 0 : index
    %24 = vector.load %arg4[%c0_10, %c0_11] : memref<16x1xf32, #tpu.memory_space<vmem>>, vector<16x1xf32>
    %25 = vector.broadcast %24 : vector<16x1xf32> to vector<16x104xf32>
    %26 = arith.mulf %23, %25 : vector<16x104xf32>
    %c0_12 = arith.constant 0 : index
    %c0_13 = arith.constant 0 : index
    %27 = vector.load %arg5[%c0_12, %c0_13] : memref<16x1xf32, #tpu.memory_space<vmem>>, vector<16x1xf32>
    %28 = vector.broadcast %27 : vector<16x1xf32> to vector<16x104xf32>
    %29 = arith.addf %26, %28 : vector<16x104xf32>
    %cst_14 = arith.constant 0.000000e+00 : f32
    %30 = vector.broadcast %cst_14 : f32 to vector<16x104xf32>
    %31 = arith.cmpf oge, %29, %30 : vector<16x104xf32>
    %c0_15 = arith.constant 0 : index
    %c0_16 = arith.constant 0 : index
    %32 = vector.load %arg6[%c0_15, %c0_16] : memref<1x1xf32, #tpu.memory_space<vmem>>, vector<1x1xf32>
    %33 = vector.broadcast %32 : vector<1x1xf32> to vector<16x104xf32>
    %34 = arith.mulf %33, %29 : vector<16x104xf32>
    %35 = arith.select %31, %29, %34 : vector<16x104xi1>, vector<16x104xf32>
    %c0_17 = arith.constant 0 : index
    %c0_18 = arith.constant 0 : index
    %36 = vector.load %arg7[%c0_17, %c0_18] : memref<16x104xf32, #tpu.memory_space<vmem>>, vector<16x104xf32>
    tpu.vector_store %arg7[%c0_17, %c0_18], %35 {strides = array<i32>} : memref<16x104xf32, #tpu.memory_space<vmem>>, vector<16x104xf32>,
    return
  }
  func.func @transform_0(%arg0: i32) -> (i32, i32) {
    %c0_i32 = arith.constant 0 : i32
    %c0_i32_0 = arith.constant 0 : i32
    return %arg0, %c0_i32 : i32, i32
  }
  func.func @transform_1(%arg0: i32) -> (i32, i32) {
    %c0_i32 = arith.constant 0 : i32
    %c0_i32_0 = arith.constant 0 : i32
    %c0_i32_1 = arith.constant 0 : i32
    return %c0_i32, %c0_i32_0 : i32, i32
  }
  func.func @transform_2(%arg0: i32) -> (i32, i32) {
    %c0_i32 = arith.constant 0 : i32
    %c0_i32_0 = arith.constant 0 : i32
    return %arg0, %c0_i32 : i32, i32
  }
  func.func @transform_3(%arg0: i32) -> (i32, i32) {
    %c0_i32 = arith.constant 0 : i32
    %c0_i32_0 = arith.constant 0 : i32
    return %arg0, %c0_i32 : i32, i32
  }
  func.func @transform_4(%arg0: i32) -> (i32, i32) {
    %c0_i32 = arith.constant 0 : i32
    %c0_i32_0 = arith.constant 0 : i32
    return %arg0, %c0_i32 : i32, i32
  }
  func.func @transform_5(%arg0: i32) -> (i32, i32) {
    %c0_i32 = arith.constant 0 : i32
    %c0_i32_0 = arith.constant 0 : i32
    %c0_i32_1 = arith.constant 0 : i32
    return %c0_i32, %c0_i32_0 : i32, i32
  }
  func.func @transform_6(%arg0: i32) -> (i32, i32) {
    %c0_i32 = arith.constant 0 : i32
    %c0_i32_0 = arith.constant 0 : i32
    return %arg0, %c0_i32 : i32, i32
  }
}

module attributes {stable_mosaic.version = 11 : i64} {
  func.func @kernel(%arg0: memref<26x128xf32, #tpu.memory_space<vmem>>, %arg1: memref<128x128xf32, #tpu.memory_space<vmem>>, %arg2: memref<1x128xf32, #tpu.memory_space<vmem>>, %arg3: memref<32x128xf32, #tpu.memory_space<vmem>>, %arg4: memref<64x128xf32, #tpu.memory_space<vmem>>, %arg5: memref<1x128xf32, #tpu.memory_space<vmem>>, %arg6: memref<32x128xf32, #tpu.memory_space<vmem>>, %arg7: memref<1x128xf32, #tpu.memory_space<vmem>>, %arg8: memref<26x128xf32, #tpu.memory_space<vmem>>, %arg9: memref<26x128xf32, #tpu.memory_space<vmem>>, %arg10: memref<26x32xf32, #tpu.memory_space<vmem>>) attributes {dimension_semantics = [], scalar_prefetch = 0 : i64, scratch_operands = 2 : i64, tpu.core_type = #tpu.core_type<tc>} {
    %c0 = arith.constant 0 : index
    %c0_0 = arith.constant 0 : index
    %0 = vector.load %arg0[%c0, %c0_0] : memref<26x128xf32, #tpu.memory_space<vmem>>, vector<26x128xf32>
    %c0_1 = arith.constant 0 : index
    %c0_2 = arith.constant 0 : index
    %1 = vector.load %arg1[%c0_1, %c0_2] : memref<128x128xf32, #tpu.memory_space<vmem>>, vector<128x128xf32>
    %cst = arith.constant dense<0.000000e+00> : vector<26x128xf32>
    %2 = tpu.matmul %0, %1, %cst {dimension_numbers = #tpu.dot_dimension_numbers<[1], [0], [0], [1], [0, 0, 1, 1], [], []>} : vector<26x128xf32>, vector<128x128xf32>, vector<26x128xf32> -> vector<26x128xf32>
    %c0_3 = arith.constant 0 : index
    %c0_4 = arith.constant 0 : index
    %3 = vector.load %arg2[%c0_3, %c0_4] : memref<1x128xf32, #tpu.memory_space<vmem>>, vector<1x128xf32>
    %4 = vector.broadcast %3 : vector<1x128xf32> to vector<26x128xf32>
    %5 = arith.addf %2, %4 : vector<26x128xf32>
    %c0_5 = arith.constant 0 : index
    %c0_6 = arith.constant 0 : index
    %6 = vector.load %arg9[%c0_5, %c0_6] : memref<26x128xf32, #tpu.memory_space<vmem>>, vector<26x128xf32>
    tpu.vector_store %arg9[%c0_5, %c0_6], %5 {strides = array<i32>} : memref<26x128xf32, #tpu.memory_space<vmem>>, vector<26x128xf32>,
    %cst_7 = arith.constant 0.000000e+00 : f32
    %7 = vector.broadcast %cst_7 : f32 to vector<2x32xf32>
    %c0_8 = arith.constant 0 : index
    %c0_9 = arith.constant 0 : index
    %8 = vector.load %arg9[%c0_8, %c0_9] : memref<26x128xf32, #tpu.memory_space<vmem>>, vector<2x128xf32>
    %c0_10 = arith.constant 0 : index
    %c0_11 = arith.constant 0 : index
    %9 = vector.load %arg3[%c0_10, %c0_11] : memref<32x128xf32, #tpu.memory_space<vmem>>, vector<32x128xf32>
    %cst_12 = arith.constant dense<0.000000e+00> : vector<2x128xf32>
    %10 = tpu.matmul %7, %9, %cst_12 {dimension_numbers = #tpu.dot_dimension_numbers<[1], [0], [0], [1], [0, 0, 1, 1], [], []>} : vector<2x32xf32>, vector<32x128xf32>, vector<2x128xf32> -> vector<2x128xf32>
    %11 = arith.addf %8, %10 : vector<2x128xf32>
    %cst_13 = arith.constant 0.000000e+00 : f32
    %12 = vector.broadcast %cst_13 : f32 to vector<2x128xf32>
    %13 = arith.subf %12, %11 : vector<2x128xf32>
    %14 = math.exp %13 : vector<2x128xf32>
    %cst_14 = arith.constant 1.000000e+00 : f32
    %15 = vector.broadcast %cst_14 : f32 to vector<2x128xf32>
    %16 = arith.addf %15, %14 : vector<2x128xf32>
    %cst_15 = arith.constant 1.000000e+00 : f32
    %17 = vector.broadcast %cst_15 : f32 to vector<2x128xf32>
    %18 = arith.divf %17, %16 : vector<2x128xf32>
    %19 = math.tanh %11 : vector<2x128xf32>
    %20 = vector.extract_strided_slice %18 {offsets = [0, 0], sizes = [2, 32], strides = [1, 1]} : vector<2x128xf32> to vector<2x32xf32>
    %21 = vector.extract_strided_slice %18 {offsets = [0, 32], sizes = [2, 32], strides = [1, 1]} : vector<2x128xf32> to vector<2x32xf32>
    %22 = vector.extract_strided_slice %19 {offsets = [0, 64], sizes = [2, 32], strides = [1, 1]} : vector<2x128xf32> to vector<2x32xf32>
    %23 = vector.extract_strided_slice %18 {offsets = [0, 96], sizes = [2, 32], strides = [1, 1]} : vector<2x128xf32> to vector<2x32xf32>
    %24 = arith.mulf %21, %7 : vector<2x32xf32>
    %25 = arith.mulf %20, %22 : vector<2x32xf32>
    %26 = arith.addf %24, %25 : vector<2x32xf32>
    %27 = math.tanh %26 : vector<2x32xf32>
    %28 = arith.mulf %23, %27 : vector<2x32xf32>
    %29 = tpu.concatenate %28, %7 in 1 : vector<2x32xf32>, vector<2x32xf32> -> vector<2x64xf32>
    %c0_16 = arith.constant 0 : index
    %c0_17 = arith.constant 0 : index
    %30 = vector.load %arg4[%c0_16, %c0_17] : memref<64x128xf32, #tpu.memory_space<vmem>>, vector<64x128xf32>
    %cst_18 = arith.constant dense<0.000000e+00> : vector<2x128xf32>
    %31 = tpu.matmul %29, %30, %cst_18 {dimension_numbers = #tpu.dot_dimension_numbers<[1], [0], [0], [1], [0, 0, 1, 1], [], []>} : vector<2x64xf32>, vector<64x128xf32>, vector<2x128xf32> -> vector<2x128xf32>
    %c0_19 = arith.constant 0 : index
    %c0_20 = arith.constant 0 : index
    %32 = vector.load %arg5[%c0_19, %c0_20] : memref<1x128xf32, #tpu.memory_space<vmem>>, vector<1x128xf32>
    %33 = vector.broadcast %32 : vector<1x128xf32> to vector<2x128xf32>
    %34 = arith.addf %31, %33 : vector<2x128xf32>
    %cst_21 = arith.constant 0.000000e+00 : f32
    %35 = vector.broadcast %cst_21 : f32 to vector<2x128xf32>
    %36 = arith.subf %35, %34 : vector<2x128xf32>
    %37 = math.exp %36 : vector<2x128xf32>
    %cst_22 = arith.constant 1.000000e+00 : f32
    %38 = vector.broadcast %cst_22 : f32 to vector<2x128xf32>
    %39 = arith.addf %38, %37 : vector<2x128xf32>
    %cst_23 = arith.constant 1.000000e+00 : f32
    %40 = vector.broadcast %cst_23 : f32 to vector<2x128xf32>
    %41 = arith.divf %40, %39 : vector<2x128xf32>
    %42 = math.tanh %34 : vector<2x128xf32>
    %43 = vector.extract_strided_slice %41 {offsets = [0, 0], sizes = [2, 32], strides = [1, 1]} : vector<2x128xf32> to vector<2x32xf32>
    %44 = vector.extract_strided_slice %41 {offsets = [0, 32], sizes = [2, 32], strides = [1, 1]} : vector<2x128xf32> to vector<2x32xf32>
    %45 = vector.extract_strided_slice %42 {offsets = [0, 64], sizes = [2, 32], strides = [1, 1]} : vector<2x128xf32> to vector<2x32xf32>
    %46 = vector.extract_strided_slice %41 {offsets = [0, 96], sizes = [2, 32], strides = [1, 1]} : vector<2x128xf32> to vector<2x32xf32>
    %47 = arith.mulf %44, %7 : vector<2x32xf32>
    %48 = arith.mulf %43, %45 : vector<2x32xf32>
    %49 = arith.addf %47, %48 : vector<2x32xf32>
    %50 = math.tanh %49 : vector<2x32xf32>
    %51 = arith.mulf %46, %50 : vector<2x32xf32>
    %c0_24 = arith.constant 0 : index
    %c0_25 = arith.constant 0 : index
    %52 = vector.load %arg10[%c0_24, %c0_25] : memref<26x32xf32, #tpu.memory_space<vmem>>, vector<2x32xf32>
    tpu.vector_store %arg10[%c0_24, %c0_25], %51 {strides = array<i32>} : memref<26x32xf32, #tpu.memory_space<vmem>>, vector<2x32xf32>,
    %c2 = arith.constant 2 : index
    %c0_26 = arith.constant 0 : index
    %53 = vector.load %arg9[%c2, %c0_26] : memref<26x128xf32, #tpu.memory_space<vmem>>, vector<2x128xf32>
    %c0_27 = arith.constant 0 : index
    %c0_28 = arith.constant 0 : index
    %54 = vector.load %arg3[%c0_27, %c0_28] : memref<32x128xf32, #tpu.memory_space<vmem>>, vector<32x128xf32>
    %cst_29 = arith.constant dense<0.000000e+00> : vector<2x128xf32>
    %55 = tpu.matmul %28, %54, %cst_29 {dimension_numbers = #tpu.dot_dimension_numbers<[1], [0], [0], [1], [0, 0, 1, 1], [], []>} : vector<2x32xf32>, vector<32x128xf32>, vector<2x128xf32> -> vector<2x128xf32>
    %56 = arith.addf %53, %55 : vector<2x128xf32>
    %cst_30 = arith.constant 0.000000e+00 : f32
    %57 = vector.broadcast %cst_30 : f32 to vector<2x128xf32>
    %58 = arith.subf %57, %56 : vector<2x128xf32>
    %59 = math.exp %58 : vector<2x128xf32>
    %cst_31 = arith.constant 1.000000e+00 : f32
    %60 = vector.broadcast %cst_31 : f32 to vector<2x128xf32>
    %61 = arith.addf %60, %59 : vector<2x128xf32>
    %cst_32 = arith.constant 1.000000e+00 : f32
    %62 = vector.broadcast %cst_32 : f32 to vector<2x128xf32>
    %63 = arith.divf %62, %61 : vector<2x128xf32>
    %64 = math.tanh %56 : vector<2x128xf32>
    %65 = vector.extract_strided_slice %63 {offsets = [0, 0], sizes = [2, 32], strides = [1, 1]} : vector<2x128xf32> to vector<2x32xf32>
    %66 = vector.extract_strided_slice %63 {offsets = [0, 32], sizes = [2, 32], strides = [1, 1]} : vector<2x128xf32> to vector<2x32xf32>
    %67 = vector.extract_strided_slice %64 {offsets = [0, 64], sizes = [2, 32], strides = [1, 1]} : vector<2x128xf32> to vector<2x32xf32>
    %68 = vector.extract_strided_slice %63 {offsets = [0, 96], sizes = [2, 32], strides = [1, 1]} : vector<2x128xf32> to vector<2x32xf32>
    %69 = arith.mulf %66, %26 : vector<2x32xf32>
    %70 = arith.mulf %65, %67 : vector<2x32xf32>
    %71 = arith.addf %69, %70 : vector<2x32xf32>
    %72 = math.tanh %71 : vector<2x32xf32>
    %73 = arith.mulf %68, %72 : vector<2x32xf32>
    %74 = tpu.concatenate %73, %51 in 1 : vector<2x32xf32>, vector<2x32xf32> -> vector<2x64xf32>
    %c0_33 = arith.constant 0 : index
    %c0_34 = arith.constant 0 : index
    %75 = vector.load %arg4[%c0_33, %c0_34] : memref<64x128xf32, #tpu.memory_space<vmem>>, vector<64x128xf32>
    %cst_35 = arith.constant dense<0.000000e+00> : vector<2x128xf32>
    %76 = tpu.matmul %74, %75, %cst_35 {dimension_numbers = #tpu.dot_dimension_numbers<[1], [0], [0], [1], [0, 0, 1, 1], [], []>} : vector<2x64xf32>, vector<64x128xf32>, vector<2x128xf32> -> vector<2x128xf32>
    %c0_36 = arith.constant 0 : index
    %c0_37 = arith.constant 0 : index
    %77 = vector.load %arg5[%c0_36, %c0_37] : memref<1x128xf32, #tpu.memory_space<vmem>>, vector<1x128xf32>
    %78 = vector.broadcast %77 : vector<1x128xf32> to vector<2x128xf32>
    %79 = arith.addf %76, %78 : vector<2x128xf32>
    %cst_38 = arith.constant 0.000000e+00 : f32
    %80 = vector.broadcast %cst_38 : f32 to vector<2x128xf32>
    %81 = arith.subf %80, %79 : vector<2x128xf32>
    %82 = math.exp %81 : vector<2x128xf32>
    %cst_39 = arith.constant 1.000000e+00 : f32
    %83 = vector.broadcast %cst_39 : f32 to vector<2x128xf32>
    %84 = arith.addf %83, %82 : vector<2x128xf32>
    %cst_40 = arith.constant 1.000000e+00 : f32
    %85 = vector.broadcast %cst_40 : f32 to vector<2x128xf32>
    %86 = arith.divf %85, %84 : vector<2x128xf32>
    %87 = math.tanh %79 : vector<2x128xf32>
    %88 = vector.extract_strided_slice %86 {offsets = [0, 0], sizes = [2, 32], strides = [1, 1]} : vector<2x128xf32> to vector<2x32xf32>
    %89 = vector.extract_strided_slice %86 {offsets = [0, 32], sizes = [2, 32], strides = [1, 1]} : vector<2x128xf32> to vector<2x32xf32>
    %90 = vector.extract_strided_slice %87 {offsets = [0, 64], sizes = [2, 32], strides = [1, 1]} : vector<2x128xf32> to vector<2x32xf32>
    %91 = vector.extract_strided_slice %86 {offsets = [0, 96], sizes = [2, 32], strides = [1, 1]} : vector<2x128xf32> to vector<2x32xf32>
    %92 = arith.mulf %89, %49 : vector<2x32xf32>
    %93 = arith.mulf %88, %90 : vector<2x32xf32>
    %94 = arith.addf %92, %93 : vector<2x32xf32>
    %95 = math.tanh %94 : vector<2x32xf32>
    %96 = arith.mulf %91, %95 : vector<2x32xf32>
    %c2_41 = arith.constant 2 : index
    %c0_42 = arith.constant 0 : index
    %97 = vector.load %arg10[%c2_41, %c0_42] : memref<26x32xf32, #tpu.memory_space<vmem>>, vector<2x32xf32>
    tpu.vector_store %arg10[%c2_41, %c0_42], %96 {strides = array<i32>} : memref<26x32xf32, #tpu.memory_space<vmem>>, vector<2x32xf32>,
    %c4 = arith.constant 4 : index
    %c0_43 = arith.constant 0 : index
    %98 = vector.load %arg9[%c4, %c0_43] : memref<26x128xf32, #tpu.memory_space<vmem>>, vector<2x128xf32>
    %c0_44 = arith.constant 0 : index
    %c0_45 = arith.constant 0 : index
    %99 = vector.load %arg3[%c0_44, %c0_45] : memref<32x128xf32, #tpu.memory_space<vmem>>, vector<32x128xf32>
    %cst_46 = arith.constant dense<0.000000e+00> : vector<2x128xf32>
    %100 = tpu.matmul %73, %99, %cst_46 {dimension_numbers = #tpu.dot_dimension_numbers<[1], [0], [0], [1], [0, 0, 1, 1], [], []>} : vector<2x32xf32>, vector<32x128xf32>, vector<2x128xf32> -> vector<2x128xf32>
    %101 = arith.addf %98, %100 : vector<2x128xf32>
    %cst_47 = arith.constant 0.000000e+00 : f32
    %102 = vector.broadcast %cst_47 : f32 to vector<2x128xf32>
    %103 = arith.subf %102, %101 : vector<2x128xf32>
    %104 = math.exp %103 : vector<2x128xf32>
    %cst_48 = arith.constant 1.000000e+00 : f32
    %105 = vector.broadcast %cst_48 : f32 to vector<2x128xf32>
    %106 = arith.addf %105, %104 : vector<2x128xf32>
    %cst_49 = arith.constant 1.000000e+00 : f32
    %107 = vector.broadcast %cst_49 : f32 to vector<2x128xf32>
    %108 = arith.divf %107, %106 : vector<2x128xf32>
    %109 = math.tanh %101 : vector<2x128xf32>
    %110 = vector.extract_strided_slice %108 {offsets = [0, 0], sizes = [2, 32], strides = [1, 1]} : vector<2x128xf32> to vector<2x32xf32>
    %111 = vector.extract_strided_slice %108 {offsets = [0, 32], sizes = [2, 32], strides = [1, 1]} : vector<2x128xf32> to vector<2x32xf32>
    %112 = vector.extract_strided_slice %109 {offsets = [0, 64], sizes = [2, 32], strides = [1, 1]} : vector<2x128xf32> to vector<2x32xf32>
    %113 = vector.extract_strided_slice %108 {offsets = [0, 96], sizes = [2, 32], strides = [1, 1]} : vector<2x128xf32> to vector<2x32xf32>
    %114 = arith.mulf %111, %71 : vector<2x32xf32>
    %115 = arith.mulf %110, %112 : vector<2x32xf32>
    %116 = arith.addf %114, %115 : vector<2x32xf32>
    %117 = math.tanh %116 : vector<2x32xf32>
    %118 = arith.mulf %113, %117 : vector<2x32xf32>
    %119 = tpu.concatenate %118, %96 in 1 : vector<2x32xf32>, vector<2x32xf32> -> vector<2x64xf32>
    %c0_50 = arith.constant 0 : index
    %c0_51 = arith.constant 0 : index
    %120 = vector.load %arg4[%c0_50, %c0_51] : memref<64x128xf32, #tpu.memory_space<vmem>>, vector<64x128xf32>
    %cst_52 = arith.constant dense<0.000000e+00> : vector<2x128xf32>
    %121 = tpu.matmul %119, %120, %cst_52 {dimension_numbers = #tpu.dot_dimension_numbers<[1], [0], [0], [1], [0, 0, 1, 1], [], []>} : vector<2x64xf32>, vector<64x128xf32>, vector<2x128xf32> -> vector<2x128xf32>
    %c0_53 = arith.constant 0 : index
    %c0_54 = arith.constant 0 : index
    %122 = vector.load %arg5[%c0_53, %c0_54] : memref<1x128xf32, #tpu.memory_space<vmem>>, vector<1x128xf32>
    %123 = vector.broadcast %122 : vector<1x128xf32> to vector<2x128xf32>
    %124 = arith.addf %121, %123 : vector<2x128xf32>
    %cst_55 = arith.constant 0.000000e+00 : f32
    %125 = vector.broadcast %cst_55 : f32 to vector<2x128xf32>
    %126 = arith.subf %125, %124 : vector<2x128xf32>
    %127 = math.exp %126 : vector<2x128xf32>
    %cst_56 = arith.constant 1.000000e+00 : f32
    %128 = vector.broadcast %cst_56 : f32 to vector<2x128xf32>
    %129 = arith.addf %128, %127 : vector<2x128xf32>
    %cst_57 = arith.constant 1.000000e+00 : f32
    %130 = vector.broadcast %cst_57 : f32 to vector<2x128xf32>
    %131 = arith.divf %130, %129 : vector<2x128xf32>
    %132 = math.tanh %124 : vector<2x128xf32>
    %133 = vector.extract_strided_slice %131 {offsets = [0, 0], sizes = [2, 32], strides = [1, 1]} : vector<2x128xf32> to vector<2x32xf32>
    %134 = vector.extract_strided_slice %131 {offsets = [0, 32], sizes = [2, 32], strides = [1, 1]} : vector<2x128xf32> to vector<2x32xf32>
    %135 = vector.extract_strided_slice %132 {offsets = [0, 64], sizes = [2, 32], strides = [1, 1]} : vector<2x128xf32> to vector<2x32xf32>
    %136 = vector.extract_strided_slice %131 {offsets = [0, 96], sizes = [2, 32], strides = [1, 1]} : vector<2x128xf32> to vector<2x32xf32>
    %137 = arith.mulf %134, %94 : vector<2x32xf32>
    %138 = arith.mulf %133, %135 : vector<2x32xf32>
    %139 = arith.addf %137, %138 : vector<2x32xf32>
    %140 = math.tanh %139 : vector<2x32xf32>
    %141 = arith.mulf %136, %140 : vector<2x32xf32>
    %c4_58 = arith.constant 4 : index
    %c0_59 = arith.constant 0 : index
    %142 = vector.load %arg10[%c4_58, %c0_59] : memref<26x32xf32, #tpu.memory_space<vmem>>, vector<2x32xf32>
    tpu.vector_store %arg10[%c4_58, %c0_59], %141 {strides = array<i32>} : memref<26x32xf32, #tpu.memory_space<vmem>>, vector<2x32xf32>,
    %c6 = arith.constant 6 : index
    %c0_60 = arith.constant 0 : index
    %143 = vector.load %arg9[%c6, %c0_60] : memref<26x128xf32, #tpu.memory_space<vmem>>, vector<2x128xf32>
    %c0_61 = arith.constant 0 : index
    %c0_62 = arith.constant 0 : index
    %144 = vector.load %arg3[%c0_61, %c0_62] : memref<32x128xf32, #tpu.memory_space<vmem>>, vector<32x128xf32>
    %cst_63 = arith.constant dense<0.000000e+00> : vector<2x128xf32>
    %145 = tpu.matmul %118, %144, %cst_63 {dimension_numbers = #tpu.dot_dimension_numbers<[1], [0], [0], [1], [0, 0, 1, 1], [], []>} : vector<2x32xf32>, vector<32x128xf32>, vector<2x128xf32> -> vector<2x128xf32>
    %146 = arith.addf %143, %145 : vector<2x128xf32>
    %cst_64 = arith.constant 0.000000e+00 : f32
    %147 = vector.broadcast %cst_64 : f32 to vector<2x128xf32>
    %148 = arith.subf %147, %146 : vector<2x128xf32>
    %149 = math.exp %148 : vector<2x128xf32>
    %cst_65 = arith.constant 1.000000e+00 : f32
    %150 = vector.broadcast %cst_65 : f32 to vector<2x128xf32>
    %151 = arith.addf %150, %149 : vector<2x128xf32>
    %cst_66 = arith.constant 1.000000e+00 : f32
    %152 = vector.broadcast %cst_66 : f32 to vector<2x128xf32>
    %153 = arith.divf %152, %151 : vector<2x128xf32>
    %154 = math.tanh %146 : vector<2x128xf32>
    %155 = vector.extract_strided_slice %153 {offsets = [0, 0], sizes = [2, 32], strides = [1, 1]} : vector<2x128xf32> to vector<2x32xf32>
    %156 = vector.extract_strided_slice %153 {offsets = [0, 32], sizes = [2, 32], strides = [1, 1]} : vector<2x128xf32> to vector<2x32xf32>
    %157 = vector.extract_strided_slice %154 {offsets = [0, 64], sizes = [2, 32], strides = [1, 1]} : vector<2x128xf32> to vector<2x32xf32>
    %158 = vector.extract_strided_slice %153 {offsets = [0, 96], sizes = [2, 32], strides = [1, 1]} : vector<2x128xf32> to vector<2x32xf32>
    %159 = arith.mulf %156, %116 : vector<2x32xf32>
    %160 = arith.mulf %155, %157 : vector<2x32xf32>
    %161 = arith.addf %159, %160 : vector<2x32xf32>
    %162 = math.tanh %161 : vector<2x32xf32>
    %163 = arith.mulf %158, %162 : vector<2x32xf32>
    %164 = tpu.concatenate %163, %141 in 1 : vector<2x32xf32>, vector<2x32xf32> -> vector<2x64xf32>
    %c0_67 = arith.constant 0 : index
    %c0_68 = arith.constant 0 : index
    %165 = vector.load %arg4[%c0_67, %c0_68] : memref<64x128xf32, #tpu.memory_space<vmem>>, vector<64x128xf32>
    %cst_69 = arith.constant dense<0.000000e+00> : vector<2x128xf32>
    %166 = tpu.matmul %164, %165, %cst_69 {dimension_numbers = #tpu.dot_dimension_numbers<[1], [0], [0], [1], [0, 0, 1, 1], [], []>} : vector<2x64xf32>, vector<64x128xf32>, vector<2x128xf32> -> vector<2x128xf32>
    %c0_70 = arith.constant 0 : index
    %c0_71 = arith.constant 0 : index
    %167 = vector.load %arg5[%c0_70, %c0_71] : memref<1x128xf32, #tpu.memory_space<vmem>>, vector<1x128xf32>
    %168 = vector.broadcast %167 : vector<1x128xf32> to vector<2x128xf32>
    %169 = arith.addf %166, %168 : vector<2x128xf32>
    %cst_72 = arith.constant 0.000000e+00 : f32
    %170 = vector.broadcast %cst_72 : f32 to vector<2x128xf32>
    %171 = arith.subf %170, %169 : vector<2x128xf32>
    %172 = math.exp %171 : vector<2x128xf32>
    %cst_73 = arith.constant 1.000000e+00 : f32
    %173 = vector.broadcast %cst_73 : f32 to vector<2x128xf32>
    %174 = arith.addf %173, %172 : vector<2x128xf32>
    %cst_74 = arith.constant 1.000000e+00 : f32
    %175 = vector.broadcast %cst_74 : f32 to vector<2x128xf32>
    %176 = arith.divf %175, %174 : vector<2x128xf32>
    %177 = math.tanh %169 : vector<2x128xf32>
    %178 = vector.extract_strided_slice %176 {offsets = [0, 0], sizes = [2, 32], strides = [1, 1]} : vector<2x128xf32> to vector<2x32xf32>
    %179 = vector.extract_strided_slice %176 {offsets = [0, 32], sizes = [2, 32], strides = [1, 1]} : vector<2x128xf32> to vector<2x32xf32>
    %180 = vector.extract_strided_slice %177 {offsets = [0, 64], sizes = [2, 32], strides = [1, 1]} : vector<2x128xf32> to vector<2x32xf32>
    %181 = vector.extract_strided_slice %176 {offsets = [0, 96], sizes = [2, 32], strides = [1, 1]} : vector<2x128xf32> to vector<2x32xf32>
    %182 = arith.mulf %179, %139 : vector<2x32xf32>
    %183 = arith.mulf %178, %180 : vector<2x32xf32>
    %184 = arith.addf %182, %183 : vector<2x32xf32>
    %185 = math.tanh %184 : vector<2x32xf32>
    %186 = arith.mulf %181, %185 : vector<2x32xf32>
    %c6_75 = arith.constant 6 : index
    %c0_76 = arith.constant 0 : index
    %187 = vector.load %arg10[%c6_75, %c0_76] : memref<26x32xf32, #tpu.memory_space<vmem>>, vector<2x32xf32>
    tpu.vector_store %arg10[%c6_75, %c0_76], %186 {strides = array<i32>} : memref<26x32xf32, #tpu.memory_space<vmem>>, vector<2x32xf32>,
    %c8 = arith.constant 8 : index
    %c0_77 = arith.constant 0 : index
    %188 = vector.load %arg9[%c8, %c0_77] : memref<26x128xf32, #tpu.memory_space<vmem>>, vector<2x128xf32>
    %c0_78 = arith.constant 0 : index
    %c0_79 = arith.constant 0 : index
    %189 = vector.load %arg3[%c0_78, %c0_79] : memref<32x128xf32, #tpu.memory_space<vmem>>, vector<32x128xf32>
    %cst_80 = arith.constant dense<0.000000e+00> : vector<2x128xf32>
    %190 = tpu.matmul %163, %189, %cst_80 {dimension_numbers = #tpu.dot_dimension_numbers<[1], [0], [0], [1], [0, 0, 1, 1], [], []>} : vector<2x32xf32>, vector<32x128xf32>, vector<2x128xf32> -> vector<2x128xf32>
    %191 = arith.addf %188, %190 : vector<2x128xf32>
    %cst_81 = arith.constant 0.000000e+00 : f32
    %192 = vector.broadcast %cst_81 : f32 to vector<2x128xf32>
    %193 = arith.subf %192, %191 : vector<2x128xf32>
    %194 = math.exp %193 : vector<2x128xf32>
    %cst_82 = arith.constant 1.000000e+00 : f32
    %195 = vector.broadcast %cst_82 : f32 to vector<2x128xf32>
    %196 = arith.addf %195, %194 : vector<2x128xf32>
    %cst_83 = arith.constant 1.000000e+00 : f32
    %197 = vector.broadcast %cst_83 : f32 to vector<2x128xf32>
    %198 = arith.divf %197, %196 : vector<2x128xf32>
    %199 = math.tanh %191 : vector<2x128xf32>
    %200 = vector.extract_strided_slice %198 {offsets = [0, 0], sizes = [2, 32], strides = [1, 1]} : vector<2x128xf32> to vector<2x32xf32>
    %201 = vector.extract_strided_slice %198 {offsets = [0, 32], sizes = [2, 32], strides = [1, 1]} : vector<2x128xf32> to vector<2x32xf32>
    %202 = vector.extract_strided_slice %199 {offsets = [0, 64], sizes = [2, 32], strides = [1, 1]} : vector<2x128xf32> to vector<2x32xf32>
    %203 = vector.extract_strided_slice %198 {offsets = [0, 96], sizes = [2, 32], strides = [1, 1]} : vector<2x128xf32> to vector<2x32xf32>
    %204 = arith.mulf %201, %161 : vector<2x32xf32>
    %205 = arith.mulf %200, %202 : vector<2x32xf32>
    %206 = arith.addf %204, %205 : vector<2x32xf32>
    %207 = math.tanh %206 : vector<2x32xf32>
    %208 = arith.mulf %203, %207 : vector<2x32xf32>
    %209 = tpu.concatenate %208, %186 in 1 : vector<2x32xf32>, vector<2x32xf32> -> vector<2x64xf32>
    %c0_84 = arith.constant 0 : index
    %c0_85 = arith.constant 0 : index
    %210 = vector.load %arg4[%c0_84, %c0_85] : memref<64x128xf32, #tpu.memory_space<vmem>>, vector<64x128xf32>
    %cst_86 = arith.constant dense<0.000000e+00> : vector<2x128xf32>
    %211 = tpu.matmul %209, %210, %cst_86 {dimension_numbers = #tpu.dot_dimension_numbers<[1], [0], [0], [1], [0, 0, 1, 1], [], []>} : vector<2x64xf32>, vector<64x128xf32>, vector<2x128xf32> -> vector<2x128xf32>
    %c0_87 = arith.constant 0 : index
    %c0_88 = arith.constant 0 : index
    %212 = vector.load %arg5[%c0_87, %c0_88] : memref<1x128xf32, #tpu.memory_space<vmem>>, vector<1x128xf32>
    %213 = vector.broadcast %212 : vector<1x128xf32> to vector<2x128xf32>
    %214 = arith.addf %211, %213 : vector<2x128xf32>
    %cst_89 = arith.constant 0.000000e+00 : f32
    %215 = vector.broadcast %cst_89 : f32 to vector<2x128xf32>
    %216 = arith.subf %215, %214 : vector<2x128xf32>
    %217 = math.exp %216 : vector<2x128xf32>
    %cst_90 = arith.constant 1.000000e+00 : f32
    %218 = vector.broadcast %cst_90 : f32 to vector<2x128xf32>
    %219 = arith.addf %218, %217 : vector<2x128xf32>
    %cst_91 = arith.constant 1.000000e+00 : f32
    %220 = vector.broadcast %cst_91 : f32 to vector<2x128xf32>
    %221 = arith.divf %220, %219 : vector<2x128xf32>
    %222 = math.tanh %214 : vector<2x128xf32>
    %223 = vector.extract_strided_slice %221 {offsets = [0, 0], sizes = [2, 32], strides = [1, 1]} : vector<2x128xf32> to vector<2x32xf32>
    %224 = vector.extract_strided_slice %221 {offsets = [0, 32], sizes = [2, 32], strides = [1, 1]} : vector<2x128xf32> to vector<2x32xf32>
    %225 = vector.extract_strided_slice %222 {offsets = [0, 64], sizes = [2, 32], strides = [1, 1]} : vector<2x128xf32> to vector<2x32xf32>
    %226 = vector.extract_strided_slice %221 {offsets = [0, 96], sizes = [2, 32], strides = [1, 1]} : vector<2x128xf32> to vector<2x32xf32>
    %227 = arith.mulf %224, %184 : vector<2x32xf32>
    %228 = arith.mulf %223, %225 : vector<2x32xf32>
    %229 = arith.addf %227, %228 : vector<2x32xf32>
    %230 = math.tanh %229 : vector<2x32xf32>
    %231 = arith.mulf %226, %230 : vector<2x32xf32>
    %c8_92 = arith.constant 8 : index
    %c0_93 = arith.constant 0 : index
    %232 = vector.load %arg10[%c8_92, %c0_93] : memref<26x32xf32, #tpu.memory_space<vmem>>, vector<2x32xf32>
    tpu.vector_store %arg10[%c8_92, %c0_93], %231 {strides = array<i32>} : memref<26x32xf32, #tpu.memory_space<vmem>>, vector<2x32xf32>,
    %c10 = arith.constant 10 : index
    %c0_94 = arith.constant 0 : index
    %233 = vector.load %arg9[%c10, %c0_94] : memref<26x128xf32, #tpu.memory_space<vmem>>, vector<2x128xf32>
    %c0_95 = arith.constant 0 : index
    %c0_96 = arith.constant 0 : index
    %234 = vector.load %arg3[%c0_95, %c0_96] : memref<32x128xf32, #tpu.memory_space<vmem>>, vector<32x128xf32>
    %cst_97 = arith.constant dense<0.000000e+00> : vector<2x128xf32>
    %235 = tpu.matmul %208, %234, %cst_97 {dimension_numbers = #tpu.dot_dimension_numbers<[1], [0], [0], [1], [0, 0, 1, 1], [], []>} : vector<2x32xf32>, vector<32x128xf32>, vector<2x128xf32> -> vector<2x128xf32>
    %236 = arith.addf %233, %235 : vector<2x128xf32>
    %cst_98 = arith.constant 0.000000e+00 : f32
    %237 = vector.broadcast %cst_98 : f32 to vector<2x128xf32>
    %238 = arith.subf %237, %236 : vector<2x128xf32>
    %239 = math.exp %238 : vector<2x128xf32>
    %cst_99 = arith.constant 1.000000e+00 : f32
    %240 = vector.broadcast %cst_99 : f32 to vector<2x128xf32>
    %241 = arith.addf %240, %239 : vector<2x128xf32>
    %cst_100 = arith.constant 1.000000e+00 : f32
    %242 = vector.broadcast %cst_100 : f32 to vector<2x128xf32>
    %243 = arith.divf %242, %241 : vector<2x128xf32>
    %244 = math.tanh %236 : vector<2x128xf32>
    %245 = vector.extract_strided_slice %243 {offsets = [0, 0], sizes = [2, 32], strides = [1, 1]} : vector<2x128xf32> to vector<2x32xf32>
    %246 = vector.extract_strided_slice %243 {offsets = [0, 32], sizes = [2, 32], strides = [1, 1]} : vector<2x128xf32> to vector<2x32xf32>
    %247 = vector.extract_strided_slice %244 {offsets = [0, 64], sizes = [2, 32], strides = [1, 1]} : vector<2x128xf32> to vector<2x32xf32>
    %248 = vector.extract_strided_slice %243 {offsets = [0, 96], sizes = [2, 32], strides = [1, 1]} : vector<2x128xf32> to vector<2x32xf32>
    %249 = arith.mulf %246, %206 : vector<2x32xf32>
    %250 = arith.mulf %245, %247 : vector<2x32xf32>
    %251 = arith.addf %249, %250 : vector<2x32xf32>
    %252 = math.tanh %251 : vector<2x32xf32>
    %253 = arith.mulf %248, %252 : vector<2x32xf32>
    %254 = tpu.concatenate %253, %231 in 1 : vector<2x32xf32>, vector<2x32xf32> -> vector<2x64xf32>
    %c0_101 = arith.constant 0 : index
    %c0_102 = arith.constant 0 : index
    %255 = vector.load %arg4[%c0_101, %c0_102] : memref<64x128xf32, #tpu.memory_space<vmem>>, vector<64x128xf32>
    %cst_103 = arith.constant dense<0.000000e+00> : vector<2x128xf32>
    %256 = tpu.matmul %254, %255, %cst_103 {dimension_numbers = #tpu.dot_dimension_numbers<[1], [0], [0], [1], [0, 0, 1, 1], [], []>} : vector<2x64xf32>, vector<64x128xf32>, vector<2x128xf32> -> vector<2x128xf32>
    %c0_104 = arith.constant 0 : index
    %c0_105 = arith.constant 0 : index
    %257 = vector.load %arg5[%c0_104, %c0_105] : memref<1x128xf32, #tpu.memory_space<vmem>>, vector<1x128xf32>
    %258 = vector.broadcast %257 : vector<1x128xf32> to vector<2x128xf32>
    %259 = arith.addf %256, %258 : vector<2x128xf32>
    %cst_106 = arith.constant 0.000000e+00 : f32
    %260 = vector.broadcast %cst_106 : f32 to vector<2x128xf32>
    %261 = arith.subf %260, %259 : vector<2x128xf32>
    %262 = math.exp %261 : vector<2x128xf32>
    %cst_107 = arith.constant 1.000000e+00 : f32
    %263 = vector.broadcast %cst_107 : f32 to vector<2x128xf32>
    %264 = arith.addf %263, %262 : vector<2x128xf32>
    %cst_108 = arith.constant 1.000000e+00 : f32
    %265 = vector.broadcast %cst_108 : f32 to vector<2x128xf32>
    %266 = arith.divf %265, %264 : vector<2x128xf32>
    %267 = math.tanh %259 : vector<2x128xf32>
    %268 = vector.extract_strided_slice %266 {offsets = [0, 0], sizes = [2, 32], strides = [1, 1]} : vector<2x128xf32> to vector<2x32xf32>
    %269 = vector.extract_strided_slice %266 {offsets = [0, 32], sizes = [2, 32], strides = [1, 1]} : vector<2x128xf32> to vector<2x32xf32>
    %270 = vector.extract_strided_slice %267 {offsets = [0, 64], sizes = [2, 32], strides = [1, 1]} : vector<2x128xf32> to vector<2x32xf32>
    %271 = vector.extract_strided_slice %266 {offsets = [0, 96], sizes = [2, 32], strides = [1, 1]} : vector<2x128xf32> to vector<2x32xf32>
    %272 = arith.mulf %269, %229 : vector<2x32xf32>
    %273 = arith.mulf %268, %270 : vector<2x32xf32>
    %274 = arith.addf %272, %273 : vector<2x32xf32>
    %275 = math.tanh %274 : vector<2x32xf32>
    %276 = arith.mulf %271, %275 : vector<2x32xf32>
    %c10_109 = arith.constant 10 : index
    %c0_110 = arith.constant 0 : index
    %277 = vector.load %arg10[%c10_109, %c0_110] : memref<26x32xf32, #tpu.memory_space<vmem>>, vector<2x32xf32>
    tpu.vector_store %arg10[%c10_109, %c0_110], %276 {strides = array<i32>} : memref<26x32xf32, #tpu.memory_space<vmem>>, vector<2x32xf32>,
    %c12 = arith.constant 12 : index
    %c0_111 = arith.constant 0 : index
    %278 = vector.load %arg9[%c12, %c0_111] : memref<26x128xf32, #tpu.memory_space<vmem>>, vector<2x128xf32>
    %c0_112 = arith.constant 0 : index
    %c0_113 = arith.constant 0 : index
    %279 = vector.load %arg3[%c0_112, %c0_113] : memref<32x128xf32, #tpu.memory_space<vmem>>, vector<32x128xf32>
    %cst_114 = arith.constant dense<0.000000e+00> : vector<2x128xf32>
    %280 = tpu.matmul %253, %279, %cst_114 {dimension_numbers = #tpu.dot_dimension_numbers<[1], [0], [0], [1], [0, 0, 1, 1], [], []>} : vector<2x32xf32>, vector<32x128xf32>, vector<2x128xf32> -> vector<2x128xf32>
    %281 = arith.addf %278, %280 : vector<2x128xf32>
    %cst_115 = arith.constant 0.000000e+00 : f32
    %282 = vector.broadcast %cst_115 : f32 to vector<2x128xf32>
    %283 = arith.subf %282, %281 : vector<2x128xf32>
    %284 = math.exp %283 : vector<2x128xf32>
    %cst_116 = arith.constant 1.000000e+00 : f32
    %285 = vector.broadcast %cst_116 : f32 to vector<2x128xf32>
    %286 = arith.addf %285, %284 : vector<2x128xf32>
    %cst_117 = arith.constant 1.000000e+00 : f32
    %287 = vector.broadcast %cst_117 : f32 to vector<2x128xf32>
    %288 = arith.divf %287, %286 : vector<2x128xf32>
    %289 = math.tanh %281 : vector<2x128xf32>
    %290 = vector.extract_strided_slice %288 {offsets = [0, 0], sizes = [2, 32], strides = [1, 1]} : vector<2x128xf32> to vector<2x32xf32>
    %291 = vector.extract_strided_slice %288 {offsets = [0, 32], sizes = [2, 32], strides = [1, 1]} : vector<2x128xf32> to vector<2x32xf32>
    %292 = vector.extract_strided_slice %289 {offsets = [0, 64], sizes = [2, 32], strides = [1, 1]} : vector<2x128xf32> to vector<2x32xf32>
    %293 = vector.extract_strided_slice %288 {offsets = [0, 96], sizes = [2, 32], strides = [1, 1]} : vector<2x128xf32> to vector<2x32xf32>
    %294 = arith.mulf %291, %251 : vector<2x32xf32>
    %295 = arith.mulf %290, %292 : vector<2x32xf32>
    %296 = arith.addf %294, %295 : vector<2x32xf32>
    %297 = math.tanh %296 : vector<2x32xf32>
    %298 = arith.mulf %293, %297 : vector<2x32xf32>
    %299 = tpu.concatenate %298, %276 in 1 : vector<2x32xf32>, vector<2x32xf32> -> vector<2x64xf32>
    %c0_118 = arith.constant 0 : index
    %c0_119 = arith.constant 0 : index
    %300 = vector.load %arg4[%c0_118, %c0_119] : memref<64x128xf32, #tpu.memory_space<vmem>>, vector<64x128xf32>
    %cst_120 = arith.constant dense<0.000000e+00> : vector<2x128xf32>
    %301 = tpu.matmul %299, %300, %cst_120 {dimension_numbers = #tpu.dot_dimension_numbers<[1], [0], [0], [1], [0, 0, 1, 1], [], []>} : vector<2x64xf32>, vector<64x128xf32>, vector<2x128xf32> -> vector<2x128xf32>
    %c0_121 = arith.constant 0 : index
    %c0_122 = arith.constant 0 : index
    %302 = vector.load %arg5[%c0_121, %c0_122] : memref<1x128xf32, #tpu.memory_space<vmem>>, vector<1x128xf32>
    %303 = vector.broadcast %302 : vector<1x128xf32> to vector<2x128xf32>
    %304 = arith.addf %301, %303 : vector<2x128xf32>
    %cst_123 = arith.constant 0.000000e+00 : f32
    %305 = vector.broadcast %cst_123 : f32 to vector<2x128xf32>
    %306 = arith.subf %305, %304 : vector<2x128xf32>
    %307 = math.exp %306 : vector<2x128xf32>
    %cst_124 = arith.constant 1.000000e+00 : f32
    %308 = vector.broadcast %cst_124 : f32 to vector<2x128xf32>
    %309 = arith.addf %308, %307 : vector<2x128xf32>
    %cst_125 = arith.constant 1.000000e+00 : f32
    %310 = vector.broadcast %cst_125 : f32 to vector<2x128xf32>
    %311 = arith.divf %310, %309 : vector<2x128xf32>
    %312 = math.tanh %304 : vector<2x128xf32>
    %313 = vector.extract_strided_slice %311 {offsets = [0, 0], sizes = [2, 32], strides = [1, 1]} : vector<2x128xf32> to vector<2x32xf32>
    %314 = vector.extract_strided_slice %311 {offsets = [0, 32], sizes = [2, 32], strides = [1, 1]} : vector<2x128xf32> to vector<2x32xf32>
    %315 = vector.extract_strided_slice %312 {offsets = [0, 64], sizes = [2, 32], strides = [1, 1]} : vector<2x128xf32> to vector<2x32xf32>
    %316 = vector.extract_strided_slice %311 {offsets = [0, 96], sizes = [2, 32], strides = [1, 1]} : vector<2x128xf32> to vector<2x32xf32>
    %317 = arith.mulf %314, %274 : vector<2x32xf32>
    %318 = arith.mulf %313, %315 : vector<2x32xf32>
    %319 = arith.addf %317, %318 : vector<2x32xf32>
    %320 = math.tanh %319 : vector<2x32xf32>
    %321 = arith.mulf %316, %320 : vector<2x32xf32>
    %c12_126 = arith.constant 12 : index
    %c0_127 = arith.constant 0 : index
    %322 = vector.load %arg10[%c12_126, %c0_127] : memref<26x32xf32, #tpu.memory_space<vmem>>, vector<2x32xf32>
    tpu.vector_store %arg10[%c12_126, %c0_127], %321 {strides = array<i32>} : memref<26x32xf32, #tpu.memory_space<vmem>>, vector<2x32xf32>,
    %c14 = arith.constant 14 : index
    %c0_128 = arith.constant 0 : index
    %323 = vector.load %arg9[%c14, %c0_128] : memref<26x128xf32, #tpu.memory_space<vmem>>, vector<2x128xf32>
    %c0_129 = arith.constant 0 : index
    %c0_130 = arith.constant 0 : index
    %324 = vector.load %arg3[%c0_129, %c0_130] : memref<32x128xf32, #tpu.memory_space<vmem>>, vector<32x128xf32>
    %cst_131 = arith.constant dense<0.000000e+00> : vector<2x128xf32>
    %325 = tpu.matmul %298, %324, %cst_131 {dimension_numbers = #tpu.dot_dimension_numbers<[1], [0], [0], [1], [0, 0, 1, 1], [], []>} : vector<2x32xf32>, vector<32x128xf32>, vector<2x128xf32> -> vector<2x128xf32>
    %326 = arith.addf %323, %325 : vector<2x128xf32>
    %cst_132 = arith.constant 0.000000e+00 : f32
    %327 = vector.broadcast %cst_132 : f32 to vector<2x128xf32>
    %328 = arith.subf %327, %326 : vector<2x128xf32>
    %329 = math.exp %328 : vector<2x128xf32>
    %cst_133 = arith.constant 1.000000e+00 : f32
    %330 = vector.broadcast %cst_133 : f32 to vector<2x128xf32>
    %331 = arith.addf %330, %329 : vector<2x128xf32>
    %cst_134 = arith.constant 1.000000e+00 : f32
    %332 = vector.broadcast %cst_134 : f32 to vector<2x128xf32>
    %333 = arith.divf %332, %331 : vector<2x128xf32>
    %334 = math.tanh %326 : vector<2x128xf32>
    %335 = vector.extract_strided_slice %333 {offsets = [0, 0], sizes = [2, 32], strides = [1, 1]} : vector<2x128xf32> to vector<2x32xf32>
    %336 = vector.extract_strided_slice %333 {offsets = [0, 32], sizes = [2, 32], strides = [1, 1]} : vector<2x128xf32> to vector<2x32xf32>
    %337 = vector.extract_strided_slice %334 {offsets = [0, 64], sizes = [2, 32], strides = [1, 1]} : vector<2x128xf32> to vector<2x32xf32>
    %338 = vector.extract_strided_slice %333 {offsets = [0, 96], sizes = [2, 32], strides = [1, 1]} : vector<2x128xf32> to vector<2x32xf32>
    %339 = arith.mulf %336, %296 : vector<2x32xf32>
    %340 = arith.mulf %335, %337 : vector<2x32xf32>
    %341 = arith.addf %339, %340 : vector<2x32xf32>
    %342 = math.tanh %341 : vector<2x32xf32>
    %343 = arith.mulf %338, %342 : vector<2x32xf32>
    %344 = tpu.concatenate %343, %321 in 1 : vector<2x32xf32>, vector<2x32xf32> -> vector<2x64xf32>
    %c0_135 = arith.constant 0 : index
    %c0_136 = arith.constant 0 : index
    %345 = vector.load %arg4[%c0_135, %c0_136] : memref<64x128xf32, #tpu.memory_space<vmem>>, vector<64x128xf32>
    %cst_137 = arith.constant dense<0.000000e+00> : vector<2x128xf32>
    %346 = tpu.matmul %344, %345, %cst_137 {dimension_numbers = #tpu.dot_dimension_numbers<[1], [0], [0], [1], [0, 0, 1, 1], [], []>} : vector<2x64xf32>, vector<64x128xf32>, vector<2x128xf32> -> vector<2x128xf32>
    %c0_138 = arith.constant 0 : index
    %c0_139 = arith.constant 0 : index
    %347 = vector.load %arg5[%c0_138, %c0_139] : memref<1x128xf32, #tpu.memory_space<vmem>>, vector<1x128xf32>
    %348 = vector.broadcast %347 : vector<1x128xf32> to vector<2x128xf32>
    %349 = arith.addf %346, %348 : vector<2x128xf32>
    %cst_140 = arith.constant 0.000000e+00 : f32
    %350 = vector.broadcast %cst_140 : f32 to vector<2x128xf32>
    %351 = arith.subf %350, %349 : vector<2x128xf32>
    %352 = math.exp %351 : vector<2x128xf32>
    %cst_141 = arith.constant 1.000000e+00 : f32
    %353 = vector.broadcast %cst_141 : f32 to vector<2x128xf32>
    %354 = arith.addf %353, %352 : vector<2x128xf32>
    %cst_142 = arith.constant 1.000000e+00 : f32
    %355 = vector.broadcast %cst_142 : f32 to vector<2x128xf32>
    %356 = arith.divf %355, %354 : vector<2x128xf32>
    %357 = math.tanh %349 : vector<2x128xf32>
    %358 = vector.extract_strided_slice %356 {offsets = [0, 0], sizes = [2, 32], strides = [1, 1]} : vector<2x128xf32> to vector<2x32xf32>
    %359 = vector.extract_strided_slice %356 {offsets = [0, 32], sizes = [2, 32], strides = [1, 1]} : vector<2x128xf32> to vector<2x32xf32>
    %360 = vector.extract_strided_slice %357 {offsets = [0, 64], sizes = [2, 32], strides = [1, 1]} : vector<2x128xf32> to vector<2x32xf32>
    %361 = vector.extract_strided_slice %356 {offsets = [0, 96], sizes = [2, 32], strides = [1, 1]} : vector<2x128xf32> to vector<2x32xf32>
    %362 = arith.mulf %359, %319 : vector<2x32xf32>
    %363 = arith.mulf %358, %360 : vector<2x32xf32>
    %364 = arith.addf %362, %363 : vector<2x32xf32>
    %365 = math.tanh %364 : vector<2x32xf32>
    %366 = arith.mulf %361, %365 : vector<2x32xf32>
    %c14_143 = arith.constant 14 : index
    %c0_144 = arith.constant 0 : index
    %367 = vector.load %arg10[%c14_143, %c0_144] : memref<26x32xf32, #tpu.memory_space<vmem>>, vector<2x32xf32>
    tpu.vector_store %arg10[%c14_143, %c0_144], %366 {strides = array<i32>} : memref<26x32xf32, #tpu.memory_space<vmem>>, vector<2x32xf32>,
    %c16 = arith.constant 16 : index
    %c0_145 = arith.constant 0 : index
    %368 = vector.load %arg9[%c16, %c0_145] : memref<26x128xf32, #tpu.memory_space<vmem>>, vector<2x128xf32>
    %c0_146 = arith.constant 0 : index
    %c0_147 = arith.constant 0 : index
    %369 = vector.load %arg3[%c0_146, %c0_147] : memref<32x128xf32, #tpu.memory_space<vmem>>, vector<32x128xf32>
    %cst_148 = arith.constant dense<0.000000e+00> : vector<2x128xf32>
    %370 = tpu.matmul %343, %369, %cst_148 {dimension_numbers = #tpu.dot_dimension_numbers<[1], [0], [0], [1], [0, 0, 1, 1], [], []>} : vector<2x32xf32>, vector<32x128xf32>, vector<2x128xf32> -> vector<2x128xf32>
    %371 = arith.addf %368, %370 : vector<2x128xf32>
    %cst_149 = arith.constant 0.000000e+00 : f32
    %372 = vector.broadcast %cst_149 : f32 to vector<2x128xf32>
    %373 = arith.subf %372, %371 : vector<2x128xf32>
    %374 = math.exp %373 : vector<2x128xf32>
    %cst_150 = arith.constant 1.000000e+00 : f32
    %375 = vector.broadcast %cst_150 : f32 to vector<2x128xf32>
    %376 = arith.addf %375, %374 : vector<2x128xf32>
    %cst_151 = arith.constant 1.000000e+00 : f32
    %377 = vector.broadcast %cst_151 : f32 to vector<2x128xf32>
    %378 = arith.divf %377, %376 : vector<2x128xf32>
    %379 = math.tanh %371 : vector<2x128xf32>
    %380 = vector.extract_strided_slice %378 {offsets = [0, 0], sizes = [2, 32], strides = [1, 1]} : vector<2x128xf32> to vector<2x32xf32>
    %381 = vector.extract_strided_slice %378 {offsets = [0, 32], sizes = [2, 32], strides = [1, 1]} : vector<2x128xf32> to vector<2x32xf32>
    %382 = vector.extract_strided_slice %379 {offsets = [0, 64], sizes = [2, 32], strides = [1, 1]} : vector<2x128xf32> to vector<2x32xf32>
    %383 = vector.extract_strided_slice %378 {offsets = [0, 96], sizes = [2, 32], strides = [1, 1]} : vector<2x128xf32> to vector<2x32xf32>
    %384 = arith.mulf %381, %341 : vector<2x32xf32>
    %385 = arith.mulf %380, %382 : vector<2x32xf32>
    %386 = arith.addf %384, %385 : vector<2x32xf32>
    %387 = math.tanh %386 : vector<2x32xf32>
    %388 = arith.mulf %383, %387 : vector<2x32xf32>
    %389 = tpu.concatenate %388, %366 in 1 : vector<2x32xf32>, vector<2x32xf32> -> vector<2x64xf32>
    %c0_152 = arith.constant 0 : index
    %c0_153 = arith.constant 0 : index
    %390 = vector.load %arg4[%c0_152, %c0_153] : memref<64x128xf32, #tpu.memory_space<vmem>>, vector<64x128xf32>
    %cst_154 = arith.constant dense<0.000000e+00> : vector<2x128xf32>
    %391 = tpu.matmul %389, %390, %cst_154 {dimension_numbers = #tpu.dot_dimension_numbers<[1], [0], [0], [1], [0, 0, 1, 1], [], []>} : vector<2x64xf32>, vector<64x128xf32>, vector<2x128xf32> -> vector<2x128xf32>
    %c0_155 = arith.constant 0 : index
    %c0_156 = arith.constant 0 : index
    %392 = vector.load %arg5[%c0_155, %c0_156] : memref<1x128xf32, #tpu.memory_space<vmem>>, vector<1x128xf32>
    %393 = vector.broadcast %392 : vector<1x128xf32> to vector<2x128xf32>
    %394 = arith.addf %391, %393 : vector<2x128xf32>
    %cst_157 = arith.constant 0.000000e+00 : f32
    %395 = vector.broadcast %cst_157 : f32 to vector<2x128xf32>
    %396 = arith.subf %395, %394 : vector<2x128xf32>
    %397 = math.exp %396 : vector<2x128xf32>
    %cst_158 = arith.constant 1.000000e+00 : f32
    %398 = vector.broadcast %cst_158 : f32 to vector<2x128xf32>
    %399 = arith.addf %398, %397 : vector<2x128xf32>
    %cst_159 = arith.constant 1.000000e+00 : f32
    %400 = vector.broadcast %cst_159 : f32 to vector<2x128xf32>
    %401 = arith.divf %400, %399 : vector<2x128xf32>
    %402 = math.tanh %394 : vector<2x128xf32>
    %403 = vector.extract_strided_slice %401 {offsets = [0, 0], sizes = [2, 32], strides = [1, 1]} : vector<2x128xf32> to vector<2x32xf32>
    %404 = vector.extract_strided_slice %401 {offsets = [0, 32], sizes = [2, 32], strides = [1, 1]} : vector<2x128xf32> to vector<2x32xf32>
    %405 = vector.extract_strided_slice %402 {offsets = [0, 64], sizes = [2, 32], strides = [1, 1]} : vector<2x128xf32> to vector<2x32xf32>
    %406 = vector.extract_strided_slice %401 {offsets = [0, 96], sizes = [2, 32], strides = [1, 1]} : vector<2x128xf32> to vector<2x32xf32>
    %407 = arith.mulf %404, %364 : vector<2x32xf32>
    %408 = arith.mulf %403, %405 : vector<2x32xf32>
    %409 = arith.addf %407, %408 : vector<2x32xf32>
    %410 = math.tanh %409 : vector<2x32xf32>
    %411 = arith.mulf %406, %410 : vector<2x32xf32>
    %c16_160 = arith.constant 16 : index
    %c0_161 = arith.constant 0 : index
    %412 = vector.load %arg10[%c16_160, %c0_161] : memref<26x32xf32, #tpu.memory_space<vmem>>, vector<2x32xf32>
    tpu.vector_store %arg10[%c16_160, %c0_161], %411 {strides = array<i32>} : memref<26x32xf32, #tpu.memory_space<vmem>>, vector<2x32xf32>,
    %c18 = arith.constant 18 : index
    %c0_162 = arith.constant 0 : index
    %413 = vector.load %arg9[%c18, %c0_162] : memref<26x128xf32, #tpu.memory_space<vmem>>, vector<2x128xf32>
    %c0_163 = arith.constant 0 : index
    %c0_164 = arith.constant 0 : index
    %414 = vector.load %arg3[%c0_163, %c0_164] : memref<32x128xf32, #tpu.memory_space<vmem>>, vector<32x128xf32>
    %cst_165 = arith.constant dense<0.000000e+00> : vector<2x128xf32>
    %415 = tpu.matmul %388, %414, %cst_165 {dimension_numbers = #tpu.dot_dimension_numbers<[1], [0], [0], [1], [0, 0, 1, 1], [], []>} : vector<2x32xf32>, vector<32x128xf32>, vector<2x128xf32> -> vector<2x128xf32>
    %416 = arith.addf %413, %415 : vector<2x128xf32>
    %cst_166 = arith.constant 0.000000e+00 : f32
    %417 = vector.broadcast %cst_166 : f32 to vector<2x128xf32>
    %418 = arith.subf %417, %416 : vector<2x128xf32>
    %419 = math.exp %418 : vector<2x128xf32>
    %cst_167 = arith.constant 1.000000e+00 : f32
    %420 = vector.broadcast %cst_167 : f32 to vector<2x128xf32>
    %421 = arith.addf %420, %419 : vector<2x128xf32>
    %cst_168 = arith.constant 1.000000e+00 : f32
    %422 = vector.broadcast %cst_168 : f32 to vector<2x128xf32>
    %423 = arith.divf %422, %421 : vector<2x128xf32>
    %424 = math.tanh %416 : vector<2x128xf32>
    %425 = vector.extract_strided_slice %423 {offsets = [0, 0], sizes = [2, 32], strides = [1, 1]} : vector<2x128xf32> to vector<2x32xf32>
    %426 = vector.extract_strided_slice %423 {offsets = [0, 32], sizes = [2, 32], strides = [1, 1]} : vector<2x128xf32> to vector<2x32xf32>
    %427 = vector.extract_strided_slice %424 {offsets = [0, 64], sizes = [2, 32], strides = [1, 1]} : vector<2x128xf32> to vector<2x32xf32>
    %428 = vector.extract_strided_slice %423 {offsets = [0, 96], sizes = [2, 32], strides = [1, 1]} : vector<2x128xf32> to vector<2x32xf32>
    %429 = arith.mulf %426, %386 : vector<2x32xf32>
    %430 = arith.mulf %425, %427 : vector<2x32xf32>
    %431 = arith.addf %429, %430 : vector<2x32xf32>
    %432 = math.tanh %431 : vector<2x32xf32>
    %433 = arith.mulf %428, %432 : vector<2x32xf32>
    %434 = tpu.concatenate %433, %411 in 1 : vector<2x32xf32>, vector<2x32xf32> -> vector<2x64xf32>
    %c0_169 = arith.constant 0 : index
    %c0_170 = arith.constant 0 : index
    %435 = vector.load %arg4[%c0_169, %c0_170] : memref<64x128xf32, #tpu.memory_space<vmem>>, vector<64x128xf32>
    %cst_171 = arith.constant dense<0.000000e+00> : vector<2x128xf32>
    %436 = tpu.matmul %434, %435, %cst_171 {dimension_numbers = #tpu.dot_dimension_numbers<[1], [0], [0], [1], [0, 0, 1, 1], [], []>} : vector<2x64xf32>, vector<64x128xf32>, vector<2x128xf32> -> vector<2x128xf32>
    %c0_172 = arith.constant 0 : index
    %c0_173 = arith.constant 0 : index
    %437 = vector.load %arg5[%c0_172, %c0_173] : memref<1x128xf32, #tpu.memory_space<vmem>>, vector<1x128xf32>
    %438 = vector.broadcast %437 : vector<1x128xf32> to vector<2x128xf32>
    %439 = arith.addf %436, %438 : vector<2x128xf32>
    %cst_174 = arith.constant 0.000000e+00 : f32
    %440 = vector.broadcast %cst_174 : f32 to vector<2x128xf32>
    %441 = arith.subf %440, %439 : vector<2x128xf32>
    %442 = math.exp %441 : vector<2x128xf32>
    %cst_175 = arith.constant 1.000000e+00 : f32
    %443 = vector.broadcast %cst_175 : f32 to vector<2x128xf32>
    %444 = arith.addf %443, %442 : vector<2x128xf32>
    %cst_176 = arith.constant 1.000000e+00 : f32
    %445 = vector.broadcast %cst_176 : f32 to vector<2x128xf32>
    %446 = arith.divf %445, %444 : vector<2x128xf32>
    %447 = math.tanh %439 : vector<2x128xf32>
    %448 = vector.extract_strided_slice %446 {offsets = [0, 0], sizes = [2, 32], strides = [1, 1]} : vector<2x128xf32> to vector<2x32xf32>
    %449 = vector.extract_strided_slice %446 {offsets = [0, 32], sizes = [2, 32], strides = [1, 1]} : vector<2x128xf32> to vector<2x32xf32>
    %450 = vector.extract_strided_slice %447 {offsets = [0, 64], sizes = [2, 32], strides = [1, 1]} : vector<2x128xf32> to vector<2x32xf32>
    %451 = vector.extract_strided_slice %446 {offsets = [0, 96], sizes = [2, 32], strides = [1, 1]} : vector<2x128xf32> to vector<2x32xf32>
    %452 = arith.mulf %449, %409 : vector<2x32xf32>
    %453 = arith.mulf %448, %450 : vector<2x32xf32>
    %454 = arith.addf %452, %453 : vector<2x32xf32>
    %455 = math.tanh %454 : vector<2x32xf32>
    %456 = arith.mulf %451, %455 : vector<2x32xf32>
    %c18_177 = arith.constant 18 : index
    %c0_178 = arith.constant 0 : index
    %457 = vector.load %arg10[%c18_177, %c0_178] : memref<26x32xf32, #tpu.memory_space<vmem>>, vector<2x32xf32>
    tpu.vector_store %arg10[%c18_177, %c0_178], %456 {strides = array<i32>} : memref<26x32xf32, #tpu.memory_space<vmem>>, vector<2x32xf32>,
    %c20 = arith.constant 20 : index
    %c0_179 = arith.constant 0 : index
    %458 = vector.load %arg9[%c20, %c0_179] : memref<26x128xf32, #tpu.memory_space<vmem>>, vector<2x128xf32>
    %c0_180 = arith.constant 0 : index
    %c0_181 = arith.constant 0 : index
    %459 = vector.load %arg3[%c0_180, %c0_181] : memref<32x128xf32, #tpu.memory_space<vmem>>, vector<32x128xf32>
    %cst_182 = arith.constant dense<0.000000e+00> : vector<2x128xf32>
    %460 = tpu.matmul %433, %459, %cst_182 {dimension_numbers = #tpu.dot_dimension_numbers<[1], [0], [0], [1], [0, 0, 1, 1], [], []>} : vector<2x32xf32>, vector<32x128xf32>, vector<2x128xf32> -> vector<2x128xf32>
    %461 = arith.addf %458, %460 : vector<2x128xf32>
    %cst_183 = arith.constant 0.000000e+00 : f32
    %462 = vector.broadcast %cst_183 : f32 to vector<2x128xf32>
    %463 = arith.subf %462, %461 : vector<2x128xf32>
    %464 = math.exp %463 : vector<2x128xf32>
    %cst_184 = arith.constant 1.000000e+00 : f32
    %465 = vector.broadcast %cst_184 : f32 to vector<2x128xf32>
    %466 = arith.addf %465, %464 : vector<2x128xf32>
    %cst_185 = arith.constant 1.000000e+00 : f32
    %467 = vector.broadcast %cst_185 : f32 to vector<2x128xf32>
    %468 = arith.divf %467, %466 : vector<2x128xf32>
    %469 = math.tanh %461 : vector<2x128xf32>
    %470 = vector.extract_strided_slice %468 {offsets = [0, 0], sizes = [2, 32], strides = [1, 1]} : vector<2x128xf32> to vector<2x32xf32>
    %471 = vector.extract_strided_slice %468 {offsets = [0, 32], sizes = [2, 32], strides = [1, 1]} : vector<2x128xf32> to vector<2x32xf32>
    %472 = vector.extract_strided_slice %469 {offsets = [0, 64], sizes = [2, 32], strides = [1, 1]} : vector<2x128xf32> to vector<2x32xf32>
    %473 = vector.extract_strided_slice %468 {offsets = [0, 96], sizes = [2, 32], strides = [1, 1]} : vector<2x128xf32> to vector<2x32xf32>
    %474 = arith.mulf %471, %431 : vector<2x32xf32>
    %475 = arith.mulf %470, %472 : vector<2x32xf32>
    %476 = arith.addf %474, %475 : vector<2x32xf32>
    %477 = math.tanh %476 : vector<2x32xf32>
    %478 = arith.mulf %473, %477 : vector<2x32xf32>
    %479 = tpu.concatenate %478, %456 in 1 : vector<2x32xf32>, vector<2x32xf32> -> vector<2x64xf32>
    %c0_186 = arith.constant 0 : index
    %c0_187 = arith.constant 0 : index
    %480 = vector.load %arg4[%c0_186, %c0_187] : memref<64x128xf32, #tpu.memory_space<vmem>>, vector<64x128xf32>
    %cst_188 = arith.constant dense<0.000000e+00> : vector<2x128xf32>
    %481 = tpu.matmul %479, %480, %cst_188 {dimension_numbers = #tpu.dot_dimension_numbers<[1], [0], [0], [1], [0, 0, 1, 1], [], []>} : vector<2x64xf32>, vector<64x128xf32>, vector<2x128xf32> -> vector<2x128xf32>
    %c0_189 = arith.constant 0 : index
    %c0_190 = arith.constant 0 : index
    %482 = vector.load %arg5[%c0_189, %c0_190] : memref<1x128xf32, #tpu.memory_space<vmem>>, vector<1x128xf32>
    %483 = vector.broadcast %482 : vector<1x128xf32> to vector<2x128xf32>
    %484 = arith.addf %481, %483 : vector<2x128xf32>
    %cst_191 = arith.constant 0.000000e+00 : f32
    %485 = vector.broadcast %cst_191 : f32 to vector<2x128xf32>
    %486 = arith.subf %485, %484 : vector<2x128xf32>
    %487 = math.exp %486 : vector<2x128xf32>
    %cst_192 = arith.constant 1.000000e+00 : f32
    %488 = vector.broadcast %cst_192 : f32 to vector<2x128xf32>
    %489 = arith.addf %488, %487 : vector<2x128xf32>
    %cst_193 = arith.constant 1.000000e+00 : f32
    %490 = vector.broadcast %cst_193 : f32 to vector<2x128xf32>
    %491 = arith.divf %490, %489 : vector<2x128xf32>
    %492 = math.tanh %484 : vector<2x128xf32>
    %493 = vector.extract_strided_slice %491 {offsets = [0, 0], sizes = [2, 32], strides = [1, 1]} : vector<2x128xf32> to vector<2x32xf32>
    %494 = vector.extract_strided_slice %491 {offsets = [0, 32], sizes = [2, 32], strides = [1, 1]} : vector<2x128xf32> to vector<2x32xf32>
    %495 = vector.extract_strided_slice %492 {offsets = [0, 64], sizes = [2, 32], strides = [1, 1]} : vector<2x128xf32> to vector<2x32xf32>
    %496 = vector.extract_strided_slice %491 {offsets = [0, 96], sizes = [2, 32], strides = [1, 1]} : vector<2x128xf32> to vector<2x32xf32>
    %497 = arith.mulf %494, %454 : vector<2x32xf32>
    %498 = arith.mulf %493, %495 : vector<2x32xf32>
    %499 = arith.addf %497, %498 : vector<2x32xf32>
    %500 = math.tanh %499 : vector<2x32xf32>
    %501 = arith.mulf %496, %500 : vector<2x32xf32>
    %c20_194 = arith.constant 20 : index
    %c0_195 = arith.constant 0 : index
    %502 = vector.load %arg10[%c20_194, %c0_195] : memref<26x32xf32, #tpu.memory_space<vmem>>, vector<2x32xf32>
    tpu.vector_store %arg10[%c20_194, %c0_195], %501 {strides = array<i32>} : memref<26x32xf32, #tpu.memory_space<vmem>>, vector<2x32xf32>,
    %c22 = arith.constant 22 : index
    %c0_196 = arith.constant 0 : index
    %503 = vector.load %arg9[%c22, %c0_196] : memref<26x128xf32, #tpu.memory_space<vmem>>, vector<2x128xf32>
    %c0_197 = arith.constant 0 : index
    %c0_198 = arith.constant 0 : index
    %504 = vector.load %arg3[%c0_197, %c0_198] : memref<32x128xf32, #tpu.memory_space<vmem>>, vector<32x128xf32>
    %cst_199 = arith.constant dense<0.000000e+00> : vector<2x128xf32>
    %505 = tpu.matmul %478, %504, %cst_199 {dimension_numbers = #tpu.dot_dimension_numbers<[1], [0], [0], [1], [0, 0, 1, 1], [], []>} : vector<2x32xf32>, vector<32x128xf32>, vector<2x128xf32> -> vector<2x128xf32>
    %506 = arith.addf %503, %505 : vector<2x128xf32>
    %cst_200 = arith.constant 0.000000e+00 : f32
    %507 = vector.broadcast %cst_200 : f32 to vector<2x128xf32>
    %508 = arith.subf %507, %506 : vector<2x128xf32>
    %509 = math.exp %508 : vector<2x128xf32>
    %cst_201 = arith.constant 1.000000e+00 : f32
    %510 = vector.broadcast %cst_201 : f32 to vector<2x128xf32>
    %511 = arith.addf %510, %509 : vector<2x128xf32>
    %cst_202 = arith.constant 1.000000e+00 : f32
    %512 = vector.broadcast %cst_202 : f32 to vector<2x128xf32>
    %513 = arith.divf %512, %511 : vector<2x128xf32>
    %514 = math.tanh %506 : vector<2x128xf32>
    %515 = vector.extract_strided_slice %513 {offsets = [0, 0], sizes = [2, 32], strides = [1, 1]} : vector<2x128xf32> to vector<2x32xf32>
    %516 = vector.extract_strided_slice %513 {offsets = [0, 32], sizes = [2, 32], strides = [1, 1]} : vector<2x128xf32> to vector<2x32xf32>
    %517 = vector.extract_strided_slice %514 {offsets = [0, 64], sizes = [2, 32], strides = [1, 1]} : vector<2x128xf32> to vector<2x32xf32>
    %518 = vector.extract_strided_slice %513 {offsets = [0, 96], sizes = [2, 32], strides = [1, 1]} : vector<2x128xf32> to vector<2x32xf32>
    %519 = arith.mulf %516, %476 : vector<2x32xf32>
    %520 = arith.mulf %515, %517 : vector<2x32xf32>
    %521 = arith.addf %519, %520 : vector<2x32xf32>
    %522 = math.tanh %521 : vector<2x32xf32>
    %523 = arith.mulf %518, %522 : vector<2x32xf32>
    %524 = tpu.concatenate %523, %501 in 1 : vector<2x32xf32>, vector<2x32xf32> -> vector<2x64xf32>
    %c0_203 = arith.constant 0 : index
    %c0_204 = arith.constant 0 : index
    %525 = vector.load %arg4[%c0_203, %c0_204] : memref<64x128xf32, #tpu.memory_space<vmem>>, vector<64x128xf32>
    %cst_205 = arith.constant dense<0.000000e+00> : vector<2x128xf32>
    %526 = tpu.matmul %524, %525, %cst_205 {dimension_numbers = #tpu.dot_dimension_numbers<[1], [0], [0], [1], [0, 0, 1, 1], [], []>} : vector<2x64xf32>, vector<64x128xf32>, vector<2x128xf32> -> vector<2x128xf32>
    %c0_206 = arith.constant 0 : index
    %c0_207 = arith.constant 0 : index
    %527 = vector.load %arg5[%c0_206, %c0_207] : memref<1x128xf32, #tpu.memory_space<vmem>>, vector<1x128xf32>
    %528 = vector.broadcast %527 : vector<1x128xf32> to vector<2x128xf32>
    %529 = arith.addf %526, %528 : vector<2x128xf32>
    %cst_208 = arith.constant 0.000000e+00 : f32
    %530 = vector.broadcast %cst_208 : f32 to vector<2x128xf32>
    %531 = arith.subf %530, %529 : vector<2x128xf32>
    %532 = math.exp %531 : vector<2x128xf32>
    %cst_209 = arith.constant 1.000000e+00 : f32
    %533 = vector.broadcast %cst_209 : f32 to vector<2x128xf32>
    %534 = arith.addf %533, %532 : vector<2x128xf32>
    %cst_210 = arith.constant 1.000000e+00 : f32
    %535 = vector.broadcast %cst_210 : f32 to vector<2x128xf32>
    %536 = arith.divf %535, %534 : vector<2x128xf32>
    %537 = math.tanh %529 : vector<2x128xf32>
    %538 = vector.extract_strided_slice %536 {offsets = [0, 0], sizes = [2, 32], strides = [1, 1]} : vector<2x128xf32> to vector<2x32xf32>
    %539 = vector.extract_strided_slice %536 {offsets = [0, 32], sizes = [2, 32], strides = [1, 1]} : vector<2x128xf32> to vector<2x32xf32>
    %540 = vector.extract_strided_slice %537 {offsets = [0, 64], sizes = [2, 32], strides = [1, 1]} : vector<2x128xf32> to vector<2x32xf32>
    %541 = vector.extract_strided_slice %536 {offsets = [0, 96], sizes = [2, 32], strides = [1, 1]} : vector<2x128xf32> to vector<2x32xf32>
    %542 = arith.mulf %539, %499 : vector<2x32xf32>
    %543 = arith.mulf %538, %540 : vector<2x32xf32>
    %544 = arith.addf %542, %543 : vector<2x32xf32>
    %545 = math.tanh %544 : vector<2x32xf32>
    %546 = arith.mulf %541, %545 : vector<2x32xf32>
    %c22_211 = arith.constant 22 : index
    %c0_212 = arith.constant 0 : index
    %547 = vector.load %arg10[%c22_211, %c0_212] : memref<26x32xf32, #tpu.memory_space<vmem>>, vector<2x32xf32>
    tpu.vector_store %arg10[%c22_211, %c0_212], %546 {strides = array<i32>} : memref<26x32xf32, #tpu.memory_space<vmem>>, vector<2x32xf32>,
    %c24 = arith.constant 24 : index
    %c0_213 = arith.constant 0 : index
    %548 = vector.load %arg9[%c24, %c0_213] : memref<26x128xf32, #tpu.memory_space<vmem>>, vector<2x128xf32>
    %c0_214 = arith.constant 0 : index
    %c0_215 = arith.constant 0 : index
    %549 = vector.load %arg3[%c0_214, %c0_215] : memref<32x128xf32, #tpu.memory_space<vmem>>, vector<32x128xf32>
    %cst_216 = arith.constant dense<0.000000e+00> : vector<2x128xf32>
    %550 = tpu.matmul %523, %549, %cst_216 {dimension_numbers = #tpu.dot_dimension_numbers<[1], [0], [0], [1], [0, 0, 1, 1], [], []>} : vector<2x32xf32>, vector<32x128xf32>, vector<2x128xf32> -> vector<2x128xf32>
    %551 = arith.addf %548, %550 : vector<2x128xf32>
    %cst_217 = arith.constant 0.000000e+00 : f32
    %552 = vector.broadcast %cst_217 : f32 to vector<2x128xf32>
    %553 = arith.subf %552, %551 : vector<2x128xf32>
    %554 = math.exp %553 : vector<2x128xf32>
    %cst_218 = arith.constant 1.000000e+00 : f32
    %555 = vector.broadcast %cst_218 : f32 to vector<2x128xf32>
    %556 = arith.addf %555, %554 : vector<2x128xf32>
    %cst_219 = arith.constant 1.000000e+00 : f32
    %557 = vector.broadcast %cst_219 : f32 to vector<2x128xf32>
    %558 = arith.divf %557, %556 : vector<2x128xf32>
    %559 = math.tanh %551 : vector<2x128xf32>
    %560 = vector.extract_strided_slice %558 {offsets = [0, 0], sizes = [2, 32], strides = [1, 1]} : vector<2x128xf32> to vector<2x32xf32>
    %561 = vector.extract_strided_slice %558 {offsets = [0, 32], sizes = [2, 32], strides = [1, 1]} : vector<2x128xf32> to vector<2x32xf32>
    %562 = vector.extract_strided_slice %559 {offsets = [0, 64], sizes = [2, 32], strides = [1, 1]} : vector<2x128xf32> to vector<2x32xf32>
    %563 = vector.extract_strided_slice %558 {offsets = [0, 96], sizes = [2, 32], strides = [1, 1]} : vector<2x128xf32> to vector<2x32xf32>
    %564 = arith.mulf %561, %521 : vector<2x32xf32>
    %565 = arith.mulf %560, %562 : vector<2x32xf32>
    %566 = arith.addf %564, %565 : vector<2x32xf32>
    %567 = math.tanh %566 : vector<2x32xf32>
    %568 = arith.mulf %563, %567 : vector<2x32xf32>
    %569 = tpu.concatenate %568, %546 in 1 : vector<2x32xf32>, vector<2x32xf32> -> vector<2x64xf32>
    %c0_220 = arith.constant 0 : index
    %c0_221 = arith.constant 0 : index
    %570 = vector.load %arg4[%c0_220, %c0_221] : memref<64x128xf32, #tpu.memory_space<vmem>>, vector<64x128xf32>
    %cst_222 = arith.constant dense<0.000000e+00> : vector<2x128xf32>
    %571 = tpu.matmul %569, %570, %cst_222 {dimension_numbers = #tpu.dot_dimension_numbers<[1], [0], [0], [1], [0, 0, 1, 1], [], []>} : vector<2x64xf32>, vector<64x128xf32>, vector<2x128xf32> -> vector<2x128xf32>
    %c0_223 = arith.constant 0 : index
    %c0_224 = arith.constant 0 : index
    %572 = vector.load %arg5[%c0_223, %c0_224] : memref<1x128xf32, #tpu.memory_space<vmem>>, vector<1x128xf32>
    %573 = vector.broadcast %572 : vector<1x128xf32> to vector<2x128xf32>
    %574 = arith.addf %571, %573 : vector<2x128xf32>
    %cst_225 = arith.constant 0.000000e+00 : f32
    %575 = vector.broadcast %cst_225 : f32 to vector<2x128xf32>
    %576 = arith.subf %575, %574 : vector<2x128xf32>
    %577 = math.exp %576 : vector<2x128xf32>
    %cst_226 = arith.constant 1.000000e+00 : f32
    %578 = vector.broadcast %cst_226 : f32 to vector<2x128xf32>
    %579 = arith.addf %578, %577 : vector<2x128xf32>
    %cst_227 = arith.constant 1.000000e+00 : f32
    %580 = vector.broadcast %cst_227 : f32 to vector<2x128xf32>
    %581 = arith.divf %580, %579 : vector<2x128xf32>
    %582 = math.tanh %574 : vector<2x128xf32>
    %583 = vector.extract_strided_slice %581 {offsets = [0, 0], sizes = [2, 32], strides = [1, 1]} : vector<2x128xf32> to vector<2x32xf32>
    %584 = vector.extract_strided_slice %581 {offsets = [0, 32], sizes = [2, 32], strides = [1, 1]} : vector<2x128xf32> to vector<2x32xf32>
    %585 = vector.extract_strided_slice %582 {offsets = [0, 64], sizes = [2, 32], strides = [1, 1]} : vector<2x128xf32> to vector<2x32xf32>
    %586 = vector.extract_strided_slice %581 {offsets = [0, 96], sizes = [2, 32], strides = [1, 1]} : vector<2x128xf32> to vector<2x32xf32>
    %587 = arith.mulf %584, %544 : vector<2x32xf32>
    %588 = arith.mulf %583, %585 : vector<2x32xf32>
    %589 = arith.addf %587, %588 : vector<2x32xf32>
    %590 = math.tanh %589 : vector<2x32xf32>
    %591 = arith.mulf %586, %590 : vector<2x32xf32>
    %c24_228 = arith.constant 24 : index
    %c0_229 = arith.constant 0 : index
    %592 = vector.load %arg10[%c24_228, %c0_229] : memref<26x32xf32, #tpu.memory_space<vmem>>, vector<2x32xf32>
    tpu.vector_store %arg10[%c24_228, %c0_229], %591 {strides = array<i32>} : memref<26x32xf32, #tpu.memory_space<vmem>>, vector<2x32xf32>,
    %c0_230 = arith.constant 0 : index
    %c0_231 = arith.constant 0 : index
    %593 = vector.load %arg10[%c0_230, %c0_231] : memref<26x32xf32, #tpu.memory_space<vmem>>, vector<26x32xf32>
    %c0_232 = arith.constant 0 : index
    %c0_233 = arith.constant 0 : index
    %594 = vector.load %arg6[%c0_232, %c0_233] : memref<32x128xf32, #tpu.memory_space<vmem>>, vector<32x128xf32>
    %cst_234 = arith.constant dense<0.000000e+00> : vector<26x128xf32>
    %595 = tpu.matmul %593, %594, %cst_234 {dimension_numbers = #tpu.dot_dimension_numbers<[1], [0], [0], [1], [0, 0, 1, 1], [], []>} : vector<26x32xf32>, vector<32x128xf32>, vector<26x128xf32> -> vector<26x128xf32>
    %c0_235 = arith.constant 0 : index
    %c0_236 = arith.constant 0 : index
    %596 = vector.load %arg7[%c0_235, %c0_236] : memref<1x128xf32, #tpu.memory_space<vmem>>, vector<1x128xf32>
    %597 = vector.broadcast %596 : vector<1x128xf32> to vector<26x128xf32>
    %598 = arith.addf %595, %597 : vector<26x128xf32>
    %c0_237 = arith.constant 0 : index
    %c0_238 = arith.constant 0 : index
    %599 = vector.load %arg8[%c0_237, %c0_238] : memref<26x128xf32, #tpu.memory_space<vmem>>, vector<26x128xf32>
    tpu.vector_store %arg8[%c0_237, %c0_238], %598 {strides = array<i32>} : memref<26x128xf32, #tpu.memory_space<vmem>>, vector<26x128xf32>,
    return
  }
}

module attributes {stable_mosaic.version = 11 : i64} {
  func.func @_conv_bn_prelu_kernel(%arg0: i32, %arg1: memref<8x640xf32, #tpu.memory_space<vmem>>, %arg2: memref<640x224xf32, #tpu.memory_space<vmem>>, %arg3: memref<8x1xf32, #tpu.memory_space<vmem>>, %arg4: memref<8x1xf32, #tpu.memory_space<vmem>>, %arg5: memref<8x1xf32, #tpu.memory_space<vmem>>, %arg6: memref<1x1xf32, #tpu.memory_space<vmem>>, %arg7: memref<8x224xf32, #tpu.memory_space<vmem>>) attributes {dimension_semantics = [#tpu.dimension_semantics<parallel>], iteration_bounds = array<i64: 2>, scalar_prefetch = 0 : i64, scratch_operands = 0 : i64, tpu.core_type = #tpu.core_type<tc>, window_params = [{transform_indices = @transform_0, window_bounds = array<i64: 8, 640>}, {pipeline_mode = #tpu.pipeline_mode<synchronous>, transform_indices = @transform_1, window_bounds = array<i64: 640, 224>}, {transform_indices = @transform_2, window_bounds = array<i64: 8, 1>}, {transform_indices = @transform_3, window_bounds = array<i64: 8, 1>}, {transform_indices = @transform_4, window_bounds = array<i64: 8, 1>}, {pipeline_mode = #tpu.pipeline_mode<synchronous>, transform_indices = @transform_5, window_bounds = array<i64: 1, 1>}, {transform_indices = @transform_6, window_bounds = array<i64: 8, 224>}]} {
    %c0 = arith.constant 0 : index
    %c0_0 = arith.constant 0 : index
    %0 = vector.load %arg1[%c0, %c0_0] : memref<8x640xf32, #tpu.memory_space<vmem>>, vector<8x640xf32>
    %c0_1 = arith.constant 0 : index
    %c0_2 = arith.constant 0 : index
    %1 = vector.load %arg2[%c0_1, %c0_2] : memref<640x224xf32, #tpu.memory_space<vmem>>, vector<640x224xf32>
    %cst = arith.constant dense<0.000000e+00> : vector<8x224xf32>
    %2 = tpu.matmul %0, %1, %cst {dimension_numbers = #tpu.dot_dimension_numbers<[1], [0], [0], [1], [0, 0, 1, 1], [], []>} : vector<8x640xf32>, vector<640x224xf32>, vector<8x224xf32> -> vector<8x224xf32>
    %c0_3 = arith.constant 0 : index
    %c0_4 = arith.constant 0 : index
    %3 = vector.load %arg3[%c0_3, %c0_4] : memref<8x1xf32, #tpu.memory_space<vmem>>, vector<8x1xf32>
    %4 = vector.broadcast %3 : vector<8x1xf32> to vector<8x224xf32>
    %5 = arith.addf %2, %4 : vector<8x224xf32>
    %cst_5 = arith.constant dense<0.000000e+00> : vector<8xf32>
    %6 = vector.multi_reduction <add>, %5, %cst_5 [1] : vector<8x224xf32> to vector<8xf32>
    %7 = vector.shape_cast %6 : vector<8xf32> to vector<8x1xf32>
    %cst_6 = arith.constant 2.240000e+02 : f32
    %8 = vector.broadcast %cst_6 : f32 to vector<8x1xf32>
    %9 = arith.divf %7, %8 : vector<8x1xf32>
    %10 = arith.mulf %5, %5 : vector<8x224xf32>
    %cst_7 = arith.constant dense<0.000000e+00> : vector<8xf32>
    %11 = vector.multi_reduction <add>, %10, %cst_7 [1] : vector<8x224xf32> to vector<8xf32>
    %12 = vector.shape_cast %11 : vector<8xf32> to vector<8x1xf32>
    %cst_8 = arith.constant 2.240000e+02 : f32
    %13 = vector.broadcast %cst_8 : f32 to vector<8x1xf32>
    %14 = arith.divf %12, %13 : vector<8x1xf32>
    %15 = arith.mulf %9, %9 : vector<8x1xf32>
    %16 = arith.subf %14, %15 : vector<8x1xf32>
    %17 = vector.broadcast %9 : vector<8x1xf32> to vector<8x224xf32>
    %18 = arith.subf %5, %17 : vector<8x224xf32>
    %cst_9 = arith.constant 9.99999974E-6 : f32
    %19 = vector.broadcast %cst_9 : f32 to vector<8x1xf32>
    %20 = arith.addf %16, %19 : vector<8x1xf32>
    %21 = math.rsqrt %20 : vector<8x1xf32>
    %22 = vector.broadcast %21 : vector<8x1xf32> to vector<8x224xf32>
    %23 = arith.mulf %18, %22 : vector<8x224xf32>
    %c0_10 = arith.constant 0 : index
    %c0_11 = arith.constant 0 : index
    %24 = vector.load %arg4[%c0_10, %c0_11] : memref<8x1xf32, #tpu.memory_space<vmem>>, vector<8x1xf32>
    %25 = vector.broadcast %24 : vector<8x1xf32> to vector<8x224xf32>
    %26 = arith.mulf %23, %25 : vector<8x224xf32>
    %c0_12 = arith.constant 0 : index
    %c0_13 = arith.constant 0 : index
    %27 = vector.load %arg5[%c0_12, %c0_13] : memref<8x1xf32, #tpu.memory_space<vmem>>, vector<8x1xf32>
    %28 = vector.broadcast %27 : vector<8x1xf32> to vector<8x224xf32>
    %29 = arith.addf %26, %28 : vector<8x224xf32>
    %cst_14 = arith.constant 0.000000e+00 : f32
    %30 = vector.broadcast %cst_14 : f32 to vector<8x224xf32>
    %31 = arith.cmpf oge, %29, %30 : vector<8x224xf32>
    %c0_15 = arith.constant 0 : index
    %c0_16 = arith.constant 0 : index
    %32 = vector.load %arg6[%c0_15, %c0_16] : memref<1x1xf32, #tpu.memory_space<vmem>>, vector<1x1xf32>
    %33 = vector.broadcast %32 : vector<1x1xf32> to vector<8x224xf32>
    %34 = arith.mulf %33, %29 : vector<8x224xf32>
    %35 = arith.select %31, %29, %34 : vector<8x224xi1>, vector<8x224xf32>
    %c0_17 = arith.constant 0 : index
    %c0_18 = arith.constant 0 : index
    %36 = vector.load %arg7[%c0_17, %c0_18] : memref<8x224xf32, #tpu.memory_space<vmem>>, vector<8x224xf32>
    tpu.vector_store %arg7[%c0_17, %c0_18], %35 {strides = array<i32>} : memref<8x224xf32, #tpu.memory_space<vmem>>, vector<8x224xf32>,
    return
  }
  func.func @transform_0(%arg0: i32) -> (i32, i32) {
    %c0_i32 = arith.constant 0 : i32
    %c0_i32_0 = arith.constant 0 : i32
    return %arg0, %c0_i32 : i32, i32
  }
  func.func @transform_1(%arg0: i32) -> (i32, i32) {
    %c0_i32 = arith.constant 0 : i32
    %c0_i32_0 = arith.constant 0 : i32
    %c0_i32_1 = arith.constant 0 : i32
    return %c0_i32, %c0_i32_0 : i32, i32
  }
  func.func @transform_2(%arg0: i32) -> (i32, i32) {
    %c0_i32 = arith.constant 0 : i32
    %c0_i32_0 = arith.constant 0 : i32
    return %arg0, %c0_i32 : i32, i32
  }
  func.func @transform_3(%arg0: i32) -> (i32, i32) {
    %c0_i32 = arith.constant 0 : i32
    %c0_i32_0 = arith.constant 0 : i32
    return %arg0, %c0_i32 : i32, i32
  }
  func.func @transform_4(%arg0: i32) -> (i32, i32) {
    %c0_i32 = arith.constant 0 : i32
    %c0_i32_0 = arith.constant 0 : i32
    return %arg0, %c0_i32 : i32, i32
  }
  func.func @transform_5(%arg0: i32) -> (i32, i32) {
    %c0_i32 = arith.constant 0 : i32
    %c0_i32_0 = arith.constant 0 : i32
    %c0_i32_1 = arith.constant 0 : i32
    return %c0_i32, %c0_i32_0 : i32, i32
  }
  func.func @transform_6(%arg0: i32) -> (i32, i32) {
    %c0_i32 = arith.constant 0 : i32
    %c0_i32_0 = arith.constant 0 : i32
    return %arg0, %c0_i32 : i32, i32
  }
}

module attributes {stable_mosaic.version = 11 : i64} {
  func.func @_conv_bn_prelu_kernel(%arg0: memref<8x320xf32, #tpu.memory_space<vmem>>, %arg1: memref<320x448xf32, #tpu.memory_space<vmem>>, %arg2: memref<8x1xf32, #tpu.memory_space<vmem>>, %arg3: memref<8x1xf32, #tpu.memory_space<vmem>>, %arg4: memref<8x1xf32, #tpu.memory_space<vmem>>, %arg5: memref<1x1xf32, #tpu.memory_space<vmem>>, %arg6: memref<8x448xf32, #tpu.memory_space<vmem>>) attributes {dimension_semantics = [], scalar_prefetch = 0 : i64, scratch_operands = 0 : i64, tpu.core_type = #tpu.core_type<tc>} {
    %c0 = arith.constant 0 : index
    %c0_0 = arith.constant 0 : index
    %0 = vector.load %arg0[%c0, %c0_0] : memref<8x320xf32, #tpu.memory_space<vmem>>, vector<8x320xf32>
    %c0_1 = arith.constant 0 : index
    %c0_2 = arith.constant 0 : index
    %1 = vector.load %arg1[%c0_1, %c0_2] : memref<320x448xf32, #tpu.memory_space<vmem>>, vector<320x448xf32>
    %cst = arith.constant dense<0.000000e+00> : vector<8x448xf32>
    %2 = tpu.matmul %0, %1, %cst {dimension_numbers = #tpu.dot_dimension_numbers<[1], [0], [0], [1], [0, 0, 1, 1], [], []>} : vector<8x320xf32>, vector<320x448xf32>, vector<8x448xf32> -> vector<8x448xf32>
    %c0_3 = arith.constant 0 : index
    %c0_4 = arith.constant 0 : index
    %3 = vector.load %arg2[%c0_3, %c0_4] : memref<8x1xf32, #tpu.memory_space<vmem>>, vector<8x1xf32>
    %4 = vector.broadcast %3 : vector<8x1xf32> to vector<8x448xf32>
    %5 = arith.addf %2, %4 : vector<8x448xf32>
    %cst_5 = arith.constant dense<0.000000e+00> : vector<8xf32>
    %6 = vector.multi_reduction <add>, %5, %cst_5 [1] : vector<8x448xf32> to vector<8xf32>
    %7 = vector.shape_cast %6 : vector<8xf32> to vector<8x1xf32>
    %cst_6 = arith.constant 4.480000e+02 : f32
    %8 = vector.broadcast %cst_6 : f32 to vector<8x1xf32>
    %9 = arith.divf %7, %8 : vector<8x1xf32>
    %10 = arith.mulf %5, %5 : vector<8x448xf32>
    %cst_7 = arith.constant dense<0.000000e+00> : vector<8xf32>
    %11 = vector.multi_reduction <add>, %10, %cst_7 [1] : vector<8x448xf32> to vector<8xf32>
    %12 = vector.shape_cast %11 : vector<8xf32> to vector<8x1xf32>
    %cst_8 = arith.constant 4.480000e+02 : f32
    %13 = vector.broadcast %cst_8 : f32 to vector<8x1xf32>
    %14 = arith.divf %12, %13 : vector<8x1xf32>
    %15 = arith.mulf %9, %9 : vector<8x1xf32>
    %16 = arith.subf %14, %15 : vector<8x1xf32>
    %17 = vector.broadcast %9 : vector<8x1xf32> to vector<8x448xf32>
    %18 = arith.subf %5, %17 : vector<8x448xf32>
    %cst_9 = arith.constant 9.99999974E-6 : f32
    %19 = vector.broadcast %cst_9 : f32 to vector<8x1xf32>
    %20 = arith.addf %16, %19 : vector<8x1xf32>
    %21 = math.rsqrt %20 : vector<8x1xf32>
    %22 = vector.broadcast %21 : vector<8x1xf32> to vector<8x448xf32>
    %23 = arith.mulf %18, %22 : vector<8x448xf32>
    %c0_10 = arith.constant 0 : index
    %c0_11 = arith.constant 0 : index
    %24 = vector.load %arg3[%c0_10, %c0_11] : memref<8x1xf32, #tpu.memory_space<vmem>>, vector<8x1xf32>
    %25 = vector.broadcast %24 : vector<8x1xf32> to vector<8x448xf32>
    %26 = arith.mulf %23, %25 : vector<8x448xf32>
    %c0_12 = arith.constant 0 : index
    %c0_13 = arith.constant 0 : index
    %27 = vector.load %arg4[%c0_12, %c0_13] : memref<8x1xf32, #tpu.memory_space<vmem>>, vector<8x1xf32>
    %28 = vector.broadcast %27 : vector<8x1xf32> to vector<8x448xf32>
    %29 = arith.addf %26, %28 : vector<8x448xf32>
    %cst_14 = arith.constant 0.000000e+00 : f32
    %30 = vector.broadcast %cst_14 : f32 to vector<8x448xf32>
    %31 = arith.cmpf oge, %29, %30 : vector<8x448xf32>
    %c0_15 = arith.constant 0 : index
    %c0_16 = arith.constant 0 : index
    %32 = vector.load %arg5[%c0_15, %c0_16] : memref<1x1xf32, #tpu.memory_space<vmem>>, vector<1x1xf32>
    %33 = vector.broadcast %32 : vector<1x1xf32> to vector<8x448xf32>
    %34 = arith.mulf %33, %29 : vector<8x448xf32>
    %35 = arith.select %31, %29, %34 : vector<8x448xi1>, vector<8x448xf32>
    %c0_17 = arith.constant 0 : index
    %c0_18 = arith.constant 0 : index
    %36 = vector.load %arg6[%c0_17, %c0_18] : memref<8x448xf32, #tpu.memory_space<vmem>>, vector<8x448xf32>
    tpu.vector_store %arg6[%c0_17, %c0_18], %35 {strides = array<i32>} : memref<8x448xf32, #tpu.memory_space<vmem>>, vector<8x448xf32>,
    return
  }
}

module attributes {stable_mosaic.version = 11 : i64} {
  func.func @_conv_bias_kernel(%arg0: memref<2x160xf32, #tpu.memory_space<vmem>>, %arg1: memref<160x896xf32, #tpu.memory_space<vmem>>, %arg2: memref<2x1xf32, #tpu.memory_space<vmem>>, %arg3: memref<2x896xf32, #tpu.memory_space<vmem>>) attributes {dimension_semantics = [], scalar_prefetch = 0 : i64, scratch_operands = 0 : i64, tpu.core_type = #tpu.core_type<tc>} {
    %c0 = arith.constant 0 : index
    %c0_0 = arith.constant 0 : index
    %0 = vector.load %arg0[%c0, %c0_0] : memref<2x160xf32, #tpu.memory_space<vmem>>, vector<2x160xf32>
    %c0_1 = arith.constant 0 : index
    %c0_2 = arith.constant 0 : index
    %1 = vector.load %arg1[%c0_1, %c0_2] : memref<160x896xf32, #tpu.memory_space<vmem>>, vector<160x896xf32>
    %cst = arith.constant dense<0.000000e+00> : vector<2x896xf32>
    %2 = tpu.matmul %0, %1, %cst {dimension_numbers = #tpu.dot_dimension_numbers<[1], [0], [0], [1], [0, 0, 1, 1], [], []>} : vector<2x160xf32>, vector<160x896xf32>, vector<2x896xf32> -> vector<2x896xf32>
    %c0_3 = arith.constant 0 : index
    %c0_4 = arith.constant 0 : index
    %3 = vector.load %arg2[%c0_3, %c0_4] : memref<2x1xf32, #tpu.memory_space<vmem>>, vector<2x1xf32>
    %4 = vector.broadcast %3 : vector<2x1xf32> to vector<2x896xf32>
    %5 = arith.addf %2, %4 : vector<2x896xf32>
    %c0_5 = arith.constant 0 : index
    %c0_6 = arith.constant 0 : index
    %6 = vector.load %arg3[%c0_5, %c0_6] : memref<2x896xf32, #tpu.memory_space<vmem>>, vector<2x896xf32>
    tpu.vector_store %arg3[%c0_5, %c0_6], %5 {strides = array<i32>} : memref<2x896xf32, #tpu.memory_space<vmem>>, vector<2x896xf32>,
    return
  }
}

module attributes {stable_mosaic.version = 11 : i64} {
  func.func @_istft_kernel(%arg0: memref<2x858xf32, #tpu.memory_space<vmem>>, %arg1: memref<858x160xf32, #tpu.memory_space<vmem>>, %arg2: memref<2x160xf32, #tpu.memory_space<vmem>>) attributes {dimension_semantics = [], scalar_prefetch = 0 : i64, scratch_operands = 0 : i64, tpu.core_type = #tpu.core_type<tc>} {
    %c0 = arith.constant 0 : index
    %c0_0 = arith.constant 0 : index
    %0 = vector.load %arg0[%c0, %c0_0] : memref<2x858xf32, #tpu.memory_space<vmem>>, vector<2x858xf32>
    %c0_1 = arith.constant 0 : index
    %c0_2 = arith.constant 0 : index
    %1 = vector.load %arg1[%c0_1, %c0_2] : memref<858x160xf32, #tpu.memory_space<vmem>>, vector<858x160xf32>
    %cst = arith.constant dense<0.000000e+00> : vector<2x160xf32>
    %2 = tpu.matmul %0, %1, %cst {dimension_numbers = #tpu.dot_dimension_numbers<[1], [0], [0], [1], [0, 0, 1, 1], [], []>} : vector<2x858xf32>, vector<858x160xf32>, vector<2x160xf32> -> vector<2x160xf32>
    %cst_3 = arith.constant -1.000000e+00 : f32
    %cst_4 = arith.constant 1.000000e+00 : f32
    %3 = vector.broadcast %cst_3 : f32 to vector<2x160xf32>
    %4 = arith.maximumf %3, %2 : vector<2x160xf32>
    %5 = vector.broadcast %cst_4 : f32 to vector<2x160xf32>
    %6 = arith.minimumf %5, %4 : vector<2x160xf32>
    %c0_5 = arith.constant 0 : index
    %c0_6 = arith.constant 0 : index
    %7 = vector.load %arg2[%c0_5, %c0_6] : memref<2x160xf32, #tpu.memory_space<vmem>>, vector<2x160xf32>
    tpu.vector_store %arg2[%c0_5, %c0_6], %6 {strides = array<i32>} : memref<2x160xf32, #tpu.memory_space<vmem>>, vector<2x160xf32>,
    return
  }
}

</mosaic_0001>

<llo_original>
// kernel: dccrn_forward.9
$region0: #{dccrn_forward.9}
  #allocation0 [shape = 'u32[]', space=smem, size = 0x4, offset = 0x4, fixed_abs, tag = 'smem constant byte address 0x4 - core index']
  #allocation1 [shape = 'u32[72,128]{1,0:T(1,128)}', space=vmem, size = 0x9000, scoped, tag = 'internal scratch']
  %s0 = inlined_call_operand.hbm [shape: f32[2,160], index: 0, kind: input, shape index: {}]
  %s1 = inlined_call_operand.hbm [shape: f32[160,858], index: 1, kind: input, shape index: {}]
  %s2 = inlined_call_operand.vmem [shape: f32[2,858], index: 2, kind: output, shape index: {}]
  %s3 = sld [smem:[#allocation0]]
  $region26: #{dccrn_forward.9} parent=0
    _
  %s5 = ssub.s32 1, %s3
  %s6 = scalar_select 0, %s5, %s3
  $region1: #{dccrn_forward.9} parent=0
    #allocation2 [shape = 'u8[2048]{0}', space=vmem, size = 0x800, scoped, tag = 'input window, operand 0, single buffered']
    #allocation3 [shape = 's32[1]{0}', space=sflag, size = 0x4, scoped, tag = 'scoped memory for dccrn_forward.9']
    #allocation4 [shape = 'u8[573440]{0}', space=vmem, size = 0x8c000, scoped, tag = 'input window, operand 1, single buffered']
    #allocation5 [shape = 's32[1]{0}', space=sflag, size = 0x4, scoped, tag = 'scoped memory for dccrn_forward.9']
    %7 = vsyncpa [#allocation3], 0
    %8 = vsyncpa [#allocation5], 0
    // Predicated region
    $region2: #{dccrn_forward.9} parent=1 // pred_check
      _
    $region3: #{dccrn_forward.9} parent=1 // pred_check_branch
      %10 = sbr.rel (0) target = $region5
    $region4: #{dccrn_forward.9} parent=1 // pred_region
      %12 = vsyncadd [#allocation3], 0
      %s14 = sshll.u32 %s0, 4
      %s15 = int_to_ptr.hbm [resolvable:$true] %s14
      %s16 = sshll.u32 [#allocation2], 4
      %s17 = int_to_ptr.vmem [resolvable:$true] %s16
      %19 = dma.hbm_to_vmem [thread:$0]  %s15, 64, %s17, [#allocation3]
    $region5: #{dccrn_forward.9} parent=1 // pred_fallthru
      _
    // Predicated region
    $region6: #{dccrn_forward.9} parent=1 // pred_check
      _
    $region7: #{dccrn_forward.9} parent=1 // pred_check_branch
      %21 = sbr.rel (0) target = $region9
    $region8: #{dccrn_forward.9} parent=1 // pred_region
      %23 = vsyncadd [#allocation5], 0
      %s24 = sshll.u32 %s1, 4
      %s25 = int_to_ptr.hbm [resolvable:$true] %s24
      %s26 = sshll.u32 [#allocation4], 4
      %s27 = int_to_ptr.vmem [resolvable:$true] %s26
      %32 = dma.hbm_to_vmem [thread:$0]  %s25, 17920, %s27, [#allocation5], 896, 896, 56
    $region9: #{dccrn_forward.9} parent=1 // pred_fallthru
      _
    // Predicated region
    $region10: #{dccrn_forward.9} parent=1 // pred_check
      _
    $region11: #{dccrn_forward.9} parent=1 // pred_check_branch
      %34 = sbr.rel (0) target = $region13
    $region12: #{dccrn_forward.9} parent=1 // pred_region
      %36 = dma.done [#allocation3], 64
    $region13: #{dccrn_forward.9} parent=1 // pred_fallthru
      _
    // Predicated region
    $region14: #{dccrn_forward.9} parent=1 // pred_check
      _
    $region15: #{dccrn_forward.9} parent=1 // pred_check_branch
      %38 = sbr.rel (0) target = $region17
    $region16: #{dccrn_forward.9} parent=1 // pred_region
      %40 = dma.done [#allocation5], 17920
    $region17: #{dccrn_forward.9} parent=1 // pred_fallthru
      _
    %v41 = vld [vmem:[#allocation2] sm:$0xf]
    %v42 = vld [vmem:[#allocation4] sm:$0xff]
    %v43 = vld [vmem:[#allocation4 + $0x8] sm:$0xff]
    %v44 = vld [vmem:[#allocation4 + $0x10] sm:$0xff]
    %v45 = vld [vmem:[#allocation4 + $0x18] sm:$0xff]
    %v46 = vld [vmem:[#allocation4 + $0x20] sm:$0xff]
    %v47 = vld [vmem:[#allocation4 + $0x28] sm:$0xff]
    %v48 = vld [vmem:[#allocation4 + $0x30] sm:$0xff]
    %v49 = vld [vmem:[#allocation4 + $0x38] sm:$0xff]
    %v50 = vld [vmem:[#allocation4 + $0x40] sm:$0xff]
    %v51 = vld [vmem:[#allocation4 + $0x48] sm:$0xff]
    %v52 = vld [vmem:[#allocation4 + $0x50] sm:$0xff]
    %v53 = vld [vmem:[#allocation4 + $0x58] sm:$0xff]
    %v54 = vld [vmem:[#allocation4 + $0x60] sm:$0xff]
    %v55 = vld [vmem:[#allocation4 + $0x68] sm:$0xff]
    %v56 = vld [vmem:[#allocation4 + $0x70] sm:$0xff]
    %v57 = vld [vmem:[#allocation4 + $0x78] sm:$0xff]
    %v58 = vld [vmem:[#allocation4 + $0x80] sm:$0xff]
    %v59 = vld [vmem:[#allocation4 + $0x88] sm:$0xff]
    %v60 = vld [vmem:[#allocation4 + $0x90] sm:$0xff]
    %v61 = vld [vmem:[#allocation4 + $0x98] sm:$0xff]
    %v62 = vld [vmem:[#allocation4 + $0xa0] sm:$0xff]
    %v63 = vld [vmem:[#allocation4 + $0xa8] sm:$0xff]
    %v64 = vld [vmem:[#allocation4 + $0xb0] sm:$0xff]
    %v65 = vld [vmem:[#allocation4 + $0xb8] sm:$0xff]
    %v66 = vld [vmem:[#allocation4 + $0xc0] sm:$0xff]
    %v67 = vld [vmem:[#allocation4 + $0xc8] sm:$0xff]
    %v68 = vld [vmem:[#allocation4 + $0xd0] sm:$0xff]
    %v69 = vld [vmem:[#allocation4 + $0xd8] sm:$0xff]
    %v70 = vld [vmem:[#allocation4 + $0xe0] sm:$0xff]
    %v71 = vld [vmem:[#allocation4 + $0xe8] sm:$0xff]
    %v72 = vld [vmem:[#allocation4 + $0xf0] sm:$0xff]
    %v73 = vld [vmem:[#allocation4 + $0xf8] sm:$0xff]
    %v74 = vld [vmem:[#allocation4 + $0x100] sm:$0xff]
    %v75 = vld [vmem:[#allocation4 + $0x108] sm:$0xff]
    %v76 = vld [vmem:[#allocation4 + $0x110] sm:$0xff]
    %v77 = vld [vmem:[#allocation4 + $0x118] sm:$0xff]
    %v78 = vld [vmem:[#allocation4 + $0x120] sm:$0xff]
    %v79 = vld [vmem:[#allocation4 + $0x128] sm:$0xff]
    %v80 = vld [vmem:[#allocation4 + $0x130] sm:$0xff]
    %v81 = vld [vmem:[#allocation4 + $0x138] sm:$0xff]
    %v82 = vld [vmem:[#allocation4 + $0x140] sm:$0xff]
    %v83 = vld [vmem:[#allocation4 + $0x148] sm:$0xff]
    %v84 = vld [vmem:[#allocation4 + $0x150] sm:$0xff]
    %v85 = vld [vmem:[#allocation4 + $0x158] sm:$0xff]
    %v86 = vld [vmem:[#allocation4 + $0x160] sm:$0xff]
    %v87 = vld [vmem:[#allocation4 + $0x168] sm:$0xff]
    %v88 = vld [vmem:[#allocation4 + $0x170] sm:$0xff]
    %v89 = vld [vmem:[#allocation4 + $0x178] sm:$0xff]
    %v90 = vld [vmem:[#allocation4 + $0x180] sm:$0xff]
    %v91 = vld [vmem:[#allocation4 + $0x188] sm:$0xff]
    %v92 = vld [vmem:[#allocation4 + $0x190] sm:$0xff]
    %v93 = vld [vmem:[#allocation4 + $0x198] sm:$0xff]
    %v94 = vld [vmem:[#allocation4 + $0x1a0] sm:$0xff]
    %v95 = vld [vmem:[#allocation4 + $0x1a8] sm:$0xff]
    %v96 = vld [vmem:[#allocation4 + $0x1b0] sm:$0xff]
    %v97 = vld [vmem:[#allocation4 + $0x1b8] sm:$0xff]
    %v98 = vld [vmem:[#allocation4 + $0x1c0] sm:$0xff]
    %v99 = vld [vmem:[#allocation4 + $0x1c8] sm:$0xff]
    %v100 = vld [vmem:[#allocation4 + $0x1d0] sm:$0xff]
    %v101 = vld [vmem:[#allocation4 + $0x1d8] sm:$0xff]
    %v102 = vld [vmem:[#allocation4 + $0x1e0] sm:$0xff]
    %v103 = vld [vmem:[#allocation4 + $0x1e8] sm:$0xff]
    %v104 = vld [vmem:[#allocation4 + $0x1f0] sm:$0xff]
    %v105 = vld [vmem:[#allocation4 + $0x1f8] sm:$0xff]
    %v106 = vld [vmem:[#allocation4 + $0x200] sm:$0xff]
    %v107 = vld [vmem:[#allocation4 + $0x208] sm:$0xff]
    %v108 = vld [vmem:[#allocation4 + $0x210] sm:$0xff]
    %v109 = vld [vmem:[#allocation4 + $0x218] sm:$0xff]
    %v110 = vld [vmem:[#allocation4 + $0x220] sm:$0xff]
    %v111 = vld [vmem:[#allocation4 + $0x228] sm:$0xff]
    %v112 = vld [vmem:[#allocation4 + $0x230] sm:$0xff]
    %v113 = vld [vmem:[#allocation4 + $0x238] sm:$0xff]
    %v114 = vld [vmem:[#allocation4 + $0x240] sm:$0xff]
    %v115 = vld [vmem:[#allocation4 + $0x248] sm:$0xff]
    %v116 = vld [vmem:[#allocation4 + $0x250] sm:$0xff]
    %v117 = vld [vmem:[#allocation4 + $0x258] sm:$0xff]
    %v118 = vld [vmem:[#allocation4 + $0x260] sm:$0xff]
    %v119 = vld [vmem:[#allocation4 + $0x268] sm:$0xff]
    %v120 = vld [vmem:[#allocation4 + $0x270] sm:$0xff]
    %v121 = vld [vmem:[#allocation4 + $0x278] sm:$0xff]
    %v122 = vld [vmem:[#allocation4 + $0x280] sm:$0xff]
    %v123 = vld [vmem:[#allocation4 + $0x288] sm:$0xff]
    %v124 = vld [vmem:[#allocation4 + $0x290] sm:$0xff]
    %v125 = vld [vmem:[#allocation4 + $0x298] sm:$0xff]
    %v126 = vld [vmem:[#allocation4 + $0x2a0] sm:$0xff]
    %v127 = vld [vmem:[#allocation4 + $0x2a8] sm:$0xff]
    %v128 = vld [vmem:[#allocation4 + $0x2b0] sm:$0xff]
    %v129 = vld [vmem:[#allocation4 + $0x2b8] sm:$0xff]
    %v130 = vld [vmem:[#allocation4 + $0x2c0] sm:$0xff]
    %v131 = vld [vmem:[#allocation4 + $0x2c8] sm:$0xff]
    %v132 = vld [vmem:[#allocation4 + $0x2d0] sm:$0xff]
    %v133 = vld [vmem:[#allocation4 + $0x2d8] sm:$0xff]
    %v134 = vld [vmem:[#allocation4 + $0x2e0] sm:$0xff]
    %v135 = vld [vmem:[#allocation4 + $0x2e8] sm:$0xff]
    %v136 = vld [vmem:[#allocation4 + $0x2f0] sm:$0xff]
    %v137 = vld [vmem:[#allocation4 + $0x2f8] sm:$0xff]
    %v138 = vld [vmem:[#allocation4 + $0x300] sm:$0xff]
    %v139 = vld [vmem:[#allocation4 + $0x308] sm:$0xff]
    %v140 = vld [vmem:[#allocation4 + $0x310] sm:$0xff]
    %v141 = vld [vmem:[#allocation4 + $0x318] sm:$0xff]
    %v142 = vld [vmem:[#allocation4 + $0x320] sm:$0xff]
    %v143 = vld [vmem:[#allocation4 + $0x328] sm:$0xff]
    %v144 = vld [vmem:[#allocation4 + $0x330] sm:$0xff]
    %v145 = vld [vmem:[#allocation4 + $0x338] sm:$0xff]
    %v146 = vld [vmem:[#allocation4 + $0x340] sm:$0xff]
    %v147 = vld [vmem:[#allocation4 + $0x348] sm:$0xff]
    %v148 = vld [vmem:[#allocation4 + $0x350] sm:$0xff]
    %v149 = vld [vmem:[#allocation4 + $0x358] sm:$0xff]
    %v150 = vld [vmem:[#allocation4 + $0x360] sm:$0xff]
    %v151 = vld [vmem:[#allocation4 + $0x368] sm:$0xff]
    %v152 = vld [vmem:[#allocation4 + $0x370] sm:$0xff]
    %v153 = vld [vmem:[#allocation4 + $0x378] sm:$0xff]
    %v154 = vld [vmem:[#allocation4 + $0x380] sm:$0xff]
    %v155 = vld [vmem:[#allocation4 + $0x388] sm:$0xff]
    %v156 = vld [vmem:[#allocation4 + $0x390] sm:$0xff]
    %v157 = vld [vmem:[#allocation4 + $0x398] sm:$0xff]
    %v158 = vld [vmem:[#allocation4 + $0x3a0] sm:$0xff]
    %v159 = vld [vmem:[#allocation4 + $0x3a8] sm:$0xff]
    %v160 = vld [vmem:[#allocation4 + $0x3b0] sm:$0xff]
    %v161 = vld [vmem:[#allocation4 + $0x3b8] sm:$0xff]
    %v162 = vld [vmem:[#allocation4 + $0x3c0] sm:$0xff]
    %v163 = vld [vmem:[#allocation4 + $0x3c8] sm:$0xff]
    %v164 = vld [vmem:[#allocation4 + $0x3d0] sm:$0xff]
    %v165 = vld [vmem:[#allocation4 + $0x3d8] sm:$0xff]
    %v166 = vld [vmem:[#allocation4 + $0x3e0] sm:$0xff]
    %v167 = vld [vmem:[#allocation4 + $0x3e8] sm:$0xff]
    %v168 = vld [vmem:[#allocation4 + $0x3f0] sm:$0xff]
    %v169 = vld [vmem:[#allocation4 + $0x3f8] sm:$0xff]
    %v170 = vld [vmem:[#allocation4 + $0x400] sm:$0xff]
    %v171 = vld [vmem:[#allocation4 + $0x408] sm:$0xff]
    %v172 = vld [vmem:[#allocation4 + $0x410] sm:$0xff]
    %v173 = vld [vmem:[#allocation4 + $0x418] sm:$0xff]
    %v174 = vld [vmem:[#allocation4 + $0x420] sm:$0xff]
    %v175 = vld [vmem:[#allocation4 + $0x428] sm:$0xff]
    %v176 = vld [vmem:[#allocation4 + $0x430] sm:$0xff]
    %v177 = vld [vmem:[#allocation4 + $0x438] sm:$0xff]
    %v178 = vld [vmem:[#allocation4 + $0x440] sm:$0xff]
    %v179 = vld [vmem:[#allocation4 + $0x448] sm:$0xff]
    %v180 = vld [vmem:[#allocation4 + $0x450] sm:$0xff]
    %v181 = vld [vmem:[#allocation4 + $0x458] sm:$0xff]
    %183 = vst [vmem:[#allocation1] ss:$4 sm:$0xff] %v41
    %v184 = vld.sshfl [vmem:[#allocation1] sm:$0xff pattern:$0x73625140]
    %v185 = vld.sshfl [vmem:[#allocation1 + $0x8] sm:$0xff pattern:$0x73625140]
    %vm187 = vcmask 261120
    %v188 = vsel %vm187, %v185, 0
    %190 = vmatpush.msra.mxu0 %v147
    %191 = vmatpush.msra.mxu0 %v140
    %192 = vmatpush.msra.mxu0 %v133
    %193 = vmatpush.msra.mxu0 %v126
    %194 = vmatpush.msra.mxu0 %v119
    %195 = vmatpush.msra.mxu0 %v112
    %196 = vmatpush.msra.mxu0 %v105
    %197 = vmatpush.msra.mxu0 %v98
    %198 = vmatpush.msra.mxu0 %v91
    %199 = vmatpush.msra.mxu0 %v84
    %200 = vmatpush.msra.mxu0 %v77
    %201 = vmatpush.msra.mxu0 %v70
    %202 = vmatpush.msra.mxu0 %v63
    %203 = vmatpush.msra.mxu0 %v56
    %204 = vmatpush.msra.mxu0 %v49
    %205 = vmatpush.msra.mxu0 %v42
    %206 = vmatmul.f32.gmra.mxu0 %v184
    %v207 = vpop.f32.mrf.mxu0
    %v208 = vadd.f32 0.0, %v207
    %209 = vdwg.mxu0
    %210 = vmatpush.msra.mxu0 0.0
    %211 = vmatpush.msra.mxu0 0.0
    %212 = vmatpush.msra.mxu0 0.0
    %213 = vmatpush.msra.mxu0 0.0
    %214 = vmatpush.msra.mxu0 0.0
    %215 = vmatpush.msra.mxu0 0.0
    %216 = vmatpush.msra.mxu0 0.0
    %217 = vmatpush.msra.mxu0 0.0
    %218 = vmatpush.msra.mxu0 0.0
    %219 = vmatpush.msra.mxu0 0.0
    %220 = vmatpush.msra.mxu0 0.0
    %221 = vmatpush.msra.mxu0 0.0
    %222 = vmatpush.msra.mxu0 %v175
    %223 = vmatpush.msra.mxu0 %v168
    %224 = vmatpush.msra.mxu0 %v161
    %225 = vmatpush.msra.mxu0 %v154
    %226 = vmatmul.f32.gmra.mxu0 %v188
    %v227 = vpop.f32.mrf.mxu0
    %v228 = vadd.f32 %v208, %v227
    %229 = vdwg.mxu0
    %230 = vmatpush.msra.mxu0 %v148
    %231 = vmatpush.msra.mxu0 %v141
    %232 = vmatpush.msra.mxu0 %v134
    %233 = vmatpush.msra.mxu0 %v127
    %234 = vmatpush.msra.mxu0 %v120
    %235 = vmatpush.msra.mxu0 %v113
    %236 = vmatpush.msra.mxu0 %v106
    %237 = vmatpush.msra.mxu0 %v99
    %238 = vmatpush.msra.mxu0 %v92
    %239 = vmatpush.msra.mxu0 %v85
    %240 = vmatpush.msra.mxu0 %v78
    %241 = vmatpush.msra.mxu0 %v71
    %242 = vmatpush.msra.mxu0 %v64
    %243 = vmatpush.msra.mxu0 %v57
    %244 = vmatpush.msra.mxu0 %v50
    %245 = vmatpush.msra.mxu0 %v43
    %246 = vmatmul.f32.gmra.mxu0 %v184
    %v247 = vpop.f32.mrf.mxu0
    %v248 = vadd.f32 0.0, %v247
    %249 = vdwg.mxu0
    %250 = vmatpush.msra.mxu0 0.0
    %251 = vmatpush.msra.mxu0 0.0
    %252 = vmatpush.msra.mxu0 0.0
    %253 = vmatpush.msra.mxu0 0.0
    %254 = vmatpush.msra.mxu0 0.0
    %255 = vmatpush.msra.mxu0 0.0
    %256 = vmatpush.msra.mxu0 0.0
    %257 = vmatpush.msra.mxu0 0.0
    %258 = vmatpush.msra.mxu0 0.0
    %259 = vmatpush.msra.mxu0 0.0
    %260 = vmatpush.msra.mxu0 0.0
    %261 = vmatpush.msra.mxu0 0.0
    %262 = vmatpush.msra.mxu0 %v176
    %263 = vmatpush.msra.mxu0 %v169
    %264 = vmatpush.msra.mxu0 %v162
    %265 = vmatpush.msra.mxu0 %v155
    %266 = vmatmul.f32.gmra.mxu0 %v188
    %v267 = vpop.f32.mrf.mxu0
    %v268 = vadd.f32 %v248, %v267
    %269 = vdwg.mxu0
    %270 = vmatpush.msra.mxu0 %v149
    %271 = vmatpush.msra.mxu0 %v142
    %272 = vmatpush.msra.mxu0 %v135
    %273 = vmatpush.msra.mxu0 %v128
    %274 = vmatpush.msra.mxu0 %v121
    %275 = vmatpush.msra.mxu0 %v114
    %276 = vmatpush.msra.mxu0 %v107
    %277 = vmatpush.msra.mxu0 %v100
    %278 = vmatpush.msra.mxu0 %v93
    %279 = vmatpush.msra.mxu0 %v86
    %280 = vmatpush.msra.mxu0 %v79
    %281 = vmatpush.msra.mxu0 %v72
    %282 = vmatpush.msra.mxu0 %v65
    %283 = vmatpush.msra.mxu0 %v58
    %284 = vmatpush.msra.mxu0 %v51
    %285 = vmatpush.msra.mxu0 %v44
    %286 = vmatmul.f32.gmra.mxu0 %v184
    %v287 = vpop.f32.mrf.mxu0
    %v288 = vadd.f32 0.0, %v287
    %289 = vdwg.mxu0
    %290 = vmatpush.msra.mxu0 0.0
    %291 = vmatpush.msra.mxu0 0.0
    %292 = vmatpush.msra.mxu0 0.0
    %293 = vmatpush.msra.mxu0 0.0
    %294 = vmatpush.msra.mxu0 0.0
    %295 = vmatpush.msra.mxu0 0.0
    %296 = vmatpush.msra.mxu0 0.0
    %297 = vmatpush.msra.mxu0 0.0
    %298 = vmatpush.msra.mxu0 0.0
    %299 = vmatpush.msra.mxu0 0.0
    %300 = vmatpush.msra.mxu0 0.0
    %301 = vmatpush.msra.mxu0 0.0
    %302 = vmatpush.msra.mxu0 %v177
    %303 = vmatpush.msra.mxu0 %v170
    %304 = vmatpush.msra.mxu0 %v163
    %305 = vmatpush.msra.mxu0 %v156
    %306 = vmatmul.f32.gmra.mxu0 %v188
    %v307 = vpop.f32.mrf.mxu0
    %v308 = vadd.f32 %v288, %v307
    %309 = vdwg.mxu0
    %310 = vmatpush.msra.mxu0 %v150
    %311 = vmatpush.msra.mxu0 %v143
    %312 = vmatpush.msra.mxu0 %v136
    %313 = vmatpush.msra.mxu0 %v129
    %314 = vmatpush.msra.mxu0 %v122
    %315 = vmatpush.msra.mxu0 %v115
    %316 = vmatpush.msra.mxu0 %v108
    %317 = vmatpush.msra.mxu0 %v101
    %318 = vmatpush.msra.mxu0 %v94
    %319 = vmatpush.msra.mxu0 %v87
    %320 = vmatpush.msra.mxu0 %v80
    %321 = vmatpush.msra.mxu0 %v73
    %322 = vmatpush.msra.mxu0 %v66
    %323 = vmatpush.msra.mxu0 %v59
    %324 = vmatpush.msra.mxu0 %v52
    %325 = vmatpush.msra.mxu0 %v45
    %326 = vmatmul.f32.gmra.mxu0 %v184
    %v327 = vpop.f32.mrf.mxu0
    %v328 = vadd.f32 0.0, %v327
    %329 = vdwg.mxu0
    %330 = vmatpush.msra.mxu0 0.0
    %331 = vmatpush.msra.mxu0 0.0
    %332 = vmatpush.msra.mxu0 0.0
    %333 = vmatpush.msra.mxu0 0.0
    %334 = vmatpush.msra.mxu0 0.0
    %335 = vmatpush.msra.mxu0 0.0
    %336 = vmatpush.msra.mxu0 0.0
    %337 = vmatpush.msra.mxu0 0.0
    %338 = vmatpush.msra.mxu0 0.0
    %339 = vmatpush.msra.mxu0 0.0
    %340 = vmatpush.msra.mxu0 0.0
    %341 = vmatpush.msra.mxu0 0.0
    %342 = vmatpush.msra.mxu0 %v178
    %343 = vmatpush.msra.mxu0 %v171
    %344 = vmatpush.msra.mxu0 %v164
    %345 = vmatpush.msra.mxu0 %v157
    %346 = vmatmul.f32.gmra.mxu0 %v188
    %v347 = vpop.f32.mrf.mxu0
    %v348 = vadd.f32 %v328, %v347
    %349 = vdwg.mxu0
    %350 = vmatpush.msra.mxu0 %v151
    %351 = vmatpush.msra.mxu0 %v144
    %352 = vmatpush.msra.mxu0 %v137
    %353 = vmatpush.msra.mxu0 %v130
    %354 = vmatpush.msra.mxu0 %v123
    %355 = vmatpush.msra.mxu0 %v116
    %356 = vmatpush.msra.mxu0 %v109
    %357 = vmatpush.msra.mxu0 %v102
    %358 = vmatpush.msra.mxu0 %v95
    %359 = vmatpush.msra.mxu0 %v88
    %360 = vmatpush.msra.mxu0 %v81
    %361 = vmatpush.msra.mxu0 %v74
    %362 = vmatpush.msra.mxu0 %v67
    %363 = vmatpush.msra.mxu0 %v60
    %364 = vmatpush.msra.mxu0 %v53
    %365 = vmatpush.msra.mxu0 %v46
    %366 = vmatmul.f32.gmra.mxu0 %v184
    %v367 = vpop.f32.mrf.mxu0
    %v368 = vadd.f32 0.0, %v367
    %369 = vdwg.mxu0
    %370 = vmatpush.msra.mxu0 0.0
    %371 = vmatpush.msra.mxu0 0.0
    %372 = vmatpush.msra.mxu0 0.0
    %373 = vmatpush.msra.mxu0 0.0
    %374 = vmatpush.msra.mxu0 0.0
    %375 = vmatpush.msra.mxu0 0.0
    %376 = vmatpush.msra.mxu0 0.0
    %377 = vmatpush.msra.mxu0 0.0
    %378 = vmatpush.msra.mxu0 0.0
    %379 = vmatpush.msra.mxu0 0.0
    %380 = vmatpush.msra.mxu0 0.0
    %381 = vmatpush.msra.mxu0 0.0
    %382 = vmatpush.msra.mxu0 %v179
    %383 = vmatpush.msra.mxu0 %v172
    %384 = vmatpush.msra.mxu0 %v165
    %385 = vmatpush.msra.mxu0 %v158
    %386 = vmatmul.f32.gmra.mxu0 %v188
    %v387 = vpop.f32.mrf.mxu0
    %v388 = vadd.f32 %v368, %v387
    %389 = vdwg.mxu0
    %390 = vmatpush.msra.mxu0 %v152
    %391 = vmatpush.msra.mxu0 %v145
    %392 = vmatpush.msra.mxu0 %v138
    %393 = vmatpush.msra.mxu0 %v131
    %394 = vmatpush.msra.mxu0 %v124
    %395 = vmatpush.msra.mxu0 %v117
    %396 = vmatpush.msra.mxu0 %v110
    %397 = vmatpush.msra.mxu0 %v103
    %398 = vmatpush.msra.mxu0 %v96
    %399 = vmatpush.msra.mxu0 %v89
    %400 = vmatpush.msra.mxu0 %v82
    %401 = vmatpush.msra.mxu0 %v75
    %402 = vmatpush.msra.mxu0 %v68
    %403 = vmatpush.msra.mxu0 %v61
    %404 = vmatpush.msra.mxu0 %v54
    %405 = vmatpush.msra.mxu0 %v47
    %406 = vmatmul.f32.gmra.mxu0 %v184
    %v407 = vpop.f32.mrf.mxu0
    %v408 = vadd.f32 0.0, %v407
    %409 = vdwg.mxu0
    %410 = vmatpush.msra.mxu0 0.0
    %411 = vmatpush.msra.mxu0 0.0
    %412 = vmatpush.msra.mxu0 0.0
    %413 = vmatpush.msra.mxu0 0.0
    %414 = vmatpush.msra.mxu0 0.0
    %415 = vmatpush.msra.mxu0 0.0
    %416 = vmatpush.msra.mxu0 0.0
    %417 = vmatpush.msra.mxu0 0.0
    %418 = vmatpush.msra.mxu0 0.0
    %419 = vmatpush.msra.mxu0 0.0
    %420 = vmatpush.msra.mxu0 0.0
    %421 = vmatpush.msra.mxu0 0.0
    %422 = vmatpush.msra.mxu0 %v180
    %423 = vmatpush.msra.mxu0 %v173
    %424 = vmatpush.msra.mxu0 %v166
    %425 = vmatpush.msra.mxu0 %v159
    %426 = vmatmul.f32.gmra.mxu0 %v188
    %v427 = vpop.f32.mrf.mxu0
    %v428 = vadd.f32 %v408, %v427
    %429 = vdwg.mxu0
    %430 = vmatpush.msra.mxu0 %v153
    %431 = vmatpush.msra.mxu0 %v146
    %432 = vmatpush.msra.mxu0 %v139
    %433 = vmatpush.msra.mxu0 %v132
    %434 = vmatpush.msra.mxu0 %v125
    %435 = vmatpush.msra.mxu0 %v118
    %436 = vmatpush.msra.mxu0 %v111
    %437 = vmatpush.msra.mxu0 %v104
    %438 = vmatpush.msra.mxu0 %v97
    %439 = vmatpush.msra.mxu0 %v90
    %440 = vmatpush.msra.mxu0 %v83
    %441 = vmatpush.msra.mxu0 %v76
    %442 = vmatpush.msra.mxu0 %v69
    %443 = vmatpush.msra.mxu0 %v62
    %444 = vmatpush.msra.mxu0 %v55
    %445 = vmatpush.msra.mxu0 %v48
    %446 = vmatmul.f32.gmra.mxu0 %v184
    %v447 = vpop.f32.mrf.mxu0
    %v448 = vadd.f32 0.0, %v447
    %449 = vdwg.mxu0
    %450 = vmatpush.msra.mxu0 0.0
    %451 = vmatpush.msra.mxu0 0.0
    %452 = vmatpush.msra.mxu0 0.0
    %453 = vmatpush.msra.mxu0 0.0
    %454 = vmatpush.msra.mxu0 0.0
    %455 = vmatpush.msra.mxu0 0.0
    %456 = vmatpush.msra.mxu0 0.0
    %457 = vmatpush.msra.mxu0 0.0
    %458 = vmatpush.msra.mxu0 0.0
    %459 = vmatpush.msra.mxu0 0.0
    %460 = vmatpush.msra.mxu0 0.0
    %461 = vmatpush.msra.mxu0 0.0
    %462 = vmatpush.msra.mxu0 %v181
    %463 = vmatpush.msra.mxu0 %v174
    %464 = vmatpush.msra.mxu0 %v167
    %465 = vmatpush.msra.mxu0 %v160
    %466 = vmatmul.f32.gmra.mxu0 %v188
    %v467 = vpop.f32.mrf.mxu0
    %v468 = vadd.f32 %v448, %v467
    %469 = vdwg.mxu0
    %v477 = vrot.slane %v268, 6
    %v478 = vrot.slane %v308, 4
    %v479 = vrot.slane %v348, 2
    %v480 = vrot.slane %v428, 6
    %v481 = vrot.slane %v468, 4
    %vm482 = vcmask 1041408
    %v483 = vsel %vm482, %v228, %v477
    %vm484 = vcmask 1045508
    %v485 = vsel %vm484, %v478, %v479
    %vm486 = vcmask 1043456
    %v487 = vsel %vm486, %v483, %v485
    %v488 = vsel %vm482, %v388, %v480
    %v489 = vsel %vm486, %v488, %v481
    %492 = vst [vmem:[%s2] sm:$0xff] %v487
    %vm493 = vcmask 1043458
    %vm494 = vmor %vm493, %vm482
    %vm495 = vcmask 734212
    %vm496 = vmor %vm495, %vm494
    %497 = vst.msk [vmem:[%s2 + $0x8] sm:$0x3f] %vm496, %v489
    // Predicated region
    $region18: #{dccrn_forward.9} parent=1 // pred_check
      _
    $region19: #{dccrn_forward.9} parent=1 // pred_check_branch
      %499 = sbr.rel (0) target = $region21
    $region20: #{dccrn_forward.9} parent=1 // pred_region
      _
    $region21: #{dccrn_forward.9} parent=1 // pred_fallthru
      _
    // Predicated region
    $region22: #{dccrn_forward.9} parent=1 // pred_check
      _
    $region23: #{dccrn_forward.9} parent=1 // pred_check_branch
      %501 = sbr.rel (0) target = $region25
    $region24: #{dccrn_forward.9} parent=1 // pred_region
      _
    $region25: #{dccrn_forward.9} parent=1 // pred_fallthru
      _
    %502 = vsyncpa [#allocation3], 1
    %503 = vsyncpa [#allocation5], 1

// kernel: dccrn_forward.10
$region0: #{dccrn_forward.10}
  #allocation0 [shape = 'u32[]', space=smem, size = 0x4, offset = 0x4, fixed_abs, tag = 'smem constant byte address 0x4 - core index']
  #allocation1 [shape = 'u32[72,128]{1,0:T(1,128)}', space=vmem, size = 0x9000, scoped, tag = 'internal scratch']
  #allocation2 [shape = 'f32[1,1]{1,0:T(1,128)S(1)}', space=vmem, size = 0x200, scoped, tag = 'scoped memory for dccrn_forward.10']
  %s0 = inlined_call_operand.vmem [shape: f32[8,20], index: 0, kind: input, shape index: {}]
  %s1 = inlined_call_operand.vmem [shape: f32[20,416], index: 1, kind: input, shape index: {}]
  %s2 = inlined_call_operand.vmem [shape: f32[8,1], index: 2, kind: input, shape index: {}]
  %s3 = inlined_call_operand.vmem [shape: f32[8,1], index: 3, kind: input, shape index: {}]
  %s4 = inlined_call_operand.vmem [shape: f32[8,1], index: 4, kind: input, shape index: {}]
  %s5 = inlined_call_operand.<no memory space> [shape: f32[1,1], index: 5, kind: input, shape index: {}]
  %s6 = inlined_call_operand.vmem [shape: f32[8,416], index: 6, kind: output, shape index: {}]
  %s7 = sld [smem:[#allocation0]]
  $region34: #{dccrn_forward.10} parent=0
    _
  %s9 = ssub.s32 1, %s7
  %s10 = scalar_select 0, %s9, %s7
  %v11 = vstv %s5
  %12 = vst [vmem:[#allocation2] sm:$0x1] %v11
  // Predicated region
  $region2: #{dccrn_forward.10} parent=0 // pred_check
    _
  $region3: #{dccrn_forward.10} parent=0 // pred_check_branch
    %14 = sbr.rel (0) target = $region5
  $region4: #{dccrn_forward.10} parent=0 // pred_region
    _
  $region5: #{dccrn_forward.10} parent=0 // pred_fallthru
    _
  // Predicated region
  $region6: #{dccrn_forward.10} parent=0 // pred_check
    _
  $region7: #{dccrn_forward.10} parent=0 // pred_check_branch
    %16 = sbr.rel (0) target = $region9
  $region8: #{dccrn_forward.10} parent=0 // pred_region
    _
  $region9: #{dccrn_forward.10} parent=0 // pred_fallthru
    _
  // Predicated region
  $region10: #{dccrn_forward.10} parent=0 // pred_check
    _
  $region11: #{dccrn_forward.10} parent=0 // pred_check_branch
    %18 = sbr.rel (0) target = $region13
  $region12: #{dccrn_forward.10} parent=0 // pred_region
    _
  $region13: #{dccrn_forward.10} parent=0 // pred_fallthru
    _
  // Predicated region
  $region14: #{dccrn_forward.10} parent=0 // pred_check
    _
  $region15: #{dccrn_forward.10} parent=0 // pred_check_branch
    %20 = sbr.rel (0) target = $region17
  $region16: #{dccrn_forward.10} parent=0 // pred_region
    _
  $region17: #{dccrn_forward.10} parent=0 // pred_fallthru
    _
  // Predicated region
  $region18: #{dccrn_forward.10} parent=0 // pred_check
    _
  $region19: #{dccrn_forward.10} parent=0 // pred_check_branch
    %22 = sbr.rel (0) target = $region21
  $region20: #{dccrn_forward.10} parent=0 // pred_region
    _
  $region21: #{dccrn_forward.10} parent=0 // pred_fallthru
    _
  // Predicated region
  $region22: #{dccrn_forward.10} parent=0 // pred_check
    _
  $region23: #{dccrn_forward.10} parent=0 // pred_check_branch
    %24 = sbr.rel (0) target = $region25
  $region24: #{dccrn_forward.10} parent=0 // pred_region
    _
  $region25: #{dccrn_forward.10} parent=0 // pred_fallthru
    _
  %v25 = vld [vmem:[%s0] sm:$0xff]
  %v26 = vld [vmem:[%s1] sm:$0xff]
  %v27 = vld [vmem:[%s1 + $0x8] sm:$0xff]
  %v28 = vld [vmem:[%s1 + $0x10] sm:$0xff]
  %v29 = vld [vmem:[%s1 + $0x18] sm:$0xff]
  %v30 = vld [vmem:[%s1 + $0x20] sm:$0xff]
  %v31 = vld [vmem:[%s1 + $0x28] sm:$0xff]
  %v32 = vld [vmem:[%s1 + $0x30] sm:$0xff]
  %v33 = vld [vmem:[%s1 + $0x38] sm:$0xff]
  %v34 = vld [vmem:[%s1 + $0x40] sm:$0xf]
  %v35 = vld [vmem:[%s1 + $0x48] sm:$0xf]
  %v36 = vld [vmem:[%s1 + $0x50] sm:$0xf]
  %v37 = vld [vmem:[%s1 + $0x58] sm:$0xf]
  %v38 = vld [vmem:[%s2] sm:$0xff]
  %40 = vset.pattern.permute.xlu0 0
  %41 = vperm.xlu0 %40, %v38
  %v42 = vpop.permute.xlu0 %41
  %vm44 = vcmask 162816
  %v46 = vsel %vm44, %v25, 0
  %vm48 = vcmask 1043456
  %v50 = vsel %vm48, %v34, 0
  %v53 = vsel %vm48, %v35, 0
  %v56 = vsel %vm48, %v36, 0
  %v59 = vsel %vm48, %v37, 0
  %61 = vmatpush.msra.mxu0 0.0
  %62 = vmatpush.msra.mxu0 0.0
  %63 = vmatpush.msra.mxu0 0.0
  %64 = vmatpush.msra.mxu0 0.0
  %65 = vmatpush.msra.mxu0 0.0
  %66 = vmatpush.msra.mxu0 0.0
  %67 = vmatpush.msra.mxu0 0.0
  %68 = vmatpush.msra.mxu0 0.0
  %69 = vmatpush.msra.mxu0 0.0
  %70 = vmatpush.msra.mxu0 0.0
  %71 = vmatpush.msra.mxu0 0.0
  %72 = vmatpush.msra.mxu0 0.0
  %73 = vmatpush.msra.mxu0 0.0
  %74 = vmatpush.msra.mxu0 %v50
  %75 = vmatpush.msra.mxu0 %v30
  %76 = vmatpush.msra.mxu0 %v26
  %77 = vmatmul.f32.gmra.mxu0 %v46
  %v78 = vpop.f32.mrf.mxu0
  %v79 = vadd.f32 %v42, %v78
  %80 = vdwg.mxu0
  %81 = vmatpush.msra.mxu0 0.0
  %82 = vmatpush.msra.mxu0 0.0
  %83 = vmatpush.msra.mxu0 0.0
  %84 = vmatpush.msra.mxu0 0.0
  %85 = vmatpush.msra.mxu0 0.0
  %86 = vmatpush.msra.mxu0 0.0
  %87 = vmatpush.msra.mxu0 0.0
  %88 = vmatpush.msra.mxu0 0.0
  %89 = vmatpush.msra.mxu0 0.0
  %90 = vmatpush.msra.mxu0 0.0
  %91 = vmatpush.msra.mxu0 0.0
  %92 = vmatpush.msra.mxu0 0.0
  %93 = vmatpush.msra.mxu0 0.0
  %94 = vmatpush.msra.mxu0 %v53
  %95 = vmatpush.msra.mxu0 %v31
  %96 = vmatpush.msra.mxu0 %v27
  %97 = vmatmul.f32.gmra.mxu0 %v46
  %v98 = vpop.f32.mrf.mxu0
  %v99 = vadd.f32 %v42, %v98
  %100 = vdwg.mxu0
  %101 = vmatpush.msra.mxu0 0.0
  %102 = vmatpush.msra.mxu0 0.0
  %103 = vmatpush.msra.mxu0 0.0
  %104 = vmatpush.msra.mxu0 0.0
  %105 = vmatpush.msra.mxu0 0.0
  %106 = vmatpush.msra.mxu0 0.0
  %107 = vmatpush.msra.mxu0 0.0
  %108 = vmatpush.msra.mxu0 0.0
  %109 = vmatpush.msra.mxu0 0.0
  %110 = vmatpush.msra.mxu0 0.0
  %111 = vmatpush.msra.mxu0 0.0
  %112 = vmatpush.msra.mxu0 0.0
  %113 = vmatpush.msra.mxu0 0.0
  %114 = vmatpush.msra.mxu0 %v56
  %115 = vmatpush.msra.mxu0 %v32
  %116 = vmatpush.msra.mxu0 %v28
  %117 = vmatmul.f32.gmra.mxu0 %v46
  %v118 = vpop.f32.mrf.mxu0
  %v119 = vadd.f32 %v42, %v118
  %120 = vdwg.mxu0
  %121 = vmatpush.msra.mxu0 0.0
  %122 = vmatpush.msra.mxu0 0.0
  %123 = vmatpush.msra.mxu0 0.0
  %124 = vmatpush.msra.mxu0 0.0
  %125 = vmatpush.msra.mxu0 0.0
  %126 = vmatpush.msra.mxu0 0.0
  %127 = vmatpush.msra.mxu0 0.0
  %128 = vmatpush.msra.mxu0 0.0
  %129 = vmatpush.msra.mxu0 0.0
  %130 = vmatpush.msra.mxu0 0.0
  %131 = vmatpush.msra.mxu0 0.0
  %132 = vmatpush.msra.mxu0 0.0
  %133 = vmatpush.msra.mxu0 0.0
  %134 = vmatpush.msra.mxu0 %v59
  %135 = vmatpush.msra.mxu0 %v33
  %136 = vmatpush.msra.mxu0 %v29
  %137 = vmatmul.f32.gmra.mxu0 %v46
  %v138 = vpop.f32.mrf.mxu0
  %v139 = vadd.f32 %v42, %v138
  %140 = vdwg.mxu0
  %v141 = vadd.f32 %v79, %v99
  %v142 = vadd.f32 %v141, %v119
  %vm143 = vcmask 261120
  %v144 = vsel %vm143, %v139, 0.0
  %v145 = vadd.f32 %v142, %v144
  %146 = vadd.xlane.f32.xlu0 %v145
  %v147 = vpop.xlane.xlu0 %146
  %v148 = vrcp.pop 416.0
  %v149 = vmul.f32 416.0, %v148
  %v150 = vsub.f32 1.0, %v149
  %v151 = vmul.f32 %v148, %v150
  %v152 = vadd.f32 %v148, %v151
  %vm153 = vweird.f32 %v148
  %v154 = vsel %vm153, %v148, %v152
  %v155 = vmul.f32 %v147, %v154
  %v156 = vmul.f32 %v79, %v79
  %v157 = vmul.f32 %v99, %v99
  %v158 = vmul.f32 %v119, %v119
  %v159 = vmul.f32 %v139, %v139
  %v160 = vadd.f32 %v156, %v157
  %v161 = vadd.f32 %v160, %v158
  %v162 = vsel %vm143, %v159, 0.0
  %v163 = vadd.f32 %v161, %v162
  %164 = vadd.xlane.f32.xlu0 %v163
  %v165 = vpop.xlane.xlu0 %164
  %v166 = vmul.f32 %v165, %v154
  %v167 = vmul.f32 %v155, %v155
  %v168 = vsub.f32 %v166, %v167
  %v169 = vsub.f32 %v79, %v155
  %v170 = vsub.f32 %v99, %v155
  %v171 = vsub.f32 %v119, %v155
  %v172 = vsub.f32 %v139, %v155
  %v173 = vadd.f32 %v168, 1e-05
  %v174 = vrsqrt.pop %v173
  %v175 = vmul.f32 %v174, %v173
  %v176 = vmul.f32 %v175, %v174
  %v177 = vmul.f32 0.5, %v176
  %v178 = vsub.f32 1.5, %v177
  %v179 = vmul.f32 %v174, %v178
  %vm180 = vweird.f32 %v173
  %vm181 = vweird.f32 %v174
  %vm182 = vmor %vm180, %vm181
  %v183 = vsel %vm182, %v174, %v179
  %v184 = vmul.f32 %v169, %v183
  %v185 = vmul.f32 %v170, %v183
  %v186 = vmul.f32 %v171, %v183
  %v187 = vmul.f32 %v172, %v183
  %v188 = vld [vmem:[%s3] sm:$0xff]
  %190 = vset.pattern.permute.xlu0 0
  %191 = vperm.xlu0 %190, %v188
  %v192 = vpop.permute.xlu0 %191
  %v194 = vmul.f32 %v184, %v192
  %v195 = vmul.f32 %v185, %v192
  %v196 = vmul.f32 %v186, %v192
  %v197 = vmul.f32 %v187, %v192
  %v198 = vld [vmem:[%s4] sm:$0xff]
  %200 = vset.pattern.permute.xlu0 0
  %201 = vperm.xlu0 %200, %v198
  %v202 = vpop.permute.xlu0 %201
  %v204 = vadd.f32 %v194, %v202
  %v205 = vadd.f32 %v195, %v202
  %v206 = vadd.f32 %v196, %v202
  %v207 = vadd.f32 %v197, %v202
  %vm208 = vcmp.ge.f32.partialorder %v204, 0.0
  %vm209 = vcmp.ge.f32.partialorder %v205, 0.0
  %vm210 = vcmp.ge.f32.partialorder %v206, 0.0
  %vm211 = vcmp.ge.f32.partialorder %v207, 0.0
  %v212 = vld [vmem:[#allocation2] sm:$0x1]
  %v214 = vperm.slane %v212, 0
  %215 = vset.pattern.permute.xlu0 0
  %216 = vperm.xlu0 %215, %v214
  %v217 = vpop.permute.xlu0 %216
  %v219 = vmul.f32 %v217, %v204
  %v220 = vmul.f32 %v217, %v205
  %v221 = vmul.f32 %v217, %v206
  %v222 = vmul.f32 %v217, %v207
  %v223 = vsel %vm208, %v204, %v219
  %v224 = vsel %vm209, %v205, %v220
  %v225 = vsel %vm210, %v206, %v221
  %v226 = vsel %vm211, %v207, %v222
  %227 = vst [vmem:[%s6] sm:$0xff] %v223
  %228 = vst [vmem:[%s6 + $0x8] sm:$0xff] %v224
  %229 = vst [vmem:[%s6 + $0x10] sm:$0xff] %v225
  %230 = vst.msk [vmem:[%s6 + $0x18] sm:$0xff] %vm143, %v226
  // Predicated region
  $region26: #{dccrn_forward.10} parent=0 // pred_check
    _
  $region27: #{dccrn_forward.10} parent=0 // pred_check_branch
    %232 = sbr.rel (0) target = $region29
  $region28: #{dccrn_forward.10} parent=0 // pred_region
    _
  $region29: #{dccrn_forward.10} parent=0 // pred_fallthru
    _
  // Predicated region
  $region30: #{dccrn_forward.10} parent=0 // pred_check
    _
  $region31: #{dccrn_forward.10} parent=0 // pred_check_branch
    %234 = sbr.rel (0) target = $region33
  $region32: #{dccrn_forward.10} parent=0 // pred_region
    _
  $region33: #{dccrn_forward.10} parent=0 // pred_fallthru
    _

// kernel: dccrn_forward.11
$region0: #{dccrn_forward.11}
  #allocation0 [shape = 'u32[]', space=smem, size = 0x4, offset = 0x4, fixed_abs, tag = 'smem constant byte address 0x4 - core index']
  #allocation1 [shape = 'u32[72,128]{1,0:T(1,128)}', space=vmem, size = 0x9000, scoped, tag = 'internal scratch']
  #allocation2 [shape = 'f32[1,1]{1,0:T(1,128)S(1)}', space=vmem, size = 0x200, scoped, tag = 'scoped memory for dccrn_forward.11']
  %s0 = inlined_call_operand.vmem [shape: f32[16,80], index: 0, kind: input, shape index: {}]
  %s1 = inlined_call_operand.vmem [shape: f32[80,208], index: 1, kind: input, shape index: {}]
  %s2 = inlined_call_operand.vmem [shape: f32[16,1], index: 2, kind: input, shape index: {}]
  %s3 = inlined_call_operand.vmem [shape: f32[16,1], index: 3, kind: input, shape index: {}]
  %s4 = inlined_call_operand.vmem [shape: f32[16,1], index: 4, kind: input, shape index: {}]
  %s5 = inlined_call_operand.<no memory space> [shape: f32[1,1], index: 5, kind: input, shape index: {}]
  %s6 = inlined_call_operand.vmem [shape: f32[16,208], index: 6, kind: output, shape index: {}]
  %s7 = sld [smem:[#allocation0]]
  $region57: #{dccrn_forward.11} parent=0
    _
  %s9 = ssub.s32 1, %s7
  %s10 = scalar_select 0, %s9, %s7
  %v11 = vstv %s5
  %12 = vst [vmem:[#allocation2] sm:$0x1] %v11
  loop: start=0, step=1, limit=4
  $region2: #{dccrn_forward.11} parent=0 // loop_pre_header
    _
  $region3: #{dccrn_forward.11} parent=0 // loop_header
    %s14 = sphi 0, %s18
    %p15 = scmp.ge.s32.totalorder %s14, 4
    %s24 = sphi 0, %s26
    %s27 = sphi 0, %s24
    %s28 = sphi 0, %s27
    %s44 = sphi 0, %s28
    %s48 = sphi 0, %s48
    %s50 = sphi 0, %s48
    %s51 = sphi 0, %s50
    %s65 = sphi 0, %s51
    %s71 = sphi 0, %s73
    %s74 = sphi 0, %s71
    %s75 = sphi 0, %s74
    %s91 = sphi 0, %s75
    %s97 = sphi 0, %s99
    %s100 = sphi 0, %s97
    %s101 = sphi 0, %s100
    %s117 = sphi 0, %s101
    %s123 = sphi 0, %s125
    %s126 = sphi 0, %s123
    %s127 = sphi 0, %s126
    %s143 = sphi 0, %s127
    %s147 = sphi 0, %s147
    %s149 = sphi 0, %s147
    %s150 = sphi 0, %s149
    %s164 = sphi 0, %s150
    %s170 = sphi 0, %s172
    %s173 = sphi 0, %s170
    %s174 = sphi 0, %s173
    %s190 = sphi 0, %s174
  $region4: #{dccrn_forward.11} parent=0 // loop_header_branch
    %17 = sbr.rel (%p15) target = $region8
  $region5: #{dccrn_forward.11} parent=0 // loop_body
    %s19 = ssub.s32 %s14, 1
    %s20 = ssub.s32 %s14, 2
    %s21 = sadd.s32 %s14, 1
    %s22 = ssub.s32 %s14, %s21
    %p23 = scmp.eq.s32.totalorder %s22, 0
    %s25 = sadd.s32 %s24, 1
    %s26 = scalar_select %p23, %s24, %s25
    %p29 = pneg %p23
    %p30 = scmp.eq.s32.totalorder %s14, 1
    %p31 = por %p29, %p30
    %p32 = scmp.ne.s32.totalorder %s24, %s27
    %p33 = scmp.eq.s32.totalorder %s14, 0
    %p34 = por %p32, %p33
    %p35 = scmp.ne.s32.totalorder %s24, %s27
    %p36 = scmp.eq.s32.totalorder %s19, 1
    %p37 = por %p35, %p36
    %p38 = scmp.ne.s32.totalorder %s27, %s28
    %p39 = scmp.eq.s32.totalorder %s19, 0
    %p40 = por %p38, %p39
    %p41 = scmp.ne.s32.totalorder %s27, %s28
    %p42 = scmp.eq.s32.totalorder %s20, 1
    %p43 = por %p41, %p42
    %p45 = scmp.ne.s32.totalorder %s28, %s44
    %p46 = scmp.eq.s32.totalorder %s20, 0
    %p47 = por %p45, %p46
    %s49 = sadd.s32 %s48, 1
    %p52 = scmp.eq.s32.totalorder %s14, 1
    %p53 = scmp.ne.s32.totalorder %s48, %s50
    %p54 = scmp.eq.s32.totalorder %s14, 0
    %p55 = por %p53, %p54
    %p56 = scmp.ne.s32.totalorder %s48, %s50
    %p57 = scmp.eq.s32.totalorder %s19, 1
    %p58 = por %p56, %p57
    %p59 = scmp.ne.s32.totalorder %s50, %s51
    %p60 = scmp.eq.s32.totalorder %s19, 0
    %p61 = por %p59, %p60
    %p62 = scmp.ne.s32.totalorder %s50, %s51
    %p63 = scmp.eq.s32.totalorder %s20, 1
    %p64 = por %p62, %p63
    %p66 = scmp.ne.s32.totalorder %s51, %s65
    %p67 = scmp.eq.s32.totalorder %s20, 0
    %p68 = por %p66, %p67
    %s69 = ssub.s32 %s14, %s21
    %p70 = scmp.eq.s32.totalorder %s69, 0
    %s72 = sadd.s32 %s71, 1
    %s73 = scalar_select %p70, %s71, %s72
    %p76 = pneg %p70
    %p77 = scmp.eq.s32.totalorder %s14, 1
    %p78 = por %p76, %p77
    %p79 = scmp.ne.s32.totalorder %s71, %s74
    %p80 = scmp.eq.s32.totalorder %s14, 0
    %p81 = por %p79, %p80
    %p82 = scmp.ne.s32.totalorder %s71, %s74
    %p83 = scmp.eq.s32.totalorder %s19, 1
    %p84 = por %p82, %p83
    %p85 = scmp.ne.s32.totalorder %s74, %s75
    %p86 = scmp.eq.s32.totalorder %s19, 0
    %p87 = por %p85, %p86
    %p88 = scmp.ne.s32.totalorder %s74, %s75
    %p89 = scmp.eq.s32.totalorder %s20, 1
    %p90 = por %p88, %p89
    %p92 = scmp.ne.s32.totalorder %s75, %s91
    %p93 = scmp.eq.s32.totalorder %s20, 0
    %p94 = por %p92, %p93
    %s95 = ssub.s32 %s14, %s21
    %p96 = scmp.eq.s32.totalorder %s95, 0
    %s98 = sadd.s32 %s97, 1
    %s99 = scalar_select %p96, %s97, %s98
    %p102 = pneg %p96
    %p103 = scmp.eq.s32.totalorder %s14, 1
    %p104 = por %p102, %p103
    %p105 = scmp.ne.s32.totalorder %s97, %s100
    %p106 = scmp.eq.s32.totalorder %s14, 0
    %p107 = por %p105, %p106
    %p108 = scmp.ne.s32.totalorder %s97, %s100
    %p109 = scmp.eq.s32.totalorder %s19, 1
    %p110 = por %p108, %p109
    %p111 = scmp.ne.s32.totalorder %s100, %s101
    %p112 = scmp.eq.s32.totalorder %s19, 0
    %p113 = por %p111, %p112
    %p114 = scmp.ne.s32.totalorder %s100, %s101
    %p115 = scmp.eq.s32.totalorder %s20, 1
    %p116 = por %p114, %p115
    %p118 = scmp.ne.s32.totalorder %s101, %s117
    %p119 = scmp.eq.s32.totalorder %s20, 0
    %p120 = por %p118, %p119
    %s121 = ssub.s32 %s14, %s21
    %p122 = scmp.eq.s32.totalorder %s121, 0
    %s124 = sadd.s32 %s123, 1
    %s125 = scalar_select %p122, %s123, %s124
    %p128 = pneg %p122
    %p129 = scmp.eq.s32.totalorder %s14, 1
    %p130 = por %p128, %p129
    %p131 = scmp.ne.s32.totalorder %s123, %s126
    %p132 = scmp.eq.s32.totalorder %s14, 0
    %p133 = por %p131, %p132
    %p134 = scmp.ne.s32.totalorder %s123, %s126
    %p135 = scmp.eq.s32.totalorder %s19, 1
    %p136 = por %p134, %p135
    %p137 = scmp.ne.s32.totalorder %s126, %s127
    %p138 = scmp.eq.s32.totalorder %s19, 0
    %p139 = por %p137, %p138
    %p140 = scmp.ne.s32.totalorder %s126, %s127
    %p141 = scmp.eq.s32.totalorder %s20, 1
    %p142 = por %p140, %p141
    %p144 = scmp.ne.s32.totalorder %s127, %s143
    %p145 = scmp.eq.s32.totalorder %s20, 0
    %p146 = por %p144, %p145
    %s148 = sadd.s32 %s147, 1
    %p151 = scmp.eq.s32.totalorder %s14, 1
    %p152 = scmp.ne.s32.totalorder %s147, %s149
    %p153 = scmp.eq.s32.totalorder %s14, 0
    %p154 = por %p152, %p153
    %p155 = scmp.ne.s32.totalorder %s147, %s149
    %p156 = scmp.eq.s32.totalorder %s19, 1
    %p157 = por %p155, %p156
    %p158 = scmp.ne.s32.totalorder %s149, %s150
    %p159 = scmp.eq.s32.totalorder %s19, 0
    %p160 = por %p158, %p159
    %p161 = scmp.ne.s32.totalorder %s149, %s150
    %p162 = scmp.eq.s32.totalorder %s20, 1
    %p163 = por %p161, %p162
    %p165 = scmp.ne.s32.totalorder %s150, %s164
    %p166 = scmp.eq.s32.totalorder %s20, 0
    %p167 = por %p165, %p166
    %s168 = ssub.s32 %s14, %s21
    %p169 = scmp.eq.s32.totalorder %s168, 0
    %s171 = sadd.s32 %s170, 1
    %s172 = scalar_select %p169, %s170, %s171
    %p175 = pneg %p169
    %p176 = scmp.eq.s32.totalorder %s14, 1
    %p177 = por %p175, %p176
    %p178 = scmp.ne.s32.totalorder %s170, %s173
    %p179 = scmp.eq.s32.totalorder %s14, 0
    %p180 = por %p178, %p179
    %p181 = scmp.ne.s32.totalorder %s170, %s173
    %p182 = scmp.eq.s32.totalorder %s19, 1
    %p183 = por %p181, %p182
    %p184 = scmp.ne.s32.totalorder %s173, %s174
    %p185 = scmp.eq.s32.totalorder %s19, 0
    %p186 = por %p184, %p185
    %p187 = scmp.ne.s32.totalorder %s173, %s174
    %p188 = scmp.eq.s32.totalorder %s20, 1
    %p189 = por %p187, %p188
    %p191 = scmp.ne.s32.totalorder %s174, %s190
    %p192 = scmp.eq.s32.totalorder %s20, 0
    %p193 = por %p191, %p192
    %p194 = scmp.le.s32.totalorder 1, %s14
    %p195 = scmp.lt.s32.totalorder %s14, 3
    %p196 = pnand %p194, %p195
    %p197 = pneg %p196
    // Predicated region
    $region9: #{dccrn_forward.11} parent=5 // pred_check
      _
    $region10: #{dccrn_forward.11} parent=5 // pred_check_branch
      %199 = sbr.rel (%p196) target = $region12
    $region11: #{dccrn_forward.11} parent=5 // pred_region
      %s200 = ssub.s32 %s14, 1
      // Predicated region
      $region13: #{dccrn_forward.11} parent=11 // pred_check
        %p201 = pneg %p61
      $region14: #{dccrn_forward.11} parent=11 // pred_check_branch
        %203 = sbr.rel (%p201) target = $region16
      $region15: #{dccrn_forward.11} parent=11 // pred_region
        _
      $region16: #{dccrn_forward.11} parent=11 // pred_fallthru
        _
      // Predicated region
      $region17: #{dccrn_forward.11} parent=11 // pred_check
        %p204 = pneg %p160
      $region18: #{dccrn_forward.11} parent=11 // pred_check_branch
        %206 = sbr.rel (%p204) target = $region20
      $region19: #{dccrn_forward.11} parent=11 // pred_region
        _
      $region20: #{dccrn_forward.11} parent=11 // pred_fallthru
        _
    $region12: #{dccrn_forward.11} parent=5 // pred_fallthru
      _
    %p207 = scmp.lt.s32.totalorder %s14, 2
    // Predicated region
    $region21: #{dccrn_forward.11} parent=5 // pred_check
      %p208 = pneg %p207
    $region22: #{dccrn_forward.11} parent=5 // pred_check_branch
      %210 = sbr.rel (%p208) target = $region24
    $region23: #{dccrn_forward.11} parent=5 // pred_region
      // Predicated region
      $region25: #{dccrn_forward.11} parent=23 // pred_check
        %p211 = pneg %p34
      $region26: #{dccrn_forward.11} parent=23 // pred_check_branch
        %213 = sbr.rel (%p211) target = $region28
      $region27: #{dccrn_forward.11} parent=23 // pred_region
        %p214 = scmp.lt.s32.totalorder %s14, 1
        %s215 = scalar_select %p214, %s14, 1
        %s216 = smul.addr %s215, 8
        %s217 = scalar_lea.vmem %s0, %s216
      $region28: #{dccrn_forward.11} parent=23 // pred_fallthru
        _
      // Predicated region
      $region29: #{dccrn_forward.11} parent=23 // pred_check
        %p218 = pneg %p81
      $region30: #{dccrn_forward.11} parent=23 // pred_check_branch
        %220 = sbr.rel (%p218) target = $region32
      $region31: #{dccrn_forward.11} parent=23 // pred_region
        %p221 = scmp.lt.s32.totalorder %s14, 1
        %s222 = scalar_select %p221, %s14, 1
        %s223 = smul.addr %s222, 8
        %s224 = scalar_lea.vmem %s2, %s223
      $region32: #{dccrn_forward.11} parent=23 // pred_fallthru
        _
      // Predicated region
      $region33: #{dccrn_forward.11} parent=23 // pred_check
        %p225 = pneg %p107
      $region34: #{dccrn_forward.11} parent=23 // pred_check_branch
        %227 = sbr.rel (%p225) target = $region36
      $region35: #{dccrn_forward.11} parent=23 // pred_region
        %p228 = scmp.lt.s32.totalorder %s14, 1
        %s229 = scalar_select %p228, %s14, 1
        %s230 = smul.addr %s229, 8
        %s231 = scalar_lea.vmem %s3, %s230
      $region36: #{dccrn_forward.11} parent=23 // pred_fallthru
        _
      // Predicated region
      $region37: #{dccrn_forward.11} parent=23 // pred_check
        %p232 = pneg %p133
      $region38: #{dccrn_forward.11} parent=23 // pred_check_branch
        %234 = sbr.rel (%p232) target = $region40
      $region39: #{dccrn_forward.11} parent=23 // pred_region
        %p235 = scmp.lt.s32.totalorder %s14, 1
        %s236 = scalar_select %p235, %s14, 1
        %s237 = smul.addr %s236, 8
        %s238 = scalar_lea.vmem %s4, %s237
      $region40: #{dccrn_forward.11} parent=23 // pred_fallthru
        _
    $region24: #{dccrn_forward.11} parent=5 // pred_fallthru
      _
    %p239 = scmp.le.s32.totalorder 1, %s14
    %p240 = scmp.lt.s32.totalorder %s14, 3
    %p241 = pnand %p239, %p240
    %p242 = pneg %p241
    // Predicated region
    $region41: #{dccrn_forward.11} parent=5 // pred_check
      _
    $region42: #{dccrn_forward.11} parent=5 // pred_check_branch
      %244 = sbr.rel (%p241) target = $region44
    $region43: #{dccrn_forward.11} parent=5 // pred_region
      %s245 = ssub.s32 %s14, 1
      %p246 = scmp.lt.s32.totalorder %s19, 1
      %s247 = scalar_select %p246, %s19, 1
      %s248 = smul.addr %s247, 8
      %s249 = scalar_lea.vmem %s0, %s248
      %p250 = pneg %p40
      %p251 = pneg %p37
      %p252 = pneg %p61
      %p253 = pneg %p58
      %p254 = scmp.lt.s32.totalorder %s19, 1
      %s255 = scalar_select %p254, %s19, 1
      %s256 = smul.addr %s255, 8
      %s257 = scalar_lea.vmem %s2, %s256
      %p258 = pneg %p87
      %p259 = pneg %p84
      %p260 = scmp.lt.s32.totalorder %s19, 1
      %s261 = scalar_select %p260, %s19, 1
      %s262 = smul.addr %s261, 8
      %s263 = scalar_lea.vmem %s3, %s262
      %p264 = pneg %p113
      %p265 = pneg %p110
      %p266 = scmp.lt.s32.totalorder %s19, 1
      %s267 = scalar_select %p266, %s19, 1
      %s268 = smul.addr %s267, 8
      %s269 = scalar_lea.vmem %s4, %s268
      %p270 = pneg %p139
      %p271 = pneg %p136
      %p272 = pneg %p160
      %p273 = pneg %p157
      %p274 = pneg %p186
      %p275 = pneg %p183
      %p276 = scmp.lt.s32.totalorder %s19, 1
      %s277 = scalar_select %p276, %s19, 1
      %s278 = smul.addr %s277, 2
      %s279 = smul.addr %s278, 8
      %s280 = scalar_lea.vmem %s6, %s279
      %p281 = scmp.lt.s32.totalorder %s19, 1
      %s282 = scalar_select %p281, %s19, 1
      %s283 = smul.addr %s282, 8
      %s284 = scalar_lea.vmem %s0, %s283
      %p285 = scmp.lt.s32.totalorder %s19, 1
      %s286 = scalar_select %p285, %s19, 1
      %s287 = smul.addr %s286, 8
      %s288 = scalar_lea.vmem %s2, %s287
      %p289 = scmp.lt.s32.totalorder %s19, 1
      %s290 = scalar_select %p289, %s19, 1
      %s291 = smul.addr %s290, 8
      %s292 = scalar_lea.vmem %s3, %s291
      %p293 = scmp.lt.s32.totalorder %s19, 1
      %s294 = scalar_select %p293, %s19, 1
      %s295 = smul.addr %s294, 8
      %s296 = scalar_lea.vmem %s4, %s295
      %p297 = scmp.lt.s32.totalorder %s19, 1
      %s298 = scalar_select %p297, %s19, 1
      %s299 = smul.addr %s298, 2
      %s300 = smul.addr %s299, 8
      %s301 = scalar_lea.vmem %s6, %s300
      %v302 = vld [vmem:[%s284] sm:$0xff]
      %v303 = vld [vmem:[%s1] sm:$0xff]
      %v304 = vld [vmem:[%s1 + $0x8] sm:$0xff]
      %v305 = vld [vmem:[%s1 + $0x10] sm:$0xff]
      %v306 = vld [vmem:[%s1 + $0x18] sm:$0xff]
      %v307 = vld [vmem:[%s1 + $0x20] sm:$0xff]
      %v308 = vld [vmem:[%s1 + $0x28] sm:$0xff]
      %v309 = vld [vmem:[%s1 + $0x30] sm:$0xff]
      %v310 = vld [vmem:[%s1 + $0x38] sm:$0xff]
      %v311 = vld [vmem:[%s1 + $0x40] sm:$0xff]
      %v312 = vld [vmem:[%s1 + $0x48] sm:$0xff]
      %v313 = vld [vmem:[%s1 + $0x50] sm:$0xff]
      %v314 = vld [vmem:[%s1 + $0x58] sm:$0xff]
      %v315 = vld [vmem:[%s1 + $0x60] sm:$0xff]
      %v316 = vld [vmem:[%s1 + $0x68] sm:$0xff]
      %v317 = vld [vmem:[%s1 + $0x70] sm:$0xff]
      %v318 = vld [vmem:[%s1 + $0x78] sm:$0xff]
      %v319 = vld [vmem:[%s1 + $0x80] sm:$0xff]
      %v320 = vld [vmem:[%s1 + $0x88] sm:$0xff]
      %v321 = vld [vmem:[%s1 + $0x90] sm:$0xff]
      %v322 = vld [vmem:[%s1 + $0x98] sm:$0xff]
      %v323 = vld [vmem:[%s288] sm:$0xff]
      %325 = vset.pattern.permute.xlu0 0
      %326 = vperm.xlu0 %325, %v323
      %v327 = vpop.permute.xlu0 %326
      %vm329 = vcmask 654336
      %v331 = vsel %vm329, %v302, 0
      %333 = vmatpush.msra.mxu0 0.0
      %334 = vmatpush.msra.mxu0 0.0
      %335 = vmatpush.msra.mxu0 0.0
      %336 = vmatpush.msra.mxu0 0.0
      %337 = vmatpush.msra.mxu0 0.0
      %338 = vmatpush.msra.mxu0 0.0
      %339 = vmatpush.msra.mxu0 %v321
      %340 = vmatpush.msra.mxu0 %v319
      %341 = vmatpush.msra.mxu0 %v317
      %342 = vmatpush.msra.mxu0 %v315
      %343 = vmatpush.msra.mxu0 %v313
      %344 = vmatpush.msra.mxu0 %v311
      %345 = vmatpush.msra.mxu0 %v309
      %346 = vmatpush.msra.mxu0 %v307
      %347 = vmatpush.msra.mxu0 %v305
      %348 = vmatpush.msra.mxu0 %v303
      %349 = vmatmul.f32.gmra.mxu0 %v331
      %v350 = vpop.f32.mrf.mxu0
      %v351 = vadd.f32 %v327, %v350
      %352 = vdwg.mxu0
      %353 = vmatpush.msra.mxu0 0.0
      %354 = vmatpush.msra.mxu0 0.0
      %355 = vmatpush.msra.mxu0 0.0
      %356 = vmatpush.msra.mxu0 0.0
      %357 = vmatpush.msra.mxu0 0.0
      %358 = vmatpush.msra.mxu0 0.0
      %359 = vmatpush.msra.mxu0 %v322
      %360 = vmatpush.msra.mxu0 %v320
      %361 = vmatpush.msra.mxu0 %v318
      %362 = vmatpush.msra.mxu0 %v316
      %363 = vmatpush.msra.mxu0 %v314
      %364 = vmatpush.msra.mxu0 %v312
      %365 = vmatpush.msra.mxu0 %v310
      %366 = vmatpush.msra.mxu0 %v308
      %367 = vmatpush.msra.mxu0 %v306
      %368 = vmatpush.msra.mxu0 %v304
      %369 = vmatmul.f32.gmra.mxu0 %v331
      %v370 = vpop.f32.mrf.mxu0
      %v371 = vadd.f32 %v327, %v370
      %372 = vdwg.mxu0
      %v373 = vsel %vm329, %v371, 0.0
      %v374 = vadd.f32 %v351, %v373
      %375 = vadd.xlane.f32.xlu0 %v374
      %v376 = vpop.xlane.xlu0 %375
      %v377 = vrcp.pop 208.0
      %v378 = vmul.f32 208.0, %v377
      %v379 = vsub.f32 1.0, %v378
      %v380 = vmul.f32 %v377, %v379
      %v381 = vadd.f32 %v377, %v380
      %vm382 = vweird.f32 %v377
      %v383 = vsel %vm382, %v377, %v381
      %v384 = vmul.f32 %v376, %v383
      %v385 = vmul.f32 %v351, %v351
      %v386 = vmul.f32 %v371, %v371
      %v387 = vsel %vm329, %v386, 0.0
      %v388 = vadd.f32 %v385, %v387
      %389 = vadd.xlane.f32.xlu0 %v388
      %v390 = vpop.xlane.xlu0 %389
      %v391 = vmul.f32 %v390, %v383
      %v392 = vmul.f32 %v384, %v384
      %v393 = vsub.f32 %v391, %v392
      %v394 = vsub.f32 %v351, %v384
      %v395 = vsub.f32 %v371, %v384
      %v396 = vadd.f32 %v393, 1e-05
      %v397 = vrsqrt.pop %v396
      %v398 = vmul.f32 %v397, %v396
      %v399 = vmul.f32 %v398, %v397
      %v400 = vmul.f32 0.5, %v399
      %v401 = vsub.f32 1.5, %v400
      %v402 = vmul.f32 %v397, %v401
      %vm403 = vweird.f32 %v396
      %vm404 = vweird.f32 %v397
      %vm405 = vmor %vm403, %vm404
      %v406 = vsel %vm405, %v397, %v402
      %v407 = vmul.f32 %v394, %v406
      %v408 = vmul.f32 %v395, %v406
      %v409 = vld [vmem:[%s292] sm:$0xff]
      %411 = vset.pattern.permute.xlu0 0
      %412 = vperm.xlu0 %411, %v409
      %v413 = vpop.permute.xlu0 %412
      %v415 = vmul.f32 %v407, %v413
      %v416 = vmul.f32 %v408, %v413
      %v417 = vld [vmem:[%s296] sm:$0xff]
      %419 = vset.pattern.permute.xlu0 0
      %420 = vperm.xlu0 %419, %v417
      %v421 = vpop.permute.xlu0 %420
      %v423 = vadd.f32 %v415, %v421
      %v424 = vadd.f32 %v416, %v421
      %vm425 = vcmp.ge.f32.partialorder %v423, 0.0
      %vm426 = vcmp.ge.f32.partialorder %v424, 0.0
      %v427 = vld [vmem:[#allocation2] sm:$0x1]
      %v429 = vperm.slane %v427, 0
      %430 = vset.pattern.permute.xlu0 0
      %431 = vperm.xlu0 %430, %v429
      %v432 = vpop.permute.xlu0 %431
      %v434 = vmul.f32 %v432, %v423
      %v435 = vmul.f32 %v432, %v424
      %v436 = vsel %vm425, %v423, %v434
      %v437 = vsel %vm426, %v424, %v435
      %438 = vst [vmem:[%s301] sm:$0xff] %v436
      %439 = vst.msk [vmem:[%s301 + $0x8] sm:$0xff] %vm329, %v437
      %p440 = scmp.lt.s32.totalorder %s19, 1
      %s441 = scalar_select %p440, %s19, 1
      %s442 = smul.addr %s441, 2
      %s443 = smul.addr %s442, 8
      %s444 = scalar_lea.vmem %s6, %s443
      // Predicated region
      $region45: #{dccrn_forward.11} parent=43 // pred_check
        %p445 = pneg %p183
      $region46: #{dccrn_forward.11} parent=43 // pred_check_branch
        %447 = sbr.rel (%p445) target = $region48
      $region47: #{dccrn_forward.11} parent=43 // pred_region
        _
      $region48: #{dccrn_forward.11} parent=43 // pred_fallthru
        _
    $region44: #{dccrn_forward.11} parent=5 // pred_fallthru
      _
    %p448 = scmp.le.s32.totalorder 2, %s14
    // Predicated region
    $region49: #{dccrn_forward.11} parent=5 // pred_check
      %p449 = pneg %p448
    $region50: #{dccrn_forward.11} parent=5 // pred_check_branch
      %451 = sbr.rel (%p449) target = $region52
    $region51: #{dccrn_forward.11} parent=5 // pred_region
      %s452 = ssub.s32 %s14, 2
      // Predicated region
      $region53: #{dccrn_forward.11} parent=51 // pred_check
        %p453 = pneg %p189
      $region54: #{dccrn_forward.11} parent=51 // pred_check_branch
        %455 = sbr.rel (%p453) target = $region56
      $region55: #{dccrn_forward.11} parent=51 // pred_region
        %p456 = scmp.lt.s32.totalorder %s20, 1
        %s457 = scalar_select %p456, %s20, 1
        %s458 = smul.addr %s457, 2
        %s459 = smul.addr %s458, 8
        %s460 = scalar_lea.vmem %s6, %s459
      $region56: #{dccrn_forward.11} parent=51 // pred_fallthru
        _
    $region52: #{dccrn_forward.11} parent=5 // pred_fallthru
      _
  $region6: #{dccrn_forward.11} parent=0 // loop_footer
    %s18 = sadd.s32 1, %s14
  $region7: #{dccrn_forward.11} parent=0 // loop_footer_branch
    %13 = sbr.rel target = $region3
  $region8: #{dccrn_forward.11} parent=0 // loop_exit
    _

// kernel: dccrn_forward.12
$region0: #{dccrn_forward.12}
  #allocation0 [shape = 'u32[]', space=smem, size = 0x4, offset = 0x4, fixed_abs, tag = 'smem constant byte address 0x4 - core index']
  #allocation1 [shape = 'u32[72,128]{1,0:T(1,128)}', space=vmem, size = 0x9000, scoped, tag = 'internal scratch']
  #allocation2 [shape = 'f32[1,1]{1,0:T(1,128)S(1)}', space=vmem, size = 0x200, scoped, tag = 'scoped memory for dccrn_forward.12']
  %s0 = inlined_call_operand.vmem [shape: f32[32,160], index: 0, kind: input, shape index: {}]
  %s1 = inlined_call_operand.vmem [shape: f32[160,104], index: 1, kind: input, shape index: {}]
  %s2 = inlined_call_operand.vmem [shape: f32[32,1], index: 2, kind: input, shape index: {}]
  %s3 = inlined_call_operand.vmem [shape: f32[32,1], index: 3, kind: input, shape index: {}]
  %s4 = inlined_call_operand.vmem [shape: f32[32,1], index: 4, kind: input, shape index: {}]
  %s5 = inlined_call_operand.<no memory space> [shape: f32[1,1], index: 5, kind: input, shape index: {}]
  %s6 = inlined_call_operand.vmem [shape: f32[32,104], index: 6, kind: output, shape index: {}]
  %s7 = sld [smem:[#allocation0]]
  $region57: #{dccrn_forward.12} parent=0
    _
  %s9 = ssub.s32 1, %s7
  %s10 = scalar_select 0, %s9, %s7
  %v11 = vstv %s5
  %12 = vst [vmem:[#allocation2] sm:$0x1] %v11
  loop: start=0, step=1, limit=4
  $region2: #{dccrn_forward.12} parent=0 // loop_pre_header
    _
  $region3: #{dccrn_forward.12} parent=0 // loop_header
    %s14 = sphi 0, %s18
    %p15 = scmp.ge.s32.totalorder %s14, 4
    %s24 = sphi 0, %s26
    %s27 = sphi 0, %s24
    %s28 = sphi 0, %s27
    %s44 = sphi 0, %s28
    %s48 = sphi 0, %s48
    %s50 = sphi 0, %s48
    %s51 = sphi 0, %s50
    %s65 = sphi 0, %s51
    %s71 = sphi 0, %s73
    %s74 = sphi 0, %s71
    %s75 = sphi 0, %s74
    %s91 = sphi 0, %s75
    %s97 = sphi 0, %s99
    %s100 = sphi 0, %s97
    %s101 = sphi 0, %s100
    %s117 = sphi 0, %s101
    %s123 = sphi 0, %s125
    %s126 = sphi 0, %s123
    %s127 = sphi 0, %s126
    %s143 = sphi 0, %s127
    %s147 = sphi 0, %s147
    %s149 = sphi 0, %s147
    %s150 = sphi 0, %s149
    %s164 = sphi 0, %s150
    %s170 = sphi 0, %s172
    %s173 = sphi 0, %s170
    %s174 = sphi 0, %s173
    %s190 = sphi 0, %s174
  $region4: #{dccrn_forward.12} parent=0 // loop_header_branch
    %17 = sbr.rel (%p15) target = $region8
  $region5: #{dccrn_forward.12} parent=0 // loop_body
    %s19 = ssub.s32 %s14, 1
    %s20 = ssub.s32 %s14, 2
    %s21 = sadd.s32 %s14, 1
    %s22 = ssub.s32 %s14, %s21
    %p23 = scmp.eq.s32.totalorder %s22, 0
    %s25 = sadd.s32 %s24, 1
    %s26 = scalar_select %p23, %s24, %s25
    %p29 = pneg %p23
    %p30 = scmp.eq.s32.totalorder %s14, 1
    %p31 = por %p29, %p30
    %p32 = scmp.ne.s32.totalorder %s24, %s27
    %p33 = scmp.eq.s32.totalorder %s14, 0
    %p34 = por %p32, %p33
    %p35 = scmp.ne.s32.totalorder %s24, %s27
    %p36 = scmp.eq.s32.totalorder %s19, 1
    %p37 = por %p35, %p36
    %p38 = scmp.ne.s32.totalorder %s27, %s28
    %p39 = scmp.eq.s32.totalorder %s19, 0
    %p40 = por %p38, %p39
    %p41 = scmp.ne.s32.totalorder %s27, %s28
    %p42 = scmp.eq.s32.totalorder %s20, 1
    %p43 = por %p41, %p42
    %p45 = scmp.ne.s32.totalorder %s28, %s44
    %p46 = scmp.eq.s32.totalorder %s20, 0
    %p47 = por %p45, %p46
    %s49 = sadd.s32 %s48, 1
    %p52 = scmp.eq.s32.totalorder %s14, 1
    %p53 = scmp.ne.s32.totalorder %s48, %s50
    %p54 = scmp.eq.s32.totalorder %s14, 0
    %p55 = por %p53, %p54
    %p56 = scmp.ne.s32.totalorder %s48, %s50
    %p57 = scmp.eq.s32.totalorder %s19, 1
    %p58 = por %p56, %p57
    %p59 = scmp.ne.s32.totalorder %s50, %s51
    %p60 = scmp.eq.s32.totalorder %s19, 0
    %p61 = por %p59, %p60
    %p62 = scmp.ne.s32.totalorder %s50, %s51
    %p63 = scmp.eq.s32.totalorder %s20, 1
    %p64 = por %p62, %p63
    %p66 = scmp.ne.s32.totalorder %s51, %s65
    %p67 = scmp.eq.s32.totalorder %s20, 0
    %p68 = por %p66, %p67
    %s69 = ssub.s32 %s14, %s21
    %p70 = scmp.eq.s32.totalorder %s69, 0
    %s72 = sadd.s32 %s71, 1
    %s73 = scalar_select %p70, %s71, %s72
    %p76 = pneg %p70
    %p77 = scmp.eq.s32.totalorder %s14, 1
    %p78 = por %p76, %p77
    %p79 = scmp.ne.s32.totalorder %s71, %s74
    %p80 = scmp.eq.s32.totalorder %s14, 0
    %p81 = por %p79, %p80
    %p82 = scmp.ne.s32.totalorder %s71, %s74
    %p83 = scmp.eq.s32.totalorder %s19, 1
    %p84 = por %p82, %p83
    %p85 = scmp.ne.s32.totalorder %s74, %s75
    %p86 = scmp.eq.s32.totalorder %s19, 0
    %p87 = por %p85, %p86
    %p88 = scmp.ne.s32.totalorder %s74, %s75
    %p89 = scmp.eq.s32.totalorder %s20, 1
    %p90 = por %p88, %p89
    %p92 = scmp.ne.s32.totalorder %s75, %s91
    %p93 = scmp.eq.s32.totalorder %s20, 0
    %p94 = por %p92, %p93
    %s95 = ssub.s32 %s14, %s21
    %p96 = scmp.eq.s32.totalorder %s95, 0
    %s98 = sadd.s32 %s97, 1
    %s99 = scalar_select %p96, %s97, %s98
    %p102 = pneg %p96
    %p103 = scmp.eq.s32.totalorder %s14, 1
    %p104 = por %p102, %p103
    %p105 = scmp.ne.s32.totalorder %s97, %s100
    %p106 = scmp.eq.s32.totalorder %s14, 0
    %p107 = por %p105, %p106
    %p108 = scmp.ne.s32.totalorder %s97, %s100
    %p109 = scmp.eq.s32.totalorder %s19, 1
    %p110 = por %p108, %p109
    %p111 = scmp.ne.s32.totalorder %s100, %s101
    %p112 = scmp.eq.s32.totalorder %s19, 0
    %p113 = por %p111, %p112
    %p114 = scmp.ne.s32.totalorder %s100, %s101
    %p115 = scmp.eq.s32.totalorder %s20, 1
    %p116 = por %p114, %p115
    %p118 = scmp.ne.s32.totalorder %s101, %s117
    %p119 = scmp.eq.s32.totalorder %s20, 0
    %p120 = por %p118, %p119
    %s121 = ssub.s32 %s14, %s21
    %p122 = scmp.eq.s32.totalorder %s121, 0
    %s124 = sadd.s32 %s123, 1
    %s125 = scalar_select %p122, %s123, %s124
    %p128 = pneg %p122
    %p129 = scmp.eq.s32.totalorder %s14, 1
    %p130 = por %p128, %p129
    %p131 = scmp.ne.s32.totalorder %s123, %s126
    %p132 = scmp.eq.s32.totalorder %s14, 0
    %p133 = por %p131, %p132
    %p134 = scmp.ne.s32.totalorder %s123, %s126
    %p135 = scmp.eq.s32.totalorder %s19, 1
    %p136 = por %p134, %p135
    %p137 = scmp.ne.s32.totalorder %s126, %s127
    %p138 = scmp.eq.s32.totalorder %s19, 0
    %p139 = por %p137, %p138
    %p140 = scmp.ne.s32.totalorder %s126, %s127
    %p141 = scmp.eq.s32.totalorder %s20, 1
    %p142 = por %p140, %p141
    %p144 = scmp.ne.s32.totalorder %s127, %s143
    %p145 = scmp.eq.s32.totalorder %s20, 0
    %p146 = por %p144, %p145
    %s148 = sadd.s32 %s147, 1
    %p151 = scmp.eq.s32.totalorder %s14, 1
    %p152 = scmp.ne.s32.totalorder %s147, %s149
    %p153 = scmp.eq.s32.totalorder %s14, 0
    %p154 = por %p152, %p153
    %p155 = scmp.ne.s32.totalorder %s147, %s149
    %p156 = scmp.eq.s32.totalorder %s19, 1
    %p157 = por %p155, %p156
    %p158 = scmp.ne.s32.totalorder %s149, %s150
    %p159 = scmp.eq.s32.totalorder %s19, 0
    %p160 = por %p158, %p159
    %p161 = scmp.ne.s32.totalorder %s149, %s150
    %p162 = scmp.eq.s32.totalorder %s20, 1
    %p163 = por %p161, %p162
    %p165 = scmp.ne.s32.totalorder %s150, %s164
    %p166 = scmp.eq.s32.totalorder %s20, 0
    %p167 = por %p165, %p166
    %s168 = ssub.s32 %s14, %s21
    %p169 = scmp.eq.s32.totalorder %s168, 0
    %s171 = sadd.s32 %s170, 1
    %s172 = scalar_select %p169, %s170, %s171
    %p175 = pneg %p169
    %p176 = scmp.eq.s32.totalorder %s14, 1
    %p177 = por %p175, %p176
    %p178 = scmp.ne.s32.totalorder %s170, %s173
    %p179 = scmp.eq.s32.totalorder %s14, 0
    %p180 = por %p178, %p179
    %p181 = scmp.ne.s32.totalorder %s170, %s173
    %p182 = scmp.eq.s32.totalorder %s19, 1
    %p183 = por %p181, %p182
    %p184 = scmp.ne.s32.totalorder %s173, %s174
    %p185 = scmp.eq.s32.totalorder %s19, 0
    %p186 = por %p184, %p185
    %p187 = scmp.ne.s32.totalorder %s173, %s174
    %p188 = scmp.eq.s32.totalorder %s20, 1
    %p189 = por %p187, %p188
    %p191 = scmp.ne.s32.totalorder %s174, %s190
    %p192 = scmp.eq.s32.totalorder %s20, 0
    %p193 = por %p191, %p192
    %p194 = scmp.le.s32.totalorder 1, %s14
    %p195 = scmp.lt.s32.totalorder %s14, 3
    %p196 = pnand %p194, %p195
    %p197 = pneg %p196
    // Predicated region
    $region9: #{dccrn_forward.12} parent=5 // pred_check
      _
    $region10: #{dccrn_forward.12} parent=5 // pred_check_branch
      %199 = sbr.rel (%p196) target = $region12
    $region11: #{dccrn_forward.12} parent=5 // pred_region
      %s200 = ssub.s32 %s14, 1
      // Predicated region
      $region13: #{dccrn_forward.12} parent=11 // pred_check
        %p201 = pneg %p61
      $region14: #{dccrn_forward.12} parent=11 // pred_check_branch
        %203 = sbr.rel (%p201) target = $region16
      $region15: #{dccrn_forward.12} parent=11 // pred_region
        _
      $region16: #{dccrn_forward.12} parent=11 // pred_fallthru
        _
      // Predicated region
      $region17: #{dccrn_forward.12} parent=11 // pred_check
        %p204 = pneg %p160
      $region18: #{dccrn_forward.12} parent=11 // pred_check_branch
        %206 = sbr.rel (%p204) target = $region20
      $region19: #{dccrn_forward.12} parent=11 // pred_region
        _
      $region20: #{dccrn_forward.12} parent=11 // pred_fallthru
        _
    $region12: #{dccrn_forward.12} parent=5 // pred_fallthru
      _
    %p207 = scmp.lt.s32.totalorder %s14, 2
    // Predicated region
    $region21: #{dccrn_forward.12} parent=5 // pred_check
      %p208 = pneg %p207
    $region22: #{dccrn_forward.12} parent=5 // pred_check_branch
      %210 = sbr.rel (%p208) target = $region24
    $region23: #{dccrn_forward.12} parent=5 // pred_region
      // Predicated region
      $region25: #{dccrn_forward.12} parent=23 // pred_check
        %p211 = pneg %p34
      $region26: #{dccrn_forward.12} parent=23 // pred_check_branch
        %213 = sbr.rel (%p211) target = $region28
      $region27: #{dccrn_forward.12} parent=23 // pred_region
        %s214 = smul.u32 2, %s14
        %p215 = scmp.lt.s32.totalorder %s214, 3
        %s216 = scalar_select %p215, %s214, 3
        %s217 = smul.addr %s216, 2
        %s218 = smul.addr %s217, 8
        %s219 = scalar_lea.vmem %s0, %s218
        %s220 = smul.u32 2, %s14
      $region28: #{dccrn_forward.12} parent=23 // pred_fallthru
        _
      // Predicated region
      $region29: #{dccrn_forward.12} parent=23 // pred_check
        %p221 = pneg %p81
      $region30: #{dccrn_forward.12} parent=23 // pred_check_branch
        %223 = sbr.rel (%p221) target = $region32
      $region31: #{dccrn_forward.12} parent=23 // pred_region
        %s224 = smul.u32 2, %s14
        %p225 = scmp.lt.s32.totalorder %s224, 3
        %s226 = scalar_select %p225, %s224, 3
        %s227 = smul.addr %s226, 8
        %s228 = scalar_lea.vmem %s2, %s227
        %s229 = smul.u32 2, %s14
      $region32: #{dccrn_forward.12} parent=23 // pred_fallthru
        _
      // Predicated region
      $region33: #{dccrn_forward.12} parent=23 // pred_check
        %p230 = pneg %p107
      $region34: #{dccrn_forward.12} parent=23 // pred_check_branch
        %232 = sbr.rel (%p230) target = $region36
      $region35: #{dccrn_forward.12} parent=23 // pred_region
        %s233 = smul.u32 2, %s14
        %p234 = scmp.lt.s32.totalorder %s233, 3
        %s235 = scalar_select %p234, %s233, 3
        %s236 = smul.addr %s235, 8
        %s237 = scalar_lea.vmem %s3, %s236
        %s238 = smul.u32 2, %s14
      $region36: #{dccrn_forward.12} parent=23 // pred_fallthru
        _
      // Predicated region
      $region37: #{dccrn_forward.12} parent=23 // pred_check
        %p239 = pneg %p133
      $region38: #{dccrn_forward.12} parent=23 // pred_check_branch
        %241 = sbr.rel (%p239) target = $region40
      $region39: #{dccrn_forward.12} parent=23 // pred_region
        %s242 = smul.u32 2, %s14
        %p243 = scmp.lt.s32.totalorder %s242, 3
        %s244 = scalar_select %p243, %s242, 3
        %s245 = smul.addr %s244, 8
        %s246 = scalar_lea.vmem %s4, %s245
        %s247 = smul.u32 2, %s14
      $region40: #{dccrn_forward.12} parent=23 // pred_fallthru
        _
    $region24: #{dccrn_forward.12} parent=5 // pred_fallthru
      _
    %p248 = scmp.le.s32.totalorder 1, %s14
    %p249 = scmp.lt.s32.totalorder %s14, 3
    %p250 = pnand %p248, %p249
    %p251 = pneg %p250
    // Predicated region
    $region41: #{dccrn_forward.12} parent=5 // pred_check
      _
    $region42: #{dccrn_forward.12} parent=5 // pred_check_branch
      %253 = sbr.rel (%p250) target = $region44
    $region43: #{dccrn_forward.12} parent=5 // pred_region
      %s254 = ssub.s32 %s14, 1
      %s255 = smul.u32 2, %s19
      %p256 = scmp.lt.s32.totalorder %s255, 3
      %s257 = scalar_select %p256, %s255, 3
      %s258 = smul.addr %s257, 2
      %s259 = smul.addr %s258, 8
      %s260 = scalar_lea.vmem %s0, %s259
      %p261 = pneg %p40
      %p262 = pneg %p37
      %p263 = pneg %p61
      %p264 = pneg %p58
      %s265 = smul.u32 2, %s19
      %p266 = scmp.lt.s32.totalorder %s265, 3
      %s267 = scalar_select %p266, %s265, 3
      %s268 = smul.addr %s267, 8
      %s269 = scalar_lea.vmem %s2, %s268
      %p270 = pneg %p87
      %p271 = pneg %p84
      %s272 = smul.u32 2, %s19
      %p273 = scmp.lt.s32.totalorder %s272, 3
      %s274 = scalar_select %p273, %s272, 3
      %s275 = smul.addr %s274, 8
      %s276 = scalar_lea.vmem %s3, %s275
      %p277 = pneg %p113
      %p278 = pneg %p110
      %s279 = smul.u32 2, %s19
      %p280 = scmp.lt.s32.totalorder %s279, 3
      %s281 = scalar_select %p280, %s279, 3
      %s282 = smul.addr %s281, 8
      %s283 = scalar_lea.vmem %s4, %s282
      %p284 = pneg %p139
      %p285 = pneg %p136
      %p286 = pneg %p160
      %p287 = pneg %p157
      %p288 = pneg %p186
      %p289 = pneg %p183
      %s290 = smul.u32 2, %s19
      %p291 = scmp.lt.s32.totalorder %s290, 3
      %s292 = scalar_select %p291, %s290, 3
      %s293 = smul.addr %s292, 8
      %s294 = scalar_lea.vmem %s6, %s293
      %s295 = smul.u32 2, %s19
      %p296 = scmp.lt.s32.totalorder %s295, 3
      %s297 = scalar_select %p296, %s295, 3
      %s298 = smul.addr %s297, 2
      %s299 = smul.addr %s298, 8
      %s300 = scalar_lea.vmem %s0, %s299
      %s301 = smul.u32 2, %s19
      %s302 = smul.u32 2, %s19
      %p303 = scmp.lt.s32.totalorder %s302, 3
      %s304 = scalar_select %p303, %s302, 3
      %s305 = smul.addr %s304, 8
      %s306 = scalar_lea.vmem %s2, %s305
      %s307 = smul.u32 2, %s19
      %s308 = smul.u32 2, %s19
      %p309 = scmp.lt.s32.totalorder %s308, 3
      %s310 = scalar_select %p309, %s308, 3
      %s311 = smul.addr %s310, 8
      %s312 = scalar_lea.vmem %s3, %s311
      %s313 = smul.u32 2, %s19
      %s314 = smul.u32 2, %s19
      %p315 = scmp.lt.s32.totalorder %s314, 3
      %s316 = scalar_select %p315, %s314, 3
      %s317 = smul.addr %s316, 8
      %s318 = scalar_lea.vmem %s4, %s317
      %s319 = smul.u32 2, %s19
      %s320 = smul.u32 2, %s19
      %p321 = scmp.lt.s32.totalorder %s320, 3
      %s322 = scalar_select %p321, %s320, 3
      %s323 = smul.addr %s322, 8
      %s324 = scalar_lea.vmem %s6, %s323
      %s325 = smul.u32 2, %s19
      %v326 = vld [vmem:[%s300] sm:$0xff]
      %v327 = vld [vmem:[%s300 + $0x8] sm:$0xff]
      %v328 = vld [vmem:[%s300 + $0x10] sm:$0xff]
      %v329 = vld [vmem:[%s300 + $0x18] sm:$0xff]
      %v330 = vld [vmem:[%s1] sm:$0xff]
      %v331 = vld [vmem:[%s1 + $0x8] sm:$0xff]
      %v332 = vld [vmem:[%s1 + $0x10] sm:$0xff]
      %v333 = vld [vmem:[%s1 + $0x18] sm:$0xff]
      %v334 = vld [vmem:[%s1 + $0x20] sm:$0xff]
      %v335 = vld [vmem:[%s1 + $0x28] sm:$0xff]
      %v336 = vld [vmem:[%s1 + $0x30] sm:$0xff]
      %v337 = vld [vmem:[%s1 + $0x38] sm:$0xff]
      %v338 = vld [vmem:[%s1 + $0x40] sm:$0xff]
      %v339 = vld [vmem:[%s1 + $0x48] sm:$0xff]
      %v340 = vld [vmem:[%s1 + $0x50] sm:$0xff]
      %v341 = vld [vmem:[%s1 + $0x58] sm:$0xff]
      %v342 = vld [vmem:[%s1 + $0x60] sm:$0xff]
      %v343 = vld [vmem:[%s1 + $0x68] sm:$0xff]
      %v344 = vld [vmem:[%s1 + $0x70] sm:$0xff]
      %v345 = vld [vmem:[%s1 + $0x78] sm:$0xff]
      %v346 = vld [vmem:[%s1 + $0x80] sm:$0xff]
      %v347 = vld [vmem:[%s1 + $0x88] sm:$0xff]
      %v348 = vld [vmem:[%s1 + $0x90] sm:$0xff]
      %v349 = vld [vmem:[%s1 + $0x98] sm:$0xff]
      %v350 = vld [vmem:[%s306] sm:$0xff]
      %v351 = vld [vmem:[%s306 + $0x8] sm:$0xff]
      %353 = vset.pattern.permute.xlu0 0
      %354 = vperm.xlu0 %353, %v350
      %v355 = vpop.permute.xlu0 %354
      %358 = vset.pattern.permute.xlu0 0
      %359 = vperm.xlu0 %358, %v351
      %v360 = vpop.permute.xlu0 %359
      %vm362 = vcmask 261120
      %v364 = vsel %vm362, %v327, 0
      %v367 = vsel %vm362, %v329, 0
      %369 = vmatpush.msra.mxu0 %v345
      %370 = vmatpush.msra.mxu0 %v344
      %371 = vmatpush.msra.mxu0 %v343
      %372 = vmatpush.msra.mxu0 %v342
      %373 = vmatpush.msra.mxu0 %v341
      %374 = vmatpush.msra.mxu0 %v340
      %375 = vmatpush.msra.mxu0 %v339
      %376 = vmatpush.msra.mxu0 %v338
      %377 = vmatpush.msra.mxu0 %v337
      %378 = vmatpush.msra.mxu0 %v336
      %379 = vmatpush.msra.mxu0 %v335
      %380 = vmatpush.msra.mxu0 %v334
      %381 = vmatpush.msra.mxu0 %v333
      %382 = vmatpush.msra.mxu0 %v332
      %383 = vmatpush.msra.mxu0 %v331
      %384 = vmatpush.msra.mxu0 %v330
      %385 = vmatmul.f32.gmra.mxu0 %v326
      %v386 = vpop.f32.mrf.mxu0
      %v387 = vadd.f32 %v355, %v386
      %388 = vmatmul.f32.gmra.mxu0 %v328
      %v389 = vpop.f32.mrf.mxu0
      %v390 = vadd.f32 %v360, %v389
      %391 = vdwg.mxu0
      %392 = vmatpush.msra.mxu0 0.0
      %393 = vmatpush.msra.mxu0 0.0
      %394 = vmatpush.msra.mxu0 0.0
      %395 = vmatpush.msra.mxu0 0.0
      %396 = vmatpush.msra.mxu0 0.0
      %397 = vmatpush.msra.mxu0 0.0
      %398 = vmatpush.msra.mxu0 0.0
      %399 = vmatpush.msra.mxu0 0.0
      %400 = vmatpush.msra.mxu0 0.0
      %401 = vmatpush.msra.mxu0 0.0
      %402 = vmatpush.msra.mxu0 0.0
      %403 = vmatpush.msra.mxu0 0.0
      %404 = vmatpush.msra.mxu0 %v349
      %405 = vmatpush.msra.mxu0 %v348
      %406 = vmatpush.msra.mxu0 %v347
      %407 = vmatpush.msra.mxu0 %v346
      %408 = vmatmul.f32.gmra.mxu0 %v364
      %v409 = vpop.f32.mrf.mxu0
      %v410 = vadd.f32 %v387, %v409
      %411 = vmatmul.f32.gmra.mxu0 %v367
      %v412 = vpop.f32.mrf.mxu0
      %v413 = vadd.f32 %v390, %v412
      %414 = vdwg.mxu0
      %vm415 = vcmask 850944
      %v416 = vsel %vm415, %v410, 0.0
      %417 = vadd.xlane.f32.xlu0 %v416
      %v418 = vpop.xlane.xlu0 %417
      %v419 = vsel %vm415, %v413, 0.0
      %420 = vadd.xlane.f32.xlu0 %v419
      %v421 = vpop.xlane.xlu0 %420
      %v422 = vrcp.pop 104.0
      %v423 = vmul.f32 104.0, %v422
      %v424 = vsub.f32 1.0, %v423
      %v425 = vmul.f32 %v422, %v424
      %v426 = vadd.f32 %v422, %v425
      %vm427 = vweird.f32 %v422
      %v428 = vsel %vm427, %v422, %v426
      %v429 = vmul.f32 %v418, %v428
      %v430 = vmul.f32 %v421, %v428
      %v431 = vmul.f32 %v410, %v410
      %v432 = vmul.f32 %v413, %v413
      %v433 = vsel %vm415, %v431, 0.0
      %434 = vadd.xlane.f32.xlu0 %v433
      %v435 = vpop.xlane.xlu0 %434
      %v436 = vsel %vm415, %v432, 0.0
      %437 = vadd.xlane.f32.xlu0 %v436
      %v438 = vpop.xlane.xlu0 %437
      %v439 = vmul.f32 %v435, %v428
      %v440 = vmul.f32 %v438, %v428
      %v441 = vmul.f32 %v429, %v429
      %v442 = vmul.f32 %v430, %v430
      %v443 = vsub.f32 %v439, %v441
      %v444 = vsub.f32 %v440, %v442
      %v445 = vsub.f32 %v410, %v429
      %v446 = vsub.f32 %v413, %v430
      %v447 = vadd.f32 %v443, 1e-05
      %v448 = vadd.f32 %v444, 1e-05
      %v449 = vrsqrt.pop %v447
      %v450 = vmul.f32 %v449, %v447
      %v451 = vmul.f32 %v450, %v449
      %v452 = vmul.f32 0.5, %v451
      %v453 = vsub.f32 1.5, %v452
      %v454 = vmul.f32 %v449, %v453
      %vm455 = vweird.f32 %v447
      %vm456 = vweird.f32 %v449
      %vm457 = vmor %vm455, %vm456
      %v458 = vsel %vm457, %v449, %v454
      %v459 = vrsqrt.pop %v448
      %v460 = vmul.f32 %v459, %v448
      %v461 = vmul.f32 %v460, %v459
      %v462 = vmul.f32 0.5, %v461
      %v463 = vsub.f32 1.5, %v462
      %v464 = vmul.f32 %v459, %v463
      %vm465 = vweird.f32 %v448
      %vm466 = vweird.f32 %v459
      %vm467 = vmor %vm465, %vm466
      %v468 = vsel %vm467, %v459, %v464
      %v469 = vmul.f32 %v445, %v458
      %v470 = vmul.f32 %v446, %v468
      %v471 = vld [vmem:[%s312] sm:$0xff]
      %v472 = vld [vmem:[%s312 + $0x8] sm:$0xff]
      %474 = vset.pattern.permute.xlu0 0
      %475 = vperm.xlu0 %474, %v471
      %v476 = vpop.permute.xlu0 %475
      %479 = vset.pattern.permute.xlu0 0
      %480 = vperm.xlu0 %479, %v472
      %v481 = vpop.permute.xlu0 %480
      %v483 = vmul.f32 %v469, %v476
      %v484 = vmul.f32 %v470, %v481
      %v485 = vld [vmem:[%s318] sm:$0xff]
      %v486 = vld [vmem:[%s318 + $0x8] sm:$0xff]
      %488 = vset.pattern.permute.xlu0 0
      %489 = vperm.xlu0 %488, %v485
      %v490 = vpop.permute.xlu0 %489
      %493 = vset.pattern.permute.xlu0 0
      %494 = vperm.xlu0 %493, %v486
      %v495 = vpop.permute.xlu0 %494
      %v497 = vadd.f32 %v483, %v490
      %v498 = vadd.f32 %v484, %v495
      %vm499 = vcmp.ge.f32.partialorder %v497, 0.0
      %vm500 = vcmp.ge.f32.partialorder %v498, 0.0
      %v501 = vld [vmem:[#allocation2] sm:$0x1]
      %v503 = vperm.slane %v501, 0
      %504 = vset.pattern.permute.xlu0 0
      %505 = vperm.xlu0 %504, %v503
      %v506 = vpop.permute.xlu0 %505
      %v508 = vmul.f32 %v506, %v497
      %v509 = vmul.f32 %v506, %v498
      %v510 = vsel %vm499, %v497, %v508
      %v511 = vsel %vm500, %v498, %v509
      %512 = vst.msk [vmem:[%s324] sm:$0xff] %vm415, %v510
      %513 = vst.msk [vmem:[%s324 + $0x8] sm:$0xff] %vm415, %v511
      %s514 = smul.u32 2, %s19
      %p515 = scmp.lt.s32.totalorder %s514, 3
      %s516 = scalar_select %p515, %s514, 3
      %s517 = smul.addr %s516, 8
      %s518 = scalar_lea.vmem %s6, %s517
      // Predicated region
      $region45: #{dccrn_forward.12} parent=43 // pred_check
        %p519 = pneg %p183
      $region46: #{dccrn_forward.12} parent=43 // pred_check_branch
        %521 = sbr.rel (%p519) target = $region48
      $region47: #{dccrn_forward.12} parent=43 // pred_region
        %s522 = smul.u32 2, %s19
      $region48: #{dccrn_forward.12} parent=43 // pred_fallthru
        _
    $region44: #{dccrn_forward.12} parent=5 // pred_fallthru
      _
    %p523 = scmp.le.s32.totalorder 2, %s14
    // Predicated region
    $region49: #{dccrn_forward.12} parent=5 // pred_check
      %p524 = pneg %p523
    $region50: #{dccrn_forward.12} parent=5 // pred_check_branch
      %526 = sbr.rel (%p524) target = $region52
    $region51: #{dccrn_forward.12} parent=5 // pred_region
      %s527 = ssub.s32 %s14, 2
      // Predicated region
      $region53: #{dccrn_forward.12} parent=51 // pred_check
        %p528 = pneg %p189
      $region54: #{dccrn_forward.12} parent=51 // pred_check_branch
        %530 = sbr.rel (%p528) target = $region56
      $region55: #{dccrn_forward.12} parent=51 // pred_region
        %s531 = smul.u32 2, %s20
        %p532 = scmp.lt.s32.totalorder %s531, 3
        %s533 = scalar_select %p532, %s531, 3
        %s534 = smul.addr %s533, 8
        %s535 = scalar_lea.vmem %s6, %s534
      $region56: #{dccrn_forward.12} parent=51 // pred_fallthru
        _
    $region52: #{dccrn_forward.12} parent=5 // pred_fallthru
      _
  $region6: #{dccrn_forward.12} parent=0 // loop_footer
    %s18 = sadd.s32 1, %s14
  $region7: #{dccrn_forward.12} parent=0 // loop_footer_branch
    %13 = sbr.rel target = $region3
  $region8: #{dccrn_forward.12} parent=0 // loop_exit
    _

// kernel: dccrn_forward.13
$region0: #{dccrn_forward.13}
  #allocation0 [shape = 'u32[]', space=smem, size = 0x4, offset = 0x4, fixed_abs, tag = 'smem constant byte address 0x4 - core index']
  #allocation1 [shape = 'u32[72,128]{1,0:T(1,128)}', space=vmem, size = 0x9000, scoped, tag = 'internal scratch']
  #allocation2 [shape = 'f32[26,128]{1,0:T(8,128)}', space=vmem, size = 0x4000, scoped, tag = 'scratch operand']
  #allocation3 [shape = 'f32[26,32]{1,0:T(8,128)}', space=vmem, size = 0x4000, scoped, tag = 'scratch operand']
  %s0 = inlined_call_operand.vmem [shape: f32[26,128], index: 0, kind: input, shape index: {}]
  %s1 = inlined_call_operand.vmem [shape: f32[128,128], index: 1, kind: input, shape index: {}]
  %s2 = inlined_call_operand.vmem [shape: f32[1,128], index: 2, kind: input, shape index: {}]
  %s3 = inlined_call_operand.vmem [shape: f32[32,128], index: 3, kind: input, shape index: {}]
  %s4 = inlined_call_operand.vmem [shape: f32[64,128], index: 4, kind: input, shape index: {}]
  %s5 = inlined_call_operand.vmem [shape: f32[1,128], index: 5, kind: input, shape index: {}]
  %s6 = inlined_call_operand.vmem [shape: f32[32,128], index: 6, kind: input, shape index: {}]
  %s7 = inlined_call_operand.vmem [shape: f32[1,128], index: 7, kind: input, shape index: {}]
  %s8 = inlined_call_operand.vmem [shape: f32[26,128], index: 8, kind: output, shape index: {}]
  %s9 = sld [smem:[#allocation0]]
  $region42: #{dccrn_forward.13} parent=0
    _
  %s11 = ssub.s32 1, %s9
  %s12 = scalar_select 0, %s11, %s9
  // Predicated region
  $region2: #{dccrn_forward.13} parent=0 // pred_check
    _
  $region3: #{dccrn_forward.13} parent=0 // pred_check_branch
    %14 = sbr.rel (0) target = $region5
  $region4: #{dccrn_forward.13} parent=0 // pred_region
    _
  $region5: #{dccrn_forward.13} parent=0 // pred_fallthru
    _
  // Predicated region
  $region6: #{dccrn_forward.13} parent=0 // pred_check
    _
  $region7: #{dccrn_forward.13} parent=0 // pred_check_branch
    %16 = sbr.rel (0) target = $region9
  $region8: #{dccrn_forward.13} parent=0 // pred_region
    _
  $region9: #{dccrn_forward.13} parent=0 // pred_fallthru
    _
  // Predicated region
  $region10: #{dccrn_forward.13} parent=0 // pred_check
    _
  $region11: #{dccrn_forward.13} parent=0 // pred_check_branch
    %18 = sbr.rel (0) target = $region13
  $region12: #{dccrn_forward.13} parent=0 // pred_region
    _
  $region13: #{dccrn_forward.13} parent=0 // pred_fallthru
    _
  // Predicated region
  $region14: #{dccrn_forward.13} parent=0 // pred_check
    _
  $region15: #{dccrn_forward.13} parent=0 // pred_check_branch
    %20 = sbr.rel (0) target = $region17
  $region16: #{dccrn_forward.13} parent=0 // pred_region
    _
  $region17: #{dccrn_forward.13} parent=0 // pred_fallthru
    _
  // Predicated region
  $region18: #{dccrn_forward.13} parent=0 // pred_check
    _
  $region19: #{dccrn_forward.13} parent=0 // pred_check_branch
    %22 = sbr.rel (0) target = $region21
  $region20: #{dccrn_forward.13} parent=0 // pred_region
    _
  $region21: #{dccrn_forward.13} parent=0 // pred_fallthru
    _
  // Predicated region
  $region22: #{dccrn_forward.13} parent=0 // pred_check
    _
  $region23: #{dccrn_forward.13} parent=0 // pred_check_branch
    %24 = sbr.rel (0) target = $region25
  $region24: #{dccrn_forward.13} parent=0 // pred_region
    _
  $region25: #{dccrn_forward.13} parent=0 // pred_fallthru
    _
  // Predicated region
  $region26: #{dccrn_forward.13} parent=0 // pred_check
    _
  $region27: #{dccrn_forward.13} parent=0 // pred_check_branch
    %26 = sbr.rel (0) target = $region29
  $region28: #{dccrn_forward.13} parent=0 // pred_region
    _
  $region29: #{dccrn_forward.13} parent=0 // pred_fallthru
    _
  // Predicated region
  $region30: #{dccrn_forward.13} parent=0 // pred_check
    _
  $region31: #{dccrn_forward.13} parent=0 // pred_check_branch
    %28 = sbr.rel (0) target = $region33
  $region32: #{dccrn_forward.13} parent=0 // pred_region
    _
  $region33: #{dccrn_forward.13} parent=0 // pred_fallthru
    _
  %v29 = vld [vmem:[%s0] sm:$0xff]
  %v30 = vld [vmem:[%s0 + $0x8] sm:$0xff]
  %v31 = vld [vmem:[%s0 + $0x10] sm:$0xff]
  %v32 = vld [vmem:[%s0 + $0x18] sm:$0x3]
  %v33 = vld [vmem:[%s1] sm:$0xff]
  %v34 = vld [vmem:[%s1 + $0x8] sm:$0xff]
  %v35 = vld [vmem:[%s1 + $0x10] sm:$0xff]
  %v36 = vld [vmem:[%s1 + $0x18] sm:$0xff]
  %v37 = vld [vmem:[%s1 + $0x20] sm:$0xff]
  %v38 = vld [vmem:[%s1 + $0x28] sm:$0xff]
  %v39 = vld [vmem:[%s1 + $0x30] sm:$0xff]
  %v40 = vld [vmem:[%s1 + $0x38] sm:$0xff]
  %v41 = vld [vmem:[%s1 + $0x40] sm:$0xff]
  %v42 = vld [vmem:[%s1 + $0x48] sm:$0xff]
  %v43 = vld [vmem:[%s1 + $0x50] sm:$0xff]
  %v44 = vld [vmem:[%s1 + $0x58] sm:$0xff]
  %v45 = vld [vmem:[%s1 + $0x60] sm:$0xff]
  %v46 = vld [vmem:[%s1 + $0x68] sm:$0xff]
  %v47 = vld [vmem:[%s1 + $0x70] sm:$0xff]
  %v48 = vld [vmem:[%s1 + $0x78] sm:$0xff]
  %v49 = vld [vmem:[%s2] sm:$0x1]
  %v51 = vperm.slane %v49, 0
  %53 = vmatpush.msra.mxu0 %v48
  %54 = vmatpush.msra.mxu0 %v47
  %55 = vmatpush.msra.mxu0 %v46
  %56 = vmatpush.msra.mxu0 %v45
  %57 = vmatpush.msra.mxu0 %v44
  %58 = vmatpush.msra.mxu0 %v43
  %59 = vmatpush.msra.mxu0 %v42
  %60 = vmatpush.msra.mxu0 %v41
  %61 = vmatpush.msra.mxu0 %v40
  %62 = vmatpush.msra.mxu0 %v39
  %63 = vmatpush.msra.mxu0 %v38
  %64 = vmatpush.msra.mxu0 %v37
  %65 = vmatpush.msra.mxu0 %v36
  %66 = vmatpush.msra.mxu0 %v35
  %67 = vmatpush.msra.mxu0 %v34
  %68 = vmatpush.msra.mxu0 %v33
  %69 = vmatmul.f32.gmra.mxu0 %v29
  %v70 = vpop.f32.mrf.mxu0
  %v71 = vadd.f32 %v51, %v70
  %72 = vmatmul.f32.gmra.mxu0 %v30
  %v73 = vpop.f32.mrf.mxu0
  %v74 = vadd.f32 %v51, %v73
  %75 = vmatmul.f32.gmra.mxu0 %v31
  %v76 = vpop.f32.mrf.mxu0
  %v77 = vadd.f32 %v51, %v76
  %78 = vmatmul.f32.gmra.mxu0 %v32
  %v79 = vpop.f32.mrf.mxu0
  %v80 = vadd.f32 %v51, %v79
  %81 = vdwg.mxu0
  %82 = vst [vmem:[#allocation2] sm:$0xff] %v71
  %83 = vst [vmem:[#allocation2 + $0x8] sm:$0xff] %v74
  %84 = vst [vmem:[#allocation2 + $0x10] sm:$0xff] %v77
  %85 = vst [vmem:[#allocation2 + $0x18] sm:$0x3] %v80
  %v86 = vld [vmem:[#allocation2] sm:$0x3]
  %v87 = vld [vmem:[%s3] sm:$0xff]
  %v88 = vld [vmem:[%s3 + $0x8] sm:$0xff]
  %v89 = vld [vmem:[%s3 + $0x10] sm:$0xff]
  %v90 = vld [vmem:[%s3 + $0x18] sm:$0xff]
  %vm91 = vcmask 261120
  %v93 = vsel %vm91, 0.0, 0
  %95 = vmatpush.msra.mxu0 0.0
  %96 = vmatpush.msra.mxu0 0.0
  %97 = vmatpush.msra.mxu0 0.0
  %98 = vmatpush.msra.mxu0 0.0
  %99 = vmatpush.msra.mxu0 0.0
  %100 = vmatpush.msra.mxu0 0.0
  %101 = vmatpush.msra.mxu0 0.0
  %102 = vmatpush.msra.mxu0 0.0
  %103 = vmatpush.msra.mxu0 0.0
  %104 = vmatpush.msra.mxu0 0.0
  %105 = vmatpush.msra.mxu0 0.0
  %106 = vmatpush.msra.mxu0 0.0
  %107 = vmatpush.msra.mxu0 %v90
  %108 = vmatpush.msra.mxu0 %v89
  %109 = vmatpush.msra.mxu0 %v88
  %110 = vmatpush.msra.mxu0 %v87
  %111 = vmatmul.f32.gmra.mxu0 %v93
  %v112 = vpop.f32.mrf.mxu0
  %v113 = vadd.f32 0.0, %v112
  %114 = vdwg.mxu0
  %v115 = vadd.f32 %v86, %v113
  %v116 = vsub.f32 0.0, %v115
  %v117 = vmul.f32 %v116, 1.442695
  %v118 = vpow.pop %v117
  %v119 = vadd.f32 %v118, 1.0
  %v120 = vrcp.pop %v119
  %v121 = vmul.f32 %v119, %v120
  %v122 = vsub.f32 1.0, %v121
  %v123 = vmul.f32 %v120, %v122
  %v124 = vadd.f32 %v120, %v123
  %vm125 = vweird.f32 %v119
  %vm126 = vweird.f32 %v120
  %vm127 = vmor %vm125, %vm126
  %v128 = vsel %vm127, %v120, %v124
  %v129 = vand.u32 2147483647, %v119
  %vm130 = vcmp.eq.f32.partialorder %v129, 8.507059e+37
  %v131 = vand.u32 %v119, 2147483648
  %v132 = vor.u32 1.1754944e-38, %v131
  %v133 = vsel %vm130, %v132, %v128
  %v134 = vmul.f32 1.0, %v133
  %v135 = vtanh.pop %v115
  %v136 = vmul.f32 %v134, 0.0
  %138 = vrot.lane.b32.xlu0 %v135, 64
  %v139 = vpop.permute.xlu0 %138
  %v141 = vmul.f32 %v134, %v139
  %143 = vrot.lane.b32.xlu0 %v141, 32
  %v144 = vpop.permute.xlu0 %143
  %v146 = vadd.f32 %v136, %v144
  %v147 = vtanh.pop %v146
  %149 = vrot.lane.b32.xlu0 %v147, 64
  %v150 = vpop.permute.xlu0 %149
  %v152 = vmul.f32 %v134, %v150
  %154 = vrot.lane.b32.xlu0 %v152, 32
  %v155 = vpop.permute.xlu0 %154
  %v157 = vsel %vm91, %v155, 0.0
  %v158 = vld [vmem:[%s4] sm:$0xff]
  %v159 = vld [vmem:[%s4 + $0x8] sm:$0xff]
  %v160 = vld [vmem:[%s4 + $0x10] sm:$0xff]
  %v161 = vld [vmem:[%s4 + $0x18] sm:$0xff]
  %v162 = vld [vmem:[%s4 + $0x20] sm:$0xff]
  %v163 = vld [vmem:[%s4 + $0x28] sm:$0xff]
  %v164 = vld [vmem:[%s4 + $0x30] sm:$0xff]
  %v165 = vld [vmem:[%s4 + $0x38] sm:$0xff]
  %v166 = vld [vmem:[%s5] sm:$0x1]
  %v168 = vperm.slane %v166, 0
  %vm170 = vcmask 523264
  %v172 = vsel %vm170, %v157, 0
  %174 = vmatpush.msra.mxu0 0.0
  %175 = vmatpush.msra.mxu0 0.0
  %176 = vmatpush.msra.mxu0 0.0
  %177 = vmatpush.msra.mxu0 0.0
  %178 = vmatpush.msra.mxu0 0.0
  %179 = vmatpush.msra.mxu0 0.0
  %180 = vmatpush.msra.mxu0 0.0
  %181 = vmatpush.msra.mxu0 0.0
  %182 = vmatpush.msra.mxu0 %v165
  %183 = vmatpush.msra.mxu0 %v164
  %184 = vmatpush.msra.mxu0 %v163
  %185 = vmatpush.msra.mxu0 %v162
  %186 = vmatpush.msra.mxu0 %v161
  %187 = vmatpush.msra.mxu0 %v160
  %188 = vmatpush.msra.mxu0 %v159
  %189 = vmatpush.msra.mxu0 %v158
  %190 = vmatmul.f32.gmra.mxu0 %v172
  %v191 = vpop.f32.mrf.mxu0
  %v192 = vadd.f32 %v168, %v191
  %193 = vdwg.mxu0
  %v194 = vsub.f32 0.0, %v192
  %v195 = vmul.f32 %v194, 1.442695
  %v196 = vpow.pop %v195
  %v197 = vadd.f32 %v196, 1.0
  %v198 = vrcp.pop %v197
  %v199 = vmul.f32 %v197, %v198
  %v200 = vsub.f32 1.0, %v199
  %v201 = vmul.f32 %v198, %v200
  %v202 = vadd.f32 %v198, %v201
  %vm203 = vweird.f32 %v197
  %vm204 = vweird.f32 %v198
  %vm205 = vmor %vm203, %vm204
  %v206 = vsel %vm205, %v198, %v202
  %v207 = vand.u32 2147483647, %v197
  %vm208 = vcmp.eq.f32.partialorder %v207, 8.507059e+37
  %v209 = vand.u32 %v197, 2147483648
  %v210 = vor.u32 1.1754944e-38, %v209
  %v211 = vsel %vm208, %v210, %v206
  %v212 = vmul.f32 1.0, %v211
  %v213 = vtanh.pop %v192
  %v214 = vmul.f32 %v212, 0.0
  %216 = vrot.lane.b32.xlu0 %v213, 64
  %v217 = vpop.permute.xlu0 %216
  %v219 = vmul.f32 %v212, %v217
  %221 = vrot.lane.b32.xlu0 %v219, 32
  %v222 = vpop.permute.xlu0 %221
  %v224 = vadd.f32 %v214, %v222
  %v225 = vtanh.pop %v224
  %227 = vrot.lane.b32.xlu0 %v225, 64
  %v228 = vpop.permute.xlu0 %227
  %v230 = vmul.f32 %v212, %v228
  %232 = vrot.lane.b32.xlu0 %v230, 32
  %v233 = vpop.permute.xlu0 %232
  %vm235 = vcmask 254976
  %236 = vst.msk [vmem:[#allocation3] sm:$0x3] %vm235, %v233
  %v237 = vld [vmem:[#allocation2 + $0x2] sm:$0x3]
  %v238 = vld [vmem:[%s3] sm:$0xff]
  %v239 = vld [vmem:[%s3 + $0x8] sm:$0xff]
  %v240 = vld [vmem:[%s3 + $0x10] sm:$0xff]
  %v241 = vld [vmem:[%s3 + $0x18] sm:$0xff]
  %v242 = vsel %vm91, %v155, 0
  %244 = vmatpush.msra.mxu0 0.0
  %245 = vmatpush.msra.mxu0 0.0
  %246 = vmatpush.msra.mxu0 0.0
  %247 = vmatpush.msra.mxu0 0.0
  %248 = vmatpush.msra.mxu0 0.0
  %249 = vmatpush.msra.mxu0 0.0
  %250 = vmatpush.msra.mxu0 0.0
  %251 = vmatpush.msra.mxu0 0.0
  %252 = vmatpush.msra.mxu0 0.0
  %253 = vmatpush.msra.mxu0 0.0
  %254 = vmatpush.msra.mxu0 0.0
  %255 = vmatpush.msra.mxu0 0.0
  %256 = vmatpush.msra.mxu0 %v241
  %257 = vmatpush.msra.mxu0 %v240
  %258 = vmatpush.msra.mxu0 %v239
  %259 = vmatpush.msra.mxu0 %v238
  %260 = vmatmul.f32.gmra.mxu0 %v242
  %v261 = vpop.f32.mrf.mxu0
  %v262 = vadd.f32 0.0, %v261
  %263 = vdwg.mxu0
  %v264 = vadd.f32 %v237, %v262
  %v265 = vsub.f32 0.0, %v264
  %v266 = vmul.f32 %v265, 1.442695
  %v267 = vpow.pop %v266
  %v268 = vadd.f32 %v267, 1.0
  %v269 = vrcp.pop %v268
  %v270 = vmul.f32 %v268, %v269
  %v271 = vsub.f32 1.0, %v270
  %v272 = vmul.f32 %v269, %v271
  %v273 = vadd.f32 %v269, %v272
  %vm274 = vweird.f32 %v268
  %vm275 = vweird.f32 %v269
  %vm276 = vmor %vm274, %vm275
  %v277 = vsel %vm276, %v269, %v273
  %v278 = vand.u32 2147483647, %v268
  %vm279 = vcmp.eq.f32.partialorder %v278, 8.507059e+37
  %v280 = vand.u32 %v268, 2147483648
  %v281 = vor.u32 1.1754944e-38, %v280
  %v282 = vsel %vm279, %v281, %v277
  %v283 = vmul.f32 1.0, %v282
  %v284 = vtanh.pop %v264
  %v285 = vmul.f32 %v283, %v146
  %287 = vrot.lane.b32.xlu0 %v284, 64
  %v288 = vpop.permute.xlu0 %287
  %v290 = vmul.f32 %v283, %v288
  %292 = vrot.lane.b32.xlu0 %v290, 32
  %v293 = vpop.permute.xlu0 %292
  %v295 = vadd.f32 %v285, %v293
  %v296 = vtanh.pop %v295
  %298 = vrot.lane.b32.xlu0 %v296, 64
  %v299 = vpop.permute.xlu0 %298
  %v301 = vmul.f32 %v283, %v299
  %303 = vrot.lane.b32.xlu0 %v301, 32
  %v304 = vpop.permute.xlu0 %303
  %306 = vrot.lane.b32.xlu0 %v230, 64
  %v307 = vpop.permute.xlu0 %306
  %v309 = vsel %vm91, %v304, %v307
  %v310 = vld [vmem:[%s4] sm:$0xff]
  %v311 = vld [vmem:[%s4 + $0x8] sm:$0xff]
  %v312 = vld [vmem:[%s4 + $0x10] sm:$0xff]
  %v313 = vld [vmem:[%s4 + $0x18] sm:$0xff]
  %v314 = vld [vmem:[%s4 + $0x20] sm:$0xff]
  %v315 = vld [vmem:[%s4 + $0x28] sm:$0xff]
  %v316 = vld [vmem:[%s4 + $0x30] sm:$0xff]
  %v317 = vld [vmem:[%s4 + $0x38] sm:$0xff]
  %v318 = vld [vmem:[%s5] sm:$0x1]
  %v320 = vperm.slane %v318, 0
  %v323 = vsel %vm170, %v309, 0
  %325 = vmatpush.msra.mxu0 0.0
  %326 = vmatpush.msra.mxu0 0.0
  %327 = vmatpush.msra.mxu0 0.0
  %328 = vmatpush.msra.mxu0 0.0
  %329 = vmatpush.msra.mxu0 0.0
  %330 = vmatpush.msra.mxu0 0.0
  %331 = vmatpush.msra.mxu0 0.0
  %332 = vmatpush.msra.mxu0 0.0
  %333 = vmatpush.msra.mxu0 %v317
  %334 = vmatpush.msra.mxu0 %v316
  %335 = vmatpush.msra.mxu0 %v315
  %336 = vmatpush.msra.mxu0 %v314
  %337 = vmatpush.msra.mxu0 %v313
  %338 = vmatpush.msra.mxu0 %v312
  %339 = vmatpush.msra.mxu0 %v311
  %340 = vmatpush.msra.mxu0 %v310
  %341 = vmatmul.f32.gmra.mxu0 %v323
  %v342 = vpop.f32.mrf.mxu0
  %v343 = vadd.f32 %v320, %v342
  %344 = vdwg.mxu0
  %v345 = vsub.f32 0.0, %v343
  %v346 = vmul.f32 %v345, 1.442695
  %v347 = vpow.pop %v346
  %v348 = vadd.f32 %v347, 1.0
  %v349 = vrcp.pop %v348
  %v350 = vmul.f32 %v348, %v349
  %v351 = vsub.f32 1.0, %v350
  %v352 = vmul.f32 %v349, %v351
  %v353 = vadd.f32 %v349, %v352
  %vm354 = vweird.f32 %v348
  %vm355 = vweird.f32 %v349
  %vm356 = vmor %vm354, %vm355
  %v357 = vsel %vm356, %v349, %v353
  %v358 = vand.u32 2147483647, %v348
  %vm359 = vcmp.eq.f32.partialorder %v358, 8.507059e+37
  %v360 = vand.u32 %v348, 2147483648
  %v361 = vor.u32 1.1754944e-38, %v360
  %v362 = vsel %vm359, %v361, %v357
  %v363 = vmul.f32 1.0, %v362
  %v364 = vtanh.pop %v343
  %v365 = vmul.f32 %v363, %v224
  %367 = vrot.lane.b32.xlu0 %v364, 64
  %v368 = vpop.permute.xlu0 %367
  %v370 = vmul.f32 %v363, %v368
  %372 = vrot.lane.b32.xlu0 %v370, 32
  %v373 = vpop.permute.xlu0 %372
  %v375 = vadd.f32 %v365, %v373
  %v376 = vtanh.pop %v375
  %378 = vrot.lane.b32.xlu0 %v376, 64
  %v379 = vpop.permute.xlu0 %378
  %v381 = vmul.f32 %v363, %v379
  %383 = vrot.lane.b32.xlu0 %v381, 32
  %v384 = vpop.permute.xlu0 %383
  %386 = vst.msk [vmem:[#allocation3 + $0x2] sm:$0x3] %vm235, %v384
  %v387 = vld [vmem:[#allocation2 + $0x4] sm:$0x3]
  %v388 = vld [vmem:[%s3] sm:$0xff]
  %v389 = vld [vmem:[%s3 + $0x8] sm:$0xff]
  %v390 = vld [vmem:[%s3 + $0x10] sm:$0xff]
  %v391 = vld [vmem:[%s3 + $0x18] sm:$0xff]
  %v392 = vsel %vm91, %v304, 0
  %394 = vmatpush.msra.mxu0 0.0
  %395 = vmatpush.msra.mxu0 0.0
  %396 = vmatpush.msra.mxu0 0.0
  %397 = vmatpush.msra.mxu0 0.0
  %398 = vmatpush.msra.mxu0 0.0
  %399 = vmatpush.msra.mxu0 0.0
  %400 = vmatpush.msra.mxu0 0.0
  %401 = vmatpush.msra.mxu0 0.0
  %402 = vmatpush.msra.mxu0 0.0
  %403 = vmatpush.msra.mxu0 0.0
  %404 = vmatpush.msra.mxu0 0.0
  %405 = vmatpush.msra.mxu0 0.0
  %406 = vmatpush.msra.mxu0 %v391
  %407 = vmatpush.msra.mxu0 %v390
  %408 = vmatpush.msra.mxu0 %v389
  %409 = vmatpush.msra.mxu0 %v388
  %410 = vmatmul.f32.gmra.mxu0 %v392
  %v411 = vpop.f32.mrf.mxu0
  %v412 = vadd.f32 0.0, %v411
  %413 = vdwg.mxu0
  %v414 = vadd.f32 %v387, %v412
  %v415 = vsub.f32 0.0, %v414
  %v416 = vmul.f32 %v415, 1.442695
  %v417 = vpow.pop %v416
  %v418 = vadd.f32 %v417, 1.0
  %v419 = vrcp.pop %v418
  %v420 = vmul.f32 %v418, %v419
  %v421 = vsub.f32 1.0, %v420
  %v422 = vmul.f32 %v419, %v421
  %v423 = vadd.f32 %v419, %v422
  %vm424 = vweird.f32 %v418
  %vm425 = vweird.f32 %v419
  %vm426 = vmor %vm424, %vm425
  %v427 = vsel %vm426, %v419, %v423
  %v428 = vand.u32 2147483647, %v418
  %vm429 = vcmp.eq.f32.partialorder %v428, 8.507059e+37
  %v430 = vand.u32 %v418, 2147483648
  %v431 = vor.u32 1.1754944e-38, %v430
  %v432 = vsel %vm429, %v431, %v427
  %v433 = vmul.f32 1.0, %v432
  %v434 = vtanh.pop %v414
  %v435 = vmul.f32 %v433, %v295
  %437 = vrot.lane.b32.xlu0 %v434, 64
  %v438 = vpop.permute.xlu0 %437
  %v440 = vmul.f32 %v433, %v438
  %442 = vrot.lane.b32.xlu0 %v440, 32
  %v443 = vpop.permute.xlu0 %442
  %v445 = vadd.f32 %v435, %v443
  %v446 = vtanh.pop %v445
  %448 = vrot.lane.b32.xlu0 %v446, 64
  %v449 = vpop.permute.xlu0 %448
  %v451 = vmul.f32 %v433, %v449
  %453 = vrot.lane.b32.xlu0 %v451, 32
  %v454 = vpop.permute.xlu0 %453
  %456 = vrot.lane.b32.xlu0 %v381, 64
  %v457 = vpop.permute.xlu0 %456
  %v459 = vsel %vm91, %v454, %v457
  %v460 = vld [vmem:[%s4] sm:$0xff]
  %v461 = vld [vmem:[%s4 + $0x8] sm:$0xff]
  %v462 = vld [vmem:[%s4 + $0x10] sm:$0xff]
  %v463 = vld [vmem:[%s4 + $0x18] sm:$0xff]
  %v464 = vld [vmem:[%s4 + $0x20] sm:$0xff]
  %v465 = vld [vmem:[%s4 + $0x28] sm:$0xff]
  %v466 = vld [vmem:[%s4 + $0x30] sm:$0xff]
  %v467 = vld [vmem:[%s4 + $0x38] sm:$0xff]
  %v468 = vld [vmem:[%s5] sm:$0x1]
  %v470 = vperm.slane %v468, 0
  %v473 = vsel %vm170, %v459, 0
  %475 = vmatpush.msra.mxu0 0.0
  %476 = vmatpush.msra.mxu0 0.0
  %477 = vmatpush.msra.mxu0 0.0
  %478 = vmatpush.msra.mxu0 0.0
  %479 = vmatpush.msra.mxu0 0.0
  %480 = vmatpush.msra.mxu0 0.0
  %481 = vmatpush.msra.mxu0 0.0
  %482 = vmatpush.msra.mxu0 0.0
  %483 = vmatpush.msra.mxu0 %v467
  %484 = vmatpush.msra.mxu0 %v466
  %485 = vmatpush.msra.mxu0 %v465
  %486 = vmatpush.msra.mxu0 %v464
  %487 = vmatpush.msra.mxu0 %v463
  %488 = vmatpush.msra.mxu0 %v462
  %489 = vmatpush.msra.mxu0 %v461
  %490 = vmatpush.msra.mxu0 %v460
  %491 = vmatmul.f32.gmra.mxu0 %v473
  %v492 = vpop.f32.mrf.mxu0
  %v493 = vadd.f32 %v470, %v492
  %494 = vdwg.mxu0
  %v495 = vsub.f32 0.0, %v493
  %v496 = vmul.f32 %v495, 1.442695
  %v497 = vpow.pop %v496
  %v498 = vadd.f32 %v497, 1.0
  %v499 = vrcp.pop %v498
  %v500 = vmul.f32 %v498, %v499
  %v501 = vsub.f32 1.0, %v500
  %v502 = vmul.f32 %v499, %v501
  %v503 = vadd.f32 %v499, %v502
  %vm504 = vweird.f32 %v498
  %vm505 = vweird.f32 %v499
  %vm506 = vmor %vm504, %vm505
  %v507 = vsel %vm506, %v499, %v503
  %v508 = vand.u32 2147483647, %v498
  %vm509 = vcmp.eq.f32.partialorder %v508, 8.507059e+37
  %v510 = vand.u32 %v498, 2147483648
  %v511 = vor.u32 1.1754944e-38, %v510
  %v512 = vsel %vm509, %v511, %v507
  %v513 = vmul.f32 1.0, %v512
  %v514 = vtanh.pop %v493
  %v515 = vmul.f32 %v513, %v375
  %517 = vrot.lane.b32.xlu0 %v514, 64
  %v518 = vpop.permute.xlu0 %517
  %v520 = vmul.f32 %v513, %v518
  %522 = vrot.lane.b32.xlu0 %v520, 32
  %v523 = vpop.permute.xlu0 %522
  %v525 = vadd.f32 %v515, %v523
  %v526 = vtanh.pop %v525
  %528 = vrot.lane.b32.xlu0 %v526, 64
  %v529 = vpop.permute.xlu0 %528
  %v531 = vmul.f32 %v513, %v529
  %533 = vrot.lane.b32.xlu0 %v531, 32
  %v534 = vpop.permute.xlu0 %533
  %536 = vst.msk [vmem:[#allocation3 + $0x4] sm:$0x3] %vm235, %v534
  %v537 = vld [vmem:[#allocation2 + $0x6] sm:$0x3]
  %v538 = vld [vmem:[%s3] sm:$0xff]
  %v539 = vld [vmem:[%s3 + $0x8] sm:$0xff]
  %v540 = vld [vmem:[%s3 + $0x10] sm:$0xff]
  %v541 = vld [vmem:[%s3 + $0x18] sm:$0xff]
  %v542 = vsel %vm91, %v454, 0
  %544 = vmatpush.msra.mxu0 0.0
  %545 = vmatpush.msra.mxu0 0.0
  %546 = vmatpush.msra.mxu0 0.0
  %547 = vmatpush.msra.mxu0 0.0
  %548 = vmatpush.msra.mxu0 0.0
  %549 = vmatpush.msra.mxu0 0.0
  %550 = vmatpush.msra.mxu0 0.0
  %551 = vmatpush.msra.mxu0 0.0
  %552 = vmatpush.msra.mxu0 0.0
  %553 = vmatpush.msra.mxu0 0.0
  %554 = vmatpush.msra.mxu0 0.0
  %555 = vmatpush.msra.mxu0 0.0
  %556 = vmatpush.msra.mxu0 %v541
  %557 = vmatpush.msra.mxu0 %v540
  %558 = vmatpush.msra.mxu0 %v539
  %559 = vmatpush.msra.mxu0 %v538
  %560 = vmatmul.f32.gmra.mxu0 %v542
  %v561 = vpop.f32.mrf.mxu0
  %v562 = vadd.f32 0.0, %v561
  %563 = vdwg.mxu0
  %v564 = vadd.f32 %v537, %v562
  %v565 = vsub.f32 0.0, %v564
  %v566 = vmul.f32 %v565, 1.442695
  %v567 = vpow.pop %v566
  %v568 = vadd.f32 %v567, 1.0
  %v569 = vrcp.pop %v568
  %v570 = vmul.f32 %v568, %v569
  %v571 = vsub.f32 1.0, %v570
  %v572 = vmul.f32 %v569, %v571
  %v573 = vadd.f32 %v569, %v572
  %vm574 = vweird.f32 %v568
  %vm575 = vweird.f32 %v569
  %vm576 = vmor %vm574, %vm575
  %v577 = vsel %vm576, %v569, %v573
  %v578 = vand.u32 2147483647, %v568
  %vm579 = vcmp.eq.f32.partialorder %v578, 8.507059e+37
  %v580 = vand.u32 %v568, 2147483648
  %v581 = vor.u32 1.1754944e-38, %v580
  %v582 = vsel %vm579, %v581, %v577
  %v583 = vmul.f32 1.0, %v582
  %v584 = vtanh.pop %v564
  %v585 = vmul.f32 %v583, %v445
  %587 = vrot.lane.b32.xlu0 %v584, 64
  %v588 = vpop.permute.xlu0 %587
  %v590 = vmul.f32 %v583, %v588
  %592 = vrot.lane.b32.xlu0 %v590, 32
  %v593 = vpop.permute.xlu0 %592
  %v595 = vadd.f32 %v585, %v593
  %v596 = vtanh.pop %v595
  %598 = vrot.lane.b32.xlu0 %v596, 64
  %v599 = vpop.permute.xlu0 %598
  %v601 = vmul.f32 %v583, %v599
  %603 = vrot.lane.b32.xlu0 %v601, 32
  %v604 = vpop.permute.xlu0 %603
  %606 = vrot.lane.b32.xlu0 %v531, 64
  %v607 = vpop.permute.xlu0 %606
  %v609 = vsel %vm91, %v604, %v607
  %v610 = vld [vmem:[%s4] sm:$0xff]
  %v611 = vld [vmem:[%s4 + $0x8] sm:$0xff]
  %v612 = vld [vmem:[%s4 + $0x10] sm:$0xff]
  %v613 = vld [vmem:[%s4 + $0x18] sm:$0xff]
  %v614 = vld [vmem:[%s4 + $0x20] sm:$0xff]
  %v615 = vld [vmem:[%s4 + $0x28] sm:$0xff]
  %v616 = vld [vmem:[%s4 + $0x30] sm:$0xff]
  %v617 = vld [vmem:[%s4 + $0x38] sm:$0xff]
  %v618 = vld [vmem:[%s5] sm:$0x1]
  %v620 = vperm.slane %v618, 0
  %v623 = vsel %vm170, %v609, 0
  %625 = vmatpush.msra.mxu0 0.0
  %626 = vmatpush.msra.mxu0 0.0
  %627 = vmatpush.msra.mxu0 0.0
  %628 = vmatpush.msra.mxu0 0.0
  %629 = vmatpush.msra.mxu0 0.0
  %630 = vmatpush.msra.mxu0 0.0
  %631 = vmatpush.msra.mxu0 0.0
  %632 = vmatpush.msra.mxu0 0.0
  %633 = vmatpush.msra.mxu0 %v617
  %634 = vmatpush.msra.mxu0 %v616
  %635 = vmatpush.msra.mxu0 %v615
  %636 = vmatpush.msra.mxu0 %v614
  %637 = vmatpush.msra.mxu0 %v613
  %638 = vmatpush.msra.mxu0 %v612
  %639 = vmatpush.msra.mxu0 %v611
  %640 = vmatpush.msra.mxu0 %v610
  %641 = vmatmul.f32.gmra.mxu0 %v623
  %v642 = vpop.f32.mrf.mxu0
  %v643 = vadd.f32 %v620, %v642
  %644 = vdwg.mxu0
  %v645 = vsub.f32 0.0, %v643
  %v646 = vmul.f32 %v645, 1.442695
  %v647 = vpow.pop %v646
  %v648 = vadd.f32 %v647, 1.0
  %v649 = vrcp.pop %v648
  %v650 = vmul.f32 %v648, %v649
  %v651 = vsub.f32 1.0, %v650
  %v652 = vmul.f32 %v649, %v651
  %v653 = vadd.f32 %v649, %v652
  %vm654 = vweird.f32 %v648
  %vm655 = vweird.f32 %v649
  %vm656 = vmor %vm654, %vm655
  %v657 = vsel %vm656, %v649, %v653
  %v658 = vand.u32 2147483647, %v648
  %vm659 = vcmp.eq.f32.partialorder %v658, 8.507059e+37
  %v660 = vand.u32 %v648, 2147483648
  %v661 = vor.u32 1.1754944e-38, %v660
  %v662 = vsel %vm659, %v661, %v657
  %v663 = vmul.f32 1.0, %v662
  %v664 = vtanh.pop %v643
  %v665 = vmul.f32 %v663, %v525
  %667 = vrot.lane.b32.xlu0 %v664, 64
  %v668 = vpop.permute.xlu0 %667
  %v670 = vmul.f32 %v663, %v668
  %672 = vrot.lane.b32.xlu0 %v670, 32
  %v673 = vpop.permute.xlu0 %672
  %v675 = vadd.f32 %v665, %v673
  %v676 = vtanh.pop %v675
  %678 = vrot.lane.b32.xlu0 %v676, 64
  %v679 = vpop.permute.xlu0 %678
  %v681 = vmul.f32 %v663, %v679
  %683 = vrot.lane.b32.xlu0 %v681, 32
  %v684 = vpop.permute.xlu0 %683
  %686 = vst.msk [vmem:[#allocation3 + $0x6] sm:$0x3] %vm235, %v684
  %v687 = vld [vmem:[#allocation2 + $0x8] sm:$0x3]
  %v688 = vld [vmem:[%s3] sm:$0xff]
  %v689 = vld [vmem:[%s3 + $0x8] sm:$0xff]
  %v690 = vld [vmem:[%s3 + $0x10] sm:$0xff]
  %v691 = vld [vmem:[%s3 + $0x18] sm:$0xff]
  %v692 = vsel %vm91, %v604, 0
  %694 = vmatpush.msra.mxu0 0.0
  %695 = vmatpush.msra.mxu0 0.0
  %696 = vmatpush.msra.mxu0 0.0
  %697 = vmatpush.msra.mxu0 0.0
  %698 = vmatpush.msra.mxu0 0.0
  %699 = vmatpush.msra.mxu0 0.0
  %700 = vmatpush.msra.mxu0 0.0
  %701 = vmatpush.msra.mxu0 0.0
  %702 = vmatpush.msra.mxu0 0.0
  %703 = vmatpush.msra.mxu0 0.0
  %704 = vmatpush.msra.mxu0 0.0
  %705 = vmatpush.msra.mxu0 0.0
  %706 = vmatpush.msra.mxu0 %v691
  %707 = vmatpush.msra.mxu0 %v690
  %708 = vmatpush.msra.mxu0 %v689
  %709 = vmatpush.msra.mxu0 %v688
  %710 = vmatmul.f32.gmra.mxu0 %v692
  %v711 = vpop.f32.mrf.mxu0
  %v712 = vadd.f32 0.0, %v711
  %713 = vdwg.mxu0
  %v714 = vadd.f32 %v687, %v712
  %v715 = vsub.f32 0.0, %v714
  %v716 = vmul.f32 %v715, 1.442695
  %v717 = vpow.pop %v716
  %v718 = vadd.f32 %v717, 1.0
  %v719 = vrcp.pop %v718
  %v720 = vmul.f32 %v718, %v719
  %v721 = vsub.f32 1.0, %v720
  %v722 = vmul.f32 %v719, %v721
  %v723 = vadd.f32 %v719, %v722
  %vm724 = vweird.f32 %v718
  %vm725 = vweird.f32 %v719
  %vm726 = vmor %vm724, %vm725
  %v727 = vsel %vm726, %v719, %v723
  %v728 = vand.u32 2147483647, %v718
  %vm729 = vcmp.eq.f32.partialorder %v728, 8.507059e+37
  %v730 = vand.u32 %v718, 2147483648
  %v731 = vor.u32 1.1754944e-38, %v730
  %v732 = vsel %vm729, %v731, %v727
  %v733 = vmul.f32 1.0, %v732
  %v734 = vtanh.pop %v714
  %v735 = vmul.f32 %v733, %v595
  %737 = vrot.lane.b32.xlu0 %v734, 64
  %v738 = vpop.permute.xlu0 %737
  %v740 = vmul.f32 %v733, %v738
  %742 = vrot.lane.b32.xlu0 %v740, 32
  %v743 = vpop.permute.xlu0 %742
  %v745 = vadd.f32 %v735, %v743
  %v746 = vtanh.pop %v745
  %748 = vrot.lane.b32.xlu0 %v746, 64
  %v749 = vpop.permute.xlu0 %748
  %v751 = vmul.f32 %v733, %v749
  %753 = vrot.lane.b32.xlu0 %v751, 32
  %v754 = vpop.permute.xlu0 %753
  %756 = vrot.lane.b32.xlu0 %v681, 64
  %v757 = vpop.permute.xlu0 %756
  %v759 = vsel %vm91, %v754, %v757
  %v760 = vld [vmem:[%s4] sm:$0xff]
  %v761 = vld [vmem:[%s4 + $0x8] sm:$0xff]
  %v762 = vld [vmem:[%s4 + $0x10] sm:$0xff]
  %v763 = vld [vmem:[%s4 + $0x18] sm:$0xff]
  %v764 = vld [vmem:[%s4 + $0x20] sm:$0xff]
  %v765 = vld [vmem:[%s4 + $0x28] sm:$0xff]
  %v766 = vld [vmem:[%s4 + $0x30] sm:$0xff]
  %v767 = vld [vmem:[%s4 + $0x38] sm:$0xff]
  %v768 = vld [vmem:[%s5] sm:$0x1]
  %v770 = vperm.slane %v768, 0
  %v773 = vsel %vm170, %v759, 0
  %775 = vmatpush.msra.mxu0 0.0
  %776 = vmatpush.msra.mxu0 0.0
  %777 = vmatpush.msra.mxu0 0.0
  %778 = vmatpush.msra.mxu0 0.0
  %779 = vmatpush.msra.mxu0 0.0
  %780 = vmatpush.msra.mxu0 0.0
  %781 = vmatpush.msra.mxu0 0.0
  %782 = vmatpush.msra.mxu0 0.0
  %783 = vmatpush.msra.mxu0 %v767
  %784 = vmatpush.msra.mxu0 %v766
  %785 = vmatpush.msra.mxu0 %v765
  %786 = vmatpush.msra.mxu0 %v764
  %787 = vmatpush.msra.mxu0 %v763
  %788 = vmatpush.msra.mxu0 %v762
  %789 = vmatpush.msra.mxu0 %v761
  %790 = vmatpush.msra.mxu0 %v760
  %791 = vmatmul.f32.gmra.mxu0 %v773
  %v792 = vpop.f32.mrf.mxu0
  %v793 = vadd.f32 %v770, %v792
  %794 = vdwg.mxu0
  %v795 = vsub.f32 0.0, %v793
  %v796 = vmul.f32 %v795, 1.442695
  %v797 = vpow.pop %v796
  %v798 = vadd.f32 %v797, 1.0
  %v799 = vrcp.pop %v798
  %v800 = vmul.f32 %v798, %v799
  %v801 = vsub.f32 1.0, %v800
  %v802 = vmul.f32 %v799, %v801
  %v803 = vadd.f32 %v799, %v802
  %vm804 = vweird.f32 %v798
  %vm805 = vweird.f32 %v799
  %vm806 = vmor %vm804, %vm805
  %v807 = vsel %vm806, %v799, %v803
  %v808 = vand.u32 2147483647, %v798
  %vm809 = vcmp.eq.f32.partialorder %v808, 8.507059e+37
  %v810 = vand.u32 %v798, 2147483648
  %v811 = vor.u32 1.1754944e-38, %v810
  %v812 = vsel %vm809, %v811, %v807
  %v813 = vmul.f32 1.0, %v812
  %v814 = vtanh.pop %v793
  %v815 = vmul.f32 %v813, %v675
  %817 = vrot.lane.b32.xlu0 %v814, 64
  %v818 = vpop.permute.xlu0 %817
  %v820 = vmul.f32 %v813, %v818
  %822 = vrot.lane.b32.xlu0 %v820, 32
  %v823 = vpop.permute.xlu0 %822
  %v825 = vadd.f32 %v815, %v823
  %v826 = vtanh.pop %v825
  %828 = vrot.lane.b32.xlu0 %v826, 64
  %v829 = vpop.permute.xlu0 %828
  %v831 = vmul.f32 %v813, %v829
  %833 = vrot.lane.b32.xlu0 %v831, 32
  %v834 = vpop.permute.xlu0 %833
  %836 = vst.msk [vmem:[#allocation3 + $0x8] sm:$0x3] %vm235, %v834
  %v837 = vld [vmem:[#allocation2 + $0xa] sm:$0x3]
  %v838 = vld [vmem:[%s3] sm:$0xff]
  %v839 = vld [vmem:[%s3 + $0x8] sm:$0xff]
  %v840 = vld [vmem:[%s3 + $0x10] sm:$0xff]
  %v841 = vld [vmem:[%s3 + $0x18] sm:$0xff]
  %v842 = vsel %vm91, %v754, 0
  %844 = vmatpush.msra.mxu0 0.0
  %845 = vmatpush.msra.mxu0 0.0
  %846 = vmatpush.msra.mxu0 0.0
  %847 = vmatpush.msra.mxu0 0.0
  %848 = vmatpush.msra.mxu0 0.0
  %849 = vmatpush.msra.mxu0 0.0
  %850 = vmatpush.msra.mxu0 0.0
  %851 = vmatpush.msra.mxu0 0.0
  %852 = vmatpush.msra.mxu0 0.0
  %853 = vmatpush.msra.mxu0 0.0
  %854 = vmatpush.msra.mxu0 0.0
  %855 = vmatpush.msra.mxu0 0.0
  %856 = vmatpush.msra.mxu0 %v841
  %857 = vmatpush.msra.mxu0 %v840
  %858 = vmatpush.msra.mxu0 %v839
  %859 = vmatpush.msra.mxu0 %v838
  %860 = vmatmul.f32.gmra.mxu0 %v842
  %v861 = vpop.f32.mrf.mxu0
  %v862 = vadd.f32 0.0, %v861
  %863 = vdwg.mxu0
  %v864 = vadd.f32 %v837, %v862
  %v865 = vsub.f32 0.0, %v864
  %v866 = vmul.f32 %v865, 1.442695
  %v867 = vpow.pop %v866
  %v868 = vadd.f32 %v867, 1.0
  %v869 = vrcp.pop %v868
  %v870 = vmul.f32 %v868, %v869
  %v871 = vsub.f32 1.0, %v870
  %v872 = vmul.f32 %v869, %v871
  %v873 = vadd.f32 %v869, %v872
  %vm874 = vweird.f32 %v868
  %vm875 = vweird.f32 %v869
  %vm876 = vmor %vm874, %vm875
  %v877 = vsel %vm876, %v869, %v873
  %v878 = vand.u32 2147483647, %v868
  %vm879 = vcmp.eq.f32.partialorder %v878, 8.507059e+37
  %v880 = vand.u32 %v868, 2147483648
  %v881 = vor.u32 1.1754944e-38, %v880
  %v882 = vsel %vm879, %v881, %v877
  %v883 = vmul.f32 1.0, %v882
  %v884 = vtanh.pop %v864
  %v885 = vmul.f32 %v883, %v745
  %887 = vrot.lane.b32.xlu0 %v884, 64
  %v888 = vpop.permute.xlu0 %887
  %v890 = vmul.f32 %v883, %v888
  %892 = vrot.lane.b32.xlu0 %v890, 32
  %v893 = vpop.permute.xlu0 %892
  %v895 = vadd.f32 %v885, %v893
  %v896 = vtanh.pop %v895
  %898 = vrot.lane.b32.xlu0 %v896, 64
  %v899 = vpop.permute.xlu0 %898
  %v901 = vmul.f32 %v883, %v899
  %903 = vrot.lane.b32.xlu0 %v901, 32
  %v904 = vpop.permute.xlu0 %903
  %906 = vrot.lane.b32.xlu0 %v831, 64
  %v907 = vpop.permute.xlu0 %906
  %v909 = vsel %vm91, %v904, %v907
  %v910 = vld [vmem:[%s4] sm:$0xff]
  %v911 = vld [vmem:[%s4 + $0x8] sm:$0xff]
  %v912 = vld [vmem:[%s4 + $0x10] sm:$0xff]
  %v913 = vld [vmem:[%s4 + $0x18] sm:$0xff]
  %v914 = vld [vmem:[%s4 + $0x20] sm:$0xff]
  %v915 = vld [vmem:[%s4 + $0x28] sm:$0xff]
  %v916 = vld [vmem:[%s4 + $0x30] sm:$0xff]
  %v917 = vld [vmem:[%s4 + $0x38] sm:$0xff]
  %v918 = vld [vmem:[%s5] sm:$0x1]
  %v920 = vperm.slane %v918, 0
  %v923 = vsel %vm170, %v909, 0
  %925 = vmatpush.msra.mxu0 0.0
  %926 = vmatpush.msra.mxu0 0.0
  %927 = vmatpush.msra.mxu0 0.0
  %928 = vmatpush.msra.mxu0 0.0
  %929 = vmatpush.msra.mxu0 0.0
  %930 = vmatpush.msra.mxu0 0.0
  %931 = vmatpush.msra.mxu0 0.0
  %932 = vmatpush.msra.mxu0 0.0
  %933 = vmatpush.msra.mxu0 %v917
  %934 = vmatpush.msra.mxu0 %v916
  %935 = vmatpush.msra.mxu0 %v915
  %936 = vmatpush.msra.mxu0 %v914
  %937 = vmatpush.msra.mxu0 %v913
  %938 = vmatpush.msra.mxu0 %v912
  %939 = vmatpush.msra.mxu0 %v911
  %940 = vmatpush.msra.mxu0 %v910
  %941 = vmatmul.f32.gmra.mxu0 %v923
  %v942 = vpop.f32.mrf.mxu0
  %v943 = vadd.f32 %v920, %v942
  %944 = vdwg.mxu0
  %v945 = vsub.f32 0.0, %v943
  %v946 = vmul.f32 %v945, 1.442695
  %v947 = vpow.pop %v946
  %v948 = vadd.f32 %v947, 1.0
  %v949 = vrcp.pop %v948
  %v950 = vmul.f32 %v948, %v949
  %v951 = vsub.f32 1.0, %v950
  %v952 = vmul.f32 %v949, %v951
  %v953 = vadd.f32 %v949, %v952
  %vm954 = vweird.f32 %v948
  %vm955 = vweird.f32 %v949
  %vm956 = vmor %vm954, %vm955
  %v957 = vsel %vm956, %v949, %v953
  %v958 = vand.u32 2147483647, %v948
  %vm959 = vcmp.eq.f32.partialorder %v958, 8.507059e+37
  %v960 = vand.u32 %v948, 2147483648
  %v961 = vor.u32 1.1754944e-38, %v960
  %v962 = vsel %vm959, %v961, %v957
  %v963 = vmul.f32 1.0, %v962
  %v964 = vtanh.pop %v943
  %v965 = vmul.f32 %v963, %v825
  %967 = vrot.lane.b32.xlu0 %v964, 64
  %v968 = vpop.permute.xlu0 %967
  %v970 = vmul.f32 %v963, %v968
  %972 = vrot.lane.b32.xlu0 %v970, 32
  %v973 = vpop.permute.xlu0 %972
  %v975 = vadd.f32 %v965, %v973
  %v976 = vtanh.pop %v975
  %978 = vrot.lane.b32.xlu0 %v976, 64
  %v979 = vpop.permute.xlu0 %978
  %v981 = vmul.f32 %v963, %v979
  %983 = vrot.lane.b32.xlu0 %v981, 32
  %v984 = vpop.permute.xlu0 %983
  %986 = vst.msk [vmem:[#allocation3 + $0xa] sm:$0x3] %vm235, %v984
  %v987 = vld [vmem:[#allocation2 + $0xc] sm:$0x3]
  %v988 = vld [vmem:[%s3] sm:$0xff]
  %v989 = vld [vmem:[%s3 + $0x8] sm:$0xff]
  %v990 = vld [vmem:[%s3 + $0x10] sm:$0xff]
  %v991 = vld [vmem:[%s3 + $0x18] sm:$0xff]
  %v992 = vsel %vm91, %v904, 0
  %994 = vmatpush.msra.mxu0 0.0
  %995 = vmatpush.msra.mxu0 0.0
  %996 = vmatpush.msra.mxu0 0.0
  %997 = vmatpush.msra.mxu0 0.0
  %998 = vmatpush.msra.mxu0 0.0
  %999 = vmatpush.msra.mxu0 0.0
  %1000 = vmatpush.msra.mxu0 0.0
  %1001 = vmatpush.msra.mxu0 0.0
  %1002 = vmatpush.msra.mxu0 0.0
  %1003 = vmatpush.msra.mxu0 0.0
  %1004 = vmatpush.msra.mxu0 0.0
  %1005 = vmatpush.msra.mxu0 0.0
  %1006 = vmatpush.msra.mxu0 %v991
  %1007 = vmatpush.msra.mxu0 %v990
  %1008 = vmatpush.msra.mxu0 %v989
  %1009 = vmatpush.msra.mxu0 %v988
  %1010 = vmatmul.f32.gmra.mxu0 %v992
  %v1011 = vpop.f32.mrf.mxu0
  %v1012 = vadd.f32 0.0, %v1011
  %1013 = vdwg.mxu0
  %v1014 = vadd.f32 %v987, %v1012
  %v1015 = vsub.f32 0.0, %v1014
  %v1016 = vmul.f32 %v1015, 1.442695
  %v1017 = vpow.pop %v1016
  %v1018 = vadd.f32 %v1017, 1.0
  %v1019 = vrcp.pop %v1018
  %v1020 = vmul.f32 %v1018, %v1019
  %v1021 = vsub.f32 1.0, %v1020
  %v1022 = vmul.f32 %v1019, %v1021
  %v1023 = vadd.f32 %v1019, %v1022
  %vm1024 = vweird.f32 %v1018
  %vm1025 = vweird.f32 %v1019
  %vm1026 = vmor %vm1024, %vm1025
  %v1027 = vsel %vm1026, %v1019, %v1023
  %v1028 = vand.u32 2147483647, %v1018
  %vm1029 = vcmp.eq.f32.partialorder %v1028, 8.507059e+37
  %v1030 = vand.u32 %v1018, 2147483648
  %v1031 = vor.u32 1.1754944e-38, %v1030
  %v1032 = vsel %vm1029, %v1031, %v1027
  %v1033 = vmul.f32 1.0, %v1032
  %v1034 = vtanh.pop %v1014
  %v1035 = vmul.f32 %v1033, %v895
  %1037 = vrot.lane.b32.xlu0 %v1034, 64
  %v1038 = vpop.permute.xlu0 %1037
  %v1040 = vmul.f32 %v1033, %v1038
  %1042 = vrot.lane.b32.xlu0 %v1040, 32
  %v1043 = vpop.permute.xlu0 %1042
  %v1045 = vadd.f32 %v1035, %v1043
  %v1046 = vtanh.pop %v1045
  %1048 = vrot.lane.b32.xlu0 %v1046, 64
  %v1049 = vpop.permute.xlu0 %1048
  %v1051 = vmul.f32 %v1033, %v1049
  %1053 = vrot.lane.b32.xlu0 %v1051, 32
  %v1054 = vpop.permute.xlu0 %1053
  %1056 = vrot.lane.b32.xlu0 %v981, 64
  %v1057 = vpop.permute.xlu0 %1056
  %v1059 = vsel %vm91, %v1054, %v1057
  %v1060 = vld [vmem:[%s4] sm:$0xff]
  %v1061 = vld [vmem:[%s4 + $0x8] sm:$0xff]
  %v1062 = vld [vmem:[%s4 + $0x10] sm:$0xff]
  %v1063 = vld [vmem:[%s4 + $0x18] sm:$0xff]
  %v1064 = vld [vmem:[%s4 + $0x20] sm:$0xff]
  %v1065 = vld [vmem:[%s4 + $0x28] sm:$0xff]
  %v1066 = vld [vmem:[%s4 + $0x30] sm:$0xff]
  %v1067 = vld [vmem:[%s4 + $0x38] sm:$0xff]
  %v1068 = vld [vmem:[%s5] sm:$0x1]
  %v1070 = vperm.slane %v1068, 0
  %v1073 = vsel %vm170, %v1059, 0
  %1075 = vmatpush.msra.mxu0 0.0
  %1076 = vmatpush.msra.mxu0 0.0
  %1077 = vmatpush.msra.mxu0 0.0
  %1078 = vmatpush.msra.mxu0 0.0
  %1079 = vmatpush.msra.mxu0 0.0
  %1080 = vmatpush.msra.mxu0 0.0
  %1081 = vmatpush.msra.mxu0 0.0
  %1082 = vmatpush.msra.mxu0 0.0
  %1083 = vmatpush.msra.mxu0 %v1067
  %1084 = vmatpush.msra.mxu0 %v1066
  %1085 = vmatpush.msra.mxu0 %v1065
  %1086 = vmatpush.msra.mxu0 %v1064
  %1087 = vmatpush.msra.mxu0 %v1063
  %1088 = vmatpush.msra.mxu0 %v1062
  %1089 = vmatpush.msra.mxu0 %v1061
  %1090 = vmatpush.msra.mxu0 %v1060
  %1091 = vmatmul.f32.gmra.mxu0 %v1073
  %v1092 = vpop.f32.mrf.mxu0
  %v1093 = vadd.f32 %v1070, %v1092
  %1094 = vdwg.mxu0
  %v1095 = vsub.f32 0.0, %v1093
  %v1096 = vmul.f32 %v1095, 1.442695
  %v1097 = vpow.pop %v1096
  %v1098 = vadd.f32 %v1097, 1.0
  %v1099 = vrcp.pop %v1098
  %v1100 = vmul.f32 %v1098, %v1099
  %v1101 = vsub.f32 1.0, %v1100
  %v1102 = vmul.f32 %v1099, %v1101
  %v1103 = vadd.f32 %v1099, %v1102
  %vm1104 = vweird.f32 %v1098
  %vm1105 = vweird.f32 %v1099
  %vm1106 = vmor %vm1104, %vm1105
  %v1107 = vsel %vm1106, %v1099, %v1103
  %v1108 = vand.u32 2147483647, %v1098
  %vm1109 = vcmp.eq.f32.partialorder %v1108, 8.507059e+37
  %v1110 = vand.u32 %v1098, 2147483648
  %v1111 = vor.u32 1.1754944e-38, %v1110
  %v1112 = vsel %vm1109, %v1111, %v1107
  %v1113 = vmul.f32 1.0, %v1112
  %v1114 = vtanh.pop %v1093
  %v1115 = vmul.f32 %v1113, %v975
  %1117 = vrot.lane.b32.xlu0 %v1114, 64
  %v1118 = vpop.permute.xlu0 %1117
  %v1120 = vmul.f32 %v1113, %v1118
  %1122 = vrot.lane.b32.xlu0 %v1120, 32
  %v1123 = vpop.permute.xlu0 %1122
  %v1125 = vadd.f32 %v1115, %v1123
  %v1126 = vtanh.pop %v1125
  %1128 = vrot.lane.b32.xlu0 %v1126, 64
  %v1129 = vpop.permute.xlu0 %1128
  %v1131 = vmul.f32 %v1113, %v1129
  %1133 = vrot.lane.b32.xlu0 %v1131, 32
  %v1134 = vpop.permute.xlu0 %1133
  %1136 = vst.msk [vmem:[#allocation3 + $0xc] sm:$0x3] %vm235, %v1134
  %v1137 = vld [vmem:[#allocation2 + $0xe] sm:$0x3]
  %v1138 = vld [vmem:[%s3] sm:$0xff]
  %v1139 = vld [vmem:[%s3 + $0x8] sm:$0xff]
  %v1140 = vld [vmem:[%s3 + $0x10] sm:$0xff]
  %v1141 = vld [vmem:[%s3 + $0x18] sm:$0xff]
  %v1142 = vsel %vm91, %v1054, 0
  %1144 = vmatpush.msra.mxu0 0.0
  %1145 = vmatpush.msra.mxu0 0.0
  %1146 = vmatpush.msra.mxu0 0.0
  %1147 = vmatpush.msra.mxu0 0.0
  %1148 = vmatpush.msra.mxu0 0.0
  %1149 = vmatpush.msra.mxu0 0.0
  %1150 = vmatpush.msra.mxu0 0.0
  %1151 = vmatpush.msra.mxu0 0.0
  %1152 = vmatpush.msra.mxu0 0.0
  %1153 = vmatpush.msra.mxu0 0.0
  %1154 = vmatpush.msra.mxu0 0.0
  %1155 = vmatpush.msra.mxu0 0.0
  %1156 = vmatpush.msra.mxu0 %v1141
  %1157 = vmatpush.msra.mxu0 %v1140
  %1158 = vmatpush.msra.mxu0 %v1139
  %1159 = vmatpush.msra.mxu0 %v1138
  %1160 = vmatmul.f32.gmra.mxu0 %v1142
  %v1161 = vpop.f32.mrf.mxu0
  %v1162 = vadd.f32 0.0, %v1161
  %1163 = vdwg.mxu0
  %v1164 = vadd.f32 %v1137, %v1162
  %v1165 = vsub.f32 0.0, %v1164
  %v1166 = vmul.f32 %v1165, 1.442695
  %v1167 = vpow.pop %v1166
  %v1168 = vadd.f32 %v1167, 1.0
  %v1169 = vrcp.pop %v1168
  %v1170 = vmul.f32 %v1168, %v1169
  %v1171 = vsub.f32 1.0, %v1170
  %v1172 = vmul.f32 %v1169, %v1171
  %v1173 = vadd.f32 %v1169, %v1172
  %vm1174 = vweird.f32 %v1168
  %vm1175 = vweird.f32 %v1169
  %vm1176 = vmor %vm1174, %vm1175
  %v1177 = vsel %vm1176, %v1169, %v1173
  %v1178 = vand.u32 2147483647, %v1168
  %vm1179 = vcmp.eq.f32.partialorder %v1178, 8.507059e+37
  %v1180 = vand.u32 %v1168, 2147483648
  %v1181 = vor.u32 1.1754944e-38, %v1180
  %v1182 = vsel %vm1179, %v1181, %v1177
  %v1183 = vmul.f32 1.0, %v1182
  %v1184 = vtanh.pop %v1164
  %v1185 = vmul.f32 %v1183, %v1045
  %1187 = vrot.lane.b32.xlu0 %v1184, 64
  %v1188 = vpop.permute.xlu0 %1187
  %v1190 = vmul.f32 %v1183, %v1188
  %1192 = vrot.lane.b32.xlu0 %v1190, 32
  %v1193 = vpop.permute.xlu0 %1192
  %v1195 = vadd.f32 %v1185, %v1193
  %v1196 = vtanh.pop %v1195
  %1198 = vrot.lane.b32.xlu0 %v1196, 64
  %v1199 = vpop.permute.xlu0 %1198
  %v1201 = vmul.f32 %v1183, %v1199
  %1203 = vrot.lane.b32.xlu0 %v1201, 32
  %v1204 = vpop.permute.xlu0 %1203
  %1206 = vrot.lane.b32.xlu0 %v1131, 64
  %v1207 = vpop.permute.xlu0 %1206
  %v1209 = vsel %vm91, %v1204, %v1207
  %v1210 = vld [vmem:[%s4] sm:$0xff]
  %v1211 = vld [vmem:[%s4 + $0x8] sm:$0xff]
  %v1212 = vld [vmem:[%s4 + $0x10] sm:$0xff]
  %v1213 = vld [vmem:[%s4 + $0x18] sm:$0xff]
  %v1214 = vld [vmem:[%s4 + $0x20] sm:$0xff]
  %v1215 = vld [vmem:[%s4 + $0x28] sm:$0xff]
  %v1216 = vld [vmem:[%s4 + $0x30] sm:$0xff]
  %v1217 = vld [vmem:[%s4 + $0x38] sm:$0xff]
  %v1218 = vld [vmem:[%s5] sm:$0x1]
  %v1220 = vperm.slane %v1218, 0
  %v1223 = vsel %vm170, %v1209, 0
  %1225 = vmatpush.msra.mxu0 0.0
  %1226 = vmatpush.msra.mxu0 0.0
  %1227 = vmatpush.msra.mxu0 0.0
  %1228 = vmatpush.msra.mxu0 0.0
  %1229 = vmatpush.msra.mxu0 0.0
  %1230 = vmatpush.msra.mxu0 0.0
  %1231 = vmatpush.msra.mxu0 0.0
  %1232 = vmatpush.msra.mxu0 0.0
  %1233 = vmatpush.msra.mxu0 %v1217
  %1234 = vmatpush.msra.mxu0 %v1216
  %1235 = vmatpush.msra.mxu0 %v1215
  %1236 = vmatpush.msra.mxu0 %v1214
  %1237 = vmatpush.msra.mxu0 %v1213
  %1238 = vmatpush.msra.mxu0 %v1212
  %1239 = vmatpush.msra.mxu0 %v1211
  %1240 = vmatpush.msra.mxu0 %v1210
  %1241 = vmatmul.f32.gmra.mxu0 %v1223
  %v1242 = vpop.f32.mrf.mxu0
  %v1243 = vadd.f32 %v1220, %v1242
  %1244 = vdwg.mxu0
  %v1245 = vsub.f32 0.0, %v1243
  %v1246 = vmul.f32 %v1245, 1.442695
  %v1247 = vpow.pop %v1246
  %v1248 = vadd.f32 %v1247, 1.0
  %v1249 = vrcp.pop %v1248
  %v1250 = vmul.f32 %v1248, %v1249
  %v1251 = vsub.f32 1.0, %v1250
  %v1252 = vmul.f32 %v1249, %v1251
  %v1253 = vadd.f32 %v1249, %v1252
  %vm1254 = vweird.f32 %v1248
  %vm1255 = vweird.f32 %v1249
  %vm1256 = vmor %vm1254, %vm1255
  %v1257 = vsel %vm1256, %v1249, %v1253
  %v1258 = vand.u32 2147483647, %v1248
  %vm1259 = vcmp.eq.f32.partialorder %v1258, 8.507059e+37
  %v1260 = vand.u32 %v1248, 2147483648
  %v1261 = vor.u32 1.1754944e-38, %v1260
  %v1262 = vsel %vm1259, %v1261, %v1257
  %v1263 = vmul.f32 1.0, %v1262
  %v1264 = vtanh.pop %v1243
  %v1265 = vmul.f32 %v1263, %v1125
  %1267 = vrot.lane.b32.xlu0 %v1264, 64
  %v1268 = vpop.permute.xlu0 %1267
  %v1270 = vmul.f32 %v1263, %v1268
  %1272 = vrot.lane.b32.xlu0 %v1270, 32
  %v1273 = vpop.permute.xlu0 %1272
  %v1275 = vadd.f32 %v1265, %v1273
  %v1276 = vtanh.pop %v1275
  %1278 = vrot.lane.b32.xlu0 %v1276, 64
  %v1279 = vpop.permute.xlu0 %1278
  %v1281 = vmul.f32 %v1263, %v1279
  %1283 = vrot.lane.b32.xlu0 %v1281, 32
  %v1284 = vpop.permute.xlu0 %1283
  %1286 = vst.msk [vmem:[#allocation3 + $0xe] sm:$0x3] %vm235, %v1284
  %v1287 = vld [vmem:[#allocation2 + $0x10] sm:$0x3]
  %v1288 = vld [vmem:[%s3] sm:$0xff]
  %v1289 = vld [vmem:[%s3 + $0x8] sm:$0xff]
  %v1290 = vld [vmem:[%s3 + $0x10] sm:$0xff]
  %v1291 = vld [vmem:[%s3 + $0x18] sm:$0xff]
  %v1292 = vsel %vm91, %v1204, 0
  %1294 = vmatpush.msra.mxu0 0.0
  %1295 = vmatpush.msra.mxu0 0.0
  %1296 = vmatpush.msra.mxu0 0.0
  %1297 = vmatpush.msra.mxu0 0.0
  %1298 = vmatpush.msra.mxu0 0.0
  %1299 = vmatpush.msra.mxu0 0.0
  %1300 = vmatpush.msra.mxu0 0.0
  %1301 = vmatpush.msra.mxu0 0.0
  %1302 = vmatpush.msra.mxu0 0.0
  %1303 = vmatpush.msra.mxu0 0.0
  %1304 = vmatpush.msra.mxu0 0.0
  %1305 = vmatpush.msra.mxu0 0.0
  %1306 = vmatpush.msra.mxu0 %v1291
  %1307 = vmatpush.msra.mxu0 %v1290
  %1308 = vmatpush.msra.mxu0 %v1289
  %1309 = vmatpush.msra.mxu0 %v1288
  %1310 = vmatmul.f32.gmra.mxu0 %v1292
  %v1311 = vpop.f32.mrf.mxu0
  %v1312 = vadd.f32 0.0, %v1311
  %1313 = vdwg.mxu0
  %v1314 = vadd.f32 %v1287, %v1312
  %v1315 = vsub.f32 0.0, %v1314
  %v1316 = vmul.f32 %v1315, 1.442695
  %v1317 = vpow.pop %v1316
  %v1318 = vadd.f32 %v1317, 1.0
  %v1319 = vrcp.pop %v1318
  %v1320 = vmul.f32 %v1318, %v1319
  %v1321 = vsub.f32 1.0, %v1320
  %v1322 = vmul.f32 %v1319, %v1321
  %v1323 = vadd.f32 %v1319, %v1322
  %vm1324 = vweird.f32 %v1318
  %vm1325 = vweird.f32 %v1319
  %vm1326 = vmor %vm1324, %vm1325
  %v1327 = vsel %vm1326, %v1319, %v1323
  %v1328 = vand.u32 2147483647, %v1318
  %vm1329 = vcmp.eq.f32.partialorder %v1328, 8.507059e+37
  %v1330 = vand.u32 %v1318, 2147483648
  %v1331 = vor.u32 1.1754944e-38, %v1330
  %v1332 = vsel %vm1329, %v1331, %v1327
  %v1333 = vmul.f32 1.0, %v1332
  %v1334 = vtanh.pop %v1314
  %v1335 = vmul.f32 %v1333, %v1195
  %1337 = vrot.lane.b32.xlu0 %v1334, 64
  %v1338 = vpop.permute.xlu0 %1337
  %v1340 = vmul.f32 %v1333, %v1338
  %1342 = vrot.lane.b32.xlu0 %v1340, 32
  %v1343 = vpop.permute.xlu0 %1342
  %v1345 = vadd.f32 %v1335, %v1343
  %v1346 = vtanh.pop %v1345
  %1348 = vrot.lane.b32.xlu0 %v1346, 64
  %v1349 = vpop.permute.xlu0 %1348
  %v1351 = vmul.f32 %v1333, %v1349
  %1353 = vrot.lane.b32.xlu0 %v1351, 32
  %v1354 = vpop.permute.xlu0 %1353
  %1356 = vrot.lane.b32.xlu0 %v1281, 64
  %v1357 = vpop.permute.xlu0 %1356
  %v1359 = vsel %vm91, %v1354, %v1357
  %v1360 = vld [vmem:[%s4] sm:$0xff]
  %v1361 = vld [vmem:[%s4 + $0x8] sm:$0xff]
  %v1362 = vld [vmem:[%s4 + $0x10] sm:$0xff]
  %v1363 = vld [vmem:[%s4 + $0x18] sm:$0xff]
  %v1364 = vld [vmem:[%s4 + $0x20] sm:$0xff]
  %v1365 = vld [vmem:[%s4 + $0x28] sm:$0xff]
  %v1366 = vld [vmem:[%s4 + $0x30] sm:$0xff]
  %v1367 = vld [vmem:[%s4 + $0x38] sm:$0xff]
  %v1368 = vld [vmem:[%s5] sm:$0x1]
  %v1370 = vperm.slane %v1368, 0
  %v1373 = vsel %vm170, %v1359, 0
  %1375 = vmatpush.msra.mxu0 0.0
  %1376 = vmatpush.msra.mxu0 0.0
  %1377 = vmatpush.msra.mxu0 0.0
  %1378 = vmatpush.msra.mxu0 0.0
  %1379 = vmatpush.msra.mxu0 0.0
  %1380 = vmatpush.msra.mxu0 0.0
  %1381 = vmatpush.msra.mxu0 0.0
  %1382 = vmatpush.msra.mxu0 0.0
  %1383 = vmatpush.msra.mxu0 %v1367
  %1384 = vmatpush.msra.mxu0 %v1366
  %1385 = vmatpush.msra.mxu0 %v1365
  %1386 = vmatpush.msra.mxu0 %v1364
  %1387 = vmatpush.msra.mxu0 %v1363
  %1388 = vmatpush.msra.mxu0 %v1362
  %1389 = vmatpush.msra.mxu0 %v1361
  %1390 = vmatpush.msra.mxu0 %v1360
  %1391 = vmatmul.f32.gmra.mxu0 %v1373
  %v1392 = vpop.f32.mrf.mxu0
  %v1393 = vadd.f32 %v1370, %v1392
  %1394 = vdwg.mxu0
  %v1395 = vsub.f32 0.0, %v1393
  %v1396 = vmul.f32 %v1395, 1.442695
  %v1397 = vpow.pop %v1396
  %v1398 = vadd.f32 %v1397, 1.0
  %v1399 = vrcp.pop %v1398
  %v1400 = vmul.f32 %v1398, %v1399
  %v1401 = vsub.f32 1.0, %v1400
  %v1402 = vmul.f32 %v1399, %v1401
  %v1403 = vadd.f32 %v1399, %v1402
  %vm1404 = vweird.f32 %v1398
  %vm1405 = vweird.f32 %v1399
  %vm1406 = vmor %vm1404, %vm1405
  %v1407 = vsel %vm1406, %v1399, %v1403
  %v1408 = vand.u32 2147483647, %v1398
  %vm1409 = vcmp.eq.f32.partialorder %v1408, 8.507059e+37
  %v1410 = vand.u32 %v1398, 2147483648
  %v1411 = vor.u32 1.1754944e-38, %v1410
  %v1412 = vsel %vm1409, %v1411, %v1407
  %v1413 = vmul.f32 1.0, %v1412
  %v1414 = vtanh.pop %v1393
  %v1415 = vmul.f32 %v1413, %v1275
  %1417 = vrot.lane.b32.xlu0 %v1414, 64
  %v1418 = vpop.permute.xlu0 %1417
  %v1420 = vmul.f32 %v1413, %v1418
  %1422 = vrot.lane.b32.xlu0 %v1420, 32
  %v1423 = vpop.permute.xlu0 %1422
  %v1425 = vadd.f32 %v1415, %v1423
  %v1426 = vtanh.pop %v1425
  %1428 = vrot.lane.b32.xlu0 %v1426, 64
  %v1429 = vpop.permute.xlu0 %1428
  %v1431 = vmul.f32 %v1413, %v1429
  %1433 = vrot.lane.b32.xlu0 %v1431, 32
  %v1434 = vpop.permute.xlu0 %1433
  %1436 = vst.msk [vmem:[#allocation3 + $0x10] sm:$0x3] %vm235, %v1434
  %v1437 = vld [vmem:[#allocation2 + $0x12] sm:$0x3]
  %v1438 = vld [vmem:[%s3] sm:$0xff]
  %v1439 = vld [vmem:[%s3 + $0x8] sm:$0xff]
  %v1440 = vld [vmem:[%s3 + $0x10] sm:$0xff]
  %v1441 = vld [vmem:[%s3 + $0x18] sm:$0xff]
  %v1442 = vsel %vm91, %v1354, 0
  %1444 = vmatpush.msra.mxu0 0.0
  %1445 = vmatpush.msra.mxu0 0.0
  %1446 = vmatpush.msra.mxu0 0.0
  %1447 = vmatpush.msra.mxu0 0.0
  %1448 = vmatpush.msra.mxu0 0.0
  %1449 = vmatpush.msra.mxu0 0.0
  %1450 = vmatpush.msra.mxu0 0.0
  %1451 = vmatpush.msra.mxu0 0.0
  %1452 = vmatpush.msra.mxu0 0.0
  %1453 = vmatpush.msra.mxu0 0.0
  %1454 = vmatpush.msra.mxu0 0.0
  %1455 = vmatpush.msra.mxu0 0.0
  %1456 = vmatpush.msra.mxu0 %v1441
  %1457 = vmatpush.msra.mxu0 %v1440
  %1458 = vmatpush.msra.mxu0 %v1439
  %1459 = vmatpush.msra.mxu0 %v1438
  %1460 = vmatmul.f32.gmra.mxu0 %v1442
  %v1461 = vpop.f32.mrf.mxu0
  %v1462 = vadd.f32 0.0, %v1461
  %1463 = vdwg.mxu0
  %v1464 = vadd.f32 %v1437, %v1462
  %v1465 = vsub.f32 0.0, %v1464
  %v1466 = vmul.f32 %v1465, 1.442695
  %v1467 = vpow.pop %v1466
  %v1468 = vadd.f32 %v1467, 1.0
  %v1469 = vrcp.pop %v1468
  %v1470 = vmul.f32 %v1468, %v1469
  %v1471 = vsub.f32 1.0, %v1470
  %v1472 = vmul.f32 %v1469, %v1471
  %v1473 = vadd.f32 %v1469, %v1472
  %vm1474 = vweird.f32 %v1468
  %vm1475 = vweird.f32 %v1469
  %vm1476 = vmor %vm1474, %vm1475
  %v1477 = vsel %vm1476, %v1469, %v1473
  %v1478 = vand.u32 2147483647, %v1468
  %vm1479 = vcmp.eq.f32.partialorder %v1478, 8.507059e+37
  %v1480 = vand.u32 %v1468, 2147483648
  %v1481 = vor.u32 1.1754944e-38, %v1480
  %v1482 = vsel %vm1479, %v1481, %v1477
  %v1483 = vmul.f32 1.0, %v1482
  %v1484 = vtanh.pop %v1464
  %v1485 = vmul.f32 %v1483, %v1345
  %1487 = vrot.lane.b32.xlu0 %v1484, 64
  %v1488 = vpop.permute.xlu0 %1487
  %v1490 = vmul.f32 %v1483, %v1488
  %1492 = vrot.lane.b32.xlu0 %v1490, 32
  %v1493 = vpop.permute.xlu0 %1492
  %v1495 = vadd.f32 %v1485, %v1493
  %v1496 = vtanh.pop %v1495
  %1498 = vrot.lane.b32.xlu0 %v1496, 64
  %v1499 = vpop.permute.xlu0 %1498
  %v1501 = vmul.f32 %v1483, %v1499
  %1503 = vrot.lane.b32.xlu0 %v1501, 32
  %v1504 = vpop.permute.xlu0 %1503
  %1506 = vrot.lane.b32.xlu0 %v1431, 64
  %v1507 = vpop.permute.xlu0 %1506
  %v1509 = vsel %vm91, %v1504, %v1507
  %v1510 = vld [vmem:[%s4] sm:$0xff]
  %v1511 = vld [vmem:[%s4 + $0x8] sm:$0xff]
  %v1512 = vld [vmem:[%s4 + $0x10] sm:$0xff]
  %v1513 = vld [vmem:[%s4 + $0x18] sm:$0xff]
  %v1514 = vld [vmem:[%s4 + $0x20] sm:$0xff]
  %v1515 = vld [vmem:[%s4 + $0x28] sm:$0xff]
  %v1516 = vld [vmem:[%s4 + $0x30] sm:$0xff]
  %v1517 = vld [vmem:[%s4 + $0x38] sm:$0xff]
  %v1518 = vld [vmem:[%s5] sm:$0x1]
  %v1520 = vperm.slane %v1518, 0
  %v1523 = vsel %vm170, %v1509, 0
  %1525 = vmatpush.msra.mxu0 0.0
  %1526 = vmatpush.msra.mxu0 0.0
  %1527 = vmatpush.msra.mxu0 0.0
  %1528 = vmatpush.msra.mxu0 0.0
  %1529 = vmatpush.msra.mxu0 0.0
  %1530 = vmatpush.msra.mxu0 0.0
  %1531 = vmatpush.msra.mxu0 0.0
  %1532 = vmatpush.msra.mxu0 0.0
  %1533 = vmatpush.msra.mxu0 %v1517
  %1534 = vmatpush.msra.mxu0 %v1516
  %1535 = vmatpush.msra.mxu0 %v1515
  %1536 = vmatpush.msra.mxu0 %v1514
  %1537 = vmatpush.msra.mxu0 %v1513
  %1538 = vmatpush.msra.mxu0 %v1512
  %1539 = vmatpush.msra.mxu0 %v1511
  %1540 = vmatpush.msra.mxu0 %v1510
  %1541 = vmatmul.f32.gmra.mxu0 %v1523
  %v1542 = vpop.f32.mrf.mxu0
  %v1543 = vadd.f32 %v1520, %v1542
  %1544 = vdwg.mxu0
  %v1545 = vsub.f32 0.0, %v1543
  %v1546 = vmul.f32 %v1545, 1.442695
  %v1547 = vpow.pop %v1546
  %v1548 = vadd.f32 %v1547, 1.0
  %v1549 = vrcp.pop %v1548
  %v1550 = vmul.f32 %v1548, %v1549
  %v1551 = vsub.f32 1.0, %v1550
  %v1552 = vmul.f32 %v1549, %v1551
  %v1553 = vadd.f32 %v1549, %v1552
  %vm1554 = vweird.f32 %v1548
  %vm1555 = vweird.f32 %v1549
  %vm1556 = vmor %vm1554, %vm1555
  %v1557 = vsel %vm1556, %v1549, %v1553
  %v1558 = vand.u32 2147483647, %v1548
  %vm1559 = vcmp.eq.f32.partialorder %v1558, 8.507059e+37
  %v1560 = vand.u32 %v1548, 2147483648
  %v1561 = vor.u32 1.1754944e-38, %v1560
  %v1562 = vsel %vm1559, %v1561, %v1557
  %v1563 = vmul.f32 1.0, %v1562
  %v1564 = vtanh.pop %v1543
  %v1565 = vmul.f32 %v1563, %v1425
  %1567 = vrot.lane.b32.xlu0 %v1564, 64
  %v1568 = vpop.permute.xlu0 %1567
  %v1570 = vmul.f32 %v1563, %v1568
  %1572 = vrot.lane.b32.xlu0 %v1570, 32
  %v1573 = vpop.permute.xlu0 %1572
  %v1575 = vadd.f32 %v1565, %v1573
  %v1576 = vtanh.pop %v1575
  %1578 = vrot.lane.b32.xlu0 %v1576, 64
  %v1579 = vpop.permute.xlu0 %1578
  %v1581 = vmul.f32 %v1563, %v1579
  %1583 = vrot.lane.b32.xlu0 %v1581, 32
  %v1584 = vpop.permute.xlu0 %1583
  %1586 = vst.msk [vmem:[#allocation3 + $0x12] sm:$0x3] %vm235, %v1584
  %v1587 = vld [vmem:[#allocation2 + $0x14] sm:$0x3]
  %v1588 = vld [vmem:[%s3] sm:$0xff]
  %v1589 = vld [vmem:[%s3 + $0x8] sm:$0xff]
  %v1590 = vld [vmem:[%s3 + $0x10] sm:$0xff]
  %v1591 = vld [vmem:[%s3 + $0x18] sm:$0xff]
  %v1592 = vsel %vm91, %v1504, 0
  %1594 = vmatpush.msra.mxu0 0.0
  %1595 = vmatpush.msra.mxu0 0.0
  %1596 = vmatpush.msra.mxu0 0.0
  %1597 = vmatpush.msra.mxu0 0.0
  %1598 = vmatpush.msra.mxu0 0.0
  %1599 = vmatpush.msra.mxu0 0.0
  %1600 = vmatpush.msra.mxu0 0.0
  %1601 = vmatpush.msra.mxu0 0.0
  %1602 = vmatpush.msra.mxu0 0.0
  %1603 = vmatpush.msra.mxu0 0.0
  %1604 = vmatpush.msra.mxu0 0.0
  %1605 = vmatpush.msra.mxu0 0.0
  %1606 = vmatpush.msra.mxu0 %v1591
  %1607 = vmatpush.msra.mxu0 %v1590
  %1608 = vmatpush.msra.mxu0 %v1589
  %1609 = vmatpush.msra.mxu0 %v1588
  %1610 = vmatmul.f32.gmra.mxu0 %v1592
  %v1611 = vpop.f32.mrf.mxu0
  %v1612 = vadd.f32 0.0, %v1611
  %1613 = vdwg.mxu0
  %v1614 = vadd.f32 %v1587, %v1612
  %v1615 = vsub.f32 0.0, %v1614
  %v1616 = vmul.f32 %v1615, 1.442695
  %v1617 = vpow.pop %v1616
  %v1618 = vadd.f32 %v1617, 1.0
  %v1619 = vrcp.pop %v1618
  %v1620 = vmul.f32 %v1618, %v1619
  %v1621 = vsub.f32 1.0, %v1620
  %v1622 = vmul.f32 %v1619, %v1621
  %v1623 = vadd.f32 %v1619, %v1622
  %vm1624 = vweird.f32 %v1618
  %vm1625 = vweird.f32 %v1619
  %vm1626 = vmor %vm1624, %vm1625
  %v1627 = vsel %vm1626, %v1619, %v1623
  %v1628 = vand.u32 2147483647, %v1618
  %vm1629 = vcmp.eq.f32.partialorder %v1628, 8.507059e+37
  %v1630 = vand.u32 %v1618, 2147483648
  %v1631 = vor.u32 1.1754944e-38, %v1630
  %v1632 = vsel %vm1629, %v1631, %v1627
  %v1633 = vmul.f32 1.0, %v1632
  %v1634 = vtanh.pop %v1614
  %v1635 = vmul.f32 %v1633, %v1495
  %1637 = vrot.lane.b32.xlu0 %v1634, 64
  %v1638 = vpop.permute.xlu0 %1637
  %v1640 = vmul.f32 %v1633, %v1638
  %1642 = vrot.lane.b32.xlu0 %v1640, 32
  %v1643 = vpop.permute.xlu0 %1642
  %v1645 = vadd.f32 %v1635, %v1643
  %v1646 = vtanh.pop %v1645
  %1648 = vrot.lane.b32.xlu0 %v1646, 64
  %v1649 = vpop.permute.xlu0 %1648
  %v1651 = vmul.f32 %v1633, %v1649
  %1653 = vrot.lane.b32.xlu0 %v1651, 32
  %v1654 = vpop.permute.xlu0 %1653
  %1656 = vrot.lane.b32.xlu0 %v1581, 64
  %v1657 = vpop.permute.xlu0 %1656
  %v1659 = vsel %vm91, %v1654, %v1657
  %v1660 = vld [vmem:[%s4] sm:$0xff]
  %v1661 = vld [vmem:[%s4 + $0x8] sm:$0xff]
  %v1662 = vld [vmem:[%s4 + $0x10] sm:$0xff]
  %v1663 = vld [vmem:[%s4 + $0x18] sm:$0xff]
  %v1664 = vld [vmem:[%s4 + $0x20] sm:$0xff]
  %v1665 = vld [vmem:[%s4 + $0x28] sm:$0xff]
  %v1666 = vld [vmem:[%s4 + $0x30] sm:$0xff]
  %v1667 = vld [vmem:[%s4 + $0x38] sm:$0xff]
  %v1668 = vld [vmem:[%s5] sm:$0x1]
  %v1670 = vperm.slane %v1668, 0
  %v1673 = vsel %vm170, %v1659, 0
  %1675 = vmatpush.msra.mxu0 0.0
  %1676 = vmatpush.msra.mxu0 0.0
  %1677 = vmatpush.msra.mxu0 0.0
  %1678 = vmatpush.msra.mxu0 0.0
  %1679 = vmatpush.msra.mxu0 0.0
  %1680 = vmatpush.msra.mxu0 0.0
  %1681 = vmatpush.msra.mxu0 0.0
  %1682 = vmatpush.msra.mxu0 0.0
  %1683 = vmatpush.msra.mxu0 %v1667
  %1684 = vmatpush.msra.mxu0 %v1666
  %1685 = vmatpush.msra.mxu0 %v1665
  %1686 = vmatpush.msra.mxu0 %v1664
  %1687 = vmatpush.msra.mxu0 %v1663
  %1688 = vmatpush.msra.mxu0 %v1662
  %1689 = vmatpush.msra.mxu0 %v1661
  %1690 = vmatpush.msra.mxu0 %v1660
  %1691 = vmatmul.f32.gmra.mxu0 %v1673
  %v1692 = vpop.f32.mrf.mxu0
  %v1693 = vadd.f32 %v1670, %v1692
  %1694 = vdwg.mxu0
  %v1695 = vsub.f32 0.0, %v1693
  %v1696 = vmul.f32 %v1695, 1.442695
  %v1697 = vpow.pop %v1696
  %v1698 = vadd.f32 %v1697, 1.0
  %v1699 = vrcp.pop %v1698
  %v1700 = vmul.f32 %v1698, %v1699
  %v1701 = vsub.f32 1.0, %v1700
  %v1702 = vmul.f32 %v1699, %v1701
  %v1703 = vadd.f32 %v1699, %v1702
  %vm1704 = vweird.f32 %v1698
  %vm1705 = vweird.f32 %v1699
  %vm1706 = vmor %vm1704, %vm1705
  %v1707 = vsel %vm1706, %v1699, %v1703
  %v1708 = vand.u32 2147483647, %v1698
  %vm1709 = vcmp.eq.f32.partialorder %v1708, 8.507059e+37
  %v1710 = vand.u32 %v1698, 2147483648
  %v1711 = vor.u32 1.1754944e-38, %v1710
  %v1712 = vsel %vm1709, %v1711, %v1707
  %v1713 = vmul.f32 1.0, %v1712
  %v1714 = vtanh.pop %v1693
  %v1715 = vmul.f32 %v1713, %v1575
  %1717 = vrot.lane.b32.xlu0 %v1714, 64
  %v1718 = vpop.permute.xlu0 %1717
  %v1720 = vmul.f32 %v1713, %v1718
  %1722 = vrot.lane.b32.xlu0 %v1720, 32
  %v1723 = vpop.permute.xlu0 %1722
  %v1725 = vadd.f32 %v1715, %v1723
  %v1726 = vtanh.pop %v1725
  %1728 = vrot.lane.b32.xlu0 %v1726, 64
  %v1729 = vpop.permute.xlu0 %1728
  %v1731 = vmul.f32 %v1713, %v1729
  %1733 = vrot.lane.b32.xlu0 %v1731, 32
  %v1734 = vpop.permute.xlu0 %1733
  %1736 = vst.msk [vmem:[#allocation3 + $0x14] sm:$0x3] %vm235, %v1734
  %v1737 = vld [vmem:[#allocation2 + $0x16] sm:$0x3]
  %v1738 = vld [vmem:[%s3] sm:$0xff]
  %v1739 = vld [vmem:[%s3 + $0x8] sm:$0xff]
  %v1740 = vld [vmem:[%s3 + $0x10] sm:$0xff]
  %v1741 = vld [vmem:[%s3 + $0x18] sm:$0xff]
  %v1742 = vsel %vm91, %v1654, 0
  %1744 = vmatpush.msra.mxu0 0.0
  %1745 = vmatpush.msra.mxu0 0.0
  %1746 = vmatpush.msra.mxu0 0.0
  %1747 = vmatpush.msra.mxu0 0.0
  %1748 = vmatpush.msra.mxu0 0.0
  %1749 = vmatpush.msra.mxu0 0.0
  %1750 = vmatpush.msra.mxu0 0.0
  %1751 = vmatpush.msra.mxu0 0.0
  %1752 = vmatpush.msra.mxu0 0.0
  %1753 = vmatpush.msra.mxu0 0.0
  %1754 = vmatpush.msra.mxu0 0.0
  %1755 = vmatpush.msra.mxu0 0.0
  %1756 = vmatpush.msra.mxu0 %v1741
  %1757 = vmatpush.msra.mxu0 %v1740
  %1758 = vmatpush.msra.mxu0 %v1739
  %1759 = vmatpush.msra.mxu0 %v1738
  %1760 = vmatmul.f32.gmra.mxu0 %v1742
  %v1761 = vpop.f32.mrf.mxu0
  %v1762 = vadd.f32 0.0, %v1761
  %1763 = vdwg.mxu0
  %v1764 = vadd.f32 %v1737, %v1762
  %v1765 = vsub.f32 0.0, %v1764
  %v1766 = vmul.f32 %v1765, 1.442695
  %v1767 = vpow.pop %v1766
  %v1768 = vadd.f32 %v1767, 1.0
  %v1769 = vrcp.pop %v1768
  %v1770 = vmul.f32 %v1768, %v1769
  %v1771 = vsub.f32 1.0, %v1770
  %v1772 = vmul.f32 %v1769, %v1771
  %v1773 = vadd.f32 %v1769, %v1772
  %vm1774 = vweird.f32 %v1768
  %vm1775 = vweird.f32 %v1769
  %vm1776 = vmor %vm1774, %vm1775
  %v1777 = vsel %vm1776, %v1769, %v1773
  %v1778 = vand.u32 2147483647, %v1768
  %vm1779 = vcmp.eq.f32.partialorder %v1778, 8.507059e+37
  %v1780 = vand.u32 %v1768, 2147483648
  %v1781 = vor.u32 1.1754944e-38, %v1780
  %v1782 = vsel %vm1779, %v1781, %v1777
  %v1783 = vmul.f32 1.0, %v1782
  %v1784 = vtanh.pop %v1764
  %v1785 = vmul.f32 %v1783, %v1645
  %1787 = vrot.lane.b32.xlu0 %v1784, 64
  %v1788 = vpop.permute.xlu0 %1787
  %v1790 = vmul.f32 %v1783, %v1788
  %1792 = vrot.lane.b32.xlu0 %v1790, 32
  %v1793 = vpop.permute.xlu0 %1792
  %v1795 = vadd.f32 %v1785, %v1793
  %v1796 = vtanh.pop %v1795
  %1798 = vrot.lane.b32.xlu0 %v1796, 64
  %v1799 = vpop.permute.xlu0 %1798
  %v1801 = vmul.f32 %v1783, %v1799
  %1803 = vrot.lane.b32.xlu0 %v1801, 32
  %v1804 = vpop.permute.xlu0 %1803
  %1806 = vrot.lane.b32.xlu0 %v1731, 64
  %v1807 = vpop.permute.xlu0 %1806
  %v1809 = vsel %vm91, %v1804, %v1807
  %v1810 = vld [vmem:[%s4] sm:$0xff]
  %v1811 = vld [vmem:[%s4 + $0x8] sm:$0xff]
  %v1812 = vld [vmem:[%s4 + $0x10] sm:$0xff]
  %v1813 = vld [vmem:[%s4 + $0x18] sm:$0xff]
  %v1814 = vld [vmem:[%s4 + $0x20] sm:$0xff]
  %v1815 = vld [vmem:[%s4 + $0x28] sm:$0xff]
  %v1816 = vld [vmem:[%s4 + $0x30] sm:$0xff]
  %v1817 = vld [vmem:[%s4 + $0x38] sm:$0xff]
  %v1818 = vld [vmem:[%s5] sm:$0x1]
  %v1820 = vperm.slane %v1818, 0
  %v1823 = vsel %vm170, %v1809, 0
  %1825 = vmatpush.msra.mxu0 0.0
  %1826 = vmatpush.msra.mxu0 0.0
  %1827 = vmatpush.msra.mxu0 0.0
  %1828 = vmatpush.msra.mxu0 0.0
  %1829 = vmatpush.msra.mxu0 0.0
  %1830 = vmatpush.msra.mxu0 0.0
  %1831 = vmatpush.msra.mxu0 0.0
  %1832 = vmatpush.msra.mxu0 0.0
  %1833 = vmatpush.msra.mxu0 %v1817
  %1834 = vmatpush.msra.mxu0 %v1816
  %1835 = vmatpush.msra.mxu0 %v1815
  %1836 = vmatpush.msra.mxu0 %v1814
  %1837 = vmatpush.msra.mxu0 %v1813
  %1838 = vmatpush.msra.mxu0 %v1812
  %1839 = vmatpush.msra.mxu0 %v1811
  %1840 = vmatpush.msra.mxu0 %v1810
  %1841 = vmatmul.f32.gmra.mxu0 %v1823
  %v1842 = vpop.f32.mrf.mxu0
  %v1843 = vadd.f32 %v1820, %v1842
  %1844 = vdwg.mxu0
  %v1845 = vsub.f32 0.0, %v1843
  %v1846 = vmul.f32 %v1845, 1.442695
  %v1847 = vpow.pop %v1846
  %v1848 = vadd.f32 %v1847, 1.0
  %v1849 = vrcp.pop %v1848
  %v1850 = vmul.f32 %v1848, %v1849
  %v1851 = vsub.f32 1.0, %v1850
  %v1852 = vmul.f32 %v1849, %v1851
  %v1853 = vadd.f32 %v1849, %v1852
  %vm1854 = vweird.f32 %v1848
  %vm1855 = vweird.f32 %v1849
  %vm1856 = vmor %vm1854, %vm1855
  %v1857 = vsel %vm1856, %v1849, %v1853
  %v1858 = vand.u32 2147483647, %v1848
  %vm1859 = vcmp.eq.f32.partialorder %v1858, 8.507059e+37
  %v1860 = vand.u32 %v1848, 2147483648
  %v1861 = vor.u32 1.1754944e-38, %v1860
  %v1862 = vsel %vm1859, %v1861, %v1857
  %v1863 = vmul.f32 1.0, %v1862
  %v1864 = vtanh.pop %v1843
  %v1865 = vmul.f32 %v1863, %v1725
  %1867 = vrot.lane.b32.xlu0 %v1864, 64
  %v1868 = vpop.permute.xlu0 %1867
  %v1870 = vmul.f32 %v1863, %v1868
  %1872 = vrot.lane.b32.xlu0 %v1870, 32
  %v1873 = vpop.permute.xlu0 %1872
  %v1875 = vadd.f32 %v1865, %v1873
  %v1876 = vtanh.pop %v1875
  %1878 = vrot.lane.b32.xlu0 %v1876, 64
  %v1879 = vpop.permute.xlu0 %1878
  %v1881 = vmul.f32 %v1863, %v1879
  %1883 = vrot.lane.b32.xlu0 %v1881, 32
  %v1884 = vpop.permute.xlu0 %1883
  %1886 = vst.msk [vmem:[#allocation3 + $0x16] sm:$0x3] %vm235, %v1884
  %v1887 = vld [vmem:[#allocation2 + $0x18] sm:$0x3]
  %v1888 = vld [vmem:[%s3] sm:$0xff]
  %v1889 = vld [vmem:[%s3 + $0x8] sm:$0xff]
  %v1890 = vld [vmem:[%s3 + $0x10] sm:$0xff]
  %v1891 = vld [vmem:[%s3 + $0x18] sm:$0xff]
  %v1892 = vsel %vm91, %v1804, 0
  %1894 = vmatpush.msra.mxu0 0.0
  %1895 = vmatpush.msra.mxu0 0.0
  %1896 = vmatpush.msra.mxu0 0.0
  %1897 = vmatpush.msra.mxu0 0.0
  %1898 = vmatpush.msra.mxu0 0.0
  %1899 = vmatpush.msra.mxu0 0.0
  %1900 = vmatpush.msra.mxu0 0.0
  %1901 = vmatpush.msra.mxu0 0.0
  %1902 = vmatpush.msra.mxu0 0.0
  %1903 = vmatpush.msra.mxu0 0.0
  %1904 = vmatpush.msra.mxu0 0.0
  %1905 = vmatpush.msra.mxu0 0.0
  %1906 = vmatpush.msra.mxu0 %v1891
  %1907 = vmatpush.msra.mxu0 %v1890
  %1908 = vmatpush.msra.mxu0 %v1889
  %1909 = vmatpush.msra.mxu0 %v1888
  %1910 = vmatmul.f32.gmra.mxu0 %v1892
  %v1911 = vpop.f32.mrf.mxu0
  %v1912 = vadd.f32 0.0, %v1911
  %1913 = vdwg.mxu0
  %v1914 = vadd.f32 %v1887, %v1912
  %v1915 = vsub.f32 0.0, %v1914
  %v1916 = vmul.f32 %v1915, 1.442695
  %v1917 = vpow.pop %v1916
  %v1918 = vadd.f32 %v1917, 1.0
  %v1919 = vrcp.pop %v1918
  %v1920 = vmul.f32 %v1918, %v1919
  %v1921 = vsub.f32 1.0, %v1920
  %v1922 = vmul.f32 %v1919, %v1921
  %v1923 = vadd.f32 %v1919, %v1922
  %vm1924 = vweird.f32 %v1918
  %vm1925 = vweird.f32 %v1919
  %vm1926 = vmor %vm1924, %vm1925
  %v1927 = vsel %vm1926, %v1919, %v1923
  %v1928 = vand.u32 2147483647, %v1918
  %vm1929 = vcmp.eq.f32.partialorder %v1928, 8.507059e+37
  %v1930 = vand.u32 %v1918, 2147483648
  %v1931 = vor.u32 1.1754944e-38, %v1930
  %v1932 = vsel %vm1929, %v1931, %v1927
  %v1933 = vmul.f32 1.0, %v1932
  %v1934 = vtanh.pop %v1914
  %v1935 = vmul.f32 %v1933, %v1795
  %1937 = vrot.lane.b32.xlu0 %v1934, 64
  %v1938 = vpop.permute.xlu0 %1937
  %v1940 = vmul.f32 %v1933, %v1938
  %1942 = vrot.lane.b32.xlu0 %v1940, 32
  %v1943 = vpop.permute.xlu0 %1942
  %v1945 = vadd.f32 %v1935, %v1943
  %v1946 = vtanh.pop %v1945
  %1948 = vrot.lane.b32.xlu0 %v1946, 64
  %v1949 = vpop.permute.xlu0 %1948
  %v1951 = vmul.f32 %v1933, %v1949
  %1953 = vrot.lane.b32.xlu0 %v1951, 32
  %v1954 = vpop.permute.xlu0 %1953
  %1956 = vrot.lane.b32.xlu0 %v1881, 64
  %v1957 = vpop.permute.xlu0 %1956
  %v1959 = vsel %vm91, %v1954, %v1957
  %v1960 = vld [vmem:[%s4] sm:$0xff]
  %v1961 = vld [vmem:[%s4 + $0x8] sm:$0xff]
  %v1962 = vld [vmem:[%s4 + $0x10] sm:$0xff]
  %v1963 = vld [vmem:[%s4 + $0x18] sm:$0xff]
  %v1964 = vld [vmem:[%s4 + $0x20] sm:$0xff]
  %v1965 = vld [vmem:[%s4 + $0x28] sm:$0xff]
  %v1966 = vld [vmem:[%s4 + $0x30] sm:$0xff]
  %v1967 = vld [vmem:[%s4 + $0x38] sm:$0xff]
  %v1968 = vld [vmem:[%s5] sm:$0x1]
  %v1970 = vperm.slane %v1968, 0
  %v1973 = vsel %vm170, %v1959, 0
  %1975 = vmatpush.msra.mxu0 0.0
  %1976 = vmatpush.msra.mxu0 0.0
  %1977 = vmatpush.msra.mxu0 0.0
  %1978 = vmatpush.msra.mxu0 0.0
  %1979 = vmatpush.msra.mxu0 0.0
  %1980 = vmatpush.msra.mxu0 0.0
  %1981 = vmatpush.msra.mxu0 0.0
  %1982 = vmatpush.msra.mxu0 0.0
  %1983 = vmatpush.msra.mxu0 %v1967
  %1984 = vmatpush.msra.mxu0 %v1966
  %1985 = vmatpush.msra.mxu0 %v1965
  %1986 = vmatpush.msra.mxu0 %v1964
  %1987 = vmatpush.msra.mxu0 %v1963
  %1988 = vmatpush.msra.mxu0 %v1962
  %1989 = vmatpush.msra.mxu0 %v1961
  %1990 = vmatpush.msra.mxu0 %v1960
  %1991 = vmatmul.f32.gmra.mxu0 %v1973
  %v1992 = vpop.f32.mrf.mxu0
  %v1993 = vadd.f32 %v1970, %v1992
  %1994 = vdwg.mxu0
  %v1995 = vsub.f32 0.0, %v1993
  %v1996 = vmul.f32 %v1995, 1.442695
  %v1997 = vpow.pop %v1996
  %v1998 = vadd.f32 %v1997, 1.0
  %v1999 = vrcp.pop %v1998
  %v2000 = vmul.f32 %v1998, %v1999
  %v2001 = vsub.f32 1.0, %v2000
  %v2002 = vmul.f32 %v1999, %v2001
  %v2003 = vadd.f32 %v1999, %v2002
  %vm2004 = vweird.f32 %v1998
  %vm2005 = vweird.f32 %v1999
  %vm2006 = vmor %vm2004, %vm2005
  %v2007 = vsel %vm2006, %v1999, %v2003
  %v2008 = vand.u32 2147483647, %v1998
  %vm2009 = vcmp.eq.f32.partialorder %v2008, 8.507059e+37
  %v2010 = vand.u32 %v1998, 2147483648
  %v2011 = vor.u32 1.1754944e-38, %v2010
  %v2012 = vsel %vm2009, %v2011, %v2007
  %v2013 = vmul.f32 1.0, %v2012
  %v2014 = vtanh.pop %v1993
  %v2015 = vmul.f32 %v2013, %v1875
  %2017 = vrot.lane.b32.xlu0 %v2014, 64
  %v2018 = vpop.permute.xlu0 %2017
  %v2020 = vmul.f32 %v2013, %v2018
  %2022 = vrot.lane.b32.xlu0 %v2020, 32
  %v2023 = vpop.permute.xlu0 %2022
  %v2025 = vadd.f32 %v2015, %v2023
  %v2026 = vtanh.pop %v2025
  %2028 = vrot.lane.b32.xlu0 %v2026, 64
  %v2029 = vpop.permute.xlu0 %2028
  %v2031 = vmul.f32 %v2013, %v2029
  %2033 = vrot.lane.b32.xlu0 %v2031, 32
  %v2034 = vpop.permute.xlu0 %2033
  %2036 = vst.msk [vmem:[#allocation3 + $0x18] sm:$0x3] %vm235, %v2034
  %v2037 = vld [vmem:[#allocation3] sm:$0xff]
  %v2038 = vld [vmem:[#allocation3 + $0x8] sm:$0xff]
  %v2039 = vld [vmem:[#allocation3 + $0x10] sm:$0xff]
  %v2040 = vld [vmem:[#allocation3 + $0x18] sm:$0x3]
  %v2041 = vld [vmem:[%s6] sm:$0xff]
  %v2042 = vld [vmem:[%s6 + $0x8] sm:$0xff]
  %v2043 = vld [vmem:[%s6 + $0x10] sm:$0xff]
  %v2044 = vld [vmem:[%s6 + $0x18] sm:$0xff]
  %v2045 = vld [vmem:[%s7] sm:$0x1]
  %v2047 = vperm.slane %v2045, 0
  %v2050 = vsel %vm91, %v2037, 0
  %v2053 = vsel %vm91, %v2038, 0
  %v2056 = vsel %vm91, %v2039, 0
  %v2059 = vsel %vm91, %v2040, 0
  %2061 = vmatpush.msra.mxu0 0.0
  %2062 = vmatpush.msra.mxu0 0.0
  %2063 = vmatpush.msra.mxu0 0.0
  %2064 = vmatpush.msra.mxu0 0.0
  %2065 = vmatpush.msra.mxu0 0.0
  %2066 = vmatpush.msra.mxu0 0.0
  %2067 = vmatpush.msra.mxu0 0.0
  %2068 = vmatpush.msra.mxu0 0.0
  %2069 = vmatpush.msra.mxu0 0.0
  %2070 = vmatpush.msra.mxu0 0.0
  %2071 = vmatpush.msra.mxu0 0.0
  %2072 = vmatpush.msra.mxu0 0.0
  %2073 = vmatpush.msra.mxu0 %v2044
  %2074 = vmatpush.msra.mxu0 %v2043
  %2075 = vmatpush.msra.mxu0 %v2042
  %2076 = vmatpush.msra.mxu0 %v2041
  %2077 = vmatmul.f32.gmra.mxu0 %v2050
  %v2078 = vpop.f32.mrf.mxu0
  %v2079 = vadd.f32 %v2047, %v2078
  %2080 = vmatmul.f32.gmra.mxu0 %v2053
  %v2081 = vpop.f32.mrf.mxu0
  %v2082 = vadd.f32 %v2047, %v2081
  %2083 = vmatmul.f32.gmra.mxu0 %v2056
  %v2084 = vpop.f32.mrf.mxu0
  %v2085 = vadd.f32 %v2047, %v2084
  %2086 = vmatmul.f32.gmra.mxu0 %v2059
  %v2087 = vpop.f32.mrf.mxu0
  %v2088 = vadd.f32 %v2047, %v2087
  %2089 = vdwg.mxu0
  %2090 = vst [vmem:[%s8] sm:$0xff] %v2079
  %2091 = vst [vmem:[%s8 + $0x8] sm:$0xff] %v2082
  %2092 = vst [vmem:[%s8 + $0x10] sm:$0xff] %v2085
  %2093 = vst [vmem:[%s8 + $0x18] sm:$0x3] %v2088
  // Predicated region
  $region34: #{dccrn_forward.13} parent=0 // pred_check
    _
  $region35: #{dccrn_forward.13} parent=0 // pred_check_branch
    %2095 = sbr.rel (0) target = $region37
  $region36: #{dccrn_forward.13} parent=0 // pred_region
    _
  $region37: #{dccrn_forward.13} parent=0 // pred_fallthru
    _
  // Predicated region
  $region38: #{dccrn_forward.13} parent=0 // pred_check
    _
  $region39: #{dccrn_forward.13} parent=0 // pred_check_branch
    %2097 = sbr.rel (0) target = $region41
  $region40: #{dccrn_forward.13} parent=0 // pred_region
    _
  $region41: #{dccrn_forward.13} parent=0 // pred_fallthru
    _

// kernel: dccrn_forward.14
$region0: #{dccrn_forward.14}
  #allocation0 [shape = 'u32[]', space=smem, size = 0x4, offset = 0x4, fixed_abs, tag = 'smem constant byte address 0x4 - core index']
  #allocation1 [shape = 'u32[72,128]{1,0:T(1,128)}', space=vmem, size = 0x9000, scoped, tag = 'internal scratch']
  #allocation2 [shape = 'f32[1,1]{1,0:T(1,128)S(1)}', space=vmem, size = 0x200, scoped, tag = 'scoped memory for dccrn_forward.14']
  %s0 = inlined_call_operand.vmem [shape: f32[16,640], index: 0, kind: input, shape index: {}]
  %s1 = inlined_call_operand.vmem [shape: f32[640,224], index: 1, kind: input, shape index: {}]
  %s2 = inlined_call_operand.vmem [shape: f32[16,1], index: 2, kind: input, shape index: {}]
  %s3 = inlined_call_operand.vmem [shape: f32[16,1], index: 3, kind: input, shape index: {}]
  %s4 = inlined_call_operand.vmem [shape: f32[16,1], index: 4, kind: input, shape index: {}]
  %s5 = inlined_call_operand.<no memory space> [shape: f32[1,1], index: 5, kind: input, shape index: {}]
  %s6 = inlined_call_operand.vmem [shape: f32[16,224], index: 6, kind: output, shape index: {}]
  %s7 = sld [smem:[#allocation0]]
  $region57: #{dccrn_forward.14} parent=0
    _
  %s9 = ssub.s32 1, %s7
  %s10 = scalar_select 0, %s9, %s7
  %v11 = vstv %s5
  %12 = vst [vmem:[#allocation2] sm:$0x1] %v11
  loop: start=0, step=1, limit=4
  $region2: #{dccrn_forward.14} parent=0 // loop_pre_header
    _
  $region3: #{dccrn_forward.14} parent=0 // loop_header
    %s14 = sphi 0, %s18
    %p15 = scmp.ge.s32.totalorder %s14, 4
    %s24 = sphi 0, %s26
    %s27 = sphi 0, %s24
    %s28 = sphi 0, %s27
    %s44 = sphi 0, %s28
    %s48 = sphi 0, %s48
    %s50 = sphi 0, %s48
    %s51 = sphi 0, %s50
    %s65 = sphi 0, %s51
    %s71 = sphi 0, %s73
    %s74 = sphi 0, %s71
    %s75 = sphi 0, %s74
    %s91 = sphi 0, %s75
    %s97 = sphi 0, %s99
    %s100 = sphi 0, %s97
    %s101 = sphi 0, %s100
    %s117 = sphi 0, %s101
    %s123 = sphi 0, %s125
    %s126 = sphi 0, %s123
    %s127 = sphi 0, %s126
    %s143 = sphi 0, %s127
    %s147 = sphi 0, %s147
    %s149 = sphi 0, %s147
    %s150 = sphi 0, %s149
    %s164 = sphi 0, %s150
    %s170 = sphi 0, %s172
    %s173 = sphi 0, %s170
    %s174 = sphi 0, %s173
    %s190 = sphi 0, %s174
  $region4: #{dccrn_forward.14} parent=0 // loop_header_branch
    %17 = sbr.rel (%p15) target = $region8
  $region5: #{dccrn_forward.14} parent=0 // loop_body
    %s19 = ssub.s32 %s14, 1
    %s20 = ssub.s32 %s14, 2
    %s21 = sadd.s32 %s14, 1
    %s22 = ssub.s32 %s14, %s21
    %p23 = scmp.eq.s32.totalorder %s22, 0
    %s25 = sadd.s32 %s24, 1
    %s26 = scalar_select %p23, %s24, %s25
    %p29 = pneg %p23
    %p30 = scmp.eq.s32.totalorder %s14, 1
    %p31 = por %p29, %p30
    %p32 = scmp.ne.s32.totalorder %s24, %s27
    %p33 = scmp.eq.s32.totalorder %s14, 0
    %p34 = por %p32, %p33
    %p35 = scmp.ne.s32.totalorder %s24, %s27
    %p36 = scmp.eq.s32.totalorder %s19, 1
    %p37 = por %p35, %p36
    %p38 = scmp.ne.s32.totalorder %s27, %s28
    %p39 = scmp.eq.s32.totalorder %s19, 0
    %p40 = por %p38, %p39
    %p41 = scmp.ne.s32.totalorder %s27, %s28
    %p42 = scmp.eq.s32.totalorder %s20, 1
    %p43 = por %p41, %p42
    %p45 = scmp.ne.s32.totalorder %s28, %s44
    %p46 = scmp.eq.s32.totalorder %s20, 0
    %p47 = por %p45, %p46
    %s49 = sadd.s32 %s48, 1
    %p52 = scmp.eq.s32.totalorder %s14, 1
    %p53 = scmp.ne.s32.totalorder %s48, %s50
    %p54 = scmp.eq.s32.totalorder %s14, 0
    %p55 = por %p53, %p54
    %p56 = scmp.ne.s32.totalorder %s48, %s50
    %p57 = scmp.eq.s32.totalorder %s19, 1
    %p58 = por %p56, %p57
    %p59 = scmp.ne.s32.totalorder %s50, %s51
    %p60 = scmp.eq.s32.totalorder %s19, 0
    %p61 = por %p59, %p60
    %p62 = scmp.ne.s32.totalorder %s50, %s51
    %p63 = scmp.eq.s32.totalorder %s20, 1
    %p64 = por %p62, %p63
    %p66 = scmp.ne.s32.totalorder %s51, %s65
    %p67 = scmp.eq.s32.totalorder %s20, 0
    %p68 = por %p66, %p67
    %s69 = ssub.s32 %s14, %s21
    %p70 = scmp.eq.s32.totalorder %s69, 0
    %s72 = sadd.s32 %s71, 1
    %s73 = scalar_select %p70, %s71, %s72
    %p76 = pneg %p70
    %p77 = scmp.eq.s32.totalorder %s14, 1
    %p78 = por %p76, %p77
    %p79 = scmp.ne.s32.totalorder %s71, %s74
    %p80 = scmp.eq.s32.totalorder %s14, 0
    %p81 = por %p79, %p80
    %p82 = scmp.ne.s32.totalorder %s71, %s74
    %p83 = scmp.eq.s32.totalorder %s19, 1
    %p84 = por %p82, %p83
    %p85 = scmp.ne.s32.totalorder %s74, %s75
    %p86 = scmp.eq.s32.totalorder %s19, 0
    %p87 = por %p85, %p86
    %p88 = scmp.ne.s32.totalorder %s74, %s75
    %p89 = scmp.eq.s32.totalorder %s20, 1
    %p90 = por %p88, %p89
    %p92 = scmp.ne.s32.totalorder %s75, %s91
    %p93 = scmp.eq.s32.totalorder %s20, 0
    %p94 = por %p92, %p93
    %s95 = ssub.s32 %s14, %s21
    %p96 = scmp.eq.s32.totalorder %s95, 0
    %s98 = sadd.s32 %s97, 1
    %s99 = scalar_select %p96, %s97, %s98
    %p102 = pneg %p96
    %p103 = scmp.eq.s32.totalorder %s14, 1
    %p104 = por %p102, %p103
    %p105 = scmp.ne.s32.totalorder %s97, %s100
    %p106 = scmp.eq.s32.totalorder %s14, 0
    %p107 = por %p105, %p106
    %p108 = scmp.ne.s32.totalorder %s97, %s100
    %p109 = scmp.eq.s32.totalorder %s19, 1
    %p110 = por %p108, %p109
    %p111 = scmp.ne.s32.totalorder %s100, %s101
    %p112 = scmp.eq.s32.totalorder %s19, 0
    %p113 = por %p111, %p112
    %p114 = scmp.ne.s32.totalorder %s100, %s101
    %p115 = scmp.eq.s32.totalorder %s20, 1
    %p116 = por %p114, %p115
    %p118 = scmp.ne.s32.totalorder %s101, %s117
    %p119 = scmp.eq.s32.totalorder %s20, 0
    %p120 = por %p118, %p119
    %s121 = ssub.s32 %s14, %s21
    %p122 = scmp.eq.s32.totalorder %s121, 0
    %s124 = sadd.s32 %s123, 1
    %s125 = scalar_select %p122, %s123, %s124
    %p128 = pneg %p122
    %p129 = scmp.eq.s32.totalorder %s14, 1
    %p130 = por %p128, %p129
    %p131 = scmp.ne.s32.totalorder %s123, %s126
    %p132 = scmp.eq.s32.totalorder %s14, 0
    %p133 = por %p131, %p132
    %p134 = scmp.ne.s32.totalorder %s123, %s126
    %p135 = scmp.eq.s32.totalorder %s19, 1
    %p136 = por %p134, %p135
    %p137 = scmp.ne.s32.totalorder %s126, %s127
    %p138 = scmp.eq.s32.totalorder %s19, 0
    %p139 = por %p137, %p138
    %p140 = scmp.ne.s32.totalorder %s126, %s127
    %p141 = scmp.eq.s32.totalorder %s20, 1
    %p142 = por %p140, %p141
    %p144 = scmp.ne.s32.totalorder %s127, %s143
    %p145 = scmp.eq.s32.totalorder %s20, 0
    %p146 = por %p144, %p145
    %s148 = sadd.s32 %s147, 1
    %p151 = scmp.eq.s32.totalorder %s14, 1
    %p152 = scmp.ne.s32.totalorder %s147, %s149
    %p153 = scmp.eq.s32.totalorder %s14, 0
    %p154 = por %p152, %p153
    %p155 = scmp.ne.s32.totalorder %s147, %s149
    %p156 = scmp.eq.s32.totalorder %s19, 1
    %p157 = por %p155, %p156
    %p158 = scmp.ne.s32.totalorder %s149, %s150
    %p159 = scmp.eq.s32.totalorder %s19, 0
    %p160 = por %p158, %p159
    %p161 = scmp.ne.s32.totalorder %s149, %s150
    %p162 = scmp.eq.s32.totalorder %s20, 1
    %p163 = por %p161, %p162
    %p165 = scmp.ne.s32.totalorder %s150, %s164
    %p166 = scmp.eq.s32.totalorder %s20, 0
    %p167 = por %p165, %p166
    %s168 = ssub.s32 %s14, %s21
    %p169 = scmp.eq.s32.totalorder %s168, 0
    %s171 = sadd.s32 %s170, 1
    %s172 = scalar_select %p169, %s170, %s171
    %p175 = pneg %p169
    %p176 = scmp.eq.s32.totalorder %s14, 1
    %p177 = por %p175, %p176
    %p178 = scmp.ne.s32.totalorder %s170, %s173
    %p179 = scmp.eq.s32.totalorder %s14, 0
    %p180 = por %p178, %p179
    %p181 = scmp.ne.s32.totalorder %s170, %s173
    %p182 = scmp.eq.s32.totalorder %s19, 1
    %p183 = por %p181, %p182
    %p184 = scmp.ne.s32.totalorder %s173, %s174
    %p185 = scmp.eq.s32.totalorder %s19, 0
    %p186 = por %p184, %p185
    %p187 = scmp.ne.s32.totalorder %s173, %s174
    %p188 = scmp.eq.s32.totalorder %s20, 1
    %p189 = por %p187, %p188
    %p191 = scmp.ne.s32.totalorder %s174, %s190
    %p192 = scmp.eq.s32.totalorder %s20, 0
    %p193 = por %p191, %p192
    %p194 = scmp.le.s32.totalorder 1, %s14
    %p195 = scmp.lt.s32.totalorder %s14, 3
    %p196 = pnand %p194, %p195
    %p197 = pneg %p196
    // Predicated region
    $region9: #{dccrn_forward.14} parent=5 // pred_check
      _
    $region10: #{dccrn_forward.14} parent=5 // pred_check_branch
      %199 = sbr.rel (%p196) target = $region12
    $region11: #{dccrn_forward.14} parent=5 // pred_region
      %s200 = ssub.s32 %s14, 1
      // Predicated region
      $region13: #{dccrn_forward.14} parent=11 // pred_check
        %p201 = pneg %p61
      $region14: #{dccrn_forward.14} parent=11 // pred_check_branch
        %203 = sbr.rel (%p201) target = $region16
      $region15: #{dccrn_forward.14} parent=11 // pred_region
        _
      $region16: #{dccrn_forward.14} parent=11 // pred_fallthru
        _
      // Predicated region
      $region17: #{dccrn_forward.14} parent=11 // pred_check
        %p204 = pneg %p160
      $region18: #{dccrn_forward.14} parent=11 // pred_check_branch
        %206 = sbr.rel (%p204) target = $region20
      $region19: #{dccrn_forward.14} parent=11 // pred_region
        _
      $region20: #{dccrn_forward.14} parent=11 // pred_fallthru
        _
    $region12: #{dccrn_forward.14} parent=5 // pred_fallthru
      _
    %p207 = scmp.lt.s32.totalorder %s14, 2
    // Predicated region
    $region21: #{dccrn_forward.14} parent=5 // pred_check
      %p208 = pneg %p207
    $region22: #{dccrn_forward.14} parent=5 // pred_check_branch
      %210 = sbr.rel (%p208) target = $region24
    $region23: #{dccrn_forward.14} parent=5 // pred_region
      // Predicated region
      $region25: #{dccrn_forward.14} parent=23 // pred_check
        %p211 = pneg %p34
      $region26: #{dccrn_forward.14} parent=23 // pred_check_branch
        %213 = sbr.rel (%p211) target = $region28
      $region27: #{dccrn_forward.14} parent=23 // pred_region
        %p214 = scmp.lt.s32.totalorder %s14, 1
        %s215 = scalar_select %p214, %s14, 1
        %s216 = smul.addr %s215, 5
        %s217 = smul.addr %s216, 8
        %s218 = scalar_lea.vmem %s0, %s217
      $region28: #{dccrn_forward.14} parent=23 // pred_fallthru
        _
      // Predicated region
      $region29: #{dccrn_forward.14} parent=23 // pred_check
        %p219 = pneg %p81
      $region30: #{dccrn_forward.14} parent=23 // pred_check_branch
        %221 = sbr.rel (%p219) target = $region32
      $region31: #{dccrn_forward.14} parent=23 // pred_region
        %p222 = scmp.lt.s32.totalorder %s14, 1
        %s223 = scalar_select %p222, %s14, 1
        %s224 = smul.addr %s223, 8
        %s225 = scalar_lea.vmem %s2, %s224
      $region32: #{dccrn_forward.14} parent=23 // pred_fallthru
        _
      // Predicated region
      $region33: #{dccrn_forward.14} parent=23 // pred_check
        %p226 = pneg %p107
      $region34: #{dccrn_forward.14} parent=23 // pred_check_branch
        %228 = sbr.rel (%p226) target = $region36
      $region35: #{dccrn_forward.14} parent=23 // pred_region
        %p229 = scmp.lt.s32.totalorder %s14, 1
        %s230 = scalar_select %p229, %s14, 1
        %s231 = smul.addr %s230, 8
        %s232 = scalar_lea.vmem %s3, %s231
      $region36: #{dccrn_forward.14} parent=23 // pred_fallthru
        _
      // Predicated region
      $region37: #{dccrn_forward.14} parent=23 // pred_check
        %p233 = pneg %p133
      $region38: #{dccrn_forward.14} parent=23 // pred_check_branch
        %235 = sbr.rel (%p233) target = $region40
      $region39: #{dccrn_forward.14} parent=23 // pred_region
        %p236 = scmp.lt.s32.totalorder %s14, 1
        %s237 = scalar_select %p236, %s14, 1
        %s238 = smul.addr %s237, 8
        %s239 = scalar_lea.vmem %s4, %s238
      $region40: #{dccrn_forward.14} parent=23 // pred_fallthru
        _
    $region24: #{dccrn_forward.14} parent=5 // pred_fallthru
      _
    %p240 = scmp.le.s32.totalorder 1, %s14
    %p241 = scmp.lt.s32.totalorder %s14, 3
    %p242 = pnand %p240, %p241
    %p243 = pneg %p242
    // Predicated region
    $region41: #{dccrn_forward.14} parent=5 // pred_check
      _
    $region42: #{dccrn_forward.14} parent=5 // pred_check_branch
      %245 = sbr.rel (%p242) target = $region44
    $region43: #{dccrn_forward.14} parent=5 // pred_region
      %s246 = ssub.s32 %s14, 1
      %p247 = scmp.lt.s32.totalorder %s19, 1
      %s248 = scalar_select %p247, %s19, 1
      %s249 = smul.addr %s248, 5
      %s250 = smul.addr %s249, 8
      %s251 = scalar_lea.vmem %s0, %s250
      %p252 = pneg %p40
      %p253 = pneg %p37
      %p254 = pneg %p61
      %p255 = pneg %p58
      %p256 = scmp.lt.s32.totalorder %s19, 1
      %s257 = scalar_select %p256, %s19, 1
      %s258 = smul.addr %s257, 8
      %s259 = scalar_lea.vmem %s2, %s258
      %p260 = pneg %p87
      %p261 = pneg %p84
      %p262 = scmp.lt.s32.totalorder %s19, 1
      %s263 = scalar_select %p262, %s19, 1
      %s264 = smul.addr %s263, 8
      %s265 = scalar_lea.vmem %s3, %s264
      %p266 = pneg %p113
      %p267 = pneg %p110
      %p268 = scmp.lt.s32.totalorder %s19, 1
      %s269 = scalar_select %p268, %s19, 1
      %s270 = smul.addr %s269, 8
      %s271 = scalar_lea.vmem %s4, %s270
      %p272 = pneg %p139
      %p273 = pneg %p136
      %p274 = pneg %p160
      %p275 = pneg %p157
      %p276 = pneg %p186
      %p277 = pneg %p183
      %p278 = scmp.lt.s32.totalorder %s19, 1
      %s279 = scalar_select %p278, %s19, 1
      %s280 = smul.addr %s279, 2
      %s281 = smul.addr %s280, 8
      %s282 = scalar_lea.vmem %s6, %s281
      %p283 = scmp.lt.s32.totalorder %s19, 1
      %s284 = scalar_select %p283, %s19, 1
      %s285 = smul.addr %s284, 5
      %s286 = smul.addr %s285, 8
      %s287 = scalar_lea.vmem %s0, %s286
      %p288 = scmp.lt.s32.totalorder %s19, 1
      %s289 = scalar_select %p288, %s19, 1
      %s290 = smul.addr %s289, 8
      %s291 = scalar_lea.vmem %s2, %s290
      %p292 = scmp.lt.s32.totalorder %s19, 1
      %s293 = scalar_select %p292, %s19, 1
      %s294 = smul.addr %s293, 8
      %s295 = scalar_lea.vmem %s3, %s294
      %p296 = scmp.lt.s32.totalorder %s19, 1
      %s297 = scalar_select %p296, %s19, 1
      %s298 = smul.addr %s297, 8
      %s299 = scalar_lea.vmem %s4, %s298
      %p300 = scmp.lt.s32.totalorder %s19, 1
      %s301 = scalar_select %p300, %s19, 1
      %s302 = smul.addr %s301, 2
      %s303 = smul.addr %s302, 8
      %s304 = scalar_lea.vmem %s6, %s303
      %v305 = vld [vmem:[%s287] sm:$0xff]
      %v306 = vld [vmem:[%s287 + $0x8] sm:$0xff]
      %v307 = vld [vmem:[%s287 + $0x10] sm:$0xff]
      %v308 = vld [vmem:[%s287 + $0x18] sm:$0xff]
      %v309 = vld [vmem:[%s287 + $0x20] sm:$0xff]
      %v310 = vld [vmem:[%s1] sm:$0xff]
      %v311 = vld [vmem:[%s1 + $0x8] sm:$0xff]
      %v312 = vld [vmem:[%s1 + $0x10] sm:$0xff]
      %v313 = vld [vmem:[%s1 + $0x18] sm:$0xff]
      %v314 = vld [vmem:[%s1 + $0x20] sm:$0xff]
      %v315 = vld [vmem:[%s1 + $0x28] sm:$0xff]
      %v316 = vld [vmem:[%s1 + $0x30] sm:$0xff]
      %v317 = vld [vmem:[%s1 + $0x38] sm:$0xff]
      %v318 = vld [vmem:[%s1 + $0x40] sm:$0xff]
      %v319 = vld [vmem:[%s1 + $0x48] sm:$0xff]
      %v320 = vld [vmem:[%s1 + $0x50] sm:$0xff]
      %v321 = vld [vmem:[%s1 + $0x58] sm:$0xff]
      %v322 = vld [vmem:[%s1 + $0x60] sm:$0xff]
      %v323 = vld [vmem:[%s1 + $0x68] sm:$0xff]
      %v324 = vld [vmem:[%s1 + $0x70] sm:$0xff]
      %v325 = vld [vmem:[%s1 + $0x78] sm:$0xff]
      %v326 = vld [vmem:[%s1 + $0x80] sm:$0xff]
      %v327 = vld [vmem:[%s1 + $0x88] sm:$0xff]
      %v328 = vld [vmem:[%s1 + $0x90] sm:$0xff]
      %v329 = vld [vmem:[%s1 + $0x98] sm:$0xff]
      %v330 = vld [vmem:[%s1 + $0xa0] sm:$0xff]
      %v331 = vld [vmem:[%s1 + $0xa8] sm:$0xff]
      %v332 = vld [vmem:[%s1 + $0xb0] sm:$0xff]
      %v333 = vld [vmem:[%s1 + $0xb8] sm:$0xff]
      %v334 = vld [vmem:[%s1 + $0xc0] sm:$0xff]
      %v335 = vld [vmem:[%s1 + $0xc8] sm:$0xff]
      %v336 = vld [vmem:[%s1 + $0xd0] sm:$0xff]
      %v337 = vld [vmem:[%s1 + $0xd8] sm:$0xff]
      %v338 = vld [vmem:[%s1 + $0xe0] sm:$0xff]
      %v339 = vld [vmem:[%s1 + $0xe8] sm:$0xff]
      %v340 = vld [vmem:[%s1 + $0xf0] sm:$0xff]
      %v341 = vld [vmem:[%s1 + $0xf8] sm:$0xff]
      %v342 = vld [vmem:[%s1 + $0x100] sm:$0xff]
      %v343 = vld [vmem:[%s1 + $0x108] sm:$0xff]
      %v344 = vld [vmem:[%s1 + $0x110] sm:$0xff]
      %v345 = vld [vmem:[%s1 + $0x118] sm:$0xff]
      %v346 = vld [vmem:[%s1 + $0x120] sm:$0xff]
      %v347 = vld [vmem:[%s1 + $0x128] sm:$0xff]
      %v348 = vld [vmem:[%s1 + $0x130] sm:$0xff]
      %v349 = vld [vmem:[%s1 + $0x138] sm:$0xff]
      %v350 = vld [vmem:[%s1 + $0x140] sm:$0xff]
      %v351 = vld [vmem:[%s1 + $0x148] sm:$0xff]
      %v352 = vld [vmem:[%s1 + $0x150] sm:$0xff]
      %v353 = vld [vmem:[%s1 + $0x158] sm:$0xff]
      %v354 = vld [vmem:[%s1 + $0x160] sm:$0xff]
      %v355 = vld [vmem:[%s1 + $0x168] sm:$0xff]
      %v356 = vld [vmem:[%s1 + $0x170] sm:$0xff]
      %v357 = vld [vmem:[%s1 + $0x178] sm:$0xff]
      %v358 = vld [vmem:[%s1 + $0x180] sm:$0xff]
      %v359 = vld [vmem:[%s1 + $0x188] sm:$0xff]
      %v360 = vld [vmem:[%s1 + $0x190] sm:$0xff]
      %v361 = vld [vmem:[%s1 + $0x198] sm:$0xff]
      %v362 = vld [vmem:[%s1 + $0x1a0] sm:$0xff]
      %v363 = vld [vmem:[%s1 + $0x1a8] sm:$0xff]
      %v364 = vld [vmem:[%s1 + $0x1b0] sm:$0xff]
      %v365 = vld [vmem:[%s1 + $0x1b8] sm:$0xff]
      %v366 = vld [vmem:[%s1 + $0x1c0] sm:$0xff]
      %v367 = vld [vmem:[%s1 + $0x1c8] sm:$0xff]
      %v368 = vld [vmem:[%s1 + $0x1d0] sm:$0xff]
      %v369 = vld [vmem:[%s1 + $0x1d8] sm:$0xff]
      %v370 = vld [vmem:[%s1 + $0x1e0] sm:$0xff]
      %v371 = vld [vmem:[%s1 + $0x1e8] sm:$0xff]
      %v372 = vld [vmem:[%s1 + $0x1f0] sm:$0xff]
      %v373 = vld [vmem:[%s1 + $0x1f8] sm:$0xff]
      %v374 = vld [vmem:[%s1 + $0x200] sm:$0xff]
      %v375 = vld [vmem:[%s1 + $0x208] sm:$0xff]
      %v376 = vld [vmem:[%s1 + $0x210] sm:$0xff]
      %v377 = vld [vmem:[%s1 + $0x218] sm:$0xff]
      %v378 = vld [vmem:[%s1 + $0x220] sm:$0xff]
      %v379 = vld [vmem:[%s1 + $0x228] sm:$0xff]
      %v380 = vld [vmem:[%s1 + $0x230] sm:$0xff]
      %v381 = vld [vmem:[%s1 + $0x238] sm:$0xff]
      %v382 = vld [vmem:[%s1 + $0x240] sm:$0xff]
      %v383 = vld [vmem:[%s1 + $0x248] sm:$0xff]
      %v384 = vld [vmem:[%s1 + $0x250] sm:$0xff]
      %v385 = vld [vmem:[%s1 + $0x258] sm:$0xff]
      %v386 = vld [vmem:[%s1 + $0x260] sm:$0xff]
      %v387 = vld [vmem:[%s1 + $0x268] sm:$0xff]
      %v388 = vld [vmem:[%s1 + $0x270] sm:$0xff]
      %v389 = vld [vmem:[%s1 + $0x278] sm:$0xff]
      %v390 = vld [vmem:[%s1 + $0x280] sm:$0xff]
      %v391 = vld [vmem:[%s1 + $0x288] sm:$0xff]
      %v392 = vld [vmem:[%s1 + $0x290] sm:$0xff]
      %v393 = vld [vmem:[%s1 + $0x298] sm:$0xff]
      %v394 = vld [vmem:[%s1 + $0x2a0] sm:$0xff]
      %v395 = vld [vmem:[%s1 + $0x2a8] sm:$0xff]
      %v396 = vld [vmem:[%s1 + $0x2b0] sm:$0xff]
      %v397 = vld [vmem:[%s1 + $0x2b8] sm:$0xff]
      %v398 = vld [vmem:[%s1 + $0x2c0] sm:$0xff]
      %v399 = vld [vmem:[%s1 + $0x2c8] sm:$0xff]
      %v400 = vld [vmem:[%s1 + $0x2d0] sm:$0xff]
      %v401 = vld [vmem:[%s1 + $0x2d8] sm:$0xff]
      %v402 = vld [vmem:[%s1 + $0x2e0] sm:$0xff]
      %v403 = vld [vmem:[%s1 + $0x2e8] sm:$0xff]
      %v404 = vld [vmem:[%s1 + $0x2f0] sm:$0xff]
      %v405 = vld [vmem:[%s1 + $0x2f8] sm:$0xff]
      %v406 = vld [vmem:[%s1 + $0x300] sm:$0xff]
      %v407 = vld [vmem:[%s1 + $0x308] sm:$0xff]
      %v408 = vld [vmem:[%s1 + $0x310] sm:$0xff]
      %v409 = vld [vmem:[%s1 + $0x318] sm:$0xff]
      %v410 = vld [vmem:[%s1 + $0x320] sm:$0xff]
      %v411 = vld [vmem:[%s1 + $0x328] sm:$0xff]
      %v412 = vld [vmem:[%s1 + $0x330] sm:$0xff]
      %v413 = vld [vmem:[%s1 + $0x338] sm:$0xff]
      %v414 = vld [vmem:[%s1 + $0x340] sm:$0xff]
      %v415 = vld [vmem:[%s1 + $0x348] sm:$0xff]
      %v416 = vld [vmem:[%s1 + $0x350] sm:$0xff]
      %v417 = vld [vmem:[%s1 + $0x358] sm:$0xff]
      %v418 = vld [vmem:[%s1 + $0x360] sm:$0xff]
      %v419 = vld [vmem:[%s1 + $0x368] sm:$0xff]
      %v420 = vld [vmem:[%s1 + $0x370] sm:$0xff]
      %v421 = vld [vmem:[%s1 + $0x378] sm:$0xff]
      %v422 = vld [vmem:[%s1 + $0x380] sm:$0xff]
      %v423 = vld [vmem:[%s1 + $0x388] sm:$0xff]
      %v424 = vld [vmem:[%s1 + $0x390] sm:$0xff]
      %v425 = vld [vmem:[%s1 + $0x398] sm:$0xff]
      %v426 = vld [vmem:[%s1 + $0x3a0] sm:$0xff]
      %v427 = vld [vmem:[%s1 + $0x3a8] sm:$0xff]
      %v428 = vld [vmem:[%s1 + $0x3b0] sm:$0xff]
      %v429 = vld [vmem:[%s1 + $0x3b8] sm:$0xff]
      %v430 = vld [vmem:[%s1 + $0x3c0] sm:$0xff]
      %v431 = vld [vmem:[%s1 + $0x3c8] sm:$0xff]
      %v432 = vld [vmem:[%s1 + $0x3d0] sm:$0xff]
      %v433 = vld [vmem:[%s1 + $0x3d8] sm:$0xff]
      %v434 = vld [vmem:[%s1 + $0x3e0] sm:$0xff]
      %v435 = vld [vmem:[%s1 + $0x3e8] sm:$0xff]
      %v436 = vld [vmem:[%s1 + $0x3f0] sm:$0xff]
      %v437 = vld [vmem:[%s1 + $0x3f8] sm:$0xff]
      %v438 = vld [vmem:[%s1 + $0x400] sm:$0xff]
      %v439 = vld [vmem:[%s1 + $0x408] sm:$0xff]
      %v440 = vld [vmem:[%s1 + $0x410] sm:$0xff]
      %v441 = vld [vmem:[%s1 + $0x418] sm:$0xff]
      %v442 = vld [vmem:[%s1 + $0x420] sm:$0xff]
      %v443 = vld [vmem:[%s1 + $0x428] sm:$0xff]
      %v444 = vld [vmem:[%s1 + $0x430] sm:$0xff]
      %v445 = vld [vmem:[%s1 + $0x438] sm:$0xff]
      %v446 = vld [vmem:[%s1 + $0x440] sm:$0xff]
      %v447 = vld [vmem:[%s1 + $0x448] sm:$0xff]
      %v448 = vld [vmem:[%s1 + $0x450] sm:$0xff]
      %v449 = vld [vmem:[%s1 + $0x458] sm:$0xff]
      %v450 = vld [vmem:[%s1 + $0x460] sm:$0xff]
      %v451 = vld [vmem:[%s1 + $0x468] sm:$0xff]
      %v452 = vld [vmem:[%s1 + $0x470] sm:$0xff]
      %v453 = vld [vmem:[%s1 + $0x478] sm:$0xff]
      %v454 = vld [vmem:[%s1 + $0x480] sm:$0xff]
      %v455 = vld [vmem:[%s1 + $0x488] sm:$0xff]
      %v456 = vld [vmem:[%s1 + $0x490] sm:$0xff]
      %v457 = vld [vmem:[%s1 + $0x498] sm:$0xff]
      %v458 = vld [vmem:[%s1 + $0x4a0] sm:$0xff]
      %v459 = vld [vmem:[%s1 + $0x4a8] sm:$0xff]
      %v460 = vld [vmem:[%s1 + $0x4b0] sm:$0xff]
      %v461 = vld [vmem:[%s1 + $0x4b8] sm:$0xff]
      %v462 = vld [vmem:[%s1 + $0x4c0] sm:$0xff]
      %v463 = vld [vmem:[%s1 + $0x4c8] sm:$0xff]
      %v464 = vld [vmem:[%s1 + $0x4d0] sm:$0xff]
      %v465 = vld [vmem:[%s1 + $0x4d8] sm:$0xff]
      %v466 = vld [vmem:[%s1 + $0x4e0] sm:$0xff]
      %v467 = vld [vmem:[%s1 + $0x4e8] sm:$0xff]
      %v468 = vld [vmem:[%s1 + $0x4f0] sm:$0xff]
      %v469 = vld [vmem:[%s1 + $0x4f8] sm:$0xff]
      %v470 = vld [vmem:[%s291] sm:$0xff]
      %472 = vset.pattern.permute.xlu0 0
      %473 = vperm.xlu0 %472, %v470
      %v474 = vpop.permute.xlu0 %473
      %476 = vmatpush.msra.mxu0 %v340
      %477 = vmatpush.msra.mxu0 %v338
      %478 = vmatpush.msra.mxu0 %v336
      %479 = vmatpush.msra.mxu0 %v334
      %480 = vmatpush.msra.mxu0 %v332
      %481 = vmatpush.msra.mxu0 %v330
      %482 = vmatpush.msra.mxu0 %v328
      %483 = vmatpush.msra.mxu0 %v326
      %484 = vmatpush.msra.mxu0 %v324
      %485 = vmatpush.msra.mxu0 %v322
      %486 = vmatpush.msra.mxu0 %v320
      %487 = vmatpush.msra.mxu0 %v318
      %488 = vmatpush.msra.mxu0 %v316
      %489 = vmatpush.msra.mxu0 %v314
      %490 = vmatpush.msra.mxu0 %v312
      %491 = vmatpush.msra.mxu0 %v310
      %492 = vmatmul.f32.gmra.mxu0 %v305
      %v493 = vpop.f32.mrf.mxu0
      %v494 = vadd.f32 %v474, %v493
      %495 = vdwg.mxu0
      %496 = vmatpush.msra.mxu0 %v372
      %497 = vmatpush.msra.mxu0 %v370
      %498 = vmatpush.msra.mxu0 %v368
      %499 = vmatpush.msra.mxu0 %v366
      %500 = vmatpush.msra.mxu0 %v364
      %501 = vmatpush.msra.mxu0 %v362
      %502 = vmatpush.msra.mxu0 %v360
      %503 = vmatpush.msra.mxu0 %v358
      %504 = vmatpush.msra.mxu0 %v356
      %505 = vmatpush.msra.mxu0 %v354
      %506 = vmatpush.msra.mxu0 %v352
      %507 = vmatpush.msra.mxu0 %v350
      %508 = vmatpush.msra.mxu0 %v348
      %509 = vmatpush.msra.mxu0 %v346
      %510 = vmatpush.msra.mxu0 %v344
      %511 = vmatpush.msra.mxu0 %v342
      %512 = vmatmul.f32.gmra.mxu0 %v306
      %v513 = vpop.f32.mrf.mxu0
      %v514 = vadd.f32 %v494, %v513
      %515 = vdwg.mxu0
      %516 = vmatpush.msra.mxu0 %v404
      %517 = vmatpush.msra.mxu0 %v402
      %518 = vmatpush.msra.mxu0 %v400
      %519 = vmatpush.msra.mxu0 %v398
      %520 = vmatpush.msra.mxu0 %v396
      %521 = vmatpush.msra.mxu0 %v394
      %522 = vmatpush.msra.mxu0 %v392
      %523 = vmatpush.msra.mxu0 %v390
      %524 = vmatpush.msra.mxu0 %v388
      %525 = vmatpush.msra.mxu0 %v386
      %526 = vmatpush.msra.mxu0 %v384
      %527 = vmatpush.msra.mxu0 %v382
      %528 = vmatpush.msra.mxu0 %v380
      %529 = vmatpush.msra.mxu0 %v378
      %530 = vmatpush.msra.mxu0 %v376
      %531 = vmatpush.msra.mxu0 %v374
      %532 = vmatmul.f32.gmra.mxu0 %v307
      %v533 = vpop.f32.mrf.mxu0
      %v534 = vadd.f32 %v514, %v533
      %535 = vdwg.mxu0
      %536 = vmatpush.msra.mxu0 %v436
      %537 = vmatpush.msra.mxu0 %v434
      %538 = vmatpush.msra.mxu0 %v432
      %539 = vmatpush.msra.mxu0 %v430
      %540 = vmatpush.msra.mxu0 %v428
      %541 = vmatpush.msra.mxu0 %v426
      %542 = vmatpush.msra.mxu0 %v424
      %543 = vmatpush.msra.mxu0 %v422
      %544 = vmatpush.msra.mxu0 %v420
      %545 = vmatpush.msra.mxu0 %v418
      %546 = vmatpush.msra.mxu0 %v416
      %547 = vmatpush.msra.mxu0 %v414
      %548 = vmatpush.msra.mxu0 %v412
      %549 = vmatpush.msra.mxu0 %v410
      %550 = vmatpush.msra.mxu0 %v408
      %551 = vmatpush.msra.mxu0 %v406
      %552 = vmatmul.f32.gmra.mxu0 %v308
      %v553 = vpop.f32.mrf.mxu0
      %v554 = vadd.f32 %v534, %v553
      %555 = vdwg.mxu0
      %556 = vmatpush.msra.mxu0 %v468
      %557 = vmatpush.msra.mxu0 %v466
      %558 = vmatpush.msra.mxu0 %v464
      %559 = vmatpush.msra.mxu0 %v462
      %560 = vmatpush.msra.mxu0 %v460
      %561 = vmatpush.msra.mxu0 %v458
      %562 = vmatpush.msra.mxu0 %v456
      %563 = vmatpush.msra.mxu0 %v454
      %564 = vmatpush.msra.mxu0 %v452
      %565 = vmatpush.msra.mxu0 %v450
      %566 = vmatpush.msra.mxu0 %v448
      %567 = vmatpush.msra.mxu0 %v446
      %568 = vmatpush.msra.mxu0 %v444
      %569 = vmatpush.msra.mxu0 %v442
      %570 = vmatpush.msra.mxu0 %v440
      %571 = vmatpush.msra.mxu0 %v438
      %572 = vmatmul.f32.gmra.mxu0 %v309
      %v573 = vpop.f32.mrf.mxu0
      %v574 = vadd.f32 %v554, %v573
      %575 = vdwg.mxu0
      %576 = vmatpush.msra.mxu0 %v341
      %577 = vmatpush.msra.mxu0 %v339
      %578 = vmatpush.msra.mxu0 %v337
      %579 = vmatpush.msra.mxu0 %v335
      %580 = vmatpush.msra.mxu0 %v333
      %581 = vmatpush.msra.mxu0 %v331
      %582 = vmatpush.msra.mxu0 %v329
      %583 = vmatpush.msra.mxu0 %v327
      %584 = vmatpush.msra.mxu0 %v325
      %585 = vmatpush.msra.mxu0 %v323
      %586 = vmatpush.msra.mxu0 %v321
      %587 = vmatpush.msra.mxu0 %v319
      %588 = vmatpush.msra.mxu0 %v317
      %589 = vmatpush.msra.mxu0 %v315
      %590 = vmatpush.msra.mxu0 %v313
      %591 = vmatpush.msra.mxu0 %v311
      %592 = vmatmul.f32.gmra.mxu0 %v305
      %v593 = vpop.f32.mrf.mxu0
      %v594 = vadd.f32 %v474, %v593
      %595 = vdwg.mxu0
      %596 = vmatpush.msra.mxu0 %v373
      %597 = vmatpush.msra.mxu0 %v371
      %598 = vmatpush.msra.mxu0 %v369
      %599 = vmatpush.msra.mxu0 %v367
      %600 = vmatpush.msra.mxu0 %v365
      %601 = vmatpush.msra.mxu0 %v363
      %602 = vmatpush.msra.mxu0 %v361
      %603 = vmatpush.msra.mxu0 %v359
      %604 = vmatpush.msra.mxu0 %v357
      %605 = vmatpush.msra.mxu0 %v355
      %606 = vmatpush.msra.mxu0 %v353
      %607 = vmatpush.msra.mxu0 %v351
      %608 = vmatpush.msra.mxu0 %v349
      %609 = vmatpush.msra.mxu0 %v347
      %610 = vmatpush.msra.mxu0 %v345
      %611 = vmatpush.msra.mxu0 %v343
      %612 = vmatmul.f32.gmra.mxu0 %v306
      %v613 = vpop.f32.mrf.mxu0
      %v614 = vadd.f32 %v594, %v613
      %615 = vdwg.mxu0
      %616 = vmatpush.msra.mxu0 %v405
      %617 = vmatpush.msra.mxu0 %v403
      %618 = vmatpush.msra.mxu0 %v401
      %619 = vmatpush.msra.mxu0 %v399
      %620 = vmatpush.msra.mxu0 %v397
      %621 = vmatpush.msra.mxu0 %v395
      %622 = vmatpush.msra.mxu0 %v393
      %623 = vmatpush.msra.mxu0 %v391
      %624 = vmatpush.msra.mxu0 %v389
      %625 = vmatpush.msra.mxu0 %v387
      %626 = vmatpush.msra.mxu0 %v385
      %627 = vmatpush.msra.mxu0 %v383
      %628 = vmatpush.msra.mxu0 %v381
      %629 = vmatpush.msra.mxu0 %v379
      %630 = vmatpush.msra.mxu0 %v377
      %631 = vmatpush.msra.mxu0 %v375
      %632 = vmatmul.f32.gmra.mxu0 %v307
      %v633 = vpop.f32.mrf.mxu0
      %v634 = vadd.f32 %v614, %v633
      %635 = vdwg.mxu0
      %636 = vmatpush.msra.mxu0 %v437
      %637 = vmatpush.msra.mxu0 %v435
      %638 = vmatpush.msra.mxu0 %v433
      %639 = vmatpush.msra.mxu0 %v431
      %640 = vmatpush.msra.mxu0 %v429
      %641 = vmatpush.msra.mxu0 %v427
      %642 = vmatpush.msra.mxu0 %v425
      %643 = vmatpush.msra.mxu0 %v423
      %644 = vmatpush.msra.mxu0 %v421
      %645 = vmatpush.msra.mxu0 %v419
      %646 = vmatpush.msra.mxu0 %v417
      %647 = vmatpush.msra.mxu0 %v415
      %648 = vmatpush.msra.mxu0 %v413
      %649 = vmatpush.msra.mxu0 %v411
      %650 = vmatpush.msra.mxu0 %v409
      %651 = vmatpush.msra.mxu0 %v407
      %652 = vmatmul.f32.gmra.mxu0 %v308
      %v653 = vpop.f32.mrf.mxu0
      %v654 = vadd.f32 %v634, %v653
      %655 = vdwg.mxu0
      %656 = vmatpush.msra.mxu0 %v469
      %657 = vmatpush.msra.mxu0 %v467
      %658 = vmatpush.msra.mxu0 %v465
      %659 = vmatpush.msra.mxu0 %v463
      %660 = vmatpush.msra.mxu0 %v461
      %661 = vmatpush.msra.mxu0 %v459
      %662 = vmatpush.msra.mxu0 %v457
      %663 = vmatpush.msra.mxu0 %v455
      %664 = vmatpush.msra.mxu0 %v453
      %665 = vmatpush.msra.mxu0 %v451
      %666 = vmatpush.msra.mxu0 %v449
      %667 = vmatpush.msra.mxu0 %v447
      %668 = vmatpush.msra.mxu0 %v445
      %669 = vmatpush.msra.mxu0 %v443
      %670 = vmatpush.msra.mxu0 %v441
      %671 = vmatpush.msra.mxu0 %v439
      %672 = vmatmul.f32.gmra.mxu0 %v309
      %v673 = vpop.f32.mrf.mxu0
      %v674 = vadd.f32 %v654, %v673
      %675 = vdwg.mxu0
      %vm676 = vcmask 785408
      %v677 = vsel %vm676, %v674, 0.0
      %v678 = vadd.f32 %v574, %v677
      %679 = vadd.xlane.f32.xlu0 %v678
      %v680 = vpop.xlane.xlu0 %679
      %v681 = vrcp.pop 224.0
      %v682 = vmul.f32 224.0, %v681
      %v683 = vsub.f32 1.0, %v682
      %v684 = vmul.f32 %v681, %v683
      %v685 = vadd.f32 %v681, %v684
      %vm686 = vweird.f32 %v681
      %v687 = vsel %vm686, %v681, %v685
      %v688 = vmul.f32 %v680, %v687
      %v689 = vmul.f32 %v574, %v574
      %v690 = vmul.f32 %v674, %v674
      %v691 = vsel %vm676, %v690, 0.0
      %v692 = vadd.f32 %v689, %v691
      %693 = vadd.xlane.f32.xlu0 %v692
      %v694 = vpop.xlane.xlu0 %693
      %v695 = vmul.f32 %v694, %v687
      %v696 = vmul.f32 %v688, %v688
      %v697 = vsub.f32 %v695, %v696
      %v698 = vsub.f32 %v574, %v688
      %v699 = vsub.f32 %v674, %v688
      %v700 = vadd.f32 %v697, 1e-05
      %v701 = vrsqrt.pop %v700
      %v702 = vmul.f32 %v701, %v700
      %v703 = vmul.f32 %v702, %v701
      %v704 = vmul.f32 0.5, %v703
      %v705 = vsub.f32 1.5, %v704
      %v706 = vmul.f32 %v701, %v705
      %vm707 = vweird.f32 %v700
      %vm708 = vweird.f32 %v701
      %vm709 = vmor %vm707, %vm708
      %v710 = vsel %vm709, %v701, %v706
      %v711 = vmul.f32 %v698, %v710
      %v712 = vmul.f32 %v699, %v710
      %v713 = vld [vmem:[%s295] sm:$0xff]
      %715 = vset.pattern.permute.xlu0 0
      %716 = vperm.xlu0 %715, %v713
      %v717 = vpop.permute.xlu0 %716
      %v719 = vmul.f32 %v711, %v717
      %v720 = vmul.f32 %v712, %v717
      %v721 = vld [vmem:[%s299] sm:$0xff]
      %723 = vset.pattern.permute.xlu0 0
      %724 = vperm.xlu0 %723, %v721
      %v725 = vpop.permute.xlu0 %724
      %v727 = vadd.f32 %v719, %v725
      %v728 = vadd.f32 %v720, %v725
      %vm729 = vcmp.ge.f32.partialorder %v727, 0.0
      %vm730 = vcmp.ge.f32.partialorder %v728, 0.0
      %v731 = vld [vmem:[#allocation2] sm:$0x1]
      %v733 = vperm.slane %v731, 0
      %734 = vset.pattern.permute.xlu0 0
      %735 = vperm.xlu0 %734, %v733
      %v736 = vpop.permute.xlu0 %735
      %v738 = vmul.f32 %v736, %v727
      %v739 = vmul.f32 %v736, %v728
      %v740 = vsel %vm729, %v727, %v738
      %v741 = vsel %vm730, %v728, %v739
      %742 = vst [vmem:[%s304] sm:$0xff] %v740
      %743 = vst.msk [vmem:[%s304 + $0x8] sm:$0xff] %vm676, %v741
      %p744 = scmp.lt.s32.totalorder %s19, 1
      %s745 = scalar_select %p744, %s19, 1
      %s746 = smul.addr %s745, 2
      %s747 = smul.addr %s746, 8
      %s748 = scalar_lea.vmem %s6, %s747
      // Predicated region
      $region45: #{dccrn_forward.14} parent=43 // pred_check
        %p749 = pneg %p183
      $region46: #{dccrn_forward.14} parent=43 // pred_check_branch
        %751 = sbr.rel (%p749) target = $region48
      $region47: #{dccrn_forward.14} parent=43 // pred_region
        _
      $region48: #{dccrn_forward.14} parent=43 // pred_fallthru
        _
    $region44: #{dccrn_forward.14} parent=5 // pred_fallthru
      _
    %p752 = scmp.le.s32.totalorder 2, %s14
    // Predicated region
    $region49: #{dccrn_forward.14} parent=5 // pred_check
      %p753 = pneg %p752
    $region50: #{dccrn_forward.14} parent=5 // pred_check_branch
      %755 = sbr.rel (%p753) target = $region52
    $region51: #{dccrn_forward.14} parent=5 // pred_region
      %s756 = ssub.s32 %s14, 2
      // Predicated region
      $region53: #{dccrn_forward.14} parent=51 // pred_check
        %p757 = pneg %p189
      $region54: #{dccrn_forward.14} parent=51 // pred_check_branch
        %759 = sbr.rel (%p757) target = $region56
      $region55: #{dccrn_forward.14} parent=51 // pred_region
        %p760 = scmp.lt.s32.totalorder %s20, 1
        %s761 = scalar_select %p760, %s20, 1
        %s762 = smul.addr %s761, 2
        %s763 = smul.addr %s762, 8
        %s764 = scalar_lea.vmem %s6, %s763
      $region56: #{dccrn_forward.14} parent=51 // pred_fallthru
        _
    $region52: #{dccrn_forward.14} parent=5 // pred_fallthru
      _
  $region6: #{dccrn_forward.14} parent=0 // loop_footer
    %s18 = sadd.s32 1, %s14
  $region7: #{dccrn_forward.14} parent=0 // loop_footer_branch
    %13 = sbr.rel target = $region3
  $region8: #{dccrn_forward.14} parent=0 // loop_exit
    _

// kernel: dccrn_forward.15
$region0: #{dccrn_forward.15}
  #allocation0 [shape = 'u32[]', space=smem, size = 0x4, offset = 0x4, fixed_abs, tag = 'smem constant byte address 0x4 - core index']
  #allocation1 [shape = 'u32[72,128]{1,0:T(1,128)}', space=vmem, size = 0x9000, scoped, tag = 'internal scratch']
  #allocation2 [shape = 'f32[1,1]{1,0:T(1,128)S(1)}', space=vmem, size = 0x200, scoped, tag = 'scoped memory for dccrn_forward.15']
  %s0 = inlined_call_operand.vmem [shape: f32[8,320], index: 0, kind: input, shape index: {}]
  %s1 = inlined_call_operand.vmem [shape: f32[320,448], index: 1, kind: input, shape index: {}]
  %s2 = inlined_call_operand.vmem [shape: f32[8,1], index: 2, kind: input, shape index: {}]
  %s3 = inlined_call_operand.vmem [shape: f32[8,1], index: 3, kind: input, shape index: {}]
  %s4 = inlined_call_operand.vmem [shape: f32[8,1], index: 4, kind: input, shape index: {}]
  %s5 = inlined_call_operand.<no memory space> [shape: f32[1,1], index: 5, kind: input, shape index: {}]
  %s6 = inlined_call_operand.vmem [shape: f32[8,448], index: 6, kind: output, shape index: {}]
  %s7 = sld [smem:[#allocation0]]
  $region34: #{dccrn_forward.15} parent=0
    _
  %s9 = ssub.s32 1, %s7
  %s10 = scalar_select 0, %s9, %s7
  %v11 = vstv %s5
  %12 = vst [vmem:[#allocation2] sm:$0x1] %v11
  // Predicated region
  $region2: #{dccrn_forward.15} parent=0 // pred_check
    _
  $region3: #{dccrn_forward.15} parent=0 // pred_check_branch
    %14 = sbr.rel (0) target = $region5
  $region4: #{dccrn_forward.15} parent=0 // pred_region
    _
  $region5: #{dccrn_forward.15} parent=0 // pred_fallthru
    _
  // Predicated region
  $region6: #{dccrn_forward.15} parent=0 // pred_check
    _
  $region7: #{dccrn_forward.15} parent=0 // pred_check_branch
    %16 = sbr.rel (0) target = $region9
  $region8: #{dccrn_forward.15} parent=0 // pred_region
    _
  $region9: #{dccrn_forward.15} parent=0 // pred_fallthru
    _
  // Predicated region
  $region10: #{dccrn_forward.15} parent=0 // pred_check
    _
  $region11: #{dccrn_forward.15} parent=0 // pred_check_branch
    %18 = sbr.rel (0) target = $region13
  $region12: #{dccrn_forward.15} parent=0 // pred_region
    _
  $region13: #{dccrn_forward.15} parent=0 // pred_fallthru
    _
  // Predicated region
  $region14: #{dccrn_forward.15} parent=0 // pred_check
    _
  $region15: #{dccrn_forward.15} parent=0 // pred_check_branch
    %20 = sbr.rel (0) target = $region17
  $region16: #{dccrn_forward.15} parent=0 // pred_region
    _
  $region17: #{dccrn_forward.15} parent=0 // pred_fallthru
    _
  // Predicated region
  $region18: #{dccrn_forward.15} parent=0 // pred_check
    _
  $region19: #{dccrn_forward.15} parent=0 // pred_check_branch
    %22 = sbr.rel (0) target = $region21
  $region20: #{dccrn_forward.15} parent=0 // pred_region
    _
  $region21: #{dccrn_forward.15} parent=0 // pred_fallthru
    _
  // Predicated region
  $region22: #{dccrn_forward.15} parent=0 // pred_check
    _
  $region23: #{dccrn_forward.15} parent=0 // pred_check_branch
    %24 = sbr.rel (0) target = $region25
  $region24: #{dccrn_forward.15} parent=0 // pred_region
    _
  $region25: #{dccrn_forward.15} parent=0 // pred_fallthru
    _
  %v25 = vld [vmem:[%s0] sm:$0xff]
  %v26 = vld [vmem:[%s0 + $0x8] sm:$0xff]
  %v27 = vld [vmem:[%s0 + $0x10] sm:$0xff]
  %v28 = vld [vmem:[%s1] sm:$0xff]
  %v29 = vld [vmem:[%s1 + $0x8] sm:$0xff]
  %v30 = vld [vmem:[%s1 + $0x10] sm:$0xff]
  %v31 = vld [vmem:[%s1 + $0x18] sm:$0xff]
  %v32 = vld [vmem:[%s1 + $0x20] sm:$0xff]
  %v33 = vld [vmem:[%s1 + $0x28] sm:$0xff]
  %v34 = vld [vmem:[%s1 + $0x30] sm:$0xff]
  %v35 = vld [vmem:[%s1 + $0x38] sm:$0xff]
  %v36 = vld [vmem:[%s1 + $0x40] sm:$0xff]
  %v37 = vld [vmem:[%s1 + $0x48] sm:$0xff]
  %v38 = vld [vmem:[%s1 + $0x50] sm:$0xff]
  %v39 = vld [vmem:[%s1 + $0x58] sm:$0xff]
  %v40 = vld [vmem:[%s1 + $0x60] sm:$0xff]
  %v41 = vld [vmem:[%s1 + $0x68] sm:$0xff]
  %v42 = vld [vmem:[%s1 + $0x70] sm:$0xff]
  %v43 = vld [vmem:[%s1 + $0x78] sm:$0xff]
  %v44 = vld [vmem:[%s1 + $0x80] sm:$0xff]
  %v45 = vld [vmem:[%s1 + $0x88] sm:$0xff]
  %v46 = vld [vmem:[%s1 + $0x90] sm:$0xff]
  %v47 = vld [vmem:[%s1 + $0x98] sm:$0xff]
  %v48 = vld [vmem:[%s1 + $0xa0] sm:$0xff]
  %v49 = vld [vmem:[%s1 + $0xa8] sm:$0xff]
  %v50 = vld [vmem:[%s1 + $0xb0] sm:$0xff]
  %v51 = vld [vmem:[%s1 + $0xb8] sm:$0xff]
  %v52 = vld [vmem:[%s1 + $0xc0] sm:$0xff]
  %v53 = vld [vmem:[%s1 + $0xc8] sm:$0xff]
  %v54 = vld [vmem:[%s1 + $0xd0] sm:$0xff]
  %v55 = vld [vmem:[%s1 + $0xd8] sm:$0xff]
  %v56 = vld [vmem:[%s1 + $0xe0] sm:$0xff]
  %v57 = vld [vmem:[%s1 + $0xe8] sm:$0xff]
  %v58 = vld [vmem:[%s1 + $0xf0] sm:$0xff]
  %v59 = vld [vmem:[%s1 + $0xf8] sm:$0xff]
  %v60 = vld [vmem:[%s1 + $0x100] sm:$0xff]
  %v61 = vld [vmem:[%s1 + $0x108] sm:$0xff]
  %v62 = vld [vmem:[%s1 + $0x110] sm:$0xff]
  %v63 = vld [vmem:[%s1 + $0x118] sm:$0xff]
  %v64 = vld [vmem:[%s1 + $0x120] sm:$0xff]
  %v65 = vld [vmem:[%s1 + $0x128] sm:$0xff]
  %v66 = vld [vmem:[%s1 + $0x130] sm:$0xff]
  %v67 = vld [vmem:[%s1 + $0x138] sm:$0xff]
  %v68 = vld [vmem:[%s1 + $0x140] sm:$0xff]
  %v69 = vld [vmem:[%s1 + $0x148] sm:$0xff]
  %v70 = vld [vmem:[%s1 + $0x150] sm:$0xff]
  %v71 = vld [vmem:[%s1 + $0x158] sm:$0xff]
  %v72 = vld [vmem:[%s1 + $0x160] sm:$0xff]
  %v73 = vld [vmem:[%s1 + $0x168] sm:$0xff]
  %v74 = vld [vmem:[%s1 + $0x170] sm:$0xff]
  %v75 = vld [vmem:[%s1 + $0x178] sm:$0xff]
  %v76 = vld [vmem:[%s1 + $0x180] sm:$0xff]
  %v77 = vld [vmem:[%s1 + $0x188] sm:$0xff]
  %v78 = vld [vmem:[%s1 + $0x190] sm:$0xff]
  %v79 = vld [vmem:[%s1 + $0x198] sm:$0xff]
  %v80 = vld [vmem:[%s1 + $0x1a0] sm:$0xff]
  %v81 = vld [vmem:[%s1 + $0x1a8] sm:$0xff]
  %v82 = vld [vmem:[%s1 + $0x1b0] sm:$0xff]
  %v83 = vld [vmem:[%s1 + $0x1b8] sm:$0xff]
  %v84 = vld [vmem:[%s1 + $0x1c0] sm:$0xff]
  %v85 = vld [vmem:[%s1 + $0x1c8] sm:$0xff]
  %v86 = vld [vmem:[%s1 + $0x1d0] sm:$0xff]
  %v87 = vld [vmem:[%s1 + $0x1d8] sm:$0xff]
  %v88 = vld [vmem:[%s1 + $0x1e0] sm:$0xff]
  %v89 = vld [vmem:[%s1 + $0x1e8] sm:$0xff]
  %v90 = vld [vmem:[%s1 + $0x1f0] sm:$0xff]
  %v91 = vld [vmem:[%s1 + $0x1f8] sm:$0xff]
  %v92 = vld [vmem:[%s1 + $0x200] sm:$0xff]
  %v93 = vld [vmem:[%s1 + $0x208] sm:$0xff]
  %v94 = vld [vmem:[%s1 + $0x210] sm:$0xff]
  %v95 = vld [vmem:[%s1 + $0x218] sm:$0xff]
  %v96 = vld [vmem:[%s1 + $0x220] sm:$0xff]
  %v97 = vld [vmem:[%s1 + $0x228] sm:$0xff]
  %v98 = vld [vmem:[%s1 + $0x230] sm:$0xff]
  %v99 = vld [vmem:[%s1 + $0x238] sm:$0xff]
  %v100 = vld [vmem:[%s1 + $0x240] sm:$0xff]
  %v101 = vld [vmem:[%s1 + $0x248] sm:$0xff]
  %v102 = vld [vmem:[%s1 + $0x250] sm:$0xff]
  %v103 = vld [vmem:[%s1 + $0x258] sm:$0xff]
  %v104 = vld [vmem:[%s1 + $0x260] sm:$0xff]
  %v105 = vld [vmem:[%s1 + $0x268] sm:$0xff]
  %v106 = vld [vmem:[%s1 + $0x270] sm:$0xff]
  %v107 = vld [vmem:[%s1 + $0x278] sm:$0xff]
  %v108 = vld [vmem:[%s1 + $0x280] sm:$0xff]
  %v109 = vld [vmem:[%s1 + $0x288] sm:$0xff]
  %v110 = vld [vmem:[%s1 + $0x290] sm:$0xff]
  %v111 = vld [vmem:[%s1 + $0x298] sm:$0xff]
  %v112 = vld [vmem:[%s1 + $0x2a0] sm:$0xff]
  %v113 = vld [vmem:[%s1 + $0x2a8] sm:$0xff]
  %v114 = vld [vmem:[%s1 + $0x2b0] sm:$0xff]
  %v115 = vld [vmem:[%s1 + $0x2b8] sm:$0xff]
  %v116 = vld [vmem:[%s1 + $0x2c0] sm:$0xff]
  %v117 = vld [vmem:[%s1 + $0x2c8] sm:$0xff]
  %v118 = vld [vmem:[%s1 + $0x2d0] sm:$0xff]
  %v119 = vld [vmem:[%s1 + $0x2d8] sm:$0xff]
  %v120 = vld [vmem:[%s1 + $0x2e0] sm:$0xff]
  %v121 = vld [vmem:[%s1 + $0x2e8] sm:$0xff]
  %v122 = vld [vmem:[%s1 + $0x2f0] sm:$0xff]
  %v123 = vld [vmem:[%s1 + $0x2f8] sm:$0xff]
  %v124 = vld [vmem:[%s1 + $0x300] sm:$0xff]
  %v125 = vld [vmem:[%s1 + $0x308] sm:$0xff]
  %v126 = vld [vmem:[%s1 + $0x310] sm:$0xff]
  %v127 = vld [vmem:[%s1 + $0x318] sm:$0xff]
  %v128 = vld [vmem:[%s1 + $0x320] sm:$0xff]
  %v129 = vld [vmem:[%s1 + $0x328] sm:$0xff]
  %v130 = vld [vmem:[%s1 + $0x330] sm:$0xff]
  %v131 = vld [vmem:[%s1 + $0x338] sm:$0xff]
  %v132 = vld [vmem:[%s1 + $0x340] sm:$0xff]
  %v133 = vld [vmem:[%s1 + $0x348] sm:$0xff]
  %v134 = vld [vmem:[%s1 + $0x350] sm:$0xff]
  %v135 = vld [vmem:[%s1 + $0x358] sm:$0xff]
  %v136 = vld [vmem:[%s1 + $0x360] sm:$0xff]
  %v137 = vld [vmem:[%s1 + $0x368] sm:$0xff]
  %v138 = vld [vmem:[%s1 + $0x370] sm:$0xff]
  %v139 = vld [vmem:[%s1 + $0x378] sm:$0xff]
  %v140 = vld [vmem:[%s1 + $0x380] sm:$0xff]
  %v141 = vld [vmem:[%s1 + $0x388] sm:$0xff]
  %v142 = vld [vmem:[%s1 + $0x390] sm:$0xff]
  %v143 = vld [vmem:[%s1 + $0x398] sm:$0xff]
  %v144 = vld [vmem:[%s1 + $0x3a0] sm:$0xff]
  %v145 = vld [vmem:[%s1 + $0x3a8] sm:$0xff]
  %v146 = vld [vmem:[%s1 + $0x3b0] sm:$0xff]
  %v147 = vld [vmem:[%s1 + $0x3b8] sm:$0xff]
  %v148 = vld [vmem:[%s1 + $0x3c0] sm:$0xff]
  %v149 = vld [vmem:[%s1 + $0x3c8] sm:$0xff]
  %v150 = vld [vmem:[%s1 + $0x3d0] sm:$0xff]
  %v151 = vld [vmem:[%s1 + $0x3d8] sm:$0xff]
  %v152 = vld [vmem:[%s1 + $0x3e0] sm:$0xff]
  %v153 = vld [vmem:[%s1 + $0x3e8] sm:$0xff]
  %v154 = vld [vmem:[%s1 + $0x3f0] sm:$0xff]
  %v155 = vld [vmem:[%s1 + $0x3f8] sm:$0xff]
  %v156 = vld [vmem:[%s1 + $0x400] sm:$0xff]
  %v157 = vld [vmem:[%s1 + $0x408] sm:$0xff]
  %v158 = vld [vmem:[%s1 + $0x410] sm:$0xff]
  %v159 = vld [vmem:[%s1 + $0x418] sm:$0xff]
  %v160 = vld [vmem:[%s1 + $0x420] sm:$0xff]
  %v161 = vld [vmem:[%s1 + $0x428] sm:$0xff]
  %v162 = vld [vmem:[%s1 + $0x430] sm:$0xff]
  %v163 = vld [vmem:[%s1 + $0x438] sm:$0xff]
  %v164 = vld [vmem:[%s1 + $0x440] sm:$0xff]
  %v165 = vld [vmem:[%s1 + $0x448] sm:$0xff]
  %v166 = vld [vmem:[%s1 + $0x450] sm:$0xff]
  %v167 = vld [vmem:[%s1 + $0x458] sm:$0xff]
  %v168 = vld [vmem:[%s1 + $0x460] sm:$0xff]
  %v169 = vld [vmem:[%s1 + $0x468] sm:$0xff]
  %v170 = vld [vmem:[%s1 + $0x470] sm:$0xff]
  %v171 = vld [vmem:[%s1 + $0x478] sm:$0xff]
  %v172 = vld [vmem:[%s1 + $0x480] sm:$0xff]
  %v173 = vld [vmem:[%s1 + $0x488] sm:$0xff]
  %v174 = vld [vmem:[%s1 + $0x490] sm:$0xff]
  %v175 = vld [vmem:[%s1 + $0x498] sm:$0xff]
  %v176 = vld [vmem:[%s1 + $0x4a0] sm:$0xff]
  %v177 = vld [vmem:[%s1 + $0x4a8] sm:$0xff]
  %v178 = vld [vmem:[%s1 + $0x4b0] sm:$0xff]
  %v179 = vld [vmem:[%s1 + $0x4b8] sm:$0xff]
  %v180 = vld [vmem:[%s1 + $0x4c0] sm:$0xff]
  %v181 = vld [vmem:[%s1 + $0x4c8] sm:$0xff]
  %v182 = vld [vmem:[%s1 + $0x4d0] sm:$0xff]
  %v183 = vld [vmem:[%s1 + $0x4d8] sm:$0xff]
  %v184 = vld [vmem:[%s1 + $0x4e0] sm:$0xff]
  %v185 = vld [vmem:[%s1 + $0x4e8] sm:$0xff]
  %v186 = vld [vmem:[%s1 + $0x4f0] sm:$0xff]
  %v187 = vld [vmem:[%s1 + $0x4f8] sm:$0xff]
  %v188 = vld [vmem:[%s2] sm:$0xff]
  %190 = vset.pattern.permute.xlu0 0
  %191 = vperm.xlu0 %190, %v188
  %v192 = vpop.permute.xlu0 %191
  %vm194 = vcmask 523264
  %v196 = vsel %vm194, %v27, 0
  %198 = vmatpush.msra.mxu0 %v88
  %199 = vmatpush.msra.mxu0 %v84
  %200 = vmatpush.msra.mxu0 %v80
  %201 = vmatpush.msra.mxu0 %v76
  %202 = vmatpush.msra.mxu0 %v72
  %203 = vmatpush.msra.mxu0 %v68
  %204 = vmatpush.msra.mxu0 %v64
  %205 = vmatpush.msra.mxu0 %v60
  %206 = vmatpush.msra.mxu0 %v56
  %207 = vmatpush.msra.mxu0 %v52
  %208 = vmatpush.msra.mxu0 %v48
  %209 = vmatpush.msra.mxu0 %v44
  %210 = vmatpush.msra.mxu0 %v40
  %211 = vmatpush.msra.mxu0 %v36
  %212 = vmatpush.msra.mxu0 %v32
  %213 = vmatpush.msra.mxu0 %v28
  %214 = vmatmul.f32.gmra.mxu0 %v25
  %v215 = vpop.f32.mrf.mxu0
  %v216 = vadd.f32 %v192, %v215
  %217 = vdwg.mxu0
  %218 = vmatpush.msra.mxu0 %v152
  %219 = vmatpush.msra.mxu0 %v148
  %220 = vmatpush.msra.mxu0 %v144
  %221 = vmatpush.msra.mxu0 %v140
  %222 = vmatpush.msra.mxu0 %v136
  %223 = vmatpush.msra.mxu0 %v132
  %224 = vmatpush.msra.mxu0 %v128
  %225 = vmatpush.msra.mxu0 %v124
  %226 = vmatpush.msra.mxu0 %v120
  %227 = vmatpush.msra.mxu0 %v116
  %228 = vmatpush.msra.mxu0 %v112
  %229 = vmatpush.msra.mxu0 %v108
  %230 = vmatpush.msra.mxu0 %v104
  %231 = vmatpush.msra.mxu0 %v100
  %232 = vmatpush.msra.mxu0 %v96
  %233 = vmatpush.msra.mxu0 %v92
  %234 = vmatmul.f32.gmra.mxu0 %v26
  %v235 = vpop.f32.mrf.mxu0
  %v236 = vadd.f32 %v216, %v235
  %237 = vdwg.mxu0
  %238 = vmatpush.msra.mxu0 0.0
  %239 = vmatpush.msra.mxu0 0.0
  %240 = vmatpush.msra.mxu0 0.0
  %241 = vmatpush.msra.mxu0 0.0
  %242 = vmatpush.msra.mxu0 0.0
  %243 = vmatpush.msra.mxu0 0.0
  %244 = vmatpush.msra.mxu0 0.0
  %245 = vmatpush.msra.mxu0 0.0
  %246 = vmatpush.msra.mxu0 %v184
  %247 = vmatpush.msra.mxu0 %v180
  %248 = vmatpush.msra.mxu0 %v176
  %249 = vmatpush.msra.mxu0 %v172
  %250 = vmatpush.msra.mxu0 %v168
  %251 = vmatpush.msra.mxu0 %v164
  %252 = vmatpush.msra.mxu0 %v160
  %253 = vmatpush.msra.mxu0 %v156
  %254 = vmatmul.f32.gmra.mxu0 %v196
  %v255 = vpop.f32.mrf.mxu0
  %v256 = vadd.f32 %v236, %v255
  %257 = vdwg.mxu0
  %258 = vmatpush.msra.mxu0 %v89
  %259 = vmatpush.msra.mxu0 %v85
  %260 = vmatpush.msra.mxu0 %v81
  %261 = vmatpush.msra.mxu0 %v77
  %262 = vmatpush.msra.mxu0 %v73
  %263 = vmatpush.msra.mxu0 %v69
  %264 = vmatpush.msra.mxu0 %v65
  %265 = vmatpush.msra.mxu0 %v61
  %266 = vmatpush.msra.mxu0 %v57
  %267 = vmatpush.msra.mxu0 %v53
  %268 = vmatpush.msra.mxu0 %v49
  %269 = vmatpush.msra.mxu0 %v45
  %270 = vmatpush.msra.mxu0 %v41
  %271 = vmatpush.msra.mxu0 %v37
  %272 = vmatpush.msra.mxu0 %v33
  %273 = vmatpush.msra.mxu0 %v29
  %274 = vmatmul.f32.gmra.mxu0 %v25
  %v275 = vpop.f32.mrf.mxu0
  %v276 = vadd.f32 %v192, %v275
  %277 = vdwg.mxu0
  %278 = vmatpush.msra.mxu0 %v153
  %279 = vmatpush.msra.mxu0 %v149
  %280 = vmatpush.msra.mxu0 %v145
  %281 = vmatpush.msra.mxu0 %v141
  %282 = vmatpush.msra.mxu0 %v137
  %283 = vmatpush.msra.mxu0 %v133
  %284 = vmatpush.msra.mxu0 %v129
  %285 = vmatpush.msra.mxu0 %v125
  %286 = vmatpush.msra.mxu0 %v121
  %287 = vmatpush.msra.mxu0 %v117
  %288 = vmatpush.msra.mxu0 %v113
  %289 = vmatpush.msra.mxu0 %v109
  %290 = vmatpush.msra.mxu0 %v105
  %291 = vmatpush.msra.mxu0 %v101
  %292 = vmatpush.msra.mxu0 %v97
  %293 = vmatpush.msra.mxu0 %v93
  %294 = vmatmul.f32.gmra.mxu0 %v26
  %v295 = vpop.f32.mrf.mxu0
  %v296 = vadd.f32 %v276, %v295
  %297 = vdwg.mxu0
  %298 = vmatpush.msra.mxu0 0.0
  %299 = vmatpush.msra.mxu0 0.0
  %300 = vmatpush.msra.mxu0 0.0
  %301 = vmatpush.msra.mxu0 0.0
  %302 = vmatpush.msra.mxu0 0.0
  %303 = vmatpush.msra.mxu0 0.0
  %304 = vmatpush.msra.mxu0 0.0
  %305 = vmatpush.msra.mxu0 0.0
  %306 = vmatpush.msra.mxu0 %v185
  %307 = vmatpush.msra.mxu0 %v181
  %308 = vmatpush.msra.mxu0 %v177
  %309 = vmatpush.msra.mxu0 %v173
  %310 = vmatpush.msra.mxu0 %v169
  %311 = vmatpush.msra.mxu0 %v165
  %312 = vmatpush.msra.mxu0 %v161
  %313 = vmatpush.msra.mxu0 %v157
  %314 = vmatmul.f32.gmra.mxu0 %v196
  %v315 = vpop.f32.mrf.mxu0
  %v316 = vadd.f32 %v296, %v315
  %317 = vdwg.mxu0
  %318 = vmatpush.msra.mxu0 %v90
  %319 = vmatpush.msra.mxu0 %v86
  %320 = vmatpush.msra.mxu0 %v82
  %321 = vmatpush.msra.mxu0 %v78
  %322 = vmatpush.msra.mxu0 %v74
  %323 = vmatpush.msra.mxu0 %v70
  %324 = vmatpush.msra.mxu0 %v66
  %325 = vmatpush.msra.mxu0 %v62
  %326 = vmatpush.msra.mxu0 %v58
  %327 = vmatpush.msra.mxu0 %v54
  %328 = vmatpush.msra.mxu0 %v50
  %329 = vmatpush.msra.mxu0 %v46
  %330 = vmatpush.msra.mxu0 %v42
  %331 = vmatpush.msra.mxu0 %v38
  %332 = vmatpush.msra.mxu0 %v34
  %333 = vmatpush.msra.mxu0 %v30
  %334 = vmatmul.f32.gmra.mxu0 %v25
  %v335 = vpop.f32.mrf.mxu0
  %v336 = vadd.f32 %v192, %v335
  %337 = vdwg.mxu0
  %338 = vmatpush.msra.mxu0 %v154
  %339 = vmatpush.msra.mxu0 %v150
  %340 = vmatpush.msra.mxu0 %v146
  %341 = vmatpush.msra.mxu0 %v142
  %342 = vmatpush.msra.mxu0 %v138
  %343 = vmatpush.msra.mxu0 %v134
  %344 = vmatpush.msra.mxu0 %v130
  %345 = vmatpush.msra.mxu0 %v126
  %346 = vmatpush.msra.mxu0 %v122
  %347 = vmatpush.msra.mxu0 %v118
  %348 = vmatpush.msra.mxu0 %v114
  %349 = vmatpush.msra.mxu0 %v110
  %350 = vmatpush.msra.mxu0 %v106
  %351 = vmatpush.msra.mxu0 %v102
  %352 = vmatpush.msra.mxu0 %v98
  %353 = vmatpush.msra.mxu0 %v94
  %354 = vmatmul.f32.gmra.mxu0 %v26
  %v355 = vpop.f32.mrf.mxu0
  %v356 = vadd.f32 %v336, %v355
  %357 = vdwg.mxu0
  %358 = vmatpush.msra.mxu0 0.0
  %359 = vmatpush.msra.mxu0 0.0
  %360 = vmatpush.msra.mxu0 0.0
  %361 = vmatpush.msra.mxu0 0.0
  %362 = vmatpush.msra.mxu0 0.0
  %363 = vmatpush.msra.mxu0 0.0
  %364 = vmatpush.msra.mxu0 0.0
  %365 = vmatpush.msra.mxu0 0.0
  %366 = vmatpush.msra.mxu0 %v186
  %367 = vmatpush.msra.mxu0 %v182
  %368 = vmatpush.msra.mxu0 %v178
  %369 = vmatpush.msra.mxu0 %v174
  %370 = vmatpush.msra.mxu0 %v170
  %371 = vmatpush.msra.mxu0 %v166
  %372 = vmatpush.msra.mxu0 %v162
  %373 = vmatpush.msra.mxu0 %v158
  %374 = vmatmul.f32.gmra.mxu0 %v196
  %v375 = vpop.f32.mrf.mxu0
  %v376 = vadd.f32 %v356, %v375
  %377 = vdwg.mxu0
  %378 = vmatpush.msra.mxu0 %v91
  %379 = vmatpush.msra.mxu0 %v87
  %380 = vmatpush.msra.mxu0 %v83
  %381 = vmatpush.msra.mxu0 %v79
  %382 = vmatpush.msra.mxu0 %v75
  %383 = vmatpush.msra.mxu0 %v71
  %384 = vmatpush.msra.mxu0 %v67
  %385 = vmatpush.msra.mxu0 %v63
  %386 = vmatpush.msra.mxu0 %v59
  %387 = vmatpush.msra.mxu0 %v55
  %388 = vmatpush.msra.mxu0 %v51
  %389 = vmatpush.msra.mxu0 %v47
  %390 = vmatpush.msra.mxu0 %v43
  %391 = vmatpush.msra.mxu0 %v39
  %392 = vmatpush.msra.mxu0 %v35
  %393 = vmatpush.msra.mxu0 %v31
  %394 = vmatmul.f32.gmra.mxu0 %v25
  %v395 = vpop.f32.mrf.mxu0
  %v396 = vadd.f32 %v192, %v395
  %397 = vdwg.mxu0
  %398 = vmatpush.msra.mxu0 %v155
  %399 = vmatpush.msra.mxu0 %v151
  %400 = vmatpush.msra.mxu0 %v147
  %401 = vmatpush.msra.mxu0 %v143
  %402 = vmatpush.msra.mxu0 %v139
  %403 = vmatpush.msra.mxu0 %v135
  %404 = vmatpush.msra.mxu0 %v131
  %405 = vmatpush.msra.mxu0 %v127
  %406 = vmatpush.msra.mxu0 %v123
  %407 = vmatpush.msra.mxu0 %v119
  %408 = vmatpush.msra.mxu0 %v115
  %409 = vmatpush.msra.mxu0 %v111
  %410 = vmatpush.msra.mxu0 %v107
  %411 = vmatpush.msra.mxu0 %v103
  %412 = vmatpush.msra.mxu0 %v99
  %413 = vmatpush.msra.mxu0 %v95
  %414 = vmatmul.f32.gmra.mxu0 %v26
  %v415 = vpop.f32.mrf.mxu0
  %v416 = vadd.f32 %v396, %v415
  %417 = vdwg.mxu0
  %418 = vmatpush.msra.mxu0 0.0
  %419 = vmatpush.msra.mxu0 0.0
  %420 = vmatpush.msra.mxu0 0.0
  %421 = vmatpush.msra.mxu0 0.0
  %422 = vmatpush.msra.mxu0 0.0
  %423 = vmatpush.msra.mxu0 0.0
  %424 = vmatpush.msra.mxu0 0.0
  %425 = vmatpush.msra.mxu0 0.0
  %426 = vmatpush.msra.mxu0 %v187
  %427 = vmatpush.msra.mxu0 %v183
  %428 = vmatpush.msra.mxu0 %v179
  %429 = vmatpush.msra.mxu0 %v175
  %430 = vmatpush.msra.mxu0 %v171
  %431 = vmatpush.msra.mxu0 %v167
  %432 = vmatpush.msra.mxu0 %v163
  %433 = vmatpush.msra.mxu0 %v159
  %434 = vmatmul.f32.gmra.mxu0 %v196
  %v435 = vpop.f32.mrf.mxu0
  %v436 = vadd.f32 %v416, %v435
  %437 = vdwg.mxu0
  %v438 = vadd.f32 %v256, %v316
  %v439 = vadd.f32 %v438, %v376
  %v440 = vsel %vm194, %v436, 0.0
  %v441 = vadd.f32 %v439, %v440
  %442 = vadd.xlane.f32.xlu0 %v441
  %v443 = vpop.xlane.xlu0 %442
  %v444 = vrcp.pop 448.0
  %v445 = vmul.f32 448.0, %v444
  %v446 = vsub.f32 1.0, %v445
  %v447 = vmul.f32 %v444, %v446
  %v448 = vadd.f32 %v444, %v447
  %vm449 = vweird.f32 %v444
  %v450 = vsel %vm449, %v444, %v448
  %v451 = vmul.f32 %v443, %v450
  %v452 = vmul.f32 %v256, %v256
  %v453 = vmul.f32 %v316, %v316
  %v454 = vmul.f32 %v376, %v376
  %v455 = vmul.f32 %v436, %v436
  %v456 = vadd.f32 %v452, %v453
  %v457 = vadd.f32 %v456, %v454
  %v458 = vsel %vm194, %v455, 0.0
  %v459 = vadd.f32 %v457, %v458
  %460 = vadd.xlane.f32.xlu0 %v459
  %v461 = vpop.xlane.xlu0 %460
  %v462 = vmul.f32 %v461, %v450
  %v463 = vmul.f32 %v451, %v451
  %v464 = vsub.f32 %v462, %v463
  %v465 = vsub.f32 %v256, %v451
  %v466 = vsub.f32 %v316, %v451
  %v467 = vsub.f32 %v376, %v451
  %v468 = vsub.f32 %v436, %v451
  %v469 = vadd.f32 %v464, 1e-05
  %v470 = vrsqrt.pop %v469
  %v471 = vmul.f32 %v470, %v469
  %v472 = vmul.f32 %v471, %v470
  %v473 = vmul.f32 0.5, %v472
  %v474 = vsub.f32 1.5, %v473
  %v475 = vmul.f32 %v470, %v474
  %vm476 = vweird.f32 %v469
  %vm477 = vweird.f32 %v470
  %vm478 = vmor %vm476, %vm477
  %v479 = vsel %vm478, %v470, %v475
  %v480 = vmul.f32 %v465, %v479
  %v481 = vmul.f32 %v466, %v479
  %v482 = vmul.f32 %v467, %v479
  %v483 = vmul.f32 %v468, %v479
  %v484 = vld [vmem:[%s3] sm:$0xff]
  %486 = vset.pattern.permute.xlu0 0
  %487 = vperm.xlu0 %486, %v484
  %v488 = vpop.permute.xlu0 %487
  %v490 = vmul.f32 %v480, %v488
  %v491 = vmul.f32 %v481, %v488
  %v492 = vmul.f32 %v482, %v488
  %v493 = vmul.f32 %v483, %v488
  %v494 = vld [vmem:[%s4] sm:$0xff]
  %496 = vset.pattern.permute.xlu0 0
  %497 = vperm.xlu0 %496, %v494
  %v498 = vpop.permute.xlu0 %497
  %v500 = vadd.f32 %v490, %v498
  %v501 = vadd.f32 %v491, %v498
  %v502 = vadd.f32 %v492, %v498
  %v503 = vadd.f32 %v493, %v498
  %vm504 = vcmp.ge.f32.partialorder %v500, 0.0
  %vm505 = vcmp.ge.f32.partialorder %v501, 0.0
  %vm506 = vcmp.ge.f32.partialorder %v502, 0.0
  %vm507 = vcmp.ge.f32.partialorder %v503, 0.0
  %v508 = vld [vmem:[#allocation2] sm:$0x1]
  %v510 = vperm.slane %v508, 0
  %511 = vset.pattern.permute.xlu0 0
  %512 = vperm.xlu0 %511, %v510
  %v513 = vpop.permute.xlu0 %512
  %v515 = vmul.f32 %v513, %v500
  %v516 = vmul.f32 %v513, %v501
  %v517 = vmul.f32 %v513, %v502
  %v518 = vmul.f32 %v513, %v503
  %v519 = vsel %vm504, %v500, %v515
  %v520 = vsel %vm505, %v501, %v516
  %v521 = vsel %vm506, %v502, %v517
  %v522 = vsel %vm507, %v503, %v518
  %523 = vst [vmem:[%s6] sm:$0xff] %v519
  %524 = vst [vmem:[%s6 + $0x8] sm:$0xff] %v520
  %525 = vst [vmem:[%s6 + $0x10] sm:$0xff] %v521
  %526 = vst.msk [vmem:[%s6 + $0x18] sm:$0xff] %vm194, %v522
  // Predicated region
  $region26: #{dccrn_forward.15} parent=0 // pred_check
    _
  $region27: #{dccrn_forward.15} parent=0 // pred_check_branch
    %528 = sbr.rel (0) target = $region29
  $region28: #{dccrn_forward.15} parent=0 // pred_region
    _
  $region29: #{dccrn_forward.15} parent=0 // pred_fallthru
    _
  // Predicated region
  $region30: #{dccrn_forward.15} parent=0 // pred_check
    _
  $region31: #{dccrn_forward.15} parent=0 // pred_check_branch
    %530 = sbr.rel (0) target = $region33
  $region32: #{dccrn_forward.15} parent=0 // pred_region
    _
  $region33: #{dccrn_forward.15} parent=0 // pred_fallthru
    _

// kernel: dccrn_forward.16
$region0: #{dccrn_forward.16}
  #allocation0 [shape = 'u32[]', space=smem, size = 0x4, offset = 0x4, fixed_abs, tag = 'smem constant byte address 0x4 - core index']
  #allocation1 [shape = 'u32[72,128]{1,0:T(1,128)}', space=vmem, size = 0x9000, scoped, tag = 'internal scratch']
  %s0 = inlined_call_operand.vmem [shape: f32[2,160], index: 0, kind: input, shape index: {}]
  %s1 = inlined_call_operand.vmem [shape: f32[160,896], index: 1, kind: input, shape index: {}]
  %s2 = inlined_call_operand.vmem [shape: f32[2,1], index: 2, kind: input, shape index: {}]
  %s3 = inlined_call_operand.vmem [shape: f32[2,896], index: 3, kind: output, shape index: {}]
  %s4 = sld [smem:[#allocation0]]
  $region22: #{dccrn_forward.16} parent=0
    _
  %s6 = ssub.s32 1, %s4
  %s7 = scalar_select 0, %s6, %s4
  // Predicated region
  $region2: #{dccrn_forward.16} parent=0 // pred_check
    _
  $region3: #{dccrn_forward.16} parent=0 // pred_check_branch
    %9 = sbr.rel (0) target = $region5
  $region4: #{dccrn_forward.16} parent=0 // pred_region
    _
  $region5: #{dccrn_forward.16} parent=0 // pred_fallthru
    _
  // Predicated region
  $region6: #{dccrn_forward.16} parent=0 // pred_check
    _
  $region7: #{dccrn_forward.16} parent=0 // pred_check_branch
    %11 = sbr.rel (0) target = $region9
  $region8: #{dccrn_forward.16} parent=0 // pred_region
    _
  $region9: #{dccrn_forward.16} parent=0 // pred_fallthru
    _
  // Predicated region
  $region10: #{dccrn_forward.16} parent=0 // pred_check
    _
  $region11: #{dccrn_forward.16} parent=0 // pred_check_branch
    %13 = sbr.rel (0) target = $region13
  $region12: #{dccrn_forward.16} parent=0 // pred_region
    _
  $region13: #{dccrn_forward.16} parent=0 // pred_fallthru
    _
  %v14 = vld [vmem:[%s0] sm:$0xf]
  %v15 = vld [vmem:[%s1] sm:$0xff]
  %v16 = vld [vmem:[%s1 + $0x8] sm:$0xff]
  %v17 = vld [vmem:[%s1 + $0x10] sm:$0xff]
  %v18 = vld [vmem:[%s1 + $0x18] sm:$0xff]
  %v19 = vld [vmem:[%s1 + $0x20] sm:$0xff]
  %v20 = vld [vmem:[%s1 + $0x28] sm:$0xff]
  %v21 = vld [vmem:[%s1 + $0x30] sm:$0xff]
  %v22 = vld [vmem:[%s1 + $0x38] sm:$0xff]
  %v23 = vld [vmem:[%s1 + $0x40] sm:$0xff]
  %v24 = vld [vmem:[%s1 + $0x48] sm:$0xff]
  %v25 = vld [vmem:[%s1 + $0x50] sm:$0xff]
  %v26 = vld [vmem:[%s1 + $0x58] sm:$0xff]
  %v27 = vld [vmem:[%s1 + $0x60] sm:$0xff]
  %v28 = vld [vmem:[%s1 + $0x68] sm:$0xff]
  %v29 = vld [vmem:[%s1 + $0x70] sm:$0xff]
  %v30 = vld [vmem:[%s1 + $0x78] sm:$0xff]
  %v31 = vld [vmem:[%s1 + $0x80] sm:$0xff]
  %v32 = vld [vmem:[%s1 + $0x88] sm:$0xff]
  %v33 = vld [vmem:[%s1 + $0x90] sm:$0xff]
  %v34 = vld [vmem:[%s1 + $0x98] sm:$0xff]
  %v35 = vld [vmem:[%s1 + $0xa0] sm:$0xff]
  %v36 = vld [vmem:[%s1 + $0xa8] sm:$0xff]
  %v37 = vld [vmem:[%s1 + $0xb0] sm:$0xff]
  %v38 = vld [vmem:[%s1 + $0xb8] sm:$0xff]
  %v39 = vld [vmem:[%s1 + $0xc0] sm:$0xff]
  %v40 = vld [vmem:[%s1 + $0xc8] sm:$0xff]
  %v41 = vld [vmem:[%s1 + $0xd0] sm:$0xff]
  %v42 = vld [vmem:[%s1 + $0xd8] sm:$0xff]
  %v43 = vld [vmem:[%s1 + $0xe0] sm:$0xff]
  %v44 = vld [vmem:[%s1 + $0xe8] sm:$0xff]
  %v45 = vld [vmem:[%s1 + $0xf0] sm:$0xff]
  %v46 = vld [vmem:[%s1 + $0xf8] sm:$0xff]
  %v47 = vld [vmem:[%s1 + $0x100] sm:$0xff]
  %v48 = vld [vmem:[%s1 + $0x108] sm:$0xff]
  %v49 = vld [vmem:[%s1 + $0x110] sm:$0xff]
  %v50 = vld [vmem:[%s1 + $0x118] sm:$0xff]
  %v51 = vld [vmem:[%s1 + $0x120] sm:$0xff]
  %v52 = vld [vmem:[%s1 + $0x128] sm:$0xff]
  %v53 = vld [vmem:[%s1 + $0x130] sm:$0xff]
  %v54 = vld [vmem:[%s1 + $0x138] sm:$0xff]
  %v55 = vld [vmem:[%s1 + $0x140] sm:$0xff]
  %v56 = vld [vmem:[%s1 + $0x148] sm:$0xff]
  %v57 = vld [vmem:[%s1 + $0x150] sm:$0xff]
  %v58 = vld [vmem:[%s1 + $0x158] sm:$0xff]
  %v59 = vld [vmem:[%s1 + $0x160] sm:$0xff]
  %v60 = vld [vmem:[%s1 + $0x168] sm:$0xff]
  %v61 = vld [vmem:[%s1 + $0x170] sm:$0xff]
  %v62 = vld [vmem:[%s1 + $0x178] sm:$0xff]
  %v63 = vld [vmem:[%s1 + $0x180] sm:$0xff]
  %v64 = vld [vmem:[%s1 + $0x188] sm:$0xff]
  %v65 = vld [vmem:[%s1 + $0x190] sm:$0xff]
  %v66 = vld [vmem:[%s1 + $0x198] sm:$0xff]
  %v67 = vld [vmem:[%s1 + $0x1a0] sm:$0xff]
  %v68 = vld [vmem:[%s1 + $0x1a8] sm:$0xff]
  %v69 = vld [vmem:[%s1 + $0x1b0] sm:$0xff]
  %v70 = vld [vmem:[%s1 + $0x1b8] sm:$0xff]
  %v71 = vld [vmem:[%s1 + $0x1c0] sm:$0xff]
  %v72 = vld [vmem:[%s1 + $0x1c8] sm:$0xff]
  %v73 = vld [vmem:[%s1 + $0x1d0] sm:$0xff]
  %v74 = vld [vmem:[%s1 + $0x1d8] sm:$0xff]
  %v75 = vld [vmem:[%s1 + $0x1e0] sm:$0xff]
  %v76 = vld [vmem:[%s1 + $0x1e8] sm:$0xff]
  %v77 = vld [vmem:[%s1 + $0x1f0] sm:$0xff]
  %v78 = vld [vmem:[%s1 + $0x1f8] sm:$0xff]
  %v79 = vld [vmem:[%s1 + $0x200] sm:$0xff]
  %v80 = vld [vmem:[%s1 + $0x208] sm:$0xff]
  %v81 = vld [vmem:[%s1 + $0x210] sm:$0xff]
  %v82 = vld [vmem:[%s1 + $0x218] sm:$0xff]
  %v83 = vld [vmem:[%s1 + $0x220] sm:$0xff]
  %v84 = vld [vmem:[%s1 + $0x228] sm:$0xff]
  %v85 = vld [vmem:[%s1 + $0x230] sm:$0xff]
  %v86 = vld [vmem:[%s1 + $0x238] sm:$0xff]
  %v87 = vld [vmem:[%s1 + $0x240] sm:$0xff]
  %v88 = vld [vmem:[%s1 + $0x248] sm:$0xff]
  %v89 = vld [vmem:[%s1 + $0x250] sm:$0xff]
  %v90 = vld [vmem:[%s1 + $0x258] sm:$0xff]
  %v91 = vld [vmem:[%s1 + $0x260] sm:$0xff]
  %v92 = vld [vmem:[%s1 + $0x268] sm:$0xff]
  %v93 = vld [vmem:[%s1 + $0x270] sm:$0xff]
  %v94 = vld [vmem:[%s1 + $0x278] sm:$0xff]
  %v95 = vld [vmem:[%s1 + $0x280] sm:$0xff]
  %v96 = vld [vmem:[%s1 + $0x288] sm:$0xff]
  %v97 = vld [vmem:[%s1 + $0x290] sm:$0xff]
  %v98 = vld [vmem:[%s1 + $0x298] sm:$0xff]
  %v99 = vld [vmem:[%s1 + $0x2a0] sm:$0xff]
  %v100 = vld [vmem:[%s1 + $0x2a8] sm:$0xff]
  %v101 = vld [vmem:[%s1 + $0x2b0] sm:$0xff]
  %v102 = vld [vmem:[%s1 + $0x2b8] sm:$0xff]
  %v103 = vld [vmem:[%s1 + $0x2c0] sm:$0xff]
  %v104 = vld [vmem:[%s1 + $0x2c8] sm:$0xff]
  %v105 = vld [vmem:[%s1 + $0x2d0] sm:$0xff]
  %v106 = vld [vmem:[%s1 + $0x2d8] sm:$0xff]
  %v107 = vld [vmem:[%s1 + $0x2e0] sm:$0xff]
  %v108 = vld [vmem:[%s1 + $0x2e8] sm:$0xff]
  %v109 = vld [vmem:[%s1 + $0x2f0] sm:$0xff]
  %v110 = vld [vmem:[%s1 + $0x2f8] sm:$0xff]
  %v111 = vld [vmem:[%s1 + $0x300] sm:$0xff]
  %v112 = vld [vmem:[%s1 + $0x308] sm:$0xff]
  %v113 = vld [vmem:[%s1 + $0x310] sm:$0xff]
  %v114 = vld [vmem:[%s1 + $0x318] sm:$0xff]
  %v115 = vld [vmem:[%s1 + $0x320] sm:$0xff]
  %v116 = vld [vmem:[%s1 + $0x328] sm:$0xff]
  %v117 = vld [vmem:[%s1 + $0x330] sm:$0xff]
  %v118 = vld [vmem:[%s1 + $0x338] sm:$0xff]
  %v119 = vld [vmem:[%s1 + $0x340] sm:$0xff]
  %v120 = vld [vmem:[%s1 + $0x348] sm:$0xff]
  %v121 = vld [vmem:[%s1 + $0x350] sm:$0xff]
  %v122 = vld [vmem:[%s1 + $0x358] sm:$0xff]
  %v123 = vld [vmem:[%s1 + $0x360] sm:$0xff]
  %v124 = vld [vmem:[%s1 + $0x368] sm:$0xff]
  %v125 = vld [vmem:[%s1 + $0x370] sm:$0xff]
  %v126 = vld [vmem:[%s1 + $0x378] sm:$0xff]
  %v127 = vld [vmem:[%s1 + $0x380] sm:$0xff]
  %v128 = vld [vmem:[%s1 + $0x388] sm:$0xff]
  %v129 = vld [vmem:[%s1 + $0x390] sm:$0xff]
  %v130 = vld [vmem:[%s1 + $0x398] sm:$0xff]
  %v131 = vld [vmem:[%s1 + $0x3a0] sm:$0xff]
  %v132 = vld [vmem:[%s1 + $0x3a8] sm:$0xff]
  %v133 = vld [vmem:[%s1 + $0x3b0] sm:$0xff]
  %v134 = vld [vmem:[%s1 + $0x3b8] sm:$0xff]
  %v135 = vld [vmem:[%s1 + $0x3c0] sm:$0xff]
  %v136 = vld [vmem:[%s1 + $0x3c8] sm:$0xff]
  %v137 = vld [vmem:[%s1 + $0x3d0] sm:$0xff]
  %v138 = vld [vmem:[%s1 + $0x3d8] sm:$0xff]
  %v139 = vld [vmem:[%s1 + $0x3e0] sm:$0xff]
  %v140 = vld [vmem:[%s1 + $0x3e8] sm:$0xff]
  %v141 = vld [vmem:[%s1 + $0x3f0] sm:$0xff]
  %v142 = vld [vmem:[%s1 + $0x3f8] sm:$0xff]
  %v143 = vld [vmem:[%s1 + $0x400] sm:$0xff]
  %v144 = vld [vmem:[%s1 + $0x408] sm:$0xff]
  %v145 = vld [vmem:[%s1 + $0x410] sm:$0xff]
  %v146 = vld [vmem:[%s1 + $0x418] sm:$0xff]
  %v147 = vld [vmem:[%s1 + $0x420] sm:$0xff]
  %v148 = vld [vmem:[%s1 + $0x428] sm:$0xff]
  %v149 = vld [vmem:[%s1 + $0x430] sm:$0xff]
  %v150 = vld [vmem:[%s1 + $0x438] sm:$0xff]
  %v151 = vld [vmem:[%s1 + $0x440] sm:$0xff]
  %v152 = vld [vmem:[%s1 + $0x448] sm:$0xff]
  %v153 = vld [vmem:[%s1 + $0x450] sm:$0xff]
  %v154 = vld [vmem:[%s1 + $0x458] sm:$0xff]
  %v155 = vld [vmem:[%s2] sm:$0x3]
  %157 = vset.pattern.permute.xlu0 0
  %158 = vperm.xlu0 %157, %v155
  %v159 = vpop.permute.xlu0 %158
  %162 = vst [vmem:[#allocation1] ss:$4 sm:$0xff] %v14
  %v163 = vld.sshfl [vmem:[#allocation1] sm:$0xff pattern:$0x73625140]
  %v164 = vld.sshfl [vmem:[#allocation1 + $0x8] sm:$0xff pattern:$0x73625140]
  %vm166 = vcmask 261120
  %v167 = vsel %vm166, %v164, 0
  %169 = vmatpush.msra.mxu0 %v120
  %170 = vmatpush.msra.mxu0 %v113
  %171 = vmatpush.msra.mxu0 %v106
  %172 = vmatpush.msra.mxu0 %v99
  %173 = vmatpush.msra.mxu0 %v92
  %174 = vmatpush.msra.mxu0 %v85
  %175 = vmatpush.msra.mxu0 %v78
  %176 = vmatpush.msra.mxu0 %v71
  %177 = vmatpush.msra.mxu0 %v64
  %178 = vmatpush.msra.mxu0 %v57
  %179 = vmatpush.msra.mxu0 %v50
  %180 = vmatpush.msra.mxu0 %v43
  %181 = vmatpush.msra.mxu0 %v36
  %182 = vmatpush.msra.mxu0 %v29
  %183 = vmatpush.msra.mxu0 %v22
  %184 = vmatpush.msra.mxu0 %v15
  %185 = vmatmul.f32.gmra.mxu0 %v163
  %v186 = vpop.f32.mrf.mxu0
  %v187 = vadd.f32 %v159, %v186
  %188 = vdwg.mxu0
  %189 = vmatpush.msra.mxu0 0.0
  %190 = vmatpush.msra.mxu0 0.0
  %191 = vmatpush.msra.mxu0 0.0
  %192 = vmatpush.msra.mxu0 0.0
  %193 = vmatpush.msra.mxu0 0.0
  %194 = vmatpush.msra.mxu0 0.0
  %195 = vmatpush.msra.mxu0 0.0
  %196 = vmatpush.msra.mxu0 0.0
  %197 = vmatpush.msra.mxu0 0.0
  %198 = vmatpush.msra.mxu0 0.0
  %199 = vmatpush.msra.mxu0 0.0
  %200 = vmatpush.msra.mxu0 0.0
  %201 = vmatpush.msra.mxu0 %v148
  %202 = vmatpush.msra.mxu0 %v141
  %203 = vmatpush.msra.mxu0 %v134
  %204 = vmatpush.msra.mxu0 %v127
  %205 = vmatmul.f32.gmra.mxu0 %v167
  %v206 = vpop.f32.mrf.mxu0
  %v207 = vadd.f32 %v187, %v206
  %208 = vdwg.mxu0
  %209 = vmatpush.msra.mxu0 %v121
  %210 = vmatpush.msra.mxu0 %v114
  %211 = vmatpush.msra.mxu0 %v107
  %212 = vmatpush.msra.mxu0 %v100
  %213 = vmatpush.msra.mxu0 %v93
  %214 = vmatpush.msra.mxu0 %v86
  %215 = vmatpush.msra.mxu0 %v79
  %216 = vmatpush.msra.mxu0 %v72
  %217 = vmatpush.msra.mxu0 %v65
  %218 = vmatpush.msra.mxu0 %v58
  %219 = vmatpush.msra.mxu0 %v51
  %220 = vmatpush.msra.mxu0 %v44
  %221 = vmatpush.msra.mxu0 %v37
  %222 = vmatpush.msra.mxu0 %v30
  %223 = vmatpush.msra.mxu0 %v23
  %224 = vmatpush.msra.mxu0 %v16
  %225 = vmatmul.f32.gmra.mxu0 %v163
  %v226 = vpop.f32.mrf.mxu0
  %v227 = vadd.f32 %v159, %v226
  %228 = vdwg.mxu0
  %229 = vmatpush.msra.mxu0 0.0
  %230 = vmatpush.msra.mxu0 0.0
  %231 = vmatpush.msra.mxu0 0.0
  %232 = vmatpush.msra.mxu0 0.0
  %233 = vmatpush.msra.mxu0 0.0
  %234 = vmatpush.msra.mxu0 0.0
  %235 = vmatpush.msra.mxu0 0.0
  %236 = vmatpush.msra.mxu0 0.0
  %237 = vmatpush.msra.mxu0 0.0
  %238 = vmatpush.msra.mxu0 0.0
  %239 = vmatpush.msra.mxu0 0.0
  %240 = vmatpush.msra.mxu0 0.0
  %241 = vmatpush.msra.mxu0 %v149
  %242 = vmatpush.msra.mxu0 %v142
  %243 = vmatpush.msra.mxu0 %v135
  %244 = vmatpush.msra.mxu0 %v128
  %245 = vmatmul.f32.gmra.mxu0 %v167
  %v246 = vpop.f32.mrf.mxu0
  %v247 = vadd.f32 %v227, %v246
  %248 = vdwg.mxu0
  %249 = vmatpush.msra.mxu0 %v122
  %250 = vmatpush.msra.mxu0 %v115
  %251 = vmatpush.msra.mxu0 %v108
  %252 = vmatpush.msra.mxu0 %v101
  %253 = vmatpush.msra.mxu0 %v94
  %254 = vmatpush.msra.mxu0 %v87
  %255 = vmatpush.msra.mxu0 %v80
  %256 = vmatpush.msra.mxu0 %v73
  %257 = vmatpush.msra.mxu0 %v66
  %258 = vmatpush.msra.mxu0 %v59
  %259 = vmatpush.msra.mxu0 %v52
  %260 = vmatpush.msra.mxu0 %v45
  %261 = vmatpush.msra.mxu0 %v38
  %262 = vmatpush.msra.mxu0 %v31
  %263 = vmatpush.msra.mxu0 %v24
  %264 = vmatpush.msra.mxu0 %v17
  %265 = vmatmul.f32.gmra.mxu0 %v163
  %v266 = vpop.f32.mrf.mxu0
  %v267 = vadd.f32 %v159, %v266
  %268 = vdwg.mxu0
  %269 = vmatpush.msra.mxu0 0.0
  %270 = vmatpush.msra.mxu0 0.0
  %271 = vmatpush.msra.mxu0 0.0
  %272 = vmatpush.msra.mxu0 0.0
  %273 = vmatpush.msra.mxu0 0.0
  %274 = vmatpush.msra.mxu0 0.0
  %275 = vmatpush.msra.mxu0 0.0
  %276 = vmatpush.msra.mxu0 0.0
  %277 = vmatpush.msra.mxu0 0.0
  %278 = vmatpush.msra.mxu0 0.0
  %279 = vmatpush.msra.mxu0 0.0
  %280 = vmatpush.msra.mxu0 0.0
  %281 = vmatpush.msra.mxu0 %v150
  %282 = vmatpush.msra.mxu0 %v143
  %283 = vmatpush.msra.mxu0 %v136
  %284 = vmatpush.msra.mxu0 %v129
  %285 = vmatmul.f32.gmra.mxu0 %v167
  %v286 = vpop.f32.mrf.mxu0
  %v287 = vadd.f32 %v267, %v286
  %288 = vdwg.mxu0
  %289 = vmatpush.msra.mxu0 %v123
  %290 = vmatpush.msra.mxu0 %v116
  %291 = vmatpush.msra.mxu0 %v109
  %292 = vmatpush.msra.mxu0 %v102
  %293 = vmatpush.msra.mxu0 %v95
  %294 = vmatpush.msra.mxu0 %v88
  %295 = vmatpush.msra.mxu0 %v81
  %296 = vmatpush.msra.mxu0 %v74
  %297 = vmatpush.msra.mxu0 %v67
  %298 = vmatpush.msra.mxu0 %v60
  %299 = vmatpush.msra.mxu0 %v53
  %300 = vmatpush.msra.mxu0 %v46
  %301 = vmatpush.msra.mxu0 %v39
  %302 = vmatpush.msra.mxu0 %v32
  %303 = vmatpush.msra.mxu0 %v25
  %304 = vmatpush.msra.mxu0 %v18
  %305 = vmatmul.f32.gmra.mxu0 %v163
  %v306 = vpop.f32.mrf.mxu0
  %v307 = vadd.f32 %v159, %v306
  %308 = vdwg.mxu0
  %309 = vmatpush.msra.mxu0 0.0
  %310 = vmatpush.msra.mxu0 0.0
  %311 = vmatpush.msra.mxu0 0.0
  %312 = vmatpush.msra.mxu0 0.0
  %313 = vmatpush.msra.mxu0 0.0
  %314 = vmatpush.msra.mxu0 0.0
  %315 = vmatpush.msra.mxu0 0.0
  %316 = vmatpush.msra.mxu0 0.0
  %317 = vmatpush.msra.mxu0 0.0
  %318 = vmatpush.msra.mxu0 0.0
  %319 = vmatpush.msra.mxu0 0.0
  %320 = vmatpush.msra.mxu0 0.0
  %321 = vmatpush.msra.mxu0 %v151
  %322 = vmatpush.msra.mxu0 %v144
  %323 = vmatpush.msra.mxu0 %v137
  %324 = vmatpush.msra.mxu0 %v130
  %325 = vmatmul.f32.gmra.mxu0 %v167
  %v326 = vpop.f32.mrf.mxu0
  %v327 = vadd.f32 %v307, %v326
  %328 = vdwg.mxu0
  %329 = vmatpush.msra.mxu0 %v124
  %330 = vmatpush.msra.mxu0 %v117
  %331 = vmatpush.msra.mxu0 %v110
  %332 = vmatpush.msra.mxu0 %v103
  %333 = vmatpush.msra.mxu0 %v96
  %334 = vmatpush.msra.mxu0 %v89
  %335 = vmatpush.msra.mxu0 %v82
  %336 = vmatpush.msra.mxu0 %v75
  %337 = vmatpush.msra.mxu0 %v68
  %338 = vmatpush.msra.mxu0 %v61
  %339 = vmatpush.msra.mxu0 %v54
  %340 = vmatpush.msra.mxu0 %v47
  %341 = vmatpush.msra.mxu0 %v40
  %342 = vmatpush.msra.mxu0 %v33
  %343 = vmatpush.msra.mxu0 %v26
  %344 = vmatpush.msra.mxu0 %v19
  %345 = vmatmul.f32.gmra.mxu0 %v163
  %v346 = vpop.f32.mrf.mxu0
  %v347 = vadd.f32 %v159, %v346
  %348 = vdwg.mxu0
  %349 = vmatpush.msra.mxu0 0.0
  %350 = vmatpush.msra.mxu0 0.0
  %351 = vmatpush.msra.mxu0 0.0
  %352 = vmatpush.msra.mxu0 0.0
  %353 = vmatpush.msra.mxu0 0.0
  %354 = vmatpush.msra.mxu0 0.0
  %355 = vmatpush.msra.mxu0 0.0
  %356 = vmatpush.msra.mxu0 0.0
  %357 = vmatpush.msra.mxu0 0.0
  %358 = vmatpush.msra.mxu0 0.0
  %359 = vmatpush.msra.mxu0 0.0
  %360 = vmatpush.msra.mxu0 0.0
  %361 = vmatpush.msra.mxu0 %v152
  %362 = vmatpush.msra.mxu0 %v145
  %363 = vmatpush.msra.mxu0 %v138
  %364 = vmatpush.msra.mxu0 %v131
  %365 = vmatmul.f32.gmra.mxu0 %v167
  %v366 = vpop.f32.mrf.mxu0
  %v367 = vadd.f32 %v347, %v366
  %368 = vdwg.mxu0
  %369 = vmatpush.msra.mxu0 %v125
  %370 = vmatpush.msra.mxu0 %v118
  %371 = vmatpush.msra.mxu0 %v111
  %372 = vmatpush.msra.mxu0 %v104
  %373 = vmatpush.msra.mxu0 %v97
  %374 = vmatpush.msra.mxu0 %v90
  %375 = vmatpush.msra.mxu0 %v83
  %376 = vmatpush.msra.mxu0 %v76
  %377 = vmatpush.msra.mxu0 %v69
  %378 = vmatpush.msra.mxu0 %v62
  %379 = vmatpush.msra.mxu0 %v55
  %380 = vmatpush.msra.mxu0 %v48
  %381 = vmatpush.msra.mxu0 %v41
  %382 = vmatpush.msra.mxu0 %v34
  %383 = vmatpush.msra.mxu0 %v27
  %384 = vmatpush.msra.mxu0 %v20
  %385 = vmatmul.f32.gmra.mxu0 %v163
  %v386 = vpop.f32.mrf.mxu0
  %v387 = vadd.f32 %v159, %v386
  %388 = vdwg.mxu0
  %389 = vmatpush.msra.mxu0 0.0
  %390 = vmatpush.msra.mxu0 0.0
  %391 = vmatpush.msra.mxu0 0.0
  %392 = vmatpush.msra.mxu0 0.0
  %393 = vmatpush.msra.mxu0 0.0
  %394 = vmatpush.msra.mxu0 0.0
  %395 = vmatpush.msra.mxu0 0.0
  %396 = vmatpush.msra.mxu0 0.0
  %397 = vmatpush.msra.mxu0 0.0
  %398 = vmatpush.msra.mxu0 0.0
  %399 = vmatpush.msra.mxu0 0.0
  %400 = vmatpush.msra.mxu0 0.0
  %401 = vmatpush.msra.mxu0 %v153
  %402 = vmatpush.msra.mxu0 %v146
  %403 = vmatpush.msra.mxu0 %v139
  %404 = vmatpush.msra.mxu0 %v132
  %405 = vmatmul.f32.gmra.mxu0 %v167
  %v406 = vpop.f32.mrf.mxu0
  %v407 = vadd.f32 %v387, %v406
  %408 = vdwg.mxu0
  %409 = vmatpush.msra.mxu0 %v126
  %410 = vmatpush.msra.mxu0 %v119
  %411 = vmatpush.msra.mxu0 %v112
  %412 = vmatpush.msra.mxu0 %v105
  %413 = vmatpush.msra.mxu0 %v98
  %414 = vmatpush.msra.mxu0 %v91
  %415 = vmatpush.msra.mxu0 %v84
  %416 = vmatpush.msra.mxu0 %v77
  %417 = vmatpush.msra.mxu0 %v70
  %418 = vmatpush.msra.mxu0 %v63
  %419 = vmatpush.msra.mxu0 %v56
  %420 = vmatpush.msra.mxu0 %v49
  %421 = vmatpush.msra.mxu0 %v42
  %422 = vmatpush.msra.mxu0 %v35
  %423 = vmatpush.msra.mxu0 %v28
  %424 = vmatpush.msra.mxu0 %v21
  %425 = vmatmul.f32.gmra.mxu0 %v163
  %v426 = vpop.f32.mrf.mxu0
  %v427 = vadd.f32 %v159, %v426
  %428 = vdwg.mxu0
  %429 = vmatpush.msra.mxu0 0.0
  %430 = vmatpush.msra.mxu0 0.0
  %431 = vmatpush.msra.mxu0 0.0
  %432 = vmatpush.msra.mxu0 0.0
  %433 = vmatpush.msra.mxu0 0.0
  %434 = vmatpush.msra.mxu0 0.0
  %435 = vmatpush.msra.mxu0 0.0
  %436 = vmatpush.msra.mxu0 0.0
  %437 = vmatpush.msra.mxu0 0.0
  %438 = vmatpush.msra.mxu0 0.0
  %439 = vmatpush.msra.mxu0 0.0
  %440 = vmatpush.msra.mxu0 0.0
  %441 = vmatpush.msra.mxu0 %v154
  %442 = vmatpush.msra.mxu0 %v147
  %443 = vmatpush.msra.mxu0 %v140
  %444 = vmatpush.msra.mxu0 %v133
  %445 = vmatmul.f32.gmra.mxu0 %v167
  %v446 = vpop.f32.mrf.mxu0
  %v447 = vadd.f32 %v427, %v446
  %448 = vdwg.mxu0
  %v456 = vrot.slane %v247, 6
  %v457 = vrot.slane %v287, 4
  %v458 = vrot.slane %v327, 2
  %v459 = vrot.slane %v407, 6
  %v460 = vrot.slane %v447, 4
  %vm461 = vcmask 1041408
  %v462 = vsel %vm461, %v207, %v456
  %vm463 = vcmask 1045508
  %v464 = vsel %vm463, %v457, %v458
  %vm465 = vcmask 1043456
  %v466 = vsel %vm465, %v462, %v464
  %v467 = vsel %vm461, %v367, %v459
  %v468 = vsel %vm465, %v467, %v460
  %471 = vst [vmem:[%s3] sm:$0xff] %v466
  %472 = vst [vmem:[%s3 + $0x8] sm:$0x3f] %v468
  // Predicated region
  $region14: #{dccrn_forward.16} parent=0 // pred_check
    _
  $region15: #{dccrn_forward.16} parent=0 // pred_check_branch
    %474 = sbr.rel (0) target = $region17
  $region16: #{dccrn_forward.16} parent=0 // pred_region
    _
  $region17: #{dccrn_forward.16} parent=0 // pred_fallthru
    _
  // Predicated region
  $region18: #{dccrn_forward.16} parent=0 // pred_check
    _
  $region19: #{dccrn_forward.16} parent=0 // pred_check_branch
    %476 = sbr.rel (0) target = $region21
  $region20: #{dccrn_forward.16} parent=0 // pred_region
    _
  $region21: #{dccrn_forward.16} parent=0 // pred_fallthru
    _

// kernel: dccrn_forward.17
$region0: #{dccrn_forward.17}
  #allocation0 [shape = 'u32[]', space=smem, size = 0x4, offset = 0x4, fixed_abs, tag = 'smem constant byte address 0x4 - core index']
  #allocation1 [shape = 'u32[72,128]{1,0:T(1,128)}', space=vmem, size = 0x9000, scoped, tag = 'internal scratch']
  %s0 = inlined_call_operand.vmem [shape: f32[2,858], index: 0, kind: input, shape index: {}]
  %s1 = inlined_call_operand.vmem [shape: f32[858,160], index: 1, kind: input, shape index: {}]
  %s2 = inlined_call_operand.hbm [shape: f32[2,160], index: 2, kind: output, shape index: {}]
  %s3 = sld [smem:[#allocation0]]
  $region18: #{dccrn_forward.17} parent=0
    _
  %s5 = ssub.s32 1, %s3
  %s6 = scalar_select 0, %s5, %s3
  $region1: #{dccrn_forward.17} parent=0
    #allocation2 [shape = 'u8[2048]{0}', space=vmem, size = 0x800, scoped, tag = 'output window, operand 0, single buffered']
    #allocation3 [shape = 's32[1]{0}', space=sflag, size = 0x4, scoped, tag = 'scoped memory for dccrn_forward.17']
    %7 = vsyncpa [#allocation3], 0
    // Predicated region
    $region2: #{dccrn_forward.17} parent=1 // pred_check
      _
    $region3: #{dccrn_forward.17} parent=1 // pred_check_branch
      %9 = sbr.rel (0) target = $region5
    $region4: #{dccrn_forward.17} parent=1 // pred_region
      _
    $region5: #{dccrn_forward.17} parent=1 // pred_fallthru
      _
    // Predicated region
    $region6: #{dccrn_forward.17} parent=1 // pred_check
      _
    $region7: #{dccrn_forward.17} parent=1 // pred_check_branch
      %11 = sbr.rel (0) target = $region9
    $region8: #{dccrn_forward.17} parent=1 // pred_region
      _
    $region9: #{dccrn_forward.17} parent=1 // pred_fallthru
      _
    %v12 = vld [vmem:[%s0] sm:$0xff]
    %v13 = vld [vmem:[%s0 + $0x8] sm:$0x3f]
    %v14 = vld [vmem:[%s1] sm:$0xff]
    %v15 = vld [vmem:[%s1 + $0x8] sm:$0xff]
    %v16 = vld [vmem:[%s1 + $0x10] sm:$0xff]
    %v17 = vld [vmem:[%s1 + $0x18] sm:$0xff]
    %v18 = vld [vmem:[%s1 + $0x20] sm:$0xff]
    %v19 = vld [vmem:[%s1 + $0x28] sm:$0xff]
    %v20 = vld [vmem:[%s1 + $0x30] sm:$0xff]
    %v21 = vld [vmem:[%s1 + $0x38] sm:$0xff]
    %v22 = vld [vmem:[%s1 + $0x40] sm:$0xff]
    %v23 = vld [vmem:[%s1 + $0x48] sm:$0xff]
    %v24 = vld [vmem:[%s1 + $0x50] sm:$0xff]
    %v25 = vld [vmem:[%s1 + $0x58] sm:$0xff]
    %v26 = vld [vmem:[%s1 + $0x60] sm:$0xff]
    %v27 = vld [vmem:[%s1 + $0x68] sm:$0xff]
    %v28 = vld [vmem:[%s1 + $0x70] sm:$0xff]
    %v29 = vld [vmem:[%s1 + $0x78] sm:$0xff]
    %v30 = vld [vmem:[%s1 + $0x80] sm:$0xff]
    %v31 = vld [vmem:[%s1 + $0x88] sm:$0xff]
    %v32 = vld [vmem:[%s1 + $0x90] sm:$0xff]
    %v33 = vld [vmem:[%s1 + $0x98] sm:$0xff]
    %v34 = vld [vmem:[%s1 + $0xa0] sm:$0xff]
    %v35 = vld [vmem:[%s1 + $0xa8] sm:$0xff]
    %v36 = vld [vmem:[%s1 + $0xb0] sm:$0xff]
    %v37 = vld [vmem:[%s1 + $0xb8] sm:$0xff]
    %v38 = vld [vmem:[%s1 + $0xc0] sm:$0xff]
    %v39 = vld [vmem:[%s1 + $0xc8] sm:$0xff]
    %v40 = vld [vmem:[%s1 + $0xd0] sm:$0xff]
    %v41 = vld [vmem:[%s1 + $0xd8] sm:$0xff]
    %v42 = vld [vmem:[%s1 + $0xe0] sm:$0xff]
    %v43 = vld [vmem:[%s1 + $0xe8] sm:$0xff]
    %v44 = vld [vmem:[%s1 + $0xf0] sm:$0xff]
    %v45 = vld [vmem:[%s1 + $0xf8] sm:$0xff]
    %v46 = vld [vmem:[%s1 + $0x100] sm:$0xff]
    %v47 = vld [vmem:[%s1 + $0x108] sm:$0xff]
    %v48 = vld [vmem:[%s1 + $0x110] sm:$0xff]
    %v49 = vld [vmem:[%s1 + $0x118] sm:$0xff]
    %v50 = vld [vmem:[%s1 + $0x120] sm:$0xff]
    %v51 = vld [vmem:[%s1 + $0x128] sm:$0xff]
    %v52 = vld [vmem:[%s1 + $0x130] sm:$0xff]
    %v53 = vld [vmem:[%s1 + $0x138] sm:$0xff]
    %v54 = vld [vmem:[%s1 + $0x140] sm:$0xff]
    %v55 = vld [vmem:[%s1 + $0x148] sm:$0xff]
    %v56 = vld [vmem:[%s1 + $0x150] sm:$0xff]
    %v57 = vld [vmem:[%s1 + $0x158] sm:$0xff]
    %v58 = vld [vmem:[%s1 + $0x160] sm:$0xff]
    %v59 = vld [vmem:[%s1 + $0x168] sm:$0xff]
    %v60 = vld [vmem:[%s1 + $0x170] sm:$0xff]
    %v61 = vld [vmem:[%s1 + $0x178] sm:$0xff]
    %v62 = vld [vmem:[%s1 + $0x180] sm:$0xff]
    %v63 = vld [vmem:[%s1 + $0x188] sm:$0xff]
    %v64 = vld [vmem:[%s1 + $0x190] sm:$0xff]
    %v65 = vld [vmem:[%s1 + $0x198] sm:$0xff]
    %v66 = vld [vmem:[%s1 + $0x1a0] sm:$0xff]
    %v67 = vld [vmem:[%s1 + $0x1a8] sm:$0xff]
    %v68 = vld [vmem:[%s1 + $0x1b0] sm:$0xff]
    %v69 = vld [vmem:[%s1 + $0x1b8] sm:$0xff]
    %v70 = vld [vmem:[%s1 + $0x1c0] sm:$0xff]
    %v71 = vld [vmem:[%s1 + $0x1c8] sm:$0xff]
    %v72 = vld [vmem:[%s1 + $0x1d0] sm:$0xff]
    %v73 = vld [vmem:[%s1 + $0x1d8] sm:$0xff]
    %v74 = vld [vmem:[%s1 + $0x1e0] sm:$0xff]
    %v75 = vld [vmem:[%s1 + $0x1e8] sm:$0xff]
    %v76 = vld [vmem:[%s1 + $0x1f0] sm:$0xff]
    %v77 = vld [vmem:[%s1 + $0x1f8] sm:$0xff]
    %v78 = vld [vmem:[%s1 + $0x200] sm:$0xff]
    %v79 = vld [vmem:[%s1 + $0x208] sm:$0xff]
    %v80 = vld [vmem:[%s1 + $0x210] sm:$0xff]
    %v81 = vld [vmem:[%s1 + $0x218] sm:$0xff]
    %v82 = vld [vmem:[%s1 + $0x220] sm:$0xff]
    %v83 = vld [vmem:[%s1 + $0x228] sm:$0xff]
    %v84 = vld [vmem:[%s1 + $0x230] sm:$0xff]
    %v85 = vld [vmem:[%s1 + $0x238] sm:$0xff]
    %v86 = vld [vmem:[%s1 + $0x240] sm:$0xff]
    %v87 = vld [vmem:[%s1 + $0x248] sm:$0xff]
    %v88 = vld [vmem:[%s1 + $0x250] sm:$0xff]
    %v89 = vld [vmem:[%s1 + $0x258] sm:$0xff]
    %v90 = vld [vmem:[%s1 + $0x260] sm:$0xff]
    %v91 = vld [vmem:[%s1 + $0x268] sm:$0xff]
    %v92 = vld [vmem:[%s1 + $0x270] sm:$0xff]
    %v93 = vld [vmem:[%s1 + $0x278] sm:$0xff]
    %v94 = vld [vmem:[%s1 + $0x280] sm:$0xff]
    %v95 = vld [vmem:[%s1 + $0x288] sm:$0xff]
    %v96 = vld [vmem:[%s1 + $0x290] sm:$0xff]
    %v97 = vld [vmem:[%s1 + $0x298] sm:$0xff]
    %v98 = vld [vmem:[%s1 + $0x2a0] sm:$0xff]
    %v99 = vld [vmem:[%s1 + $0x2a8] sm:$0xff]
    %v100 = vld [vmem:[%s1 + $0x2b0] sm:$0xff]
    %v101 = vld [vmem:[%s1 + $0x2b8] sm:$0xff]
    %v102 = vld [vmem:[%s1 + $0x2c0] sm:$0xff]
    %v103 = vld [vmem:[%s1 + $0x2c8] sm:$0xff]
    %v104 = vld [vmem:[%s1 + $0x2d0] sm:$0xff]
    %v105 = vld [vmem:[%s1 + $0x2d8] sm:$0xff]
    %v106 = vld [vmem:[%s1 + $0x2e0] sm:$0xff]
    %v107 = vld [vmem:[%s1 + $0x2e8] sm:$0xff]
    %v108 = vld [vmem:[%s1 + $0x2f0] sm:$0xff]
    %v109 = vld [vmem:[%s1 + $0x2f8] sm:$0xff]
    %v110 = vld [vmem:[%s1 + $0x300] sm:$0xff]
    %v111 = vld [vmem:[%s1 + $0x308] sm:$0xff]
    %v112 = vld [vmem:[%s1 + $0x310] sm:$0xff]
    %v113 = vld [vmem:[%s1 + $0x318] sm:$0xff]
    %v114 = vld [vmem:[%s1 + $0x320] sm:$0xff]
    %v115 = vld [vmem:[%s1 + $0x328] sm:$0xff]
    %v116 = vld [vmem:[%s1 + $0x330] sm:$0xff]
    %v117 = vld [vmem:[%s1 + $0x338] sm:$0xff]
    %v118 = vld [vmem:[%s1 + $0x340] sm:$0xff]
    %v119 = vld [vmem:[%s1 + $0x348] sm:$0xff]
    %v120 = vld [vmem:[%s1 + $0x350] sm:$0xff]
    %v121 = vld [vmem:[%s1 + $0x358] sm:$0xff]
    %v122 = vld [vmem:[%s1 + $0x360] sm:$0xff]
    %v123 = vld [vmem:[%s1 + $0x368] sm:$0xff]
    %v124 = vld [vmem:[%s1 + $0x370] sm:$0xff]
    %v125 = vld [vmem:[%s1 + $0x378] sm:$0xff]
    %v126 = vld [vmem:[%s1 + $0x380] sm:$0xff]
    %v127 = vld [vmem:[%s1 + $0x388] sm:$0xff]
    %v128 = vld [vmem:[%s1 + $0x390] sm:$0xff]
    %v129 = vld [vmem:[%s1 + $0x398] sm:$0xff]
    %v130 = vld [vmem:[%s1 + $0x3a0] sm:$0xff]
    %v131 = vld [vmem:[%s1 + $0x3a8] sm:$0xff]
    %v132 = vld [vmem:[%s1 + $0x3b0] sm:$0xff]
    %v133 = vld [vmem:[%s1 + $0x3b8] sm:$0xff]
    %v134 = vld [vmem:[%s1 + $0x3c0] sm:$0xff]
    %v135 = vld [vmem:[%s1 + $0x3c8] sm:$0xff]
    %v136 = vld [vmem:[%s1 + $0x3d0] sm:$0xff]
    %v137 = vld [vmem:[%s1 + $0x3d8] sm:$0xff]
    %v138 = vld [vmem:[%s1 + $0x3e0] sm:$0xff]
    %v139 = vld [vmem:[%s1 + $0x3e8] sm:$0xff]
    %v140 = vld [vmem:[%s1 + $0x3f0] sm:$0xff]
    %v141 = vld [vmem:[%s1 + $0x3f8] sm:$0xff]
    %v142 = vld [vmem:[%s1 + $0x400] sm:$0xff]
    %v143 = vld [vmem:[%s1 + $0x408] sm:$0xff]
    %v144 = vld [vmem:[%s1 + $0x410] sm:$0xff]
    %v145 = vld [vmem:[%s1 + $0x418] sm:$0xff]
    %v146 = vld [vmem:[%s1 + $0x420] sm:$0xff]
    %v147 = vld [vmem:[%s1 + $0x428] sm:$0xff]
    %v148 = vld [vmem:[%s1 + $0x430] sm:$0xff]
    %v149 = vld [vmem:[%s1 + $0x438] sm:$0xff]
    %v150 = vld [vmem:[%s1 + $0x440] sm:$0xff]
    %v151 = vld [vmem:[%s1 + $0x448] sm:$0xff]
    %v152 = vld [vmem:[%s1 + $0x450] sm:$0xff]
    %v153 = vld [vmem:[%s1 + $0x458] sm:$0xff]
    %v154 = vld [vmem:[%s1 + $0x460] sm:$0xff]
    %v155 = vld [vmem:[%s1 + $0x468] sm:$0xff]
    %v156 = vld [vmem:[%s1 + $0x470] sm:$0xff]
    %v157 = vld [vmem:[%s1 + $0x478] sm:$0xff]
    %v158 = vld [vmem:[%s1 + $0x480] sm:$0xff]
    %v159 = vld [vmem:[%s1 + $0x488] sm:$0xff]
    %v160 = vld [vmem:[%s1 + $0x490] sm:$0xff]
    %v161 = vld [vmem:[%s1 + $0x498] sm:$0xff]
    %v162 = vld [vmem:[%s1 + $0x4a0] sm:$0xff]
    %v163 = vld [vmem:[%s1 + $0x4a8] sm:$0xff]
    %v164 = vld [vmem:[%s1 + $0x4b0] sm:$0xff]
    %v165 = vld [vmem:[%s1 + $0x4b8] sm:$0xff]
    %v166 = vld [vmem:[%s1 + $0x4c0] sm:$0xff]
    %v167 = vld [vmem:[%s1 + $0x4c8] sm:$0xff]
    %v168 = vld [vmem:[%s1 + $0x4d0] sm:$0xff]
    %v169 = vld [vmem:[%s1 + $0x4d8] sm:$0xff]
    %v170 = vld [vmem:[%s1 + $0x4e0] sm:$0xff]
    %v171 = vld [vmem:[%s1 + $0x4e8] sm:$0xff]
    %v172 = vld [vmem:[%s1 + $0x4f0] sm:$0xff]
    %v173 = vld [vmem:[%s1 + $0x4f8] sm:$0xff]
    %v174 = vld [vmem:[%s1 + $0x500] sm:$0xff]
    %v175 = vld [vmem:[%s1 + $0x508] sm:$0xff]
    %v176 = vld [vmem:[%s1 + $0x510] sm:$0xff]
    %v177 = vld [vmem:[%s1 + $0x518] sm:$0xff]
    %v178 = vld [vmem:[%s1 + $0x520] sm:$0xff]
    %v179 = vld [vmem:[%s1 + $0x528] sm:$0xff]
    %v180 = vld [vmem:[%s1 + $0x530] sm:$0xff]
    %v181 = vld [vmem:[%s1 + $0x538] sm:$0xff]
    %v182 = vld [vmem:[%s1 + $0x540] sm:$0xff]
    %v183 = vld [vmem:[%s1 + $0x548] sm:$0xff]
    %v184 = vld [vmem:[%s1 + $0x550] sm:$0xff]
    %v185 = vld [vmem:[%s1 + $0x558] sm:$0xff]
    %v186 = vld [vmem:[%s1 + $0x560] sm:$0xff]
    %v187 = vld [vmem:[%s1 + $0x568] sm:$0xff]
    %v188 = vld [vmem:[%s1 + $0x570] sm:$0xff]
    %v189 = vld [vmem:[%s1 + $0x578] sm:$0xff]
    %v190 = vld [vmem:[%s1 + $0x580] sm:$0xff]
    %v191 = vld [vmem:[%s1 + $0x588] sm:$0xff]
    %v192 = vld [vmem:[%s1 + $0x590] sm:$0xff]
    %v193 = vld [vmem:[%s1 + $0x598] sm:$0xff]
    %v194 = vld [vmem:[%s1 + $0x5a0] sm:$0xff]
    %v195 = vld [vmem:[%s1 + $0x5a8] sm:$0xff]
    %v196 = vld [vmem:[%s1 + $0x5b0] sm:$0xff]
    %v197 = vld [vmem:[%s1 + $0x5b8] sm:$0xff]
    %v198 = vld [vmem:[%s1 + $0x5c0] sm:$0xff]
    %v199 = vld [vmem:[%s1 + $0x5c8] sm:$0xff]
    %v200 = vld [vmem:[%s1 + $0x5d0] sm:$0xff]
    %v201 = vld [vmem:[%s1 + $0x5d8] sm:$0xff]
    %v202 = vld [vmem:[%s1 + $0x5e0] sm:$0xff]
    %v203 = vld [vmem:[%s1 + $0x5e8] sm:$0xff]
    %v204 = vld [vmem:[%s1 + $0x5f0] sm:$0xff]
    %v205 = vld [vmem:[%s1 + $0x5f8] sm:$0xff]
    %v206 = vld [vmem:[%s1 + $0x600] sm:$0xff]
    %v207 = vld [vmem:[%s1 + $0x608] sm:$0xff]
    %v208 = vld [vmem:[%s1 + $0x610] sm:$0xff]
    %v209 = vld [vmem:[%s1 + $0x618] sm:$0xff]
    %v210 = vld [vmem:[%s1 + $0x620] sm:$0xff]
    %v211 = vld [vmem:[%s1 + $0x628] sm:$0xff]
    %v212 = vld [vmem:[%s1 + $0x630] sm:$0xff]
    %v213 = vld [vmem:[%s1 + $0x638] sm:$0xff]
    %v214 = vld [vmem:[%s1 + $0x640] sm:$0xff]
    %v215 = vld [vmem:[%s1 + $0x648] sm:$0xff]
    %v216 = vld [vmem:[%s1 + $0x650] sm:$0xff]
    %v217 = vld [vmem:[%s1 + $0x658] sm:$0xff]
    %v218 = vld [vmem:[%s1 + $0x660] sm:$0xff]
    %v219 = vld [vmem:[%s1 + $0x668] sm:$0xff]
    %v220 = vld [vmem:[%s1 + $0x670] sm:$0xff]
    %v221 = vld [vmem:[%s1 + $0x678] sm:$0xff]
    %v222 = vld [vmem:[%s1 + $0x680] sm:$0xff]
    %v223 = vld [vmem:[%s1 + $0x688] sm:$0xff]
    %v224 = vld [vmem:[%s1 + $0x690] sm:$0xff]
    %v225 = vld [vmem:[%s1 + $0x698] sm:$0xff]
    %v226 = vld [vmem:[%s1 + $0x6a0] sm:$0xff]
    %v227 = vld [vmem:[%s1 + $0x6a8] sm:$0xff]
    %v228 = vld [vmem:[%s1 + $0x6b0] sm:$0x3]
    %v229 = vld [vmem:[%s1 + $0x6b8] sm:$0x3]
    %232 = vst [vmem:[#allocation1] ss:$4 sm:$0xff] %v12
    %s233 = scalar_lea.vmem [#allocation1], 32
    %234 = vst [vmem:[%s233] ss:$4 sm:$0xff] %v13
    %v235 = vld.sshfl [vmem:[#allocation1] sm:$0xff pattern:$0x73625140]
    %v236 = vld.sshfl [vmem:[#allocation1 + $0x8] sm:$0xff pattern:$0x73625140]
    %v237 = vld.sshfl [vmem:[#allocation1 + $0x10] sm:$0xff pattern:$0x73625140]
    %v238 = vld.sshfl [vmem:[#allocation1 + $0x18] sm:$0xff pattern:$0x73625140]
    %v239 = vld.sshfl [vmem:[#allocation1 + $0x20] sm:$0xff pattern:$0x73625140]
    %v240 = vld.sshfl [vmem:[#allocation1 + $0x28] sm:$0xff pattern:$0x73625140]
    %v241 = vld.sshfl [vmem:[#allocation1 + $0x30] sm:$0xff pattern:$0x73625140]
    %vm248 = vcmask 736256
    %v249 = vsel %vm248, %v241, 0
    %vm251 = vcmask 1041408
    %v253 = vsel %vm251, %v228, 0
    %v256 = vsel %vm251, %v229, 0
    %258 = vmatpush.msra.mxu0 %v44
    %259 = vmatpush.msra.mxu0 %v42
    %260 = vmatpush.msra.mxu0 %v40
    %261 = vmatpush.msra.mxu0 %v38
    %262 = vmatpush.msra.mxu0 %v36
    %263 = vmatpush.msra.mxu0 %v34
    %264 = vmatpush.msra.mxu0 %v32
    %265 = vmatpush.msra.mxu0 %v30
    %266 = vmatpush.msra.mxu0 %v28
    %267 = vmatpush.msra.mxu0 %v26
    %268 = vmatpush.msra.mxu0 %v24
    %269 = vmatpush.msra.mxu0 %v22
    %270 = vmatpush.msra.mxu0 %v20
    %271 = vmatpush.msra.mxu0 %v18
    %272 = vmatpush.msra.mxu0 %v16
    %273 = vmatpush.msra.mxu0 %v14
    %274 = vmatmul.f32.gmra.mxu0 %v235
    %v275 = vpop.f32.mrf.mxu0
    %v276 = vadd.f32 0.0, %v275
    %277 = vdwg.mxu0
    %278 = vmatpush.msra.mxu0 %v76
    %279 = vmatpush.msra.mxu0 %v74
    %280 = vmatpush.msra.mxu0 %v72
    %281 = vmatpush.msra.mxu0 %v70
    %282 = vmatpush.msra.mxu0 %v68
    %283 = vmatpush.msra.mxu0 %v66
    %284 = vmatpush.msra.mxu0 %v64
    %285 = vmatpush.msra.mxu0 %v62
    %286 = vmatpush.msra.mxu0 %v60
    %287 = vmatpush.msra.mxu0 %v58
    %288 = vmatpush.msra.mxu0 %v56
    %289 = vmatpush.msra.mxu0 %v54
    %290 = vmatpush.msra.mxu0 %v52
    %291 = vmatpush.msra.mxu0 %v50
    %292 = vmatpush.msra.mxu0 %v48
    %293 = vmatpush.msra.mxu0 %v46
    %294 = vmatmul.f32.gmra.mxu0 %v236
    %v295 = vpop.f32.mrf.mxu0
    %v296 = vadd.f32 %v276, %v295
    %297 = vdwg.mxu0
    %298 = vmatpush.msra.mxu0 %v108
    %299 = vmatpush.msra.mxu0 %v106
    %300 = vmatpush.msra.mxu0 %v104
    %301 = vmatpush.msra.mxu0 %v102
    %302 = vmatpush.msra.mxu0 %v100
    %303 = vmatpush.msra.mxu0 %v98
    %304 = vmatpush.msra.mxu0 %v96
    %305 = vmatpush.msra.mxu0 %v94
    %306 = vmatpush.msra.mxu0 %v92
    %307 = vmatpush.msra.mxu0 %v90
    %308 = vmatpush.msra.mxu0 %v88
    %309 = vmatpush.msra.mxu0 %v86
    %310 = vmatpush.msra.mxu0 %v84
    %311 = vmatpush.msra.mxu0 %v82
    %312 = vmatpush.msra.mxu0 %v80
    %313 = vmatpush.msra.mxu0 %v78
    %314 = vmatmul.f32.gmra.mxu0 %v237
    %v315 = vpop.f32.mrf.mxu0
    %v316 = vadd.f32 %v296, %v315
    %317 = vdwg.mxu0
    %318 = vmatpush.msra.mxu0 %v140
    %319 = vmatpush.msra.mxu0 %v138
    %320 = vmatpush.msra.mxu0 %v136
    %321 = vmatpush.msra.mxu0 %v134
    %322 = vmatpush.msra.mxu0 %v132
    %323 = vmatpush.msra.mxu0 %v130
    %324 = vmatpush.msra.mxu0 %v128
    %325 = vmatpush.msra.mxu0 %v126
    %326 = vmatpush.msra.mxu0 %v124
    %327 = vmatpush.msra.mxu0 %v122
    %328 = vmatpush.msra.mxu0 %v120
    %329 = vmatpush.msra.mxu0 %v118
    %330 = vmatpush.msra.mxu0 %v116
    %331 = vmatpush.msra.mxu0 %v114
    %332 = vmatpush.msra.mxu0 %v112
    %333 = vmatpush.msra.mxu0 %v110
    %334 = vmatmul.f32.gmra.mxu0 %v238
    %v335 = vpop.f32.mrf.mxu0
    %v336 = vadd.f32 %v316, %v335
    %337 = vdwg.mxu0
    %338 = vmatpush.msra.mxu0 %v172
    %339 = vmatpush.msra.mxu0 %v170
    %340 = vmatpush.msra.mxu0 %v168
    %341 = vmatpush.msra.mxu0 %v166
    %342 = vmatpush.msra.mxu0 %v164
    %343 = vmatpush.msra.mxu0 %v162
    %344 = vmatpush.msra.mxu0 %v160
    %345 = vmatpush.msra.mxu0 %v158
    %346 = vmatpush.msra.mxu0 %v156
    %347 = vmatpush.msra.mxu0 %v154
    %348 = vmatpush.msra.mxu0 %v152
    %349 = vmatpush.msra.mxu0 %v150
    %350 = vmatpush.msra.mxu0 %v148
    %351 = vmatpush.msra.mxu0 %v146
    %352 = vmatpush.msra.mxu0 %v144
    %353 = vmatpush.msra.mxu0 %v142
    %354 = vmatmul.f32.gmra.mxu0 %v239
    %v355 = vpop.f32.mrf.mxu0
    %v356 = vadd.f32 %v336, %v355
    %357 = vdwg.mxu0
    %358 = vmatpush.msra.mxu0 %v204
    %359 = vmatpush.msra.mxu0 %v202
    %360 = vmatpush.msra.mxu0 %v200
    %361 = vmatpush.msra.mxu0 %v198
    %362 = vmatpush.msra.mxu0 %v196
    %363 = vmatpush.msra.mxu0 %v194
    %364 = vmatpush.msra.mxu0 %v192
    %365 = vmatpush.msra.mxu0 %v190
    %366 = vmatpush.msra.mxu0 %v188
    %367 = vmatpush.msra.mxu0 %v186
    %368 = vmatpush.msra.mxu0 %v184
    %369 = vmatpush.msra.mxu0 %v182
    %370 = vmatpush.msra.mxu0 %v180
    %371 = vmatpush.msra.mxu0 %v178
    %372 = vmatpush.msra.mxu0 %v176
    %373 = vmatpush.msra.mxu0 %v174
    %374 = vmatmul.f32.gmra.mxu0 %v240
    %v375 = vpop.f32.mrf.mxu0
    %v376 = vadd.f32 %v356, %v375
    %377 = vdwg.mxu0
    %378 = vmatpush.msra.mxu0 0.0
    %379 = vmatpush.msra.mxu0 0.0
    %380 = vmatpush.msra.mxu0 0.0
    %381 = vmatpush.msra.mxu0 0.0
    %382 = vmatpush.msra.mxu0 %v253
    %383 = vmatpush.msra.mxu0 %v226
    %384 = vmatpush.msra.mxu0 %v224
    %385 = vmatpush.msra.mxu0 %v222
    %386 = vmatpush.msra.mxu0 %v220
    %387 = vmatpush.msra.mxu0 %v218
    %388 = vmatpush.msra.mxu0 %v216
    %389 = vmatpush.msra.mxu0 %v214
    %390 = vmatpush.msra.mxu0 %v212
    %391 = vmatpush.msra.mxu0 %v210
    %392 = vmatpush.msra.mxu0 %v208
    %393 = vmatpush.msra.mxu0 %v206
    %394 = vmatmul.f32.gmra.mxu0 %v249
    %v395 = vpop.f32.mrf.mxu0
    %v396 = vadd.f32 %v376, %v395
    %397 = vdwg.mxu0
    %398 = vmatpush.msra.mxu0 %v45
    %399 = vmatpush.msra.mxu0 %v43
    %400 = vmatpush.msra.mxu0 %v41
    %401 = vmatpush.msra.mxu0 %v39
    %402 = vmatpush.msra.mxu0 %v37
    %403 = vmatpush.msra.mxu0 %v35
    %404 = vmatpush.msra.mxu0 %v33
    %405 = vmatpush.msra.mxu0 %v31
    %406 = vmatpush.msra.mxu0 %v29
    %407 = vmatpush.msra.mxu0 %v27
    %408 = vmatpush.msra.mxu0 %v25
    %409 = vmatpush.msra.mxu0 %v23
    %410 = vmatpush.msra.mxu0 %v21
    %411 = vmatpush.msra.mxu0 %v19
    %412 = vmatpush.msra.mxu0 %v17
    %413 = vmatpush.msra.mxu0 %v15
    %414 = vmatmul.f32.gmra.mxu0 %v235
    %v415 = vpop.f32.mrf.mxu0
    %v416 = vadd.f32 0.0, %v415
    %417 = vdwg.mxu0
    %418 = vmatpush.msra.mxu0 %v77
    %419 = vmatpush.msra.mxu0 %v75
    %420 = vmatpush.msra.mxu0 %v73
    %421 = vmatpush.msra.mxu0 %v71
    %422 = vmatpush.msra.mxu0 %v69
    %423 = vmatpush.msra.mxu0 %v67
    %424 = vmatpush.msra.mxu0 %v65
    %425 = vmatpush.msra.mxu0 %v63
    %426 = vmatpush.msra.mxu0 %v61
    %427 = vmatpush.msra.mxu0 %v59
    %428 = vmatpush.msra.mxu0 %v57
    %429 = vmatpush.msra.mxu0 %v55
    %430 = vmatpush.msra.mxu0 %v53
    %431 = vmatpush.msra.mxu0 %v51
    %432 = vmatpush.msra.mxu0 %v49
    %433 = vmatpush.msra.mxu0 %v47
    %434 = vmatmul.f32.gmra.mxu0 %v236
    %v435 = vpop.f32.mrf.mxu0
    %v436 = vadd.f32 %v416, %v435
    %437 = vdwg.mxu0
    %438 = vmatpush.msra.mxu0 %v109
    %439 = vmatpush.msra.mxu0 %v107
    %440 = vmatpush.msra.mxu0 %v105
    %441 = vmatpush.msra.mxu0 %v103
    %442 = vmatpush.msra.mxu0 %v101
    %443 = vmatpush.msra.mxu0 %v99
    %444 = vmatpush.msra.mxu0 %v97
    %445 = vmatpush.msra.mxu0 %v95
    %446 = vmatpush.msra.mxu0 %v93
    %447 = vmatpush.msra.mxu0 %v91
    %448 = vmatpush.msra.mxu0 %v89
    %449 = vmatpush.msra.mxu0 %v87
    %450 = vmatpush.msra.mxu0 %v85
    %451 = vmatpush.msra.mxu0 %v83
    %452 = vmatpush.msra.mxu0 %v81
    %453 = vmatpush.msra.mxu0 %v79
    %454 = vmatmul.f32.gmra.mxu0 %v237
    %v455 = vpop.f32.mrf.mxu0
    %v456 = vadd.f32 %v436, %v455
    %457 = vdwg.mxu0
    %458 = vmatpush.msra.mxu0 %v141
    %459 = vmatpush.msra.mxu0 %v139
    %460 = vmatpush.msra.mxu0 %v137
    %461 = vmatpush.msra.mxu0 %v135
    %462 = vmatpush.msra.mxu0 %v133
    %463 = vmatpush.msra.mxu0 %v131
    %464 = vmatpush.msra.mxu0 %v129
    %465 = vmatpush.msra.mxu0 %v127
    %466 = vmatpush.msra.mxu0 %v125
    %467 = vmatpush.msra.mxu0 %v123
    %468 = vmatpush.msra.mxu0 %v121
    %469 = vmatpush.msra.mxu0 %v119
    %470 = vmatpush.msra.mxu0 %v117
    %471 = vmatpush.msra.mxu0 %v115
    %472 = vmatpush.msra.mxu0 %v113
    %473 = vmatpush.msra.mxu0 %v111
    %474 = vmatmul.f32.gmra.mxu0 %v238
    %v475 = vpop.f32.mrf.mxu0
    %v476 = vadd.f32 %v456, %v475
    %477 = vdwg.mxu0
    %478 = vmatpush.msra.mxu0 %v173
    %479 = vmatpush.msra.mxu0 %v171
    %480 = vmatpush.msra.mxu0 %v169
    %481 = vmatpush.msra.mxu0 %v167
    %482 = vmatpush.msra.mxu0 %v165
    %483 = vmatpush.msra.mxu0 %v163
    %484 = vmatpush.msra.mxu0 %v161
    %485 = vmatpush.msra.mxu0 %v159
    %486 = vmatpush.msra.mxu0 %v157
    %487 = vmatpush.msra.mxu0 %v155
    %488 = vmatpush.msra.mxu0 %v153
    %489 = vmatpush.msra.mxu0 %v151
    %490 = vmatpush.msra.mxu0 %v149
    %491 = vmatpush.msra.mxu0 %v147
    %492 = vmatpush.msra.mxu0 %v145
    %493 = vmatpush.msra.mxu0 %v143
    %494 = vmatmul.f32.gmra.mxu0 %v239
    %v495 = vpop.f32.mrf.mxu0
    %v496 = vadd.f32 %v476, %v495
    %497 = vdwg.mxu0
    %498 = vmatpush.msra.mxu0 %v205
    %499 = vmatpush.msra.mxu0 %v203
    %500 = vmatpush.msra.mxu0 %v201
    %501 = vmatpush.msra.mxu0 %v199
    %502 = vmatpush.msra.mxu0 %v197
    %503 = vmatpush.msra.mxu0 %v195
    %504 = vmatpush.msra.mxu0 %v193
    %505 = vmatpush.msra.mxu0 %v191
    %506 = vmatpush.msra.mxu0 %v189
    %507 = vmatpush.msra.mxu0 %v187
    %508 = vmatpush.msra.mxu0 %v185
    %509 = vmatpush.msra.mxu0 %v183
    %510 = vmatpush.msra.mxu0 %v181
    %511 = vmatpush.msra.mxu0 %v179
    %512 = vmatpush.msra.mxu0 %v177
    %513 = vmatpush.msra.mxu0 %v175
    %514 = vmatmul.f32.gmra.mxu0 %v240
    %v515 = vpop.f32.mrf.mxu0
    %v516 = vadd.f32 %v496, %v515
    %517 = vdwg.mxu0
    %518 = vmatpush.msra.mxu0 0.0
    %519 = vmatpush.msra.mxu0 0.0
    %520 = vmatpush.msra.mxu0 0.0
    %521 = vmatpush.msra.mxu0 0.0
    %522 = vmatpush.msra.mxu0 %v256
    %523 = vmatpush.msra.mxu0 %v227
    %524 = vmatpush.msra.mxu0 %v225
    %525 = vmatpush.msra.mxu0 %v223
    %526 = vmatpush.msra.mxu0 %v221
    %527 = vmatpush.msra.mxu0 %v219
    %528 = vmatpush.msra.mxu0 %v217
    %529 = vmatpush.msra.mxu0 %v215
    %530 = vmatpush.msra.mxu0 %v213
    %531 = vmatpush.msra.mxu0 %v211
    %532 = vmatpush.msra.mxu0 %v209
    %533 = vmatpush.msra.mxu0 %v207
    %534 = vmatmul.f32.gmra.mxu0 %v249
    %v535 = vpop.f32.mrf.mxu0
    %v536 = vadd.f32 %v516, %v535
    %537 = vdwg.mxu0
    %v538 = vmax.f32 %v396, -1.0
    %v539 = vmax.f32 %v536, -1.0
    %v540 = vmin.f32 %v538, 1.0
    %v541 = vmin.f32 %v539, 1.0
    %v544 = vrot.slane %v541, 6
    %v545 = vsel %vm251, %v540, %v544
    %vm547 = vcmask 257026
    %vm548 = vmor %vm547, %vm251
    %549 = vst.msk [vmem:[#allocation2] sm:$0xf] %vm548, %v545
    // Predicated region
    $region10: #{dccrn_forward.17} parent=1 // pred_check
      _
    $region11: #{dccrn_forward.17} parent=1 // pred_check_branch
      %551 = sbr.rel (0) target = $region13
    $region12: #{dccrn_forward.17} parent=1 // pred_region
      %553 = vsyncadd [#allocation3], 0
      %s555 = sshll.u32 [#allocation2], 4
      %s556 = int_to_ptr.vmem [resolvable:$true] %s555
      %s557 = sshll.u32 %s2, 4
      %s558 = int_to_ptr.hbm [resolvable:$true] %s557
      %560 = dma.vmem_to_hbm [thread:$0]  %s556, 64, %s558, [#allocation3]
    $region13: #{dccrn_forward.17} parent=1 // pred_fallthru
      _
    // Predicated region
    $region14: #{dccrn_forward.17} parent=1 // pred_check
      _
    $region15: #{dccrn_forward.17} parent=1 // pred_check_branch
      %562 = sbr.rel (0) target = $region17
    $region16: #{dccrn_forward.17} parent=1 // pred_region
      %564 = dma.done [#allocation3], 64
    $region17: #{dccrn_forward.17} parent=1 // pred_fallthru
      _
    %565 = vsyncpa [#allocation3], 1

</llo_original>
